<compile_context>
chip_gen: v7x
topology: tpu7x:2x2x1
jax: 0.10.0
libtpu: 0.0.40
codegen_flags: <defaults>
</compile_context>

<pallas_src>
import numpy as np

import jax
import jax.numpy as jnp
from jax import lax
from jax.experimental import pallas as pl
from jax.experimental.pallas import tpu as pltpu

_EPS = 1e-5


# ----------------------------------------------------------------------------
# Host-side (one-time) lowering of conv / conv-transpose weights into dense
# per-layer linear operators and small BatchNorm helper matrices.
# ----------------------------------------------------------------------------
def _conv_matrix(w, hin, win, stride, pad):
    """Conv2d weight (Cout,Cin,kh,kw) -> A of shape (Cin*Hin*Win, Cout*Hout*Wout)."""
    w = np.asarray(w, np.float32)
    cout, cin, kh, kw = w.shape
    hout = (hin + 2 * pad - kh) // stride + 1
    wout = (win + 2 * pad - kw) // stride + 1
    a = np.zeros((cin, hin, win, cout, hout, wout), np.float32)
    for ho in range(hout):
        for wo in range(wout):
            for i in range(kh):
                for j in range(kw):
                    hi = stride * ho + i - pad
                    wi = stride * wo + j - pad
                    if 0 <= hi < hin and 0 <= wi < win:
                        a[:, hi, wi, :, ho, wo] += w[:, :, i, j].T
    return a.reshape(cin * hin * win, cout * hout * wout)


def _convT_matrix(w, hin, win, stride, pad):
    """ConvTranspose2d weight (Cin,Cout,kh,kw) -> A (Cin*Hin*Win, Cout*Hout*Wout)."""
    w = np.asarray(w, np.float32)
    cin, cout, kh, kw = w.shape
    hout = (hin - 1) * stride - 2 * pad + kh
    wout = (win - 1) * stride - 2 * pad + kw
    a = np.zeros((cin, hin, win, cout, hout, wout), np.float32)
    for hi in range(hin):
        for wi in range(win):
            for i in range(kh):
                for j in range(kw):
                    ho = stride * hi + i - pad
                    wo = stride * wi + j - pad
                    if 0 <= ho < hout and 0 <= wo < wout:
                        a[:, hi, wi, :, ho, wo] += w[:, :, i, j]
    return a.reshape(cin * hin * win, cout * hout * wout)


def _sum_rep(c, p):
    """Per-channel summation matrix (C*P, C) and replication matrix (C, C*P)."""
    s = np.kron(np.eye(c, dtype=np.float32), np.ones((p, 1), np.float32))
    return s, np.ascontiguousarray(s.T)


def _bias_rep(b, p):
    return np.repeat(np.asarray(b, np.float32), p)[None, :]


def prepare(params):
    """Turn raw (PyTorch-layout) parameters into the kernel's constant operands."""
    p = {k: np.asarray(v, np.float32) for k, v in params.items()}
    ops = []

    # conv1 (1->8, k3 s1 p1) on 16x16, split into the 4 MaxPool(2,2) phases.
    a1 = _conv_matrix(p["ew1"], 16, 16, 1, 1)                     # (256, 8*16*16)
    a1r = a1.reshape(a1.shape[0], 8, 16, 16)
    for a in range(2):
        for b in range(2):
            ops.append(np.ascontiguousarray(
                a1r[:, :, a::2, b::2].reshape(a1.shape[0], 8 * 8 * 8)))
    ops.append(_bias_rep(p["eb1"], 64))                           # (1, 512)
    s, r = _sum_rep(8, 64)
    ops += [s, r, p["eg1"][None, :], p["ebt1"][None, :]]

    # conv2 (8->16, k5 s2 p1): 8x8 -> 3x3
    ops += [_conv_matrix(p["ew2"], 8, 8, 2, 1), _bias_rep(p["eb2"], 9)]
    s, r = _sum_rep(16, 9)
    ops += [s, r, p["eg2"][None, :], p["ebt2"][None, :]]

    # conv3 (16->18, k5 s2 p1): 3x3 -> 1x1 (no activation)
    ops += [_conv_matrix(p["ew3"], 3, 3, 2, 1), _bias_rep(p["eb3"], 1)]

    # dconv1 (18->16, k5 s2 p1): 1x1 -> 3x3
    ops += [_convT_matrix(p["dw1"], 1, 1, 2, 1), _bias_rep(p["db1"], 9)]
    s, r = _sum_rep(16, 9)
    ops += [s, r, p["dg1"][None, :], p["dbt1"][None, :]]

    # dconv2 (16->8, k5 s2 p1): 3x3 -> 7x7 (no activation)
    ops += [_convT_matrix(p["dw2"], 3, 3, 2, 1), _bias_rep(p["db2"], 49)]

    # dconv3 (8->8, k2 s2 p0): 7x7 -> 14x14
    ops += [_convT_matrix(p["dw3"], 7, 7, 2, 0), _bias_rep(p["db3"], 196)]
    s, r = _sum_rep(8, 196)
    ops += [s, r, p["dg3"][None, :], p["dbt3"][None, :]]

    # dconv4 (8->1, k3 s1 p0): 14x14 -> 16x16 (no activation)
    ops += [_convT_matrix(p["dw4"], 14, 14, 1, 0), _bias_rep(p["db4"], 256)]

    return tuple(jnp.asarray(o, dtype=jnp.float32) for o in ops)


# ----------------------------------------------------------------------------
# The fused Pallas kernel (the entire forward pass).
# ----------------------------------------------------------------------------
def _leaky(v):
    return jnp.where(v >= 0.0, v, 0.1 * v)


def _bn(y, sum_ref, rep_ref, g_ref, b_ref, count):
    """Training-mode BatchNorm on a (N, C*P) lane-dense activation."""
    s1 = jnp.dot(jnp.sum(y, axis=0, keepdims=True), sum_ref[...],
                 preferred_element_type=jnp.float32)
    s2 = jnp.dot(jnp.sum(y * y, axis=0, keepdims=True), sum_ref[...],
                 preferred_element_type=jnp.float32)
    mean = s1 * (1.0 / count)
    var = jnp.maximum(s2 * (1.0 / count) - mean * mean, 0.0)
    inv = lax.rsqrt(var + _EPS)
    scale = g_ref[...] * inv
    shift = b_ref[...] - scale * mean
    scale_r = jnp.dot(scale, rep_ref[...], preferred_element_type=jnp.float32)
    shift_r = jnp.dot(shift, rep_ref[...], preferred_element_type=jnp.float32)
    return y * scale_r + shift_r


def _fwd_kernel(x_ref,
                a1_00, a1_01, a1_10, a1_11, b1, s1m, r1m, g1, be1,
                a2, b2, s2m, r2m, g2, be2,
                a3, b3,
                d1, db1, sd1m, rd1m, gd1, bed1,
                d2, db2,
                d3, db3, sd3m, rd3m, gd3, bed3,
                d4, db4,
                o_ref):
    n = x_ref.shape[0]
    x = x_ref[...]                                     # (N, 256)

    # ---- conv1 + LeakyReLU, computed per 2x2 pooling phase --------------
    phases = []
    for a_ref in (a1_00, a1_01, a1_10, a1_11):
        y = jnp.dot(x, a_ref[...], preferred_element_type=jnp.float32) + b1[...]
        phases.append(_leaky(y))                       # each (N, 8*8*8)

    # ---- BatchNorm2d(8) with batch stats over all N*16*16 positions -----
    s1 = jnp.zeros((1, 8), jnp.float32)
    s2 = jnp.zeros((1, 8), jnp.float32)
    for y in phases:
        s1 = s1 + jnp.dot(jnp.sum(y, axis=0, keepdims=True), s1m[...],
                          preferred_element_type=jnp.float32)
        s2 = s2 + jnp.dot(jnp.sum(y * y, axis=0, keepdims=True), s1m[...],
                          preferred_element_type=jnp.float32)
    count = float(n * 16 * 16)
    mean = s1 * (1.0 / count)
    var = jnp.maximum(s2 * (1.0 / count) - mean * mean, 0.0)
    inv = lax.rsqrt(var + _EPS)
    scale = g1[...] * inv
    shift = be1[...] - scale * mean
    scale_r = jnp.dot(scale, r1m[...], preferred_element_type=jnp.float32)
    shift_r = jnp.dot(shift, r1m[...], preferred_element_type=jnp.float32)
    phases = [y * scale_r + shift_r for y in phases]

    # ---- MaxPool2d(2,2): elementwise max over the 4 phases ---------------
    h = jnp.maximum(jnp.maximum(phases[0], phases[1]),
                    jnp.maximum(phases[2], phases[3]))  # (N, 8*8*8)

    # ---- conv2 + LeakyReLU + BN ------------------------------------------
    h = jnp.dot(h, a2[...], preferred_element_type=jnp.float32) + b2[...]
    h = _bn(_leaky(h), s2m, r2m, g2, be2, float(n * 9))        # (N, 144)

    # ---- conv3 (no activation) -------------------------------------------
    h = jnp.dot(h, a3[...], preferred_element_type=jnp.float32) + b3[...]   # (N, 18)

    # ---- dconv1 + LeakyReLU + BN -----------------------------------------
    h = jnp.dot(h, d1[...], preferred_element_type=jnp.float32) + db1[...]
    h = _bn(_leaky(h), sd1m, rd1m, gd1, bed1, float(n * 9))    # (N, 144)

    # ---- dconv2 (no activation) ------------------------------------------
    h = jnp.dot(h, d2[...], preferred_element_type=jnp.float32) + db2[...]  # (N, 392)

    # ---- dconv3 + LeakyReLU + BN -----------------------------------------
    h = jnp.dot(h, d3[...], preferred_element_type=jnp.float32) + db3[...]
    h = _bn(_leaky(h), sd3m, rd3m, gd3, bed3, float(n * 196))  # (N, 1568)

    # ---- dconv4 (no activation) ------------------------------------------
    h = jnp.dot(h, d4[...], preferred_element_type=jnp.float32) + db4[...]  # (N, 256)

    o_ref[...] = h


def elev_map_enc_dec(ops, x):
    """x: (N, 1, 16, 16) -> (N, 16, 16). One fused Pallas kernel."""
    n = x.shape[0]
    x_flat = x.reshape(n, 16 * 16)
    operands = (x_flat,) + tuple(ops)

    in_specs = [pl.BlockSpec(op.shape, lambda i: (0, 0)) for op in operands]
    total_elems = sum(int(o.size) for o in operands) + n * 256
    mat_flops = 2 * n * sum(int(o.shape[0]) * int(o.shape[1]) for o in ops)

    out = pl.pallas_call(
        _fwd_kernel,
        out_shape=jax.ShapeDtypeStruct((n, 16 * 16), jnp.float32),
        grid=(1,),
        in_specs=in_specs,
        out_specs=pl.BlockSpec((n, 16 * 16), lambda i: (0, 0)),
        compiler_params=pltpu.CompilerParams(
            dimension_semantics=("arbitrary",),
            vmem_limit_bytes=40 * 1024 * 1024),
        cost_estimate=pl.CostEstimate(
            flops=int(mat_flops),
            transcendentals=64,
            bytes_accessed=int(4 * total_elems)),
    )(*operands)
    return out.reshape(n, 16, 16)       # matches torch .squeeze() for N > 1


# ----------------------------------------------------------------------------
# Parameters (PyTorch-style layouts + kaiming init as in the module __init__).
# ----------------------------------------------------------------------------
def _kaiming_normal(key, shape):
    # nn.init.kaiming_normal_(w, mode='fan_in', nonlinearity='leaky_relu'):
    # default a=0  =>  gain = sqrt(2),  std = gain / sqrt(fan_in)
    fan_in = shape[1] * shape[2] * shape[3]
    std = (2.0 / fan_in) ** 0.5
    return std * jax.random.normal(key, shape, dtype=jnp.float32)


def _default_conv_uniform(key, shape):
    # PyTorch default kaiming_uniform_(a=sqrt(5)) => U(-1/sqrt(fan_in), ...)
    fan_in = shape[1] * shape[2] * shape[3]
    bound = 1.0 / (fan_in ** 0.5)
    return jax.random.uniform(key, shape, jnp.float32, -bound, bound)


def _bias(key, n, fan_in):
    bound = 1.0 / (fan_in ** 0.5)
    return jax.random.uniform(key, (n,), jnp.float32, -bound, bound)


def init_params(key):
    ks = jax.random.split(key, 16)
    p = {}
    # Encoder
    p["ew1"] = _kaiming_normal(ks[0], (8, 1, 3, 3));   p["eb1"] = _bias(ks[1], 8, 1 * 9)
    p["eg1"] = jnp.ones((8,), jnp.float32);            p["ebt1"] = jnp.zeros((8,), jnp.float32)
    p["ew2"] = _kaiming_normal(ks[2], (16, 8, 5, 5));  p["eb2"] = _bias(ks[3], 16, 8 * 25)
    p["eg2"] = jnp.ones((16,), jnp.float32);           p["ebt2"] = jnp.zeros((16,), jnp.float32)
    p["ew3"] = _kaiming_normal(ks[4], (18, 16, 5, 5)); p["eb3"] = _bias(ks[5], 18, 16 * 25)
    # Decoder (ConvTranspose weights in PyTorch (Cin, Cout, kh, kw) layout)
    p["dw1"] = _kaiming_normal(ks[6], (18, 16, 5, 5)); p["db1"] = _bias(ks[7], 16, 16 * 25)
    p["dg1"] = jnp.ones((16,), jnp.float32);           p["dbt1"] = jnp.zeros((16,), jnp.float32)
    p["dw2"] = _kaiming_normal(ks[8], (16, 8, 5, 5));  p["db2"] = _bias(ks[9], 8, 8 * 25)
    p["dw3"] = _default_conv_uniform(ks[10], (8, 8, 2, 2))   # map_decode[4]: default init
    p["db3"] = _bias(ks[11], 8, 8 * 4)
    p["dg3"] = jnp.ones((8,), jnp.float32);            p["dbt3"] = jnp.zeros((8,), jnp.float32)
    p["dw4"] = _kaiming_normal(ks[12], (8, 1, 3, 3));  p["db4"] = _bias(ks[13], 1, 1 * 9)
    return p


if __name__ == "__main__":
    key = jax.random.PRNGKey(0)
    pkey, xkey = jax.random.split(key)
    params = init_params(pkey)
    ops = prepare(params)                               # host-side, once

    x = jax.random.normal(xkey, (2, 1, 16, 16), dtype=jnp.float32)

    fwd = jax.jit(elev_map_enc_dec)
    out = fwd(ops, x)
    out = jax.block_until_ready(out)

    assert out.shape == (2, 16, 16), out.shape
    assert bool(jnp.all(jnp.isfinite(out)))
    print("KERNEL_OK")
</pallas_src>

<mosaic_0001>
module attributes {stable_mosaic.version = 11 : i64} {
  func.func @_fwd_kernel(%arg0: i32, %arg1: memref<2x256xf32, #tpu.memory_space<vmem>>, %arg2: memref<256x512xf32, #tpu.memory_space<vmem>>, %arg3: memref<256x512xf32, #tpu.memory_space<vmem>>, %arg4: memref<256x512xf32, #tpu.memory_space<vmem>>, %arg5: memref<256x512xf32, #tpu.memory_space<vmem>>, %arg6: memref<1x512xf32, #tpu.memory_space<vmem>>, %arg7: memref<512x8xf32, #tpu.memory_space<vmem>>, %arg8: memref<8x512xf32, #tpu.memory_space<vmem>>, %arg9: memref<1x8xf32, #tpu.memory_space<vmem>>, %arg10: memref<1x8xf32, #tpu.memory_space<vmem>>, %arg11: memref<512x144xf32, #tpu.memory_space<vmem>>, %arg12: memref<1x144xf32, #tpu.memory_space<vmem>>, %arg13: memref<144x16xf32, #tpu.memory_space<vmem>>, %arg14: memref<16x144xf32, #tpu.memory_space<vmem>>, %arg15: memref<1x16xf32, #tpu.memory_space<vmem>>, %arg16: memref<1x16xf32, #tpu.memory_space<vmem>>, %arg17: memref<144x18xf32, #tpu.memory_space<vmem>>, %arg18: memref<1x18xf32, #tpu.memory_space<vmem>>, %arg19: memref<18x144xf32, #tpu.memory_space<vmem>>, %arg20: memref<1x144xf32, #tpu.memory_space<vmem>>, %arg21: memref<144x16xf32, #tpu.memory_space<vmem>>, %arg22: memref<16x144xf32, #tpu.memory_space<vmem>>, %arg23: memref<1x16xf32, #tpu.memory_space<vmem>>, %arg24: memref<1x16xf32, #tpu.memory_space<vmem>>, %arg25: memref<144x392xf32, #tpu.memory_space<vmem>>, %arg26: memref<1x392xf32, #tpu.memory_space<vmem>>, %arg27: memref<392x1568xf32, #tpu.memory_space<vmem>>, %arg28: memref<1x1568xf32, #tpu.memory_space<vmem>>, %arg29: memref<1568x8xf32, #tpu.memory_space<vmem>>, %arg30: memref<8x1568xf32, #tpu.memory_space<vmem>>, %arg31: memref<1x8xf32, #tpu.memory_space<vmem>>, %arg32: memref<1x8xf32, #tpu.memory_space<vmem>>, %arg33: memref<1568x256xf32, #tpu.memory_space<vmem>>, %arg34: memref<1x256xf32, #tpu.memory_space<vmem>>, %arg35: memref<2x256xf32, #tpu.memory_space<vmem>>) attributes {dimension_semantics = [#tpu.dimension_semantics<arbitrary>], iteration_bounds = array<i64: 1>, scalar_prefetch = 0 : i64, scratch_operands = 0 : i64, tpu.core_type = #tpu.core_type<tc>, window_params = [{pipeline_mode = #tpu.pipeline_mode<synchronous>, transform_indices = @transform_0, window_bounds = array<i64: 2, 256>}, {pipeline_mode = #tpu.pipeline_mode<synchronous>, transform_indices = @transform_1, window_bounds = array<i64: 256, 512>}, {pipeline_mode = #tpu.pipeline_mode<synchronous>, transform_indices = @transform_2, window_bounds = array<i64: 256, 512>}, {pipeline_mode = #tpu.pipeline_mode<synchronous>, transform_indices = @transform_3, window_bounds = array<i64: 256, 512>}, {pipeline_mode = #tpu.pipeline_mode<synchronous>, transform_indices = @transform_4, window_bounds = array<i64: 256, 512>}, {pipeline_mode = #tpu.pipeline_mode<synchronous>, transform_indices = @transform_5, window_bounds = array<i64: 1, 512>}, {pipeline_mode = #tpu.pipeline_mode<synchronous>, transform_indices = @transform_6, window_bounds = array<i64: 512, 8>}, {pipeline_mode = #tpu.pipeline_mode<synchronous>, transform_indices = @transform_7, window_bounds = array<i64: 8, 512>}, {pipeline_mode = #tpu.pipeline_mode<synchronous>, transform_indices = @transform_8, window_bounds = array<i64: 1, 8>}, {pipeline_mode = #tpu.pipeline_mode<synchronous>, transform_indices = @transform_9, window_bounds = array<i64: 1, 8>}, {pipeline_mode = #tpu.pipeline_mode<synchronous>, transform_indices = @transform_10, window_bounds = array<i64: 512, 144>}, {pipeline_mode = #tpu.pipeline_mode<synchronous>, transform_indices = @transform_11, window_bounds = array<i64: 1, 144>}, {pipeline_mode = #tpu.pipeline_mode<synchronous>, transform_indices = @transform_12, window_bounds = array<i64: 144, 16>}, {pipeline_mode = #tpu.pipeline_mode<synchronous>, transform_indices = @transform_13, window_bounds = array<i64: 16, 144>}, {pipeline_mode = #tpu.pipeline_mode<synchronous>, transform_indices = @transform_14, window_bounds = array<i64: 1, 16>}, {pipeline_mode = #tpu.pipeline_mode<synchronous>, transform_indices = @transform_15, window_bounds = array<i64: 1, 16>}, {pipeline_mode = #tpu.pipeline_mode<synchronous>, transform_indices = @transform_16, window_bounds = array<i64: 144, 18>}, {pipeline_mode = #tpu.pipeline_mode<synchronous>, transform_indices = @transform_17, window_bounds = array<i64: 1, 18>}, {pipeline_mode = #tpu.pipeline_mode<synchronous>, transform_indices = @transform_18, window_bounds = array<i64: 18, 144>}, {pipeline_mode = #tpu.pipeline_mode<synchronous>, transform_indices = @transform_19, window_bounds = array<i64: 1, 144>}, {pipeline_mode = #tpu.pipeline_mode<synchronous>, transform_indices = @transform_20, window_bounds = array<i64: 144, 16>}, {pipeline_mode = #tpu.pipeline_mode<synchronous>, transform_indices = @transform_21, window_bounds = array<i64: 16, 144>}, {pipeline_mode = #tpu.pipeline_mode<synchronous>, transform_indices = @transform_22, window_bounds = array<i64: 1, 16>}, {pipeline_mode = #tpu.pipeline_mode<synchronous>, transform_indices = @transform_23, window_bounds = array<i64: 1, 16>}, {pipeline_mode = #tpu.pipeline_mode<synchronous>, transform_indices = @transform_24, window_bounds = array<i64: 144, 392>}, {pipeline_mode = #tpu.pipeline_mode<synchronous>, transform_indices = @transform_25, window_bounds = array<i64: 1, 392>}, {pipeline_mode = #tpu.pipeline_mode<synchronous>, transform_indices = @transform_26, window_bounds = array<i64: 392, 1568>}, {pipeline_mode = #tpu.pipeline_mode<synchronous>, transform_indices = @transform_27, window_bounds = array<i64: 1, 1568>}, {pipeline_mode = #tpu.pipeline_mode<synchronous>, transform_indices = @transform_28, window_bounds = array<i64: 1568, 8>}, {pipeline_mode = #tpu.pipeline_mode<synchronous>, transform_indices = @transform_29, window_bounds = array<i64: 8, 1568>}, {pipeline_mode = #tpu.pipeline_mode<synchronous>, transform_indices = @transform_30, window_bounds = array<i64: 1, 8>}, {pipeline_mode = #tpu.pipeline_mode<synchronous>, transform_indices = @transform_31, window_bounds = array<i64: 1, 8>}, {pipeline_mode = #tpu.pipeline_mode<synchronous>, transform_indices = @transform_32, window_bounds = array<i64: 1568, 256>}, {pipeline_mode = #tpu.pipeline_mode<synchronous>, transform_indices = @transform_33, window_bounds = array<i64: 1, 256>}, {pipeline_mode = #tpu.pipeline_mode<synchronous>, transform_indices = @transform_34, window_bounds = array<i64: 2, 256>}]} {
    %c0 = arith.constant 0 : index
    %c0_0 = arith.constant 0 : index
    %0 = vector.load %arg1[%c0, %c0_0] : memref<2x256xf32, #tpu.memory_space<vmem>>, vector<2x256xf32>
    %c0_1 = arith.constant 0 : index
    %c0_2 = arith.constant 0 : index
    %1 = vector.load %arg2[%c0_1, %c0_2] : memref<256x512xf32, #tpu.memory_space<vmem>>, vector<256x512xf32>
    %cst = arith.constant dense<0.000000e+00> : vector<2x512xf32>
    %2 = tpu.matmul %0, %1, %cst {dimension_numbers = #tpu.dot_dimension_numbers<[1], [0], [0], [1], [0, 0, 1, 1], [], []>} : vector<2x256xf32>, vector<256x512xf32>, vector<2x512xf32> -> vector<2x512xf32>
    %c0_3 = arith.constant 0 : index
    %c0_4 = arith.constant 0 : index
    %3 = vector.load %arg6[%c0_3, %c0_4] : memref<1x512xf32, #tpu.memory_space<vmem>>, vector<1x512xf32>
    %4 = vector.broadcast %3 : vector<1x512xf32> to vector<2x512xf32>
    %5 = arith.addf %2, %4 : vector<2x512xf32>
    %cst_5 = arith.constant 0.000000e+00 : f32
    %6 = vector.broadcast %cst_5 : f32 to vector<2x512xf32>
    %7 = arith.cmpf oge, %5, %6 : vector<2x512xf32>
    %cst_6 = arith.constant 1.000000e-01 : f32
    %8 = vector.broadcast %cst_6 : f32 to vector<2x512xf32>
    %9 = arith.mulf %8, %5 : vector<2x512xf32>
    %10 = arith.select %7, %5, %9 : vector<2x512xi1>, vector<2x512xf32>
    %c0_7 = arith.constant 0 : index
    %c0_8 = arith.constant 0 : index
    %11 = vector.load %arg3[%c0_7, %c0_8] : memref<256x512xf32, #tpu.memory_space<vmem>>, vector<256x512xf32>
    %cst_9 = arith.constant dense<0.000000e+00> : vector<2x512xf32>
    %12 = tpu.matmul %0, %11, %cst_9 {dimension_numbers = #tpu.dot_dimension_numbers<[1], [0], [0], [1], [0, 0, 1, 1], [], []>} : vector<2x256xf32>, vector<256x512xf32>, vector<2x512xf32> -> vector<2x512xf32>
    %c0_10 = arith.constant 0 : index
    %c0_11 = arith.constant 0 : index
    %13 = vector.load %arg6[%c0_10, %c0_11] : memref<1x512xf32, #tpu.memory_space<vmem>>, vector<1x512xf32>
    %14 = vector.broadcast %13 : vector<1x512xf32> to vector<2x512xf32>
    %15 = arith.addf %12, %14 : vector<2x512xf32>
    %cst_12 = arith.constant 0.000000e+00 : f32
    %16 = vector.broadcast %cst_12 : f32 to vector<2x512xf32>
    %17 = arith.cmpf oge, %15, %16 : vector<2x512xf32>
    %cst_13 = arith.constant 1.000000e-01 : f32
    %18 = vector.broadcast %cst_13 : f32 to vector<2x512xf32>
    %19 = arith.mulf %18, %15 : vector<2x512xf32>
    %20 = arith.select %17, %15, %19 : vector<2x512xi1>, vector<2x512xf32>
    %c0_14 = arith.constant 0 : index
    %c0_15 = arith.constant 0 : index
    %21 = vector.load %arg4[%c0_14, %c0_15] : memref<256x512xf32, #tpu.memory_space<vmem>>, vector<256x512xf32>
    %cst_16 = arith.constant dense<0.000000e+00> : vector<2x512xf32>
    %22 = tpu.matmul %0, %21, %cst_16 {dimension_numbers = #tpu.dot_dimension_numbers<[1], [0], [0], [1], [0, 0, 1, 1], [], []>} : vector<2x256xf32>, vector<256x512xf32>, vector<2x512xf32> -> vector<2x512xf32>
    %c0_17 = arith.constant 0 : index
    %c0_18 = arith.constant 0 : index
    %23 = vector.load %arg6[%c0_17, %c0_18] : memref<1x512xf32, #tpu.memory_space<vmem>>, vector<1x512xf32>
    %24 = vector.broadcast %23 : vector<1x512xf32> to vector<2x512xf32>
    %25 = arith.addf %22, %24 : vector<2x512xf32>
    %cst_19 = arith.constant 0.000000e+00 : f32
    %26 = vector.broadcast %cst_19 : f32 to vector<2x512xf32>
    %27 = arith.cmpf oge, %25, %26 : vector<2x512xf32>
    %cst_20 = arith.constant 1.000000e-01 : f32
    %28 = vector.broadcast %cst_20 : f32 to vector<2x512xf32>
    %29 = arith.mulf %28, %25 : vector<2x512xf32>
    %30 = arith.select %27, %25, %29 : vector<2x512xi1>, vector<2x512xf32>
    %c0_21 = arith.constant 0 : index
    %c0_22 = arith.constant 0 : index
    %31 = vector.load %arg5[%c0_21, %c0_22] : memref<256x512xf32, #tpu.memory_space<vmem>>, vector<256x512xf32>
    %cst_23 = arith.constant dense<0.000000e+00> : vector<2x512xf32>
    %32 = tpu.matmul %0, %31, %cst_23 {dimension_numbers = #tpu.dot_dimension_numbers<[1], [0], [0], [1], [0, 0, 1, 1], [], []>} : vector<2x256xf32>, vector<256x512xf32>, vector<2x512xf32> -> vector<2x512xf32>
    %c0_24 = arith.constant 0 : index
    %c0_25 = arith.constant 0 : index
    %33 = vector.load %arg6[%c0_24, %c0_25] : memref<1x512xf32, #tpu.memory_space<vmem>>, vector<1x512xf32>
    %34 = vector.broadcast %33 : vector<1x512xf32> to vector<2x512xf32>
    %35 = arith.addf %32, %34 : vector<2x512xf32>
    %cst_26 = arith.constant 0.000000e+00 : f32
    %36 = vector.broadcast %cst_26 : f32 to vector<2x512xf32>
    %37 = arith.cmpf oge, %35, %36 : vector<2x512xf32>
    %cst_27 = arith.constant 1.000000e-01 : f32
    %38 = vector.broadcast %cst_27 : f32 to vector<2x512xf32>
    %39 = arith.mulf %38, %35 : vector<2x512xf32>
    %40 = arith.select %37, %35, %39 : vector<2x512xi1>, vector<2x512xf32>
    %cst_28 = arith.constant 0.000000e+00 : f32
    %41 = vector.broadcast %cst_28 : f32 to vector<1x8xf32>
    %cst_29 = arith.constant 0.000000e+00 : f32
    %42 = vector.broadcast %cst_29 : f32 to vector<1x8xf32>
    %cst_30 = arith.constant dense<0.000000e+00> : vector<512xf32>
    %43 = vector.multi_reduction <add>, %10, %cst_30 [0] : vector<2x512xf32> to vector<512xf32>
    %44 = vector.shape_cast %43 : vector<512xf32> to vector<1x512xf32>
    %c0_31 = arith.constant 0 : index
    %c0_32 = arith.constant 0 : index
    %45 = vector.load %arg7[%c0_31, %c0_32] : memref<512x8xf32, #tpu.memory_space<vmem>>, vector<512x8xf32>
    %cst_33 = arith.constant dense<0.000000e+00> : vector<1x8xf32>
    %46 = tpu.matmul %44, %45, %cst_33 {dimension_numbers = #tpu.dot_dimension_numbers<[1], [0], [0], [1], [0, 0, 1, 1], [], []>} : vector<1x512xf32>, vector<512x8xf32>, vector<1x8xf32> -> vector<1x8xf32>
    %47 = arith.addf %41, %46 : vector<1x8xf32>
    %48 = arith.mulf %10, %10 : vector<2x512xf32>
    %cst_34 = arith.constant dense<0.000000e+00> : vector<512xf32>
    %49 = vector.multi_reduction <add>, %48, %cst_34 [0] : vector<2x512xf32> to vector<512xf32>
    %50 = vector.shape_cast %49 : vector<512xf32> to vector<1x512xf32>
    %c0_35 = arith.constant 0 : index
    %c0_36 = arith.constant 0 : index
    %51 = vector.load %arg7[%c0_35, %c0_36] : memref<512x8xf32, #tpu.memory_space<vmem>>, vector<512x8xf32>
    %cst_37 = arith.constant dense<0.000000e+00> : vector<1x8xf32>
    %52 = tpu.matmul %50, %51, %cst_37 {dimension_numbers = #tpu.dot_dimension_numbers<[1], [0], [0], [1], [0, 0, 1, 1], [], []>} : vector<1x512xf32>, vector<512x8xf32>, vector<1x8xf32> -> vector<1x8xf32>
    %53 = arith.addf %42, %52 : vector<1x8xf32>
    %cst_38 = arith.constant dense<0.000000e+00> : vector<512xf32>
    %54 = vector.multi_reduction <add>, %20, %cst_38 [0] : vector<2x512xf32> to vector<512xf32>
    %55 = vector.shape_cast %54 : vector<512xf32> to vector<1x512xf32>
    %c0_39 = arith.constant 0 : index
    %c0_40 = arith.constant 0 : index
    %56 = vector.load %arg7[%c0_39, %c0_40] : memref<512x8xf32, #tpu.memory_space<vmem>>, vector<512x8xf32>
    %cst_41 = arith.constant dense<0.000000e+00> : vector<1x8xf32>
    %57 = tpu.matmul %55, %56, %cst_41 {dimension_numbers = #tpu.dot_dimension_numbers<[1], [0], [0], [1], [0, 0, 1, 1], [], []>} : vector<1x512xf32>, vector<512x8xf32>, vector<1x8xf32> -> vector<1x8xf32>
    %58 = arith.addf %47, %57 : vector<1x8xf32>
    %59 = arith.mulf %20, %20 : vector<2x512xf32>
    %cst_42 = arith.constant dense<0.000000e+00> : vector<512xf32>
    %60 = vector.multi_reduction <add>, %59, %cst_42 [0] : vector<2x512xf32> to vector<512xf32>
    %61 = vector.shape_cast %60 : vector<512xf32> to vector<1x512xf32>
    %c0_43 = arith.constant 0 : index
    %c0_44 = arith.constant 0 : index
    %62 = vector.load %arg7[%c0_43, %c0_44] : memref<512x8xf32, #tpu.memory_space<vmem>>, vector<512x8xf32>
    %cst_45 = arith.constant dense<0.000000e+00> : vector<1x8xf32>
    %63 = tpu.matmul %61, %62, %cst_45 {dimension_numbers = #tpu.dot_dimension_numbers<[1], [0], [0], [1], [0, 0, 1, 1], [], []>} : vector<1x512xf32>, vector<512x8xf32>, vector<1x8xf32> -> vector<1x8xf32>
    %64 = arith.addf %53, %63 : vector<1x8xf32>
    %cst_46 = arith.constant dense<0.000000e+00> : vector<512xf32>
    %65 = vector.multi_reduction <add>, %30, %cst_46 [0] : vector<2x512xf32> to vector<512xf32>
    %66 = vector.shape_cast %65 : vector<512xf32> to vector<1x512xf32>
    %c0_47 = arith.constant 0 : index
    %c0_48 = arith.constant 0 : index
    %67 = vector.load %arg7[%c0_47, %c0_48] : memref<512x8xf32, #tpu.memory_space<vmem>>, vector<512x8xf32>
    %cst_49 = arith.constant dense<0.000000e+00> : vector<1x8xf32>
    %68 = tpu.matmul %66, %67, %cst_49 {dimension_numbers = #tpu.dot_dimension_numbers<[1], [0], [0], [1], [0, 0, 1, 1], [], []>} : vector<1x512xf32>, vector<512x8xf32>, vector<1x8xf32> -> vector<1x8xf32>
    %69 = arith.addf %58, %68 : vector<1x8xf32>
    %70 = arith.mulf %30, %30 : vector<2x512xf32>
    %cst_50 = arith.constant dense<0.000000e+00> : vector<512xf32>
    %71 = vector.multi_reduction <add>, %70, %cst_50 [0] : vector<2x512xf32> to vector<512xf32>
    %72 = vector.shape_cast %71 : vector<512xf32> to vector<1x512xf32>
    %c0_51 = arith.constant 0 : index
    %c0_52 = arith.constant 0 : index
    %73 = vector.load %arg7[%c0_51, %c0_52] : memref<512x8xf32, #tpu.memory_space<vmem>>, vector<512x8xf32>
    %cst_53 = arith.constant dense<0.000000e+00> : vector<1x8xf32>
    %74 = tpu.matmul %72, %73, %cst_53 {dimension_numbers = #tpu.dot_dimension_numbers<[1], [0], [0], [1], [0, 0, 1, 1], [], []>} : vector<1x512xf32>, vector<512x8xf32>, vector<1x8xf32> -> vector<1x8xf32>
    %75 = arith.addf %64, %74 : vector<1x8xf32>
    %cst_54 = arith.constant dense<0.000000e+00> : vector<512xf32>
    %76 = vector.multi_reduction <add>, %40, %cst_54 [0] : vector<2x512xf32> to vector<512xf32>
    %77 = vector.shape_cast %76 : vector<512xf32> to vector<1x512xf32>
    %c0_55 = arith.constant 0 : index
    %c0_56 = arith.constant 0 : index
    %78 = vector.load %arg7[%c0_55, %c0_56] : memref<512x8xf32, #tpu.memory_space<vmem>>, vector<512x8xf32>
    %cst_57 = arith.constant dense<0.000000e+00> : vector<1x8xf32>
    %79 = tpu.matmul %77, %78, %cst_57 {dimension_numbers = #tpu.dot_dimension_numbers<[1], [0], [0], [1], [0, 0, 1, 1], [], []>} : vector<1x512xf32>, vector<512x8xf32>, vector<1x8xf32> -> vector<1x8xf32>
    %80 = arith.addf %69, %79 : vector<1x8xf32>
    %81 = arith.mulf %40, %40 : vector<2x512xf32>
    %cst_58 = arith.constant dense<0.000000e+00> : vector<512xf32>
    %82 = vector.multi_reduction <add>, %81, %cst_58 [0] : vector<2x512xf32> to vector<512xf32>
    %83 = vector.shape_cast %82 : vector<512xf32> to vector<1x512xf32>
    %c0_59 = arith.constant 0 : index
    %c0_60 = arith.constant 0 : index
    %84 = vector.load %arg7[%c0_59, %c0_60] : memref<512x8xf32, #tpu.memory_space<vmem>>, vector<512x8xf32>
    %cst_61 = arith.constant dense<0.000000e+00> : vector<1x8xf32>
    %85 = tpu.matmul %83, %84, %cst_61 {dimension_numbers = #tpu.dot_dimension_numbers<[1], [0], [0], [1], [0, 0, 1, 1], [], []>} : vector<1x512xf32>, vector<512x8xf32>, vector<1x8xf32> -> vector<1x8xf32>
    %86 = arith.addf %75, %85 : vector<1x8xf32>
    %cst_62 = arith.constant 0.001953125 : f32
    %87 = vector.broadcast %cst_62 : f32 to vector<1x8xf32>
    %88 = arith.mulf %80, %87 : vector<1x8xf32>
    %cst_63 = arith.constant 0.001953125 : f32
    %89 = vector.broadcast %cst_63 : f32 to vector<1x8xf32>
    %90 = arith.mulf %86, %89 : vector<1x8xf32>
    %91 = arith.mulf %88, %88 : vector<1x8xf32>
    %92 = arith.subf %90, %91 : vector<1x8xf32>
    %cst_64 = arith.constant 0.000000e+00 : f32
    %93 = vector.broadcast %cst_64 : f32 to vector<1x8xf32>
    %94 = arith.maximumf %92, %93 : vector<1x8xf32>
    %cst_65 = arith.constant 9.99999974E-6 : f32
    %95 = vector.broadcast %cst_65 : f32 to vector<1x8xf32>
    %96 = arith.addf %94, %95 : vector<1x8xf32>
    %97 = math.rsqrt %96 : vector<1x8xf32>
    %c0_66 = arith.constant 0 : index
    %c0_67 = arith.constant 0 : index
    %98 = vector.load %arg9[%c0_66, %c0_67] : memref<1x8xf32, #tpu.memory_space<vmem>>, vector<1x8xf32>
    %99 = arith.mulf %98, %97 : vector<1x8xf32>
    %c0_68 = arith.constant 0 : index
    %c0_69 = arith.constant 0 : index
    %100 = vector.load %arg10[%c0_68, %c0_69] : memref<1x8xf32, #tpu.memory_space<vmem>>, vector<1x8xf32>
    %101 = arith.mulf %99, %88 : vector<1x8xf32>
    %102 = arith.subf %100, %101 : vector<1x8xf32>
    %c0_70 = arith.constant 0 : index
    %c0_71 = arith.constant 0 : index
    %103 = vector.load %arg8[%c0_70, %c0_71] : memref<8x512xf32, #tpu.memory_space<vmem>>, vector<8x512xf32>
    %cst_72 = arith.constant dense<0.000000e+00> : vector<1x512xf32>
    %104 = tpu.matmul %99, %103, %cst_72 {dimension_numbers = #tpu.dot_dimension_numbers<[1], [0], [0], [1], [0, 0, 1, 1], [], []>} : vector<1x8xf32>, vector<8x512xf32>, vector<1x512xf32> -> vector<1x512xf32>
    %c0_73 = arith.constant 0 : index
    %c0_74 = arith.constant 0 : index
    %105 = vector.load %arg8[%c0_73, %c0_74] : memref<8x512xf32, #tpu.memory_space<vmem>>, vector<8x512xf32>
    %cst_75 = arith.constant dense<0.000000e+00> : vector<1x512xf32>
    %106 = tpu.matmul %102, %105, %cst_75 {dimension_numbers = #tpu.dot_dimension_numbers<[1], [0], [0], [1], [0, 0, 1, 1], [], []>} : vector<1x8xf32>, vector<8x512xf32>, vector<1x512xf32> -> vector<1x512xf32>
    %107 = vector.broadcast %104 : vector<1x512xf32> to vector<2x512xf32>
    %108 = arith.mulf %10, %107 : vector<2x512xf32>
    %109 = vector.broadcast %106 : vector<1x512xf32> to vector<2x512xf32>
    %110 = arith.addf %108, %109 : vector<2x512xf32>
    %111 = vector.broadcast %104 : vector<1x512xf32> to vector<2x512xf32>
    %112 = arith.mulf %20, %111 : vector<2x512xf32>
    %113 = vector.broadcast %106 : vector<1x512xf32> to vector<2x512xf32>
    %114 = arith.addf %112, %113 : vector<2x512xf32>
    %115 = vector.broadcast %104 : vector<1x512xf32> to vector<2x512xf32>
    %116 = arith.mulf %30, %115 : vector<2x512xf32>
    %117 = vector.broadcast %106 : vector<1x512xf32> to vector<2x512xf32>
    %118 = arith.addf %116, %117 : vector<2x512xf32>
    %119 = vector.broadcast %104 : vector<1x512xf32> to vector<2x512xf32>
    %120 = arith.mulf %40, %119 : vector<2x512xf32>
    %121 = vector.broadcast %106 : vector<1x512xf32> to vector<2x512xf32>
    %122 = arith.addf %120, %121 : vector<2x512xf32>
    %123 = arith.maximumf %110, %114 : vector<2x512xf32>
    %124 = arith.maximumf %118, %122 : vector<2x512xf32>
    %125 = arith.maximumf %123, %124 : vector<2x512xf32>
    %c0_76 = arith.constant 0 : index
    %c0_77 = arith.constant 0 : index
    %126 = vector.load %arg11[%c0_76, %c0_77] : memref<512x144xf32, #tpu.memory_space<vmem>>, vector<512x144xf32>
    %cst_78 = arith.constant dense<0.000000e+00> : vector<2x144xf32>
    %127 = tpu.matmul %125, %126, %cst_78 {dimension_numbers = #tpu.dot_dimension_numbers<[1], [0], [0], [1], [0, 0, 1, 1], [], []>} : vector<2x512xf32>, vector<512x144xf32>, vector<2x144xf32> -> vector<2x144xf32>
    %c0_79 = arith.constant 0 : index
    %c0_80 = arith.constant 0 : index
    %128 = vector.load %arg12[%c0_79, %c0_80] : memref<1x144xf32, #tpu.memory_space<vmem>>, vector<1x144xf32>
    %129 = vector.broadcast %128 : vector<1x144xf32> to vector<2x144xf32>
    %130 = arith.addf %127, %129 : vector<2x144xf32>
    %cst_81 = arith.constant 0.000000e+00 : f32
    %131 = vector.broadcast %cst_81 : f32 to vector<2x144xf32>
    %132 = arith.cmpf oge, %130, %131 : vector<2x144xf32>
    %cst_82 = arith.constant 1.000000e-01 : f32
    %133 = vector.broadcast %cst_82 : f32 to vector<2x144xf32>
    %134 = arith.mulf %133, %130 : vector<2x144xf32>
    %135 = arith.select %132, %130, %134 : vector<2x144xi1>, vector<2x144xf32>
    %cst_83 = arith.constant dense<0.000000e+00> : vector<144xf32>
    %136 = vector.multi_reduction <add>, %135, %cst_83 [0] : vector<2x144xf32> to vector<144xf32>
    %137 = vector.shape_cast %136 : vector<144xf32> to vector<1x144xf32>
    %c0_84 = arith.constant 0 : index
    %c0_85 = arith.constant 0 : index
    %138 = vector.load %arg13[%c0_84, %c0_85] : memref<144x16xf32, #tpu.memory_space<vmem>>, vector<144x16xf32>
    %cst_86 = arith.constant dense<0.000000e+00> : vector<1x16xf32>
    %139 = tpu.matmul %137, %138, %cst_86 {dimension_numbers = #tpu.dot_dimension_numbers<[1], [0], [0], [1], [0, 0, 1, 1], [], []>} : vector<1x144xf32>, vector<144x16xf32>, vector<1x16xf32> -> vector<1x16xf32>
    %140 = arith.mulf %135, %135 : vector<2x144xf32>
    %cst_87 = arith.constant dense<0.000000e+00> : vector<144xf32>
    %141 = vector.multi_reduction <add>, %140, %cst_87 [0] : vector<2x144xf32> to vector<144xf32>
    %142 = vector.shape_cast %141 : vector<144xf32> to vector<1x144xf32>
    %c0_88 = arith.constant 0 : index
    %c0_89 = arith.constant 0 : index
    %143 = vector.load %arg13[%c0_88, %c0_89] : memref<144x16xf32, #tpu.memory_space<vmem>>, vector<144x16xf32>
    %cst_90 = arith.constant dense<0.000000e+00> : vector<1x16xf32>
    %144 = tpu.matmul %142, %143, %cst_90 {dimension_numbers = #tpu.dot_dimension_numbers<[1], [0], [0], [1], [0, 0, 1, 1], [], []>} : vector<1x144xf32>, vector<144x16xf32>, vector<1x16xf32> -> vector<1x16xf32>
    %cst_91 = arith.constant 0.055555556 : f32
    %145 = vector.broadcast %cst_91 : f32 to vector<1x16xf32>
    %146 = arith.mulf %139, %145 : vector<1x16xf32>
    %cst_92 = arith.constant 0.055555556 : f32
    %147 = vector.broadcast %cst_92 : f32 to vector<1x16xf32>
    %148 = arith.mulf %144, %147 : vector<1x16xf32>
    %149 = arith.mulf %146, %146 : vector<1x16xf32>
    %150 = arith.subf %148, %149 : vector<1x16xf32>
    %cst_93 = arith.constant 0.000000e+00 : f32
    %151 = vector.broadcast %cst_93 : f32 to vector<1x16xf32>
    %152 = arith.maximumf %150, %151 : vector<1x16xf32>
    %cst_94 = arith.constant 9.99999974E-6 : f32
    %153 = vector.broadcast %cst_94 : f32 to vector<1x16xf32>
    %154 = arith.addf %152, %153 : vector<1x16xf32>
    %155 = math.rsqrt %154 : vector<1x16xf32>
    %c0_95 = arith.constant 0 : index
    %c0_96 = arith.constant 0 : index
    %156 = vector.load %arg15[%c0_95, %c0_96] : memref<1x16xf32, #tpu.memory_space<vmem>>, vector<1x16xf32>
    %157 = arith.mulf %156, %155 : vector<1x16xf32>
    %c0_97 = arith.constant 0 : index
    %c0_98 = arith.constant 0 : index
    %158 = vector.load %arg16[%c0_97, %c0_98] : memref<1x16xf32, #tpu.memory_space<vmem>>, vector<1x16xf32>
    %159 = arith.mulf %157, %146 : vector<1x16xf32>
    %160 = arith.subf %158, %159 : vector<1x16xf32>
    %c0_99 = arith.constant 0 : index
    %c0_100 = arith.constant 0 : index
    %161 = vector.load %arg14[%c0_99, %c0_100] : memref<16x144xf32, #tpu.memory_space<vmem>>, vector<16x144xf32>
    %cst_101 = arith.constant dense<0.000000e+00> : vector<1x144xf32>
    %162 = tpu.matmul %157, %161, %cst_101 {dimension_numbers = #tpu.dot_dimension_numbers<[1], [0], [0], [1], [0, 0, 1, 1], [], []>} : vector<1x16xf32>, vector<16x144xf32>, vector<1x144xf32> -> vector<1x144xf32>
    %c0_102 = arith.constant 0 : index
    %c0_103 = arith.constant 0 : index
    %163 = vector.load %arg14[%c0_102, %c0_103] : memref<16x144xf32, #tpu.memory_space<vmem>>, vector<16x144xf32>
    %cst_104 = arith.constant dense<0.000000e+00> : vector<1x144xf32>
    %164 = tpu.matmul %160, %163, %cst_104 {dimension_numbers = #tpu.dot_dimension_numbers<[1], [0], [0], [1], [0, 0, 1, 1], [], []>} : vector<1x16xf32>, vector<16x144xf32>, vector<1x144xf32> -> vector<1x144xf32>
    %165 = vector.broadcast %162 : vector<1x144xf32> to vector<2x144xf32>
    %166 = arith.mulf %135, %165 : vector<2x144xf32>
    %167 = vector.broadcast %164 : vector<1x144xf32> to vector<2x144xf32>
    %168 = arith.addf %166, %167 : vector<2x144xf32>
    %c0_105 = arith.constant 0 : index
    %c0_106 = arith.constant 0 : index
    %169 = vector.load %arg17[%c0_105, %c0_106] : memref<144x18xf32, #tpu.memory_space<vmem>>, vector<144x18xf32>
    %cst_107 = arith.constant dense<0.000000e+00> : vector<2x18xf32>
    %170 = tpu.matmul %168, %169, %cst_107 {dimension_numbers = #tpu.dot_dimension_numbers<[1], [0], [0], [1], [0, 0, 1, 1], [], []>} : vector<2x144xf32>, vector<144x18xf32>, vector<2x18xf32> -> vector<2x18xf32>
    %c0_108 = arith.constant 0 : index
    %c0_109 = arith.constant 0 : index
    %171 = vector.load %arg18[%c0_108, %c0_109] : memref<1x18xf32, #tpu.memory_space<vmem>>, vector<1x18xf32>
    %172 = vector.broadcast %171 : vector<1x18xf32> to vector<2x18xf32>
    %173 = arith.addf %170, %172 : vector<2x18xf32>
    %c0_110 = arith.constant 0 : index
    %c0_111 = arith.constant 0 : index
    %174 = vector.load %arg19[%c0_110, %c0_111] : memref<18x144xf32, #tpu.memory_space<vmem>>, vector<18x144xf32>
    %cst_112 = arith.constant dense<0.000000e+00> : vector<2x144xf32>
    %175 = tpu.matmul %173, %174, %cst_112 {dimension_numbers = #tpu.dot_dimension_numbers<[1], [0], [0], [1], [0, 0, 1, 1], [], []>} : vector<2x18xf32>, vector<18x144xf32>, vector<2x144xf32> -> vector<2x144xf32>
    %c0_113 = arith.constant 0 : index
    %c0_114 = arith.constant 0 : index
    %176 = vector.load %arg20[%c0_113, %c0_114] : memref<1x144xf32, #tpu.memory_space<vmem>>, vector<1x144xf32>
    %177 = vector.broadcast %176 : vector<1x144xf32> to vector<2x144xf32>
    %178 = arith.addf %175, %177 : vector<2x144xf32>
    %cst_115 = arith.constant 0.000000e+00 : f32
    %179 = vector.broadcast %cst_115 : f32 to vector<2x144xf32>
    %180 = arith.cmpf oge, %178, %179 : vector<2x144xf32>
    %cst_116 = arith.constant 1.000000e-01 : f32
    %181 = vector.broadcast %cst_116 : f32 to vector<2x144xf32>
    %182 = arith.mulf %181, %178 : vector<2x144xf32>
    %183 = arith.select %180, %178, %182 : vector<2x144xi1>, vector<2x144xf32>
    %cst_117 = arith.constant dense<0.000000e+00> : vector<144xf32>
    %184 = vector.multi_reduction <add>, %183, %cst_117 [0] : vector<2x144xf32> to vector<144xf32>
    %185 = vector.shape_cast %184 : vector<144xf32> to vector<1x144xf32>
    %c0_118 = arith.constant 0 : index
    %c0_119 = arith.constant 0 : index
    %186 = vector.load %arg21[%c0_118, %c0_119] : memref<144x16xf32, #tpu.memory_space<vmem>>, vector<144x16xf32>
    %cst_120 = arith.constant dense<0.000000e+00> : vector<1x16xf32>
    %187 = tpu.matmul %185, %186, %cst_120 {dimension_numbers = #tpu.dot_dimension_numbers<[1], [0], [0], [1], [0, 0, 1, 1], [], []>} : vector<1x144xf32>, vector<144x16xf32>, vector<1x16xf32> -> vector<1x16xf32>
    %188 = arith.mulf %183, %183 : vector<2x144xf32>
    %cst_121 = arith.constant dense<0.000000e+00> : vector<144xf32>
    %189 = vector.multi_reduction <add>, %188, %cst_121 [0] : vector<2x144xf32> to vector<144xf32>
    %190 = vector.shape_cast %189 : vector<144xf32> to vector<1x144xf32>
    %c0_122 = arith.constant 0 : index
    %c0_123 = arith.constant 0 : index
    %191 = vector.load %arg21[%c0_122, %c0_123] : memref<144x16xf32, #tpu.memory_space<vmem>>, vector<144x16xf32>
    %cst_124 = arith.constant dense<0.000000e+00> : vector<1x16xf32>
    %192 = tpu.matmul %190, %191, %cst_124 {dimension_numbers = #tpu.dot_dimension_numbers<[1], [0], [0], [1], [0, 0, 1, 1], [], []>} : vector<1x144xf32>, vector<144x16xf32>, vector<1x16xf32> -> vector<1x16xf32>
    %cst_125 = arith.constant 0.055555556 : f32
    %193 = vector.broadcast %cst_125 : f32 to vector<1x16xf32>
    %194 = arith.mulf %187, %193 : vector<1x16xf32>
    %cst_126 = arith.constant 0.055555556 : f32
    %195 = vector.broadcast %cst_126 : f32 to vector<1x16xf32>
    %196 = arith.mulf %192, %195 : vector<1x16xf32>
    %197 = arith.mulf %194, %194 : vector<1x16xf32>
    %198 = arith.subf %196, %197 : vector<1x16xf32>
    %cst_127 = arith.constant 0.000000e+00 : f32
    %199 = vector.broadcast %cst_127 : f32 to vector<1x16xf32>
    %200 = arith.maximumf %198, %199 : vector<1x16xf32>
    %cst_128 = arith.constant 9.99999974E-6 : f32
    %201 = vector.broadcast %cst_128 : f32 to vector<1x16xf32>
    %202 = arith.addf %200, %201 : vector<1x16xf32>
    %203 = math.rsqrt %202 : vector<1x16xf32>
    %c0_129 = arith.constant 0 : index
    %c0_130 = arith.constant 0 : index
    %204 = vector.load %arg23[%c0_129, %c0_130] : memref<1x16xf32, #tpu.memory_space<vmem>>, vector<1x16xf32>
    %205 = arith.mulf %204, %203 : vector<1x16xf32>
    %c0_131 = arith.constant 0 : index
    %c0_132 = arith.constant 0 : index
    %206 = vector.load %arg24[%c0_131, %c0_132] : memref<1x16xf32, #tpu.memory_space<vmem>>, vector<1x16xf32>
    %207 = arith.mulf %205, %194 : vector<1x16xf32>
    %208 = arith.subf %206, %207 : vector<1x16xf32>
    %c0_133 = arith.constant 0 : index
    %c0_134 = arith.constant 0 : index
    %209 = vector.load %arg22[%c0_133, %c0_134] : memref<16x144xf32, #tpu.memory_space<vmem>>, vector<16x144xf32>
    %cst_135 = arith.constant dense<0.000000e+00> : vector<1x144xf32>
    %210 = tpu.matmul %205, %209, %cst_135 {dimension_numbers = #tpu.dot_dimension_numbers<[1], [0], [0], [1], [0, 0, 1, 1], [], []>} : vector<1x16xf32>, vector<16x144xf32>, vector<1x144xf32> -> vector<1x144xf32>
    %c0_136 = arith.constant 0 : index
    %c0_137 = arith.constant 0 : index
    %211 = vector.load %arg22[%c0_136, %c0_137] : memref<16x144xf32, #tpu.memory_space<vmem>>, vector<16x144xf32>
    %cst_138 = arith.constant dense<0.000000e+00> : vector<1x144xf32>
    %212 = tpu.matmul %208, %211, %cst_138 {dimension_numbers = #tpu.dot_dimension_numbers<[1], [0], [0], [1], [0, 0, 1, 1], [], []>} : vector<1x16xf32>, vector<16x144xf32>, vector<1x144xf32> -> vector<1x144xf32>
    %213 = vector.broadcast %210 : vector<1x144xf32> to vector<2x144xf32>
    %214 = arith.mulf %183, %213 : vector<2x144xf32>
    %215 = vector.broadcast %212 : vector<1x144xf32> to vector<2x144xf32>
    %216 = arith.addf %214, %215 : vector<2x144xf32>
    %c0_139 = arith.constant 0 : index
    %c0_140 = arith.constant 0 : index
    %217 = vector.load %arg25[%c0_139, %c0_140] : memref<144x392xf32, #tpu.memory_space<vmem>>, vector<144x392xf32>
    %cst_141 = arith.constant dense<0.000000e+00> : vector<2x392xf32>
    %218 = tpu.matmul %216, %217, %cst_141 {dimension_numbers = #tpu.dot_dimension_numbers<[1], [0], [0], [1], [0, 0, 1, 1], [], []>} : vector<2x144xf32>, vector<144x392xf32>, vector<2x392xf32> -> vector<2x392xf32>
    %c0_142 = arith.constant 0 : index
    %c0_143 = arith.constant 0 : index
    %219 = vector.load %arg26[%c0_142, %c0_143] : memref<1x392xf32, #tpu.memory_space<vmem>>, vector<1x392xf32>
    %220 = vector.broadcast %219 : vector<1x392xf32> to vector<2x392xf32>
    %221 = arith.addf %218, %220 : vector<2x392xf32>
    %c0_144 = arith.constant 0 : index
    %c0_145 = arith.constant 0 : index
    %222 = vector.load %arg27[%c0_144, %c0_145] : memref<392x1568xf32, #tpu.memory_space<vmem>>, vector<392x1568xf32>
    %cst_146 = arith.constant dense<0.000000e+00> : vector<2x1568xf32>
    %223 = tpu.matmul %221, %222, %cst_146 {dimension_numbers = #tpu.dot_dimension_numbers<[1], [0], [0], [1], [0, 0, 1, 1], [], []>} : vector<2x392xf32>, vector<392x1568xf32>, vector<2x1568xf32> -> vector<2x1568xf32>
    %c0_147 = arith.constant 0 : index
    %c0_148 = arith.constant 0 : index
    %224 = vector.load %arg28[%c0_147, %c0_148] : memref<1x1568xf32, #tpu.memory_space<vmem>>, vector<1x1568xf32>
    %225 = vector.broadcast %224 : vector<1x1568xf32> to vector<2x1568xf32>
    %226 = arith.addf %223, %225 : vector<2x1568xf32>
    %cst_149 = arith.constant 0.000000e+00 : f32
    %227 = vector.broadcast %cst_149 : f32 to vector<2x1568xf32>
    %228 = arith.cmpf oge, %226, %227 : vector<2x1568xf32>
    %cst_150 = arith.constant 1.000000e-01 : f32
    %229 = vector.broadcast %cst_150 : f32 to vector<2x1568xf32>
    %230 = arith.mulf %229, %226 : vector<2x1568xf32>
    %231 = arith.select %228, %226, %230 : vector<2x1568xi1>, vector<2x1568xf32>
    %cst_151 = arith.constant dense<0.000000e+00> : vector<1568xf32>
    %232 = vector.multi_reduction <add>, %231, %cst_151 [0] : vector<2x1568xf32> to vector<1568xf32>
    %233 = vector.shape_cast %232 : vector<1568xf32> to vector<1x1568xf32>
    %c0_152 = arith.constant 0 : index
    %c0_153 = arith.constant 0 : index
    %234 = vector.load %arg29[%c0_152, %c0_153] : memref<1568x8xf32, #tpu.memory_space<vmem>>, vector<1568x8xf32>
    %cst_154 = arith.constant dense<0.000000e+00> : vector<1x8xf32>
    %235 = tpu.matmul %233, %234, %cst_154 {dimension_numbers = #tpu.dot_dimension_numbers<[1], [0], [0], [1], [0, 0, 1, 1], [], []>} : vector<1x1568xf32>, vector<1568x8xf32>, vector<1x8xf32> -> vector<1x8xf32>
    %236 = arith.mulf %231, %231 : vector<2x1568xf32>
    %cst_155 = arith.constant dense<0.000000e+00> : vector<1568xf32>
    %237 = vector.multi_reduction <add>, %236, %cst_155 [0] : vector<2x1568xf32> to vector<1568xf32>
    %238 = vector.shape_cast %237 : vector<1568xf32> to vector<1x1568xf32>
    %c0_156 = arith.constant 0 : index
    %c0_157 = arith.constant 0 : index
    %239 = vector.load %arg29[%c0_156, %c0_157] : memref<1568x8xf32, #tpu.memory_space<vmem>>, vector<1568x8xf32>
    %cst_158 = arith.constant dense<0.000000e+00> : vector<1x8xf32>
    %240 = tpu.matmul %238, %239, %cst_158 {dimension_numbers = #tpu.dot_dimension_numbers<[1], [0], [0], [1], [0, 0, 1, 1], [], []>} : vector<1x1568xf32>, vector<1568x8xf32>, vector<1x8xf32> -> vector<1x8xf32>
    %cst_159 = arith.constant 0.00255102036 : f32
    %241 = vector.broadcast %cst_159 : f32 to vector<1x8xf32>
    %242 = arith.mulf %235, %241 : vector<1x8xf32>
    %cst_160 = arith.constant 0.00255102036 : f32
    %243 = vector.broadcast %cst_160 : f32 to vector<1x8xf32>
    %244 = arith.mulf %240, %243 : vector<1x8xf32>
    %245 = arith.mulf %242, %242 : vector<1x8xf32>
    %246 = arith.subf %244, %245 : vector<1x8xf32>
    %cst_161 = arith.constant 0.000000e+00 : f32
    %247 = vector.broadcast %cst_161 : f32 to vector<1x8xf32>
    %248 = arith.maximumf %246, %247 : vector<1x8xf32>
    %cst_162 = arith.constant 9.99999974E-6 : f32
    %249 = vector.broadcast %cst_162 : f32 to vector<1x8xf32>
    %250 = arith.addf %248, %249 : vector<1x8xf32>
    %251 = math.rsqrt %250 : vector<1x8xf32>
    %c0_163 = arith.constant 0 : index
    %c0_164 = arith.constant 0 : index
    %252 = vector.load %arg31[%c0_163, %c0_164] : memref<1x8xf32, #tpu.memory_space<vmem>>, vector<1x8xf32>
    %253 = arith.mulf %252, %251 : vector<1x8xf32>
    %c0_165 = arith.constant 0 : index
    %c0_166 = arith.constant 0 : index
    %254 = vector.load %arg32[%c0_165, %c0_166] : memref<1x8xf32, #tpu.memory_space<vmem>>, vector<1x8xf32>
    %255 = arith.mulf %253, %242 : vector<1x8xf32>
    %256 = arith.subf %254, %255 : vector<1x8xf32>
    %c0_167 = arith.constant 0 : index
    %c0_168 = arith.constant 0 : index
    %257 = vector.load %arg30[%c0_167, %c0_168] : memref<8x1568xf32, #tpu.memory_space<vmem>>, vector<8x1568xf32>
    %cst_169 = arith.constant dense<0.000000e+00> : vector<1x1568xf32>
    %258 = tpu.matmul %253, %257, %cst_169 {dimension_numbers = #tpu.dot_dimension_numbers<[1], [0], [0], [1], [0, 0, 1, 1], [], []>} : vector<1x8xf32>, vector<8x1568xf32>, vector<1x1568xf32> -> vector<1x1568xf32>
    %c0_170 = arith.constant 0 : index
    %c0_171 = arith.constant 0 : index
    %259 = vector.load %arg30[%c0_170, %c0_171] : memref<8x1568xf32, #tpu.memory_space<vmem>>, vector<8x1568xf32>
    %cst_172 = arith.constant dense<0.000000e+00> : vector<1x1568xf32>
    %260 = tpu.matmul %256, %259, %cst_172 {dimension_numbers = #tpu.dot_dimension_numbers<[1], [0], [0], [1], [0, 0, 1, 1], [], []>} : vector<1x8xf32>, vector<8x1568xf32>, vector<1x1568xf32> -> vector<1x1568xf32>
    %261 = vector.broadcast %258 : vector<1x1568xf32> to vector<2x1568xf32>
    %262 = arith.mulf %231, %261 : vector<2x1568xf32>
    %263 = vector.broadcast %260 : vector<1x1568xf32> to vector<2x1568xf32>
    %264 = arith.addf %262, %263 : vector<2x1568xf32>
    %c0_173 = arith.constant 0 : index
    %c0_174 = arith.constant 0 : index
    %265 = vector.load %arg33[%c0_173, %c0_174] : memref<1568x256xf32, #tpu.memory_space<vmem>>, vector<1568x256xf32>
    %cst_175 = arith.constant dense<0.000000e+00> : vector<2x256xf32>
    %266 = tpu.matmul %264, %265, %cst_175 {dimension_numbers = #tpu.dot_dimension_numbers<[1], [0], [0], [1], [0, 0, 1, 1], [], []>} : vector<2x1568xf32>, vector<1568x256xf32>, vector<2x256xf32> -> vector<2x256xf32>
    %c0_176 = arith.constant 0 : index
    %c0_177 = arith.constant 0 : index
    %267 = vector.load %arg34[%c0_176, %c0_177] : memref<1x256xf32, #tpu.memory_space<vmem>>, vector<1x256xf32>
    %268 = vector.broadcast %267 : vector<1x256xf32> to vector<2x256xf32>
    %269 = arith.addf %266, %268 : vector<2x256xf32>
    %c0_178 = arith.constant 0 : index
    %c0_179 = arith.constant 0 : index
    %270 = vector.load %arg35[%c0_178, %c0_179] : memref<2x256xf32, #tpu.memory_space<vmem>>, vector<2x256xf32>
    tpu.vector_store %arg35[%c0_178, %c0_179], %269 {strides = array<i32>} : memref<2x256xf32, #tpu.memory_space<vmem>>, vector<2x256xf32>,
    return
  }
  func.func @transform_0(%arg0: i32) -> (i32, i32) {
    %c0_i32 = arith.constant 0 : i32
    %c0_i32_0 = arith.constant 0 : i32
    %c0_i32_1 = arith.constant 0 : i32
    return %c0_i32, %c0_i32_0 : i32, i32
  }
  func.func @transform_1(%arg0: i32) -> (i32, i32) {
    %c0_i32 = arith.constant 0 : i32
    %c0_i32_0 = arith.constant 0 : i32
    %c0_i32_1 = arith.constant 0 : i32
    return %c0_i32, %c0_i32_0 : i32, i32
  }
  func.func @transform_2(%arg0: i32) -> (i32, i32) {
    %c0_i32 = arith.constant 0 : i32
    %c0_i32_0 = arith.constant 0 : i32
    %c0_i32_1 = arith.constant 0 : i32
    return %c0_i32, %c0_i32_0 : i32, i32
  }
  func.func @transform_3(%arg0: i32) -> (i32, i32) {
    %c0_i32 = arith.constant 0 : i32
    %c0_i32_0 = arith.constant 0 : i32
    %c0_i32_1 = arith.constant 0 : i32
    return %c0_i32, %c0_i32_0 : i32, i32
  }
  func.func @transform_4(%arg0: i32) -> (i32, i32) {
    %c0_i32 = arith.constant 0 : i32
    %c0_i32_0 = arith.constant 0 : i32
    %c0_i32_1 = arith.constant 0 : i32
    return %c0_i32, %c0_i32_0 : i32, i32
  }
  func.func @transform_5(%arg0: i32) -> (i32, i32) {
    %c0_i32 = arith.constant 0 : i32
    %c0_i32_0 = arith.constant 0 : i32
    %c0_i32_1 = arith.constant 0 : i32
    return %c0_i32, %c0_i32_0 : i32, i32
  }
  func.func @transform_6(%arg0: i32) -> (i32, i32) {
    %c0_i32 = arith.constant 0 : i32
    %c0_i32_0 = arith.constant 0 : i32
    %c0_i32_1 = arith.constant 0 : i32
    return %c0_i32, %c0_i32_0 : i32, i32
  }
  func.func @transform_7(%arg0: i32) -> (i32, i32) {
    %c0_i32 = arith.constant 0 : i32
    %c0_i32_0 = arith.constant 0 : i32
    %c0_i32_1 = arith.constant 0 : i32
    return %c0_i32, %c0_i32_0 : i32, i32
  }
  func.func @transform_8(%arg0: i32) -> (i32, i32) {
    %c0_i32 = arith.constant 0 : i32
    %c0_i32_0 = arith.constant 0 : i32
    %c0_i32_1 = arith.constant 0 : i32
    return %c0_i32, %c0_i32_0 : i32, i32
  }
  func.func @transform_9(%arg0: i32) -> (i32, i32) {
    %c0_i32 = arith.constant 0 : i32
    %c0_i32_0 = arith.constant 0 : i32
    %c0_i32_1 = arith.constant 0 : i32
    return %c0_i32, %c0_i32_0 : i32, i32
  }
  func.func @transform_10(%arg0: i32) -> (i32, i32) {
    %c0_i32 = arith.constant 0 : i32
    %c0_i32_0 = arith.constant 0 : i32
    %c0_i32_1 = arith.constant 0 : i32
    return %c0_i32, %c0_i32_0 : i32, i32
  }
  func.func @transform_11(%arg0: i32) -> (i32, i32) {
    %c0_i32 = arith.constant 0 : i32
    %c0_i32_0 = arith.constant 0 : i32
    %c0_i32_1 = arith.constant 0 : i32
    return %c0_i32, %c0_i32_0 : i32, i32
  }
  func.func @transform_12(%arg0: i32) -> (i32, i32) {
    %c0_i32 = arith.constant 0 : i32
    %c0_i32_0 = arith.constant 0 : i32
    %c0_i32_1 = arith.constant 0 : i32
    return %c0_i32, %c0_i32_0 : i32, i32
  }
  func.func @transform_13(%arg0: i32) -> (i32, i32) {
    %c0_i32 = arith.constant 0 : i32
    %c0_i32_0 = arith.constant 0 : i32
    %c0_i32_1 = arith.constant 0 : i32
    return %c0_i32, %c0_i32_0 : i32, i32
  }
  func.func @transform_14(%arg0: i32) -> (i32, i32) {
    %c0_i32 = arith.constant 0 : i32
    %c0_i32_0 = arith.constant 0 : i32
    %c0_i32_1 = arith.constant 0 : i32
    return %c0_i32, %c0_i32_0 : i32, i32
  }
  func.func @transform_15(%arg0: i32) -> (i32, i32) {
    %c0_i32 = arith.constant 0 : i32
    %c0_i32_0 = arith.constant 0 : i32
    %c0_i32_1 = arith.constant 0 : i32
    return %c0_i32, %c0_i32_0 : i32, i32
  }
  func.func @transform_16(%arg0: i32) -> (i32, i32) {
    %c0_i32 = arith.constant 0 : i32
    %c0_i32_0 = arith.constant 0 : i32
    %c0_i32_1 = arith.constant 0 : i32
    return %c0_i32, %c0_i32_0 : i32, i32
  }
  func.func @transform_17(%arg0: i32) -> (i32, i32) {
    %c0_i32 = arith.constant 0 : i32
    %c0_i32_0 = arith.constant 0 : i32
    %c0_i32_1 = arith.constant 0 : i32
    return %c0_i32, %c0_i32_0 : i32, i32
  }
  func.func @transform_18(%arg0: i32) -> (i32, i32) {
    %c0_i32 = arith.constant 0 : i32
    %c0_i32_0 = arith.constant 0 : i32
    %c0_i32_1 = arith.constant 0 : i32
    return %c0_i32, %c0_i32_0 : i32, i32
  }
  func.func @transform_19(%arg0: i32) -> (i32, i32) {
    %c0_i32 = arith.constant 0 : i32
    %c0_i32_0 = arith.constant 0 : i32
    %c0_i32_1 = arith.constant 0 : i32
    return %c0_i32, %c0_i32_0 : i32, i32
  }
  func.func @transform_20(%arg0: i32) -> (i32, i32) {
    %c0_i32 = arith.constant 0 : i32
    %c0_i32_0 = arith.constant 0 : i32
    %c0_i32_1 = arith.constant 0 : i32
    return %c0_i32, %c0_i32_0 : i32, i32
  }
  func.func @transform_21(%arg0: i32) -> (i32, i32) {
    %c0_i32 = arith.constant 0 : i32
    %c0_i32_0 = arith.constant 0 : i32
    %c0_i32_1 = arith.constant 0 : i32
    return %c0_i32, %c0_i32_0 : i32, i32
  }
  func.func @transform_22(%arg0: i32) -> (i32, i32) {
    %c0_i32 = arith.constant 0 : i32
    %c0_i32_0 = arith.constant 0 : i32
    %c0_i32_1 = arith.constant 0 : i32
    return %c0_i32, %c0_i32_0 : i32, i32
  }
  func.func @transform_23(%arg0: i32) -> (i32, i32) {
    %c0_i32 = arith.constant 0 : i32
    %c0_i32_0 = arith.constant 0 : i32
    %c0_i32_1 = arith.constant 0 : i32
    return %c0_i32, %c0_i32_0 : i32, i32
  }
  func.func @transform_24(%arg0: i32) -> (i32, i32) {
    %c0_i32 = arith.constant 0 : i32
    %c0_i32_0 = arith.constant 0 : i32
    %c0_i32_1 = arith.constant 0 : i32
    return %c0_i32, %c0_i32_0 : i32, i32
  }
  func.func @transform_25(%arg0: i32) -> (i32, i32) {
    %c0_i32 = arith.constant 0 : i32
    %c0_i32_0 = arith.constant 0 : i32
    %c0_i32_1 = arith.constant 0 : i32
    return %c0_i32, %c0_i32_0 : i32, i32
  }
  func.func @transform_26(%arg0: i32) -> (i32, i32) {
    %c0_i32 = arith.constant 0 : i32
    %c0_i32_0 = arith.constant 0 : i32
    %c0_i32_1 = arith.constant 0 : i32
    return %c0_i32, %c0_i32_0 : i32, i32
  }
  func.func @transform_27(%arg0: i32) -> (i32, i32) {
    %c0_i32 = arith.constant 0 : i32
    %c0_i32_0 = arith.constant 0 : i32
    %c0_i32_1 = arith.constant 0 : i32
    return %c0_i32, %c0_i32_0 : i32, i32
  }
  func.func @transform_28(%arg0: i32) -> (i32, i32) {
    %c0_i32 = arith.constant 0 : i32
    %c0_i32_0 = arith.constant 0 : i32
    %c0_i32_1 = arith.constant 0 : i32
    return %c0_i32, %c0_i32_0 : i32, i32
  }
  func.func @transform_29(%arg0: i32) -> (i32, i32) {
    %c0_i32 = arith.constant 0 : i32
    %c0_i32_0 = arith.constant 0 : i32
    %c0_i32_1 = arith.constant 0 : i32
    return %c0_i32, %c0_i32_0 : i32, i32
  }
  func.func @transform_30(%arg0: i32) -> (i32, i32) {
    %c0_i32 = arith.constant 0 : i32
    %c0_i32_0 = arith.constant 0 : i32
    %c0_i32_1 = arith.constant 0 : i32
    return %c0_i32, %c0_i32_0 : i32, i32
  }
  func.func @transform_31(%arg0: i32) -> (i32, i32) {
    %c0_i32 = arith.constant 0 : i32
    %c0_i32_0 = arith.constant 0 : i32
    %c0_i32_1 = arith.constant 0 : i32
    return %c0_i32, %c0_i32_0 : i32, i32
  }
  func.func @transform_32(%arg0: i32) -> (i32, i32) {
    %c0_i32 = arith.constant 0 : i32
    %c0_i32_0 = arith.constant 0 : i32
    %c0_i32_1 = arith.constant 0 : i32
    return %c0_i32, %c0_i32_0 : i32, i32
  }
  func.func @transform_33(%arg0: i32) -> (i32, i32) {
    %c0_i32 = arith.constant 0 : i32
    %c0_i32_0 = arith.constant 0 : i32
    %c0_i32_1 = arith.constant 0 : i32
    return %c0_i32, %c0_i32_0 : i32, i32
  }
  func.func @transform_34(%arg0: i32) -> (i32, i32) {
    %c0_i32 = arith.constant 0 : i32
    %c0_i32_0 = arith.constant 0 : i32
    %c0_i32_1 = arith.constant 0 : i32
    return %c0_i32, %c0_i32_0 : i32, i32
  }
}

</mosaic_0001>

<llo_original>
// kernel: elev_map_enc_dec.1
$region0: #{elev_map_enc_dec.1}
  #allocation0 [shape = 'u32[]', space=smem, size = 0x4, offset = 0x4, fixed_abs, tag = 'smem constant byte address 0x4 - core index']
  #allocation1 [shape = 'u32[144,128]{1,0:T(1,128)}', space=vmem, size = 0x12000, scoped, tag = 'internal scratch']
  %s0 = inlined_call_operand.smem [shape: u32[35], index: -1, kind: input, shape index: {}]
  %s1 = sld [smem:[%s0]]
  %s2 = scalar_lea.smem %s0, 1
  %s3 = sld [smem:[%s2]]
  %s4 = scalar_lea.smem %s0, 2
  %s5 = sld [smem:[%s4]]
  %s6 = scalar_lea.smem %s0, 3
  %s7 = sld [smem:[%s6]]
  %s8 = scalar_lea.smem %s0, 4
  %s9 = sld [smem:[%s8]]
  %s10 = scalar_lea.smem %s0, 5
  %s11 = sld [smem:[%s10]]
  %s12 = scalar_lea.smem %s0, 6
  %s13 = sld [smem:[%s12]]
  %s14 = scalar_lea.smem %s0, 7
  %s15 = sld [smem:[%s14]]
  %s16 = scalar_lea.smem %s0, 8
  %s17 = sld [smem:[%s16]]
  %s18 = scalar_lea.smem %s0, 9
  %s19 = sld [smem:[%s18]]
  %s20 = scalar_lea.smem %s0, 10
  %s21 = sld [smem:[%s20]]
  %s22 = scalar_lea.smem %s0, 11
  %s23 = sld [smem:[%s22]]
  %s24 = scalar_lea.smem %s0, 12
  %s25 = sld [smem:[%s24]]
  %s26 = scalar_lea.smem %s0, 13
  %s27 = sld [smem:[%s26]]
  %s28 = scalar_lea.smem %s0, 14
  %s29 = sld [smem:[%s28]]
  %s30 = scalar_lea.smem %s0, 15
  %s31 = sld [smem:[%s30]]
  %s32 = scalar_lea.smem %s0, 16
  %s33 = sld [smem:[%s32]]
  %s34 = scalar_lea.smem %s0, 17
  %s35 = sld [smem:[%s34]]
  %s36 = scalar_lea.smem %s0, 18
  %s37 = sld [smem:[%s36]]
  %s38 = scalar_lea.smem %s0, 19
  %s39 = sld [smem:[%s38]]
  %s40 = scalar_lea.smem %s0, 20
  %s41 = sld [smem:[%s40]]
  %s42 = scalar_lea.smem %s0, 21
  %s43 = sld [smem:[%s42]]
  %s44 = scalar_lea.smem %s0, 22
  %s45 = sld [smem:[%s44]]
  %s46 = scalar_lea.smem %s0, 23
  %s47 = sld [smem:[%s46]]
  %s48 = scalar_lea.smem %s0, 24
  %s49 = sld [smem:[%s48]]
  %s50 = scalar_lea.smem %s0, 25
  %s51 = sld [smem:[%s50]]
  %s52 = scalar_lea.smem %s0, 26
  %s53 = sld [smem:[%s52]]
  %s54 = scalar_lea.smem %s0, 27
  %s55 = sld [smem:[%s54]]
  %s56 = scalar_lea.smem %s0, 28
  %s57 = sld [smem:[%s56]]
  %s58 = scalar_lea.smem %s0, 29
  %s59 = sld [smem:[%s58]]
  %s60 = scalar_lea.smem %s0, 30
  %s61 = sld [smem:[%s60]]
  %s62 = scalar_lea.smem %s0, 31
  %s63 = sld [smem:[%s62]]
  %s64 = scalar_lea.smem %s0, 32
  %s65 = sld [smem:[%s64]]
  %s66 = scalar_lea.smem %s0, 33
  %s67 = sld [smem:[%s66]]
  %s68 = scalar_lea.smem %s0, 34
  %s69 = sld [smem:[%s68]]
  %s70 = sld [smem:[#allocation0]]
  $region246: #{elev_map_enc_dec.1} parent=0
    _
  %s72 = ssub.s32 1, %s70
  %s73 = scalar_select 0, %s72, %s70
  $region1: #{elev_map_enc_dec.1} parent=0
    #allocation2 [shape = 'u8[524288]{0}', space=vmem, size = 0x80000, scoped, tag = 'input window, operand 2, single buffered']
    #allocation3 [shape = 's32[1]{0}', space=sflag, size = 0x4, scoped, tag = 'scoped memory for elev_map_enc_dec.1']
    #allocation4 [shape = 'u8[524288]{0}', space=vmem, size = 0x80000, scoped, tag = 'input window, operand 3, single buffered']
    #allocation5 [shape = 's32[1]{0}', space=sflag, size = 0x4, scoped, tag = 'scoped memory for elev_map_enc_dec.1']
    #allocation6 [shape = 'u8[524288]{0}', space=vmem, size = 0x80000, scoped, tag = 'input window, operand 4, single buffered']
    #allocation7 [shape = 'u8[2048]{0}', space=vmem, size = 0x800, scoped, tag = 'input window, operand 5, single buffered']
    #allocation8 [shape = 's32[1]{0}', space=sflag, size = 0x4, scoped, tag = 'scoped memory for elev_map_enc_dec.1']
    #allocation9 [shape = 'u8[16384]{0}', space=vmem, size = 0x4000, scoped, tag = 'input window, operand 7, single buffered']
    #allocation10 [shape = 'u8[512]{0}', space=vmem, size = 0x400, scoped, tag = 'input window, operand 8, single buffered']
    #allocation11 [shape = 's32[1]{0}', space=sflag, size = 0x4, scoped, tag = 'scoped memory for elev_map_enc_dec.1']
    #allocation12 [shape = 'u8[512]{0}', space=vmem, size = 0x400, scoped, tag = 'input window, operand 9, single buffered']
    #allocation13 [shape = 'u8[1024]{0}', space=vmem, size = 0x400, scoped, tag = 'input window, operand 11, single buffered']
    #allocation14 [shape = 's32[1]{0}', space=sflag, size = 0x4, scoped, tag = 'scoped memory for elev_map_enc_dec.1']
    #allocation15 [shape = 'u8[16384]{0}', space=vmem, size = 0x4000, scoped, tag = 'input window, operand 13, single buffered']
    #allocation16 [shape = 'u8[512]{0}', space=vmem, size = 0x400, scoped, tag = 'input window, operand 14, single buffered']
    #allocation17 [shape = 's32[1]{0}', space=sflag, size = 0x4, scoped, tag = 'scoped memory for elev_map_enc_dec.1']
    #allocation18 [shape = 'u8[512]{0}', space=vmem, size = 0x400, scoped, tag = 'input window, operand 15, single buffered']
    #allocation19 [shape = 'u8[512]{0}', space=vmem, size = 0x400, scoped, tag = 'input window, operand 17, single buffered']
    #allocation20 [shape = 's32[1]{0}', space=sflag, size = 0x4, scoped, tag = 'scoped memory for elev_map_enc_dec.1']
    #allocation21 [shape = 'u8[24576]{0}', space=vmem, size = 0x6000, scoped, tag = 'input window, operand 18, single buffered']
    #allocation22 [shape = 'u8[1024]{0}', space=vmem, size = 0x400, scoped, tag = 'input window, operand 19, single buffered']
    #allocation23 [shape = 's32[1]{0}', space=sflag, size = 0x4, scoped, tag = 'scoped memory for elev_map_enc_dec.1']
    #allocation24 [shape = 'u8[16384]{0}', space=vmem, size = 0x4000, scoped, tag = 'input window, operand 21, single buffered']
    #allocation25 [shape = 'u8[512]{0}', space=vmem, size = 0x400, scoped, tag = 'input window, operand 22, single buffered']
    #allocation26 [shape = 's32[1]{0}', space=sflag, size = 0x4, scoped, tag = 'scoped memory for elev_map_enc_dec.1']
    #allocation27 [shape = 'u8[512]{0}', space=vmem, size = 0x400, scoped, tag = 'input window, operand 23, single buffered']
    #allocation28 [shape = 'u8[294912]{0}', space=vmem, size = 0x48000, scoped, tag = 'input window, operand 24, single buffered']
    #allocation29 [shape = 's32[1]{0}', space=sflag, size = 0x4, scoped, tag = 'scoped memory for elev_map_enc_dec.1']
    #allocation30 [shape = 'u8[2048]{0}', space=vmem, size = 0x800, scoped, tag = 'input window, operand 25, single buffered']
    #allocation31 [shape = 'u8[2609152]{0}', space=vmem, size = 0x27d000, scoped, tag = 'input window, operand 26, single buffered']
    #allocation32 [shape = 's32[1]{0}', space=sflag, size = 0x4, scoped, tag = 'scoped memory for elev_map_enc_dec.1']
    #allocation33 [shape = 'u8[6656]{0}', space=vmem, size = 0x1c00, scoped, tag = 'input window, operand 27, single buffered']
    #allocation34 [shape = 'u8[53248]{0}', space=vmem, size = 0xd000, scoped, tag = 'input window, operand 29, single buffered']
    #allocation35 [shape = 's32[1]{0}', space=sflag, size = 0x4, scoped, tag = 'scoped memory for elev_map_enc_dec.1']
    #allocation36 [shape = 'u8[512]{0}', space=vmem, size = 0x400, scoped, tag = 'input window, operand 30, single buffered']
    #allocation37 [shape = 'u8[512]{0}', space=vmem, size = 0x400, scoped, tag = 'input window, operand 31, single buffered']
    #allocation38 [shape = 's32[1]{0}', space=sflag, size = 0x4, scoped, tag = 'scoped memory for elev_map_enc_dec.1']
    #allocation39 [shape = 'u8[1024]{0}', space=vmem, size = 0x400, scoped, tag = 'input window, operand 33, single buffered']
    %74 = vsyncpa [#allocation3], 0
    %75 = vsyncpa [#allocation5], 0
    %76 = vsyncpa [#allocation8], 0
    %77 = vsyncpa [#allocation11], 0
    %78 = vsyncpa [#allocation14], 0
    %79 = vsyncpa [#allocation17], 0
    %80 = vsyncpa [#allocation20], 0
    %81 = vsyncpa [#allocation23], 0
    %82 = vsyncpa [#allocation26], 0
    %83 = vsyncpa [#allocation29], 0
    %84 = vsyncpa [#allocation32], 0
    %85 = vsyncpa [#allocation35], 0
    %86 = vsyncpa [#allocation38], 0
    // Predicated region
    $region2: #{elev_map_enc_dec.1} parent=1 // pred_check
      _
    $region3: #{elev_map_enc_dec.1} parent=1 // pred_check_branch
      %88 = sbr.rel (0) target = $region5
    $region4: #{elev_map_enc_dec.1} parent=1 // pred_region
      _
    $region5: #{elev_map_enc_dec.1} parent=1 // pred_fallthru
      _
    // Predicated region
    $region6: #{elev_map_enc_dec.1} parent=1 // pred_check
      _
    $region7: #{elev_map_enc_dec.1} parent=1 // pred_check_branch
      %90 = sbr.rel (0) target = $region9
    $region8: #{elev_map_enc_dec.1} parent=1 // pred_region
      _
    $region9: #{elev_map_enc_dec.1} parent=1 // pred_fallthru
      _
    // Predicated region
    $region10: #{elev_map_enc_dec.1} parent=1 // pred_check
      _
    $region11: #{elev_map_enc_dec.1} parent=1 // pred_check_branch
      %92 = sbr.rel (0) target = $region13
    $region12: #{elev_map_enc_dec.1} parent=1 // pred_region
      %s94 = ssub.s32 16384, 16384
      %95 = vsyncadd [#allocation3], %s94
      %s96 = sshll.u32 [#allocation2], 4
      %s97 = int_to_ptr.vmem [resolvable:$true] %s96
      %102 = dma.hbm_to_vmem [thread:$0]  %s5, 16384, %s97, [#allocation3], 512, 512, 32
    $region13: #{elev_map_enc_dec.1} parent=1 // pred_fallthru
      _
    // Predicated region
    $region14: #{elev_map_enc_dec.1} parent=1 // pred_check
      _
    $region15: #{elev_map_enc_dec.1} parent=1 // pred_check_branch
      %104 = sbr.rel (0) target = $region17
    $region16: #{elev_map_enc_dec.1} parent=1 // pred_region
      %s106 = ssub.s32 16384, 16384
      %107 = vsyncadd [#allocation5], %s106
      %s108 = sshll.u32 [#allocation4], 4
      %s109 = int_to_ptr.vmem [resolvable:$true] %s108
      %114 = dma.hbm_to_vmem [thread:$0]  %s7, 16384, %s109, [#allocation5], 512, 512, 32
    $region17: #{elev_map_enc_dec.1} parent=1 // pred_fallthru
      _
    // Predicated region
    $region18: #{elev_map_enc_dec.1} parent=1 // pred_check
      _
    $region19: #{elev_map_enc_dec.1} parent=1 // pred_check_branch
      %116 = sbr.rel (0) target = $region21
    $region20: #{elev_map_enc_dec.1} parent=1 // pred_region
      %s118 = ssub.s32 16384, 16384
      %119 = vsyncadd [#allocation5], %s118
      %s120 = sshll.u32 [#allocation6], 4
      %s121 = int_to_ptr.vmem [resolvable:$true] %s120
      %126 = dma.hbm_to_vmem [thread:$0]  %s9, 16384, %s121, [#allocation5], 512, 512, 32
    $region21: #{elev_map_enc_dec.1} parent=1 // pred_fallthru
      _
    // Predicated region
    $region22: #{elev_map_enc_dec.1} parent=1 // pred_check
      _
    $region23: #{elev_map_enc_dec.1} parent=1 // pred_check_branch
      %128 = sbr.rel (0) target = $region25
    $region24: #{elev_map_enc_dec.1} parent=1 // pred_region
      %s130 = ssub.s32 64, 64
      %131 = vsyncadd [#allocation8], %s130
      %s133 = sshll.u32 [#allocation7], 4
      %s134 = int_to_ptr.vmem [resolvable:$true] %s133
      %136 = dma.hbm_to_vmem [thread:$0]  %s11, 64, %s134, [#allocation8]
    $region25: #{elev_map_enc_dec.1} parent=1 // pred_fallthru
      _
    // Predicated region
    $region26: #{elev_map_enc_dec.1} parent=1 // pred_check
      _
    $region27: #{elev_map_enc_dec.1} parent=1 // pred_check_branch
      %138 = sbr.rel (0) target = $region29
    $region28: #{elev_map_enc_dec.1} parent=1 // pred_region
      _
    $region29: #{elev_map_enc_dec.1} parent=1 // pred_fallthru
      _
    // Predicated region
    $region30: #{elev_map_enc_dec.1} parent=1 // pred_check
      _
    $region31: #{elev_map_enc_dec.1} parent=1 // pred_check_branch
      %140 = sbr.rel (0) target = $region33
    $region32: #{elev_map_enc_dec.1} parent=1 // pred_region
      %s142 = ssub.s32 512, 512
      %143 = vsyncadd [#allocation8], %s142
      %s145 = sshll.u32 [#allocation9], 4
      %s146 = int_to_ptr.vmem [resolvable:$true] %s145
      %148 = dma.hbm_to_vmem [thread:$0]  %s15, 512, %s146, [#allocation8]
    $region33: #{elev_map_enc_dec.1} parent=1 // pred_fallthru
      _
    // Predicated region
    $region34: #{elev_map_enc_dec.1} parent=1 // pred_check
      _
    $region35: #{elev_map_enc_dec.1} parent=1 // pred_check_branch
      %150 = sbr.rel (0) target = $region37
    $region36: #{elev_map_enc_dec.1} parent=1 // pred_region
      %s152 = ssub.s32 16, 16
      %153 = vsyncadd [#allocation11], %s152
      %s155 = sshll.u32 [#allocation10], 4
      %s156 = int_to_ptr.vmem [resolvable:$true] %s155
      %158 = dma.hbm_to_vmem [thread:$0]  %s17, 16, %s156, [#allocation11]
    $region37: #{elev_map_enc_dec.1} parent=1 // pred_fallthru
      _
    // Predicated region
    $region38: #{elev_map_enc_dec.1} parent=1 // pred_check
      _
    $region39: #{elev_map_enc_dec.1} parent=1 // pred_check_branch
      %160 = sbr.rel (0) target = $region41
    $region40: #{elev_map_enc_dec.1} parent=1 // pred_region
      %s162 = ssub.s32 16, 16
      %163 = vsyncadd [#allocation11], %s162
      %s165 = sshll.u32 [#allocation12], 4
      %s166 = int_to_ptr.vmem [resolvable:$true] %s165
      %168 = dma.hbm_to_vmem [thread:$0]  %s19, 16, %s166, [#allocation11]
    $region41: #{elev_map_enc_dec.1} parent=1 // pred_fallthru
      _
    // Predicated region
    $region42: #{elev_map_enc_dec.1} parent=1 // pred_check
      _
    $region43: #{elev_map_enc_dec.1} parent=1 // pred_check_branch
      %170 = sbr.rel (0) target = $region45
    $region44: #{elev_map_enc_dec.1} parent=1 // pred_region
      _
    $region45: #{elev_map_enc_dec.1} parent=1 // pred_fallthru
      _
    // Predicated region
    $region46: #{elev_map_enc_dec.1} parent=1 // pred_check
      _
    $region47: #{elev_map_enc_dec.1} parent=1 // pred_check_branch
      %172 = sbr.rel (0) target = $region49
    $region48: #{elev_map_enc_dec.1} parent=1 // pred_region
      %s174 = ssub.s32 32, 32
      %175 = vsyncadd [#allocation14], %s174
      %s177 = sshll.u32 [#allocation13], 4
      %s178 = int_to_ptr.vmem [resolvable:$true] %s177
      %180 = dma.hbm_to_vmem [thread:$0]  %s23, 32, %s178, [#allocation14]
    $region49: #{elev_map_enc_dec.1} parent=1 // pred_fallthru
      _
    // Predicated region
    $region50: #{elev_map_enc_dec.1} parent=1 // pred_check
      _
    $region51: #{elev_map_enc_dec.1} parent=1 // pred_check_branch
      %182 = sbr.rel (0) target = $region53
    $region52: #{elev_map_enc_dec.1} parent=1 // pred_region
      _
    $region53: #{elev_map_enc_dec.1} parent=1 // pred_fallthru
      _
    // Predicated region
    $region54: #{elev_map_enc_dec.1} parent=1 // pred_check
      _
    $region55: #{elev_map_enc_dec.1} parent=1 // pred_check_branch
      %184 = sbr.rel (0) target = $region57
    $region56: #{elev_map_enc_dec.1} parent=1 // pred_region
      %s186 = ssub.s32 512, 512
      %187 = vsyncadd [#allocation14], %s186
      %s188 = sshll.u32 [#allocation15], 4
      %s189 = int_to_ptr.vmem [resolvable:$true] %s188
      %194 = dma.hbm_to_vmem [thread:$0]  %s27, 512, %s189, [#allocation14], 256, 256, 16
    $region57: #{elev_map_enc_dec.1} parent=1 // pred_fallthru
      _
    // Predicated region
    $region58: #{elev_map_enc_dec.1} parent=1 // pred_check
      _
    $region59: #{elev_map_enc_dec.1} parent=1 // pred_check_branch
      %196 = sbr.rel (0) target = $region61
    $region60: #{elev_map_enc_dec.1} parent=1 // pred_region
      %s198 = ssub.s32 16, 16
      %199 = vsyncadd [#allocation17], %s198
      %s201 = sshll.u32 [#allocation16], 4
      %s202 = int_to_ptr.vmem [resolvable:$true] %s201
      %204 = dma.hbm_to_vmem [thread:$0]  %s29, 16, %s202, [#allocation17]
    $region61: #{elev_map_enc_dec.1} parent=1 // pred_fallthru
      _
    // Predicated region
    $region62: #{elev_map_enc_dec.1} parent=1 // pred_check
      _
    $region63: #{elev_map_enc_dec.1} parent=1 // pred_check_branch
      %206 = sbr.rel (0) target = $region65
    $region64: #{elev_map_enc_dec.1} parent=1 // pred_region
      %s208 = ssub.s32 16, 16
      %209 = vsyncadd [#allocation17], %s208
      %s211 = sshll.u32 [#allocation18], 4
      %s212 = int_to_ptr.vmem [resolvable:$true] %s211
      %214 = dma.hbm_to_vmem [thread:$0]  %s31, 16, %s212, [#allocation17]
    $region65: #{elev_map_enc_dec.1} parent=1 // pred_fallthru
      _
    // Predicated region
    $region66: #{elev_map_enc_dec.1} parent=1 // pred_check
      _
    $region67: #{elev_map_enc_dec.1} parent=1 // pred_check_branch
      %216 = sbr.rel (0) target = $region69
    $region68: #{elev_map_enc_dec.1} parent=1 // pred_region
      _
    $region69: #{elev_map_enc_dec.1} parent=1 // pred_fallthru
      _
    // Predicated region
    $region70: #{elev_map_enc_dec.1} parent=1 // pred_check
      _
    $region71: #{elev_map_enc_dec.1} parent=1 // pred_check_branch
      %218 = sbr.rel (0) target = $region73
    $region72: #{elev_map_enc_dec.1} parent=1 // pred_region
      %s220 = ssub.s32 16, 16
      %221 = vsyncadd [#allocation20], %s220
      %s223 = sshll.u32 [#allocation19], 4
      %s224 = int_to_ptr.vmem [resolvable:$true] %s223
      %226 = dma.hbm_to_vmem [thread:$0]  %s35, 16, %s224, [#allocation20]
    $region73: #{elev_map_enc_dec.1} parent=1 // pred_fallthru
      _
    // Predicated region
    $region74: #{elev_map_enc_dec.1} parent=1 // pred_check
      _
    $region75: #{elev_map_enc_dec.1} parent=1 // pred_check_branch
      %228 = sbr.rel (0) target = $region77
    $region76: #{elev_map_enc_dec.1} parent=1 // pred_region
      %s230 = ssub.s32 768, 768
      %231 = vsyncadd [#allocation20], %s230
      %s232 = sshll.u32 [#allocation21], 4
      %s233 = int_to_ptr.vmem [resolvable:$true] %s232
      %238 = dma.hbm_to_vmem [thread:$0]  %s37, 768, %s233, [#allocation20], 256, 256, 16
    $region77: #{elev_map_enc_dec.1} parent=1 // pred_fallthru
      _
    // Predicated region
    $region78: #{elev_map_enc_dec.1} parent=1 // pred_check
      _
    $region79: #{elev_map_enc_dec.1} parent=1 // pred_check_branch
      %240 = sbr.rel (0) target = $region81
    $region80: #{elev_map_enc_dec.1} parent=1 // pred_region
      %s242 = ssub.s32 32, 32
      %243 = vsyncadd [#allocation23], %s242
      %s245 = sshll.u32 [#allocation22], 4
      %s246 = int_to_ptr.vmem [resolvable:$true] %s245
      %248 = dma.hbm_to_vmem [thread:$0]  %s39, 32, %s246, [#allocation23]
    $region81: #{elev_map_enc_dec.1} parent=1 // pred_fallthru
      _
    // Predicated region
    $region82: #{elev_map_enc_dec.1} parent=1 // pred_check
      _
    $region83: #{elev_map_enc_dec.1} parent=1 // pred_check_branch
      %250 = sbr.rel (0) target = $region85
    $region84: #{elev_map_enc_dec.1} parent=1 // pred_region
      _
    $region85: #{elev_map_enc_dec.1} parent=1 // pred_fallthru
      _
    // Predicated region
    $region86: #{elev_map_enc_dec.1} parent=1 // pred_check
      _
    $region87: #{elev_map_enc_dec.1} parent=1 // pred_check_branch
      %252 = sbr.rel (0) target = $region89
    $region88: #{elev_map_enc_dec.1} parent=1 // pred_region
      %s254 = ssub.s32 512, 512
      %255 = vsyncadd [#allocation23], %s254
      %s256 = sshll.u32 [#allocation24], 4
      %s257 = int_to_ptr.vmem [resolvable:$true] %s256
      %262 = dma.hbm_to_vmem [thread:$0]  %s43, 512, %s257, [#allocation23], 256, 256, 16
    $region89: #{elev_map_enc_dec.1} parent=1 // pred_fallthru
      _
    // Predicated region
    $region90: #{elev_map_enc_dec.1} parent=1 // pred_check
      _
    $region91: #{elev_map_enc_dec.1} parent=1 // pred_check_branch
      %264 = sbr.rel (0) target = $region93
    $region92: #{elev_map_enc_dec.1} parent=1 // pred_region
      %s266 = ssub.s32 16, 16
      %267 = vsyncadd [#allocation26], %s266
      %s269 = sshll.u32 [#allocation25], 4
      %s270 = int_to_ptr.vmem [resolvable:$true] %s269
      %272 = dma.hbm_to_vmem [thread:$0]  %s45, 16, %s270, [#allocation26]
    $region93: #{elev_map_enc_dec.1} parent=1 // pred_fallthru
      _
    // Predicated region
    $region94: #{elev_map_enc_dec.1} parent=1 // pred_check
      _
    $region95: #{elev_map_enc_dec.1} parent=1 // pred_check_branch
      %274 = sbr.rel (0) target = $region97
    $region96: #{elev_map_enc_dec.1} parent=1 // pred_region
      %s276 = ssub.s32 16, 16
      %277 = vsyncadd [#allocation26], %s276
      %s279 = sshll.u32 [#allocation27], 4
      %s280 = int_to_ptr.vmem [resolvable:$true] %s279
      %282 = dma.hbm_to_vmem [thread:$0]  %s47, 16, %s280, [#allocation26]
    $region97: #{elev_map_enc_dec.1} parent=1 // pred_fallthru
      _
    // Predicated region
    $region98: #{elev_map_enc_dec.1} parent=1 // pred_check
      _
    $region99: #{elev_map_enc_dec.1} parent=1 // pred_check_branch
      %284 = sbr.rel (0) target = $region101
    $region100: #{elev_map_enc_dec.1} parent=1 // pred_region
      %s286 = ssub.s32 9216, 9216
      %287 = vsyncadd [#allocation29], %s286
      %s288 = sshll.u32 [#allocation28], 4
      %s289 = int_to_ptr.vmem [resolvable:$true] %s288
      %294 = dma.hbm_to_vmem [thread:$0]  %s49, 9216, %s289, [#allocation29], 512, 512, 32
    $region101: #{elev_map_enc_dec.1} parent=1 // pred_fallthru
      _
    // Predicated region
    $region102: #{elev_map_enc_dec.1} parent=1 // pred_check
      _
    $region103: #{elev_map_enc_dec.1} parent=1 // pred_check_branch
      %296 = sbr.rel (0) target = $region105
    $region104: #{elev_map_enc_dec.1} parent=1 // pred_region
      %s298 = ssub.s32 64, 64
      %299 = vsyncadd [#allocation29], %s298
      %s301 = sshll.u32 [#allocation30], 4
      %s302 = int_to_ptr.vmem [resolvable:$true] %s301
      %304 = dma.hbm_to_vmem [thread:$0]  %s51, 64, %s302, [#allocation29]
    $region105: #{elev_map_enc_dec.1} parent=1 // pred_fallthru
      _
    // Predicated region
    $region106: #{elev_map_enc_dec.1} parent=1 // pred_check
      _
    $region107: #{elev_map_enc_dec.1} parent=1 // pred_check_branch
      %306 = sbr.rel (0) target = $region109
    $region108: #{elev_map_enc_dec.1} parent=1 // pred_region
      %s308 = ssub.s32 81536, 81536
      %309 = vsyncadd [#allocation32], %s308
      %s310 = sshll.u32 [#allocation31], 4
      %s311 = int_to_ptr.vmem [resolvable:$true] %s310
      %316 = dma.hbm_to_vmem [thread:$0]  %s53, 81536, %s311, [#allocation32], 1664, 1664, 104
    $region109: #{elev_map_enc_dec.1} parent=1 // pred_fallthru
      _
    // Predicated region
    $region110: #{elev_map_enc_dec.1} parent=1 // pred_check
      _
    $region111: #{elev_map_enc_dec.1} parent=1 // pred_check_branch
      %318 = sbr.rel (0) target = $region113
    $region112: #{elev_map_enc_dec.1} parent=1 // pred_region
      %s320 = ssub.s32 208, 208
      %321 = vsyncadd [#allocation32], %s320
      %s323 = sshll.u32 [#allocation33], 4
      %s324 = int_to_ptr.vmem [resolvable:$true] %s323
      %326 = dma.hbm_to_vmem [thread:$0]  %s55, 208, %s324, [#allocation32]
    $region113: #{elev_map_enc_dec.1} parent=1 // pred_fallthru
      _
    // Predicated region
    $region114: #{elev_map_enc_dec.1} parent=1 // pred_check
      _
    $region115: #{elev_map_enc_dec.1} parent=1 // pred_check_branch
      %328 = sbr.rel (0) target = $region117
    $region116: #{elev_map_enc_dec.1} parent=1 // pred_region
      _
    $region117: #{elev_map_enc_dec.1} parent=1 // pred_fallthru
      _
    // Predicated region
    $region118: #{elev_map_enc_dec.1} parent=1 // pred_check
      _
    $region119: #{elev_map_enc_dec.1} parent=1 // pred_check_branch
      %330 = sbr.rel (0) target = $region121
    $region120: #{elev_map_enc_dec.1} parent=1 // pred_region
      %s332 = ssub.s32 1664, 1664
      %333 = vsyncadd [#allocation35], %s332
      %s335 = sshll.u32 [#allocation34], 4
      %s336 = int_to_ptr.vmem [resolvable:$true] %s335
      %338 = dma.hbm_to_vmem [thread:$0]  %s59, 1664, %s336, [#allocation35]
    $region121: #{elev_map_enc_dec.1} parent=1 // pred_fallthru
      _
    // Predicated region
    $region122: #{elev_map_enc_dec.1} parent=1 // pred_check
      _
    $region123: #{elev_map_enc_dec.1} parent=1 // pred_check_branch
      %340 = sbr.rel (0) target = $region125
    $region124: #{elev_map_enc_dec.1} parent=1 // pred_region
      %s342 = ssub.s32 16, 16
      %343 = vsyncadd [#allocation35], %s342
      %s345 = sshll.u32 [#allocation36], 4
      %s346 = int_to_ptr.vmem [resolvable:$true] %s345
      %348 = dma.hbm_to_vmem [thread:$0]  %s61, 16, %s346, [#allocation35]
    $region125: #{elev_map_enc_dec.1} parent=1 // pred_fallthru
      _
    // Predicated region
    $region126: #{elev_map_enc_dec.1} parent=1 // pred_check
      _
    $region127: #{elev_map_enc_dec.1} parent=1 // pred_check_branch
      %350 = sbr.rel (0) target = $region129
    $region128: #{elev_map_enc_dec.1} parent=1 // pred_region
      %s352 = ssub.s32 16, 16
      %353 = vsyncadd [#allocation38], %s352
      %s355 = sshll.u32 [#allocation37], 4
      %s356 = int_to_ptr.vmem [resolvable:$true] %s355
      %358 = dma.hbm_to_vmem [thread:$0]  %s63, 16, %s356, [#allocation38]
    $region129: #{elev_map_enc_dec.1} parent=1 // pred_fallthru
      _
    // Predicated region
    $region130: #{elev_map_enc_dec.1} parent=1 // pred_check
      _
    $region131: #{elev_map_enc_dec.1} parent=1 // pred_check_branch
      %360 = sbr.rel (0) target = $region133
    $region132: #{elev_map_enc_dec.1} parent=1 // pred_region
      _
    $region133: #{elev_map_enc_dec.1} parent=1 // pred_fallthru
      _
    // Predicated region
    $region134: #{elev_map_enc_dec.1} parent=1 // pred_check
      _
    $region135: #{elev_map_enc_dec.1} parent=1 // pred_check_branch
      %362 = sbr.rel (0) target = $region137
    $region136: #{elev_map_enc_dec.1} parent=1 // pred_region
      %s364 = ssub.s32 32, 32
      %365 = vsyncadd [#allocation38], %s364
      %s367 = sshll.u32 [#allocation39], 4
      %s368 = int_to_ptr.vmem [resolvable:$true] %s367
      %370 = dma.hbm_to_vmem [thread:$0]  %s67, 32, %s368, [#allocation38]
    $region137: #{elev_map_enc_dec.1} parent=1 // pred_fallthru
      _
    // Predicated region
    $region138: #{elev_map_enc_dec.1} parent=1 // pred_check
      _
    $region139: #{elev_map_enc_dec.1} parent=1 // pred_check_branch
      %372 = sbr.rel (0) target = $region141
    $region140: #{elev_map_enc_dec.1} parent=1 // pred_region
      %373 = dma.done [#allocation3], 16384
    $region141: #{elev_map_enc_dec.1} parent=1 // pred_fallthru
      _
    // Predicated region
    $region142: #{elev_map_enc_dec.1} parent=1 // pred_check
      _
    $region143: #{elev_map_enc_dec.1} parent=1 // pred_check_branch
      %375 = sbr.rel (0) target = $region145
    $region144: #{elev_map_enc_dec.1} parent=1 // pred_region
      %376 = dma.done [#allocation5], 16384
    $region145: #{elev_map_enc_dec.1} parent=1 // pred_fallthru
      _
    // Predicated region
    $region146: #{elev_map_enc_dec.1} parent=1 // pred_check
      _
    $region147: #{elev_map_enc_dec.1} parent=1 // pred_check_branch
      %378 = sbr.rel (0) target = $region149
    $region148: #{elev_map_enc_dec.1} parent=1 // pred_region
      %379 = dma.done [#allocation5], 16384
    $region149: #{elev_map_enc_dec.1} parent=1 // pred_fallthru
      _
    // Predicated region
    $region150: #{elev_map_enc_dec.1} parent=1 // pred_check
      _
    $region151: #{elev_map_enc_dec.1} parent=1 // pred_check_branch
      %381 = sbr.rel (0) target = $region153
    $region152: #{elev_map_enc_dec.1} parent=1 // pred_region
      %382 = dma.done [#allocation8], 64
    $region153: #{elev_map_enc_dec.1} parent=1 // pred_fallthru
      _
    // Predicated region
    $region154: #{elev_map_enc_dec.1} parent=1 // pred_check
      _
    $region155: #{elev_map_enc_dec.1} parent=1 // pred_check_branch
      %384 = sbr.rel (0) target = $region157
    $region156: #{elev_map_enc_dec.1} parent=1 // pred_region
      %385 = dma.done [#allocation8], 512
    $region157: #{elev_map_enc_dec.1} parent=1 // pred_fallthru
      _
    // Predicated region
    $region158: #{elev_map_enc_dec.1} parent=1 // pred_check
      _
    $region159: #{elev_map_enc_dec.1} parent=1 // pred_check_branch
      %387 = sbr.rel (0) target = $region161
    $region160: #{elev_map_enc_dec.1} parent=1 // pred_region
      %388 = dma.done [#allocation11], 16
    $region161: #{elev_map_enc_dec.1} parent=1 // pred_fallthru
      _
    // Predicated region
    $region162: #{elev_map_enc_dec.1} parent=1 // pred_check
      _
    $region163: #{elev_map_enc_dec.1} parent=1 // pred_check_branch
      %390 = sbr.rel (0) target = $region165
    $region164: #{elev_map_enc_dec.1} parent=1 // pred_region
      %391 = dma.done [#allocation11], 16
    $region165: #{elev_map_enc_dec.1} parent=1 // pred_fallthru
      _
    // Predicated region
    $region166: #{elev_map_enc_dec.1} parent=1 // pred_check
      _
    $region167: #{elev_map_enc_dec.1} parent=1 // pred_check_branch
      %393 = sbr.rel (0) target = $region169
    $region168: #{elev_map_enc_dec.1} parent=1 // pred_region
      %394 = dma.done [#allocation14], 32
    $region169: #{elev_map_enc_dec.1} parent=1 // pred_fallthru
      _
    // Predicated region
    $region170: #{elev_map_enc_dec.1} parent=1 // pred_check
      _
    $region171: #{elev_map_enc_dec.1} parent=1 // pred_check_branch
      %396 = sbr.rel (0) target = $region173
    $region172: #{elev_map_enc_dec.1} parent=1 // pred_region
      %397 = dma.done [#allocation14], 512
    $region173: #{elev_map_enc_dec.1} parent=1 // pred_fallthru
      _
    // Predicated region
    $region174: #{elev_map_enc_dec.1} parent=1 // pred_check
      _
    $region175: #{elev_map_enc_dec.1} parent=1 // pred_check_branch
      %399 = sbr.rel (0) target = $region177
    $region176: #{elev_map_enc_dec.1} parent=1 // pred_region
      %400 = dma.done [#allocation17], 16
    $region177: #{elev_map_enc_dec.1} parent=1 // pred_fallthru
      _
    // Predicated region
    $region178: #{elev_map_enc_dec.1} parent=1 // pred_check
      _
    $region179: #{elev_map_enc_dec.1} parent=1 // pred_check_branch
      %402 = sbr.rel (0) target = $region181
    $region180: #{elev_map_enc_dec.1} parent=1 // pred_region
      %403 = dma.done [#allocation17], 16
    $region181: #{elev_map_enc_dec.1} parent=1 // pred_fallthru
      _
    // Predicated region
    $region182: #{elev_map_enc_dec.1} parent=1 // pred_check
      _
    $region183: #{elev_map_enc_dec.1} parent=1 // pred_check_branch
      %405 = sbr.rel (0) target = $region185
    $region184: #{elev_map_enc_dec.1} parent=1 // pred_region
      %406 = dma.done [#allocation20], 16
    $region185: #{elev_map_enc_dec.1} parent=1 // pred_fallthru
      _
    // Predicated region
    $region186: #{elev_map_enc_dec.1} parent=1 // pred_check
      _
    $region187: #{elev_map_enc_dec.1} parent=1 // pred_check_branch
      %408 = sbr.rel (0) target = $region189
    $region188: #{elev_map_enc_dec.1} parent=1 // pred_region
      %409 = dma.done [#allocation20], 768
    $region189: #{elev_map_enc_dec.1} parent=1 // pred_fallthru
      _
    // Predicated region
    $region190: #{elev_map_enc_dec.1} parent=1 // pred_check
      _
    $region191: #{elev_map_enc_dec.1} parent=1 // pred_check_branch
      %411 = sbr.rel (0) target = $region193
    $region192: #{elev_map_enc_dec.1} parent=1 // pred_region
      %412 = dma.done [#allocation23], 32
    $region193: #{elev_map_enc_dec.1} parent=1 // pred_fallthru
      _
    // Predicated region
    $region194: #{elev_map_enc_dec.1} parent=1 // pred_check
      _
    $region195: #{elev_map_enc_dec.1} parent=1 // pred_check_branch
      %414 = sbr.rel (0) target = $region197
    $region196: #{elev_map_enc_dec.1} parent=1 // pred_region
      %415 = dma.done [#allocation23], 512
    $region197: #{elev_map_enc_dec.1} parent=1 // pred_fallthru
      _
    // Predicated region
    $region198: #{elev_map_enc_dec.1} parent=1 // pred_check
      _
    $region199: #{elev_map_enc_dec.1} parent=1 // pred_check_branch
      %417 = sbr.rel (0) target = $region201
    $region200: #{elev_map_enc_dec.1} parent=1 // pred_region
      %418 = dma.done [#allocation26], 16
    $region201: #{elev_map_enc_dec.1} parent=1 // pred_fallthru
      _
    // Predicated region
    $region202: #{elev_map_enc_dec.1} parent=1 // pred_check
      _
    $region203: #{elev_map_enc_dec.1} parent=1 // pred_check_branch
      %420 = sbr.rel (0) target = $region205
    $region204: #{elev_map_enc_dec.1} parent=1 // pred_region
      %421 = dma.done [#allocation26], 16
    $region205: #{elev_map_enc_dec.1} parent=1 // pred_fallthru
      _
    // Predicated region
    $region206: #{elev_map_enc_dec.1} parent=1 // pred_check
      _
    $region207: #{elev_map_enc_dec.1} parent=1 // pred_check_branch
      %423 = sbr.rel (0) target = $region209
    $region208: #{elev_map_enc_dec.1} parent=1 // pred_region
      %424 = dma.done [#allocation29], 9216
    $region209: #{elev_map_enc_dec.1} parent=1 // pred_fallthru
      _
    // Predicated region
    $region210: #{elev_map_enc_dec.1} parent=1 // pred_check
      _
    $region211: #{elev_map_enc_dec.1} parent=1 // pred_check_branch
      %426 = sbr.rel (0) target = $region213
    $region212: #{elev_map_enc_dec.1} parent=1 // pred_region
      %427 = dma.done [#allocation29], 64
    $region213: #{elev_map_enc_dec.1} parent=1 // pred_fallthru
      _
    // Predicated region
    $region214: #{elev_map_enc_dec.1} parent=1 // pred_check
      _
    $region215: #{elev_map_enc_dec.1} parent=1 // pred_check_branch
      %429 = sbr.rel (0) target = $region217
    $region216: #{elev_map_enc_dec.1} parent=1 // pred_region
      %430 = dma.done [#allocation32], 81536
    $region217: #{elev_map_enc_dec.1} parent=1 // pred_fallthru
      _
    // Predicated region
    $region218: #{elev_map_enc_dec.1} parent=1 // pred_check
      _
    $region219: #{elev_map_enc_dec.1} parent=1 // pred_check_branch
      %432 = sbr.rel (0) target = $region221
    $region220: #{elev_map_enc_dec.1} parent=1 // pred_region
      %433 = dma.done [#allocation32], 208
    $region221: #{elev_map_enc_dec.1} parent=1 // pred_fallthru
      _
    // Predicated region
    $region222: #{elev_map_enc_dec.1} parent=1 // pred_check
      _
    $region223: #{elev_map_enc_dec.1} parent=1 // pred_check_branch
      %435 = sbr.rel (0) target = $region225
    $region224: #{elev_map_enc_dec.1} parent=1 // pred_region
      %436 = dma.done [#allocation35], 1664
    $region225: #{elev_map_enc_dec.1} parent=1 // pred_fallthru
      _
    // Predicated region
    $region226: #{elev_map_enc_dec.1} parent=1 // pred_check
      _
    $region227: #{elev_map_enc_dec.1} parent=1 // pred_check_branch
      %438 = sbr.rel (0) target = $region229
    $region228: #{elev_map_enc_dec.1} parent=1 // pred_region
      %439 = dma.done [#allocation35], 16
    $region229: #{elev_map_enc_dec.1} parent=1 // pred_fallthru
      _
    // Predicated region
    $region230: #{elev_map_enc_dec.1} parent=1 // pred_check
      _
    $region231: #{elev_map_enc_dec.1} parent=1 // pred_check_branch
      %441 = sbr.rel (0) target = $region233
    $region232: #{elev_map_enc_dec.1} parent=1 // pred_region
      %442 = dma.done [#allocation38], 16
    $region233: #{elev_map_enc_dec.1} parent=1 // pred_fallthru
      _
    // Predicated region
    $region234: #{elev_map_enc_dec.1} parent=1 // pred_check
      _
    $region235: #{elev_map_enc_dec.1} parent=1 // pred_check_branch
      %444 = sbr.rel (0) target = $region237
    $region236: #{elev_map_enc_dec.1} parent=1 // pred_region
      %445 = dma.done [#allocation38], 32
    $region237: #{elev_map_enc_dec.1} parent=1 // pred_fallthru
      _
    %v446 = vld [vmem:[%s1] sm:$0xf]
    %v447 = vld [vmem:[%s3] sm:$0xff]
    %v448 = vld [vmem:[%s3 + $0x8] sm:$0xff]
    %v449 = vld [vmem:[%s3 + $0x10] sm:$0xff]
    %v450 = vld [vmem:[%s3 + $0x18] sm:$0xff]
    %v451 = vld [vmem:[%s3 + $0x20] sm:$0xff]
    %v452 = vld [vmem:[%s3 + $0x28] sm:$0xff]
    %v453 = vld [vmem:[%s3 + $0x30] sm:$0xff]
    %v454 = vld [vmem:[%s3 + $0x38] sm:$0xff]
    %v455 = vld [vmem:[%s3 + $0x40] sm:$0xff]
    %v456 = vld [vmem:[%s3 + $0x48] sm:$0xff]
    %v457 = vld [vmem:[%s3 + $0x50] sm:$0xff]
    %v458 = vld [vmem:[%s3 + $0x58] sm:$0xff]
    %v459 = vld [vmem:[%s3 + $0x60] sm:$0xff]
    %v460 = vld [vmem:[%s3 + $0x68] sm:$0xff]
    %v461 = vld [vmem:[%s3 + $0x70] sm:$0xff]
    %v462 = vld [vmem:[%s3 + $0x78] sm:$0xff]
    %v463 = vld [vmem:[%s3 + $0x80] sm:$0xff]
    %v464 = vld [vmem:[%s3 + $0x88] sm:$0xff]
    %v465 = vld [vmem:[%s3 + $0x90] sm:$0xff]
    %v466 = vld [vmem:[%s3 + $0x98] sm:$0xff]
    %v467 = vld [vmem:[%s3 + $0xa0] sm:$0xff]
    %v468 = vld [vmem:[%s3 + $0xa8] sm:$0xff]
    %v469 = vld [vmem:[%s3 + $0xb0] sm:$0xff]
    %v470 = vld [vmem:[%s3 + $0xb8] sm:$0xff]
    %v471 = vld [vmem:[%s3 + $0xc0] sm:$0xff]
    %v472 = vld [vmem:[%s3 + $0xc8] sm:$0xff]
    %v473 = vld [vmem:[%s3 + $0xd0] sm:$0xff]
    %v474 = vld [vmem:[%s3 + $0xd8] sm:$0xff]
    %v475 = vld [vmem:[%s3 + $0xe0] sm:$0xff]
    %v476 = vld [vmem:[%s3 + $0xe8] sm:$0xff]
    %v477 = vld [vmem:[%s3 + $0xf0] sm:$0xff]
    %v478 = vld [vmem:[%s3 + $0xf8] sm:$0xff]
    %v479 = vld [vmem:[%s3 + $0x100] sm:$0xff]
    %v480 = vld [vmem:[%s3 + $0x108] sm:$0xff]
    %v481 = vld [vmem:[%s3 + $0x110] sm:$0xff]
    %v482 = vld [vmem:[%s3 + $0x118] sm:$0xff]
    %v483 = vld [vmem:[%s3 + $0x120] sm:$0xff]
    %v484 = vld [vmem:[%s3 + $0x128] sm:$0xff]
    %v485 = vld [vmem:[%s3 + $0x130] sm:$0xff]
    %v486 = vld [vmem:[%s3 + $0x138] sm:$0xff]
    %v487 = vld [vmem:[%s3 + $0x140] sm:$0xff]
    %v488 = vld [vmem:[%s3 + $0x148] sm:$0xff]
    %v489 = vld [vmem:[%s3 + $0x150] sm:$0xff]
    %v490 = vld [vmem:[%s3 + $0x158] sm:$0xff]
    %v491 = vld [vmem:[%s3 + $0x160] sm:$0xff]
    %v492 = vld [vmem:[%s3 + $0x168] sm:$0xff]
    %v493 = vld [vmem:[%s3 + $0x170] sm:$0xff]
    %v494 = vld [vmem:[%s3 + $0x178] sm:$0xff]
    %v495 = vld [vmem:[%s3 + $0x180] sm:$0xff]
    %v496 = vld [vmem:[%s3 + $0x188] sm:$0xff]
    %v497 = vld [vmem:[%s3 + $0x190] sm:$0xff]
    %v498 = vld [vmem:[%s3 + $0x198] sm:$0xff]
    %v499 = vld [vmem:[%s3 + $0x1a0] sm:$0xff]
    %v500 = vld [vmem:[%s3 + $0x1a8] sm:$0xff]
    %v501 = vld [vmem:[%s3 + $0x1b0] sm:$0xff]
    %v502 = vld [vmem:[%s3 + $0x1b8] sm:$0xff]
    %v503 = vld [vmem:[%s3 + $0x1c0] sm:$0xff]
    %v504 = vld [vmem:[%s3 + $0x1c8] sm:$0xff]
    %v505 = vld [vmem:[%s3 + $0x1d0] sm:$0xff]
    %v506 = vld [vmem:[%s3 + $0x1d8] sm:$0xff]
    %v507 = vld [vmem:[%s3 + $0x1e0] sm:$0xff]
    %v508 = vld [vmem:[%s3 + $0x1e8] sm:$0xff]
    %v509 = vld [vmem:[%s3 + $0x1f0] sm:$0xff]
    %v510 = vld [vmem:[%s3 + $0x1f8] sm:$0xff]
    %v511 = vld [vmem:[%s3 + $0x200] sm:$0xff]
    %v512 = vld [vmem:[%s3 + $0x208] sm:$0xff]
    %v513 = vld [vmem:[%s3 + $0x210] sm:$0xff]
    %v514 = vld [vmem:[%s3 + $0x218] sm:$0xff]
    %v515 = vld [vmem:[%s3 + $0x220] sm:$0xff]
    %v516 = vld [vmem:[%s3 + $0x228] sm:$0xff]
    %v517 = vld [vmem:[%s3 + $0x230] sm:$0xff]
    %v518 = vld [vmem:[%s3 + $0x238] sm:$0xff]
    %v519 = vld [vmem:[%s3 + $0x240] sm:$0xff]
    %v520 = vld [vmem:[%s3 + $0x248] sm:$0xff]
    %v521 = vld [vmem:[%s3 + $0x250] sm:$0xff]
    %v522 = vld [vmem:[%s3 + $0x258] sm:$0xff]
    %v523 = vld [vmem:[%s3 + $0x260] sm:$0xff]
    %v524 = vld [vmem:[%s3 + $0x268] sm:$0xff]
    %v525 = vld [vmem:[%s3 + $0x270] sm:$0xff]
    %v526 = vld [vmem:[%s3 + $0x278] sm:$0xff]
    %v527 = vld [vmem:[%s3 + $0x280] sm:$0xff]
    %v528 = vld [vmem:[%s3 + $0x288] sm:$0xff]
    %v529 = vld [vmem:[%s3 + $0x290] sm:$0xff]
    %v530 = vld [vmem:[%s3 + $0x298] sm:$0xff]
    %v531 = vld [vmem:[%s3 + $0x2a0] sm:$0xff]
    %v532 = vld [vmem:[%s3 + $0x2a8] sm:$0xff]
    %v533 = vld [vmem:[%s3 + $0x2b0] sm:$0xff]
    %v534 = vld [vmem:[%s3 + $0x2b8] sm:$0xff]
    %v535 = vld [vmem:[%s3 + $0x2c0] sm:$0xff]
    %v536 = vld [vmem:[%s3 + $0x2c8] sm:$0xff]
    %v537 = vld [vmem:[%s3 + $0x2d0] sm:$0xff]
    %v538 = vld [vmem:[%s3 + $0x2d8] sm:$0xff]
    %v539 = vld [vmem:[%s3 + $0x2e0] sm:$0xff]
    %v540 = vld [vmem:[%s3 + $0x2e8] sm:$0xff]
    %v541 = vld [vmem:[%s3 + $0x2f0] sm:$0xff]
    %v542 = vld [vmem:[%s3 + $0x2f8] sm:$0xff]
    %v543 = vld [vmem:[%s3 + $0x300] sm:$0xff]
    %v544 = vld [vmem:[%s3 + $0x308] sm:$0xff]
    %v545 = vld [vmem:[%s3 + $0x310] sm:$0xff]
    %v546 = vld [vmem:[%s3 + $0x318] sm:$0xff]
    %v547 = vld [vmem:[%s3 + $0x320] sm:$0xff]
    %v548 = vld [vmem:[%s3 + $0x328] sm:$0xff]
    %v549 = vld [vmem:[%s3 + $0x330] sm:$0xff]
    %v550 = vld [vmem:[%s3 + $0x338] sm:$0xff]
    %v551 = vld [vmem:[%s3 + $0x340] sm:$0xff]
    %v552 = vld [vmem:[%s3 + $0x348] sm:$0xff]
    %v553 = vld [vmem:[%s3 + $0x350] sm:$0xff]
    %v554 = vld [vmem:[%s3 + $0x358] sm:$0xff]
    %v555 = vld [vmem:[%s3 + $0x360] sm:$0xff]
    %v556 = vld [vmem:[%s3 + $0x368] sm:$0xff]
    %v557 = vld [vmem:[%s3 + $0x370] sm:$0xff]
    %v558 = vld [vmem:[%s3 + $0x378] sm:$0xff]
    %v559 = vld [vmem:[%s3 + $0x380] sm:$0xff]
    %v560 = vld [vmem:[%s3 + $0x388] sm:$0xff]
    %v561 = vld [vmem:[%s3 + $0x390] sm:$0xff]
    %v562 = vld [vmem:[%s3 + $0x398] sm:$0xff]
    %v563 = vld [vmem:[%s3 + $0x3a0] sm:$0xff]
    %v564 = vld [vmem:[%s3 + $0x3a8] sm:$0xff]
    %v565 = vld [vmem:[%s3 + $0x3b0] sm:$0xff]
    %v566 = vld [vmem:[%s3 + $0x3b8] sm:$0xff]
    %v567 = vld [vmem:[%s3 + $0x3c0] sm:$0xff]
    %v568 = vld [vmem:[%s3 + $0x3c8] sm:$0xff]
    %v569 = vld [vmem:[%s3 + $0x3d0] sm:$0xff]
    %v570 = vld [vmem:[%s3 + $0x3d8] sm:$0xff]
    %v571 = vld [vmem:[%s3 + $0x3e0] sm:$0xff]
    %v572 = vld [vmem:[%s3 + $0x3e8] sm:$0xff]
    %v573 = vld [vmem:[%s3 + $0x3f0] sm:$0xff]
    %v574 = vld [vmem:[%s3 + $0x3f8] sm:$0xff]
    %v575 = vld [vmem:[#allocation7] sm:$0xf]
    %v577 = vlaneseq
    %v578 = vshrl.u32 %v577, 7
    %v579 = vsub.s32 0, %v578
    %v580 = vrot.slane %v575, %v579
    %v581 = vlaneseq
    %v582 = vshrl.u32 %v581, 7
    %v583 = vsub.s32 1, %v582
    %v584 = vrot.slane %v575, %v583
    %v585 = vlaneseq
    %v586 = vshrl.u32 %v585, 7
    %v587 = vsub.s32 2, %v586
    %v588 = vrot.slane %v575, %v587
    %v589 = vlaneseq
    %v590 = vshrl.u32 %v589, 7
    %v591 = vsub.s32 3, %v590
    %v592 = vrot.slane %v575, %v591
    %v599 = vunpack.c.l.s4 1983009808
    %v600 = vunpack.c.0.s8 %v599
    %v601 = vlaneseq
    %v602 = vshrl.u32 %v601, 7
    %v603 = vsub.s32 %v600, %v602
    %v604 = vrot.slane %v446, %v603
    %v605 = vcombine.high %v604, %v604
    %608 = vmatprep.subr.mxu0 %v448
    %609 = vmatpush1.msra.mxu0 %v447
    %610 = vmatprep.subr.mxu0 %v452
    %611 = vmatpush1.msra.mxu0 %v451
    %612 = vmatprep.subr.mxu0 %v456
    %613 = vmatpush1.msra.mxu0 %v455
    %614 = vmatprep.subr.mxu0 %v460
    %615 = vmatpush1.msra.mxu0 %v459
    %616 = vmatprep.subr.mxu0 %v464
    %617 = vmatpush1.msra.mxu0 %v463
    %618 = vmatprep.subr.mxu0 %v468
    %619 = vmatpush1.msra.mxu0 %v467
    %620 = vmatprep.subr.mxu0 %v472
    %621 = vmatpush1.msra.mxu0 %v471
    %622 = vmatprep.subr.mxu0 %v476
    %623 = vmatpush1.msra.mxu0 %v475
    %624 = vmatprep.subr.mxu0 %v480
    %625 = vmatpush1.msra.mxu0 %v479
    %626 = vmatprep.subr.mxu0 %v484
    %627 = vmatpush1.msra.mxu0 %v483
    %628 = vmatprep.subr.mxu0 %v488
    %629 = vmatpush1.msra.mxu0 %v487
    %630 = vmatprep.subr.mxu0 %v492
    %631 = vmatpush1.msra.mxu0 %v491
    %632 = vmatprep.subr.mxu0 %v496
    %633 = vmatpush1.msra.mxu0 %v495
    %634 = vmatprep.subr.mxu0 %v500
    %635 = vmatpush1.msra.mxu0 %v499
    %636 = vmatprep.subr.mxu0 %v504
    %637 = vmatpush1.msra.mxu0 %v503
    %638 = vmatprep.subr.mxu0 %v508
    %639 = vmatpush1.msra.mxu0 %v507
    %640 = vmatprep.subr.mxu0 %v512
    %641 = vmatpush1.msra.mxu0 %v511
    %642 = vmatprep.subr.mxu0 %v516
    %643 = vmatpush1.msra.mxu0 %v515
    %644 = vmatprep.subr.mxu0 %v520
    %645 = vmatpush1.msra.mxu0 %v519
    %646 = vmatprep.subr.mxu0 %v524
    %647 = vmatpush1.msra.mxu0 %v523
    %648 = vmatprep.subr.mxu0 %v528
    %649 = vmatpush1.msra.mxu0 %v527
    %650 = vmatprep.subr.mxu0 %v532
    %651 = vmatpush1.msra.mxu0 %v531
    %652 = vmatprep.subr.mxu0 %v536
    %653 = vmatpush1.msra.mxu0 %v535
    %654 = vmatprep.subr.mxu0 %v540
    %655 = vmatpush1.msra.mxu0 %v539
    %656 = vmatprep.subr.mxu0 %v544
    %657 = vmatpush1.msra.mxu0 %v543
    %658 = vmatprep.subr.mxu0 %v548
    %659 = vmatpush1.msra.mxu0 %v547
    %660 = vmatprep.subr.mxu0 %v552
    %661 = vmatpush1.msra.mxu0 %v551
    %662 = vmatprep.subr.mxu0 %v556
    %663 = vmatpush1.msra.mxu0 %v555
    %664 = vmatprep.subr.mxu0 %v560
    %665 = vmatpush1.msra.mxu0 %v559
    %666 = vmatprep.subr.mxu0 %v564
    %667 = vmatpush1.msra.mxu0 %v563
    %668 = vmatprep.subr.mxu0 %v568
    %669 = vmatpush1.msra.mxu0 %v567
    %670 = vmatprep.subr.mxu0 %v572
    %671 = vmatpush1.msra.mxu0 %v571
    %672 = vmatprep.mubr.f32.mxu0 %v605
    %673 = vmatmul.mubr.f32.gmra.mrb[0].mxu0 %v604
    %v674 = vpop.f32.mrb[0].mxu0
    %v675 = vadd.f32 %v580, %v674
    %v676 = vpop.f32.mrb[0].mxu0
    %v677 = vadd.f32 %v584, %v676
    %678 = vdwg.mxu0
    %679 = vmatprep.subr.mxu0 %v450
    %680 = vmatpush1.msra.mxu0 %v449
    %681 = vmatprep.subr.mxu0 %v454
    %682 = vmatpush1.msra.mxu0 %v453
    %683 = vmatprep.subr.mxu0 %v458
    %684 = vmatpush1.msra.mxu0 %v457
    %685 = vmatprep.subr.mxu0 %v462
    %686 = vmatpush1.msra.mxu0 %v461
    %687 = vmatprep.subr.mxu0 %v466
    %688 = vmatpush1.msra.mxu0 %v465
    %689 = vmatprep.subr.mxu0 %v470
    %690 = vmatpush1.msra.mxu0 %v469
    %691 = vmatprep.subr.mxu0 %v474
    %692 = vmatpush1.msra.mxu0 %v473
    %693 = vmatprep.subr.mxu0 %v478
    %694 = vmatpush1.msra.mxu0 %v477
    %695 = vmatprep.subr.mxu0 %v482
    %696 = vmatpush1.msra.mxu0 %v481
    %697 = vmatprep.subr.mxu0 %v486
    %698 = vmatpush1.msra.mxu0 %v485
    %699 = vmatprep.subr.mxu0 %v490
    %700 = vmatpush1.msra.mxu0 %v489
    %701 = vmatprep.subr.mxu0 %v494
    %702 = vmatpush1.msra.mxu0 %v493
    %703 = vmatprep.subr.mxu0 %v498
    %704 = vmatpush1.msra.mxu0 %v497
    %705 = vmatprep.subr.mxu0 %v502
    %706 = vmatpush1.msra.mxu0 %v501
    %707 = vmatprep.subr.mxu0 %v506
    %708 = vmatpush1.msra.mxu0 %v505
    %709 = vmatprep.subr.mxu0 %v510
    %710 = vmatpush1.msra.mxu0 %v509
    %711 = vmatprep.subr.mxu0 %v514
    %712 = vmatpush1.msra.mxu0 %v513
    %713 = vmatprep.subr.mxu0 %v518
    %714 = vmatpush1.msra.mxu0 %v517
    %715 = vmatprep.subr.mxu0 %v522
    %716 = vmatpush1.msra.mxu0 %v521
    %717 = vmatprep.subr.mxu0 %v526
    %718 = vmatpush1.msra.mxu0 %v525
    %719 = vmatprep.subr.mxu0 %v530
    %720 = vmatpush1.msra.mxu0 %v529
    %721 = vmatprep.subr.mxu0 %v534
    %722 = vmatpush1.msra.mxu0 %v533
    %723 = vmatprep.subr.mxu0 %v538
    %724 = vmatpush1.msra.mxu0 %v537
    %725 = vmatprep.subr.mxu0 %v542
    %726 = vmatpush1.msra.mxu0 %v541
    %727 = vmatprep.subr.mxu0 %v546
    %728 = vmatpush1.msra.mxu0 %v545
    %729 = vmatprep.subr.mxu0 %v550
    %730 = vmatpush1.msra.mxu0 %v549
    %731 = vmatprep.subr.mxu0 %v554
    %732 = vmatpush1.msra.mxu0 %v553
    %733 = vmatprep.subr.mxu0 %v558
    %734 = vmatpush1.msra.mxu0 %v557
    %735 = vmatprep.subr.mxu0 %v562
    %736 = vmatpush1.msra.mxu0 %v561
    %737 = vmatprep.subr.mxu0 %v566
    %738 = vmatpush1.msra.mxu0 %v565
    %739 = vmatprep.subr.mxu0 %v570
    %740 = vmatpush1.msra.mxu0 %v569
    %741 = vmatprep.subr.mxu0 %v574
    %742 = vmatpush1.msra.mxu0 %v573
    %743 = vmatprep.mubr.f32.mxu0 %v605
    %744 = vmatmul.mubr.f32.gmra.mrb[0].mxu0 %v604
    %v745 = vpop.f32.mrb[0].mxu0
    %v746 = vadd.f32 %v588, %v745
    %v747 = vpop.f32.mrb[0].mxu0
    %v748 = vadd.f32 %v592, %v747
    %749 = vdwg.mxu0
    %vm750 = vcmp.ge.f32.partialorder %v675, 0.0
    %vm751 = vcmp.ge.f32.partialorder %v677, 0.0
    %vm752 = vcmp.ge.f32.partialorder %v746, 0.0
    %vm753 = vcmp.ge.f32.partialorder %v748, 0.0
    %v754 = vmul.f32 %v675, 0.1
    %v755 = vmul.f32 %v677, 0.1
    %v756 = vmul.f32 %v746, 0.1
    %v757 = vmul.f32 %v748, 0.1
    %v758 = vsel %vm750, %v675, %v754
    %v759 = vsel %vm751, %v677, %v755
    %v760 = vsel %vm752, %v746, %v756
    %v761 = vsel %vm753, %v748, %v757
    %v762 = vld [vmem:[#allocation2] sm:$0xff]
    %v763 = vld [vmem:[#allocation2 + $0x8] sm:$0xff]
    %v764 = vld [vmem:[#allocation2 + $0x10] sm:$0xff]
    %v765 = vld [vmem:[#allocation2 + $0x18] sm:$0xff]
    %v766 = vld [vmem:[#allocation2 + $0x20] sm:$0xff]
    %v767 = vld [vmem:[#allocation2 + $0x28] sm:$0xff]
    %v768 = vld [vmem:[#allocation2 + $0x30] sm:$0xff]
    %v769 = vld [vmem:[#allocation2 + $0x38] sm:$0xff]
    %v770 = vld [vmem:[#allocation2 + $0x40] sm:$0xff]
    %v771 = vld [vmem:[#allocation2 + $0x48] sm:$0xff]
    %v772 = vld [vmem:[#allocation2 + $0x50] sm:$0xff]
    %v773 = vld [vmem:[#allocation2 + $0x58] sm:$0xff]
    %v774 = vld [vmem:[#allocation2 + $0x60] sm:$0xff]
    %v775 = vld [vmem:[#allocation2 + $0x68] sm:$0xff]
    %v776 = vld [vmem:[#allocation2 + $0x70] sm:$0xff]
    %v777 = vld [vmem:[#allocation2 + $0x78] sm:$0xff]
    %v778 = vld [vmem:[#allocation2 + $0x80] sm:$0xff]
    %v779 = vld [vmem:[#allocation2 + $0x88] sm:$0xff]
    %v780 = vld [vmem:[#allocation2 + $0x90] sm:$0xff]
    %v781 = vld [vmem:[#allocation2 + $0x98] sm:$0xff]
    %v782 = vld [vmem:[#allocation2 + $0xa0] sm:$0xff]
    %v783 = vld [vmem:[#allocation2 + $0xa8] sm:$0xff]
    %v784 = vld [vmem:[#allocation2 + $0xb0] sm:$0xff]
    %v785 = vld [vmem:[#allocation2 + $0xb8] sm:$0xff]
    %v786 = vld [vmem:[#allocation2 + $0xc0] sm:$0xff]
    %v787 = vld [vmem:[#allocation2 + $0xc8] sm:$0xff]
    %v788 = vld [vmem:[#allocation2 + $0xd0] sm:$0xff]
    %v789 = vld [vmem:[#allocation2 + $0xd8] sm:$0xff]
    %v790 = vld [vmem:[#allocation2 + $0xe0] sm:$0xff]
    %v791 = vld [vmem:[#allocation2 + $0xe8] sm:$0xff]
    %v792 = vld [vmem:[#allocation2 + $0xf0] sm:$0xff]
    %v793 = vld [vmem:[#allocation2 + $0xf8] sm:$0xff]
    %v794 = vld [vmem:[#allocation2 + $0x100] sm:$0xff]
    %v795 = vld [vmem:[#allocation2 + $0x108] sm:$0xff]
    %v796 = vld [vmem:[#allocation2 + $0x110] sm:$0xff]
    %v797 = vld [vmem:[#allocation2 + $0x118] sm:$0xff]
    %v798 = vld [vmem:[#allocation2 + $0x120] sm:$0xff]
    %v799 = vld [vmem:[#allocation2 + $0x128] sm:$0xff]
    %v800 = vld [vmem:[#allocation2 + $0x130] sm:$0xff]
    %v801 = vld [vmem:[#allocation2 + $0x138] sm:$0xff]
    %v802 = vld [vmem:[#allocation2 + $0x140] sm:$0xff]
    %v803 = vld [vmem:[#allocation2 + $0x148] sm:$0xff]
    %v804 = vld [vmem:[#allocation2 + $0x150] sm:$0xff]
    %v805 = vld [vmem:[#allocation2 + $0x158] sm:$0xff]
    %v806 = vld [vmem:[#allocation2 + $0x160] sm:$0xff]
    %v807 = vld [vmem:[#allocation2 + $0x168] sm:$0xff]
    %v808 = vld [vmem:[#allocation2 + $0x170] sm:$0xff]
    %v809 = vld [vmem:[#allocation2 + $0x178] sm:$0xff]
    %v810 = vld [vmem:[#allocation2 + $0x180] sm:$0xff]
    %v811 = vld [vmem:[#allocation2 + $0x188] sm:$0xff]
    %v812 = vld [vmem:[#allocation2 + $0x190] sm:$0xff]
    %v813 = vld [vmem:[#allocation2 + $0x198] sm:$0xff]
    %v814 = vld [vmem:[#allocation2 + $0x1a0] sm:$0xff]
    %v815 = vld [vmem:[#allocation2 + $0x1a8] sm:$0xff]
    %v816 = vld [vmem:[#allocation2 + $0x1b0] sm:$0xff]
    %v817 = vld [vmem:[#allocation2 + $0x1b8] sm:$0xff]
    %v818 = vld [vmem:[#allocation2 + $0x1c0] sm:$0xff]
    %v819 = vld [vmem:[#allocation2 + $0x1c8] sm:$0xff]
    %v820 = vld [vmem:[#allocation2 + $0x1d0] sm:$0xff]
    %v821 = vld [vmem:[#allocation2 + $0x1d8] sm:$0xff]
    %v822 = vld [vmem:[#allocation2 + $0x1e0] sm:$0xff]
    %v823 = vld [vmem:[#allocation2 + $0x1e8] sm:$0xff]
    %v824 = vld [vmem:[#allocation2 + $0x1f0] sm:$0xff]
    %v825 = vld [vmem:[#allocation2 + $0x1f8] sm:$0xff]
    %v826 = vld [vmem:[#allocation2 + $0x200] sm:$0xff]
    %v827 = vld [vmem:[#allocation2 + $0x208] sm:$0xff]
    %v828 = vld [vmem:[#allocation2 + $0x210] sm:$0xff]
    %v829 = vld [vmem:[#allocation2 + $0x218] sm:$0xff]
    %v830 = vld [vmem:[#allocation2 + $0x220] sm:$0xff]
    %v831 = vld [vmem:[#allocation2 + $0x228] sm:$0xff]
    %v832 = vld [vmem:[#allocation2 + $0x230] sm:$0xff]
    %v833 = vld [vmem:[#allocation2 + $0x238] sm:$0xff]
    %v834 = vld [vmem:[#allocation2 + $0x240] sm:$0xff]
    %v835 = vld [vmem:[#allocation2 + $0x248] sm:$0xff]
    %v836 = vld [vmem:[#allocation2 + $0x250] sm:$0xff]
    %v837 = vld [vmem:[#allocation2 + $0x258] sm:$0xff]
    %v838 = vld [vmem:[#allocation2 + $0x260] sm:$0xff]
    %v839 = vld [vmem:[#allocation2 + $0x268] sm:$0xff]
    %v840 = vld [vmem:[#allocation2 + $0x270] sm:$0xff]
    %v841 = vld [vmem:[#allocation2 + $0x278] sm:$0xff]
    %v842 = vld [vmem:[#allocation2 + $0x280] sm:$0xff]
    %v843 = vld [vmem:[#allocation2 + $0x288] sm:$0xff]
    %v844 = vld [vmem:[#allocation2 + $0x290] sm:$0xff]
    %v845 = vld [vmem:[#allocation2 + $0x298] sm:$0xff]
    %v846 = vld [vmem:[#allocation2 + $0x2a0] sm:$0xff]
    %v847 = vld [vmem:[#allocation2 + $0x2a8] sm:$0xff]
    %v848 = vld [vmem:[#allocation2 + $0x2b0] sm:$0xff]
    %v849 = vld [vmem:[#allocation2 + $0x2b8] sm:$0xff]
    %v850 = vld [vmem:[#allocation2 + $0x2c0] sm:$0xff]
    %v851 = vld [vmem:[#allocation2 + $0x2c8] sm:$0xff]
    %v852 = vld [vmem:[#allocation2 + $0x2d0] sm:$0xff]
    %v853 = vld [vmem:[#allocation2 + $0x2d8] sm:$0xff]
    %v854 = vld [vmem:[#allocation2 + $0x2e0] sm:$0xff]
    %v855 = vld [vmem:[#allocation2 + $0x2e8] sm:$0xff]
    %v856 = vld [vmem:[#allocation2 + $0x2f0] sm:$0xff]
    %v857 = vld [vmem:[#allocation2 + $0x2f8] sm:$0xff]
    %v858 = vld [vmem:[#allocation2 + $0x300] sm:$0xff]
    %v859 = vld [vmem:[#allocation2 + $0x308] sm:$0xff]
    %v860 = vld [vmem:[#allocation2 + $0x310] sm:$0xff]
    %v861 = vld [vmem:[#allocation2 + $0x318] sm:$0xff]
    %v862 = vld [vmem:[#allocation2 + $0x320] sm:$0xff]
    %v863 = vld [vmem:[#allocation2 + $0x328] sm:$0xff]
    %v864 = vld [vmem:[#allocation2 + $0x330] sm:$0xff]
    %v865 = vld [vmem:[#allocation2 + $0x338] sm:$0xff]
    %v866 = vld [vmem:[#allocation2 + $0x340] sm:$0xff]
    %v867 = vld [vmem:[#allocation2 + $0x348] sm:$0xff]
    %v868 = vld [vmem:[#allocation2 + $0x350] sm:$0xff]
    %v869 = vld [vmem:[#allocation2 + $0x358] sm:$0xff]
    %v870 = vld [vmem:[#allocation2 + $0x360] sm:$0xff]
    %v871 = vld [vmem:[#allocation2 + $0x368] sm:$0xff]
    %v872 = vld [vmem:[#allocation2 + $0x370] sm:$0xff]
    %v873 = vld [vmem:[#allocation2 + $0x378] sm:$0xff]
    %v874 = vld [vmem:[#allocation2 + $0x380] sm:$0xff]
    %v875 = vld [vmem:[#allocation2 + $0x388] sm:$0xff]
    %v876 = vld [vmem:[#allocation2 + $0x390] sm:$0xff]
    %v877 = vld [vmem:[#allocation2 + $0x398] sm:$0xff]
    %v878 = vld [vmem:[#allocation2 + $0x3a0] sm:$0xff]
    %v879 = vld [vmem:[#allocation2 + $0x3a8] sm:$0xff]
    %v880 = vld [vmem:[#allocation2 + $0x3b0] sm:$0xff]
    %v881 = vld [vmem:[#allocation2 + $0x3b8] sm:$0xff]
    %v882 = vld [vmem:[#allocation2 + $0x3c0] sm:$0xff]
    %v883 = vld [vmem:[#allocation2 + $0x3c8] sm:$0xff]
    %v884 = vld [vmem:[#allocation2 + $0x3d0] sm:$0xff]
    %v885 = vld [vmem:[#allocation2 + $0x3d8] sm:$0xff]
    %v886 = vld [vmem:[#allocation2 + $0x3e0] sm:$0xff]
    %v887 = vld [vmem:[#allocation2 + $0x3e8] sm:$0xff]
    %v888 = vld [vmem:[#allocation2 + $0x3f0] sm:$0xff]
    %v889 = vld [vmem:[#allocation2 + $0x3f8] sm:$0xff]
    %890 = vmatprep.subr.mxu0 %v763
    %891 = vmatpush1.msra.mxu0 %v762
    %892 = vmatprep.subr.mxu0 %v767
    %893 = vmatpush1.msra.mxu0 %v766
    %894 = vmatprep.subr.mxu0 %v771
    %895 = vmatpush1.msra.mxu0 %v770
    %896 = vmatprep.subr.mxu0 %v775
    %897 = vmatpush1.msra.mxu0 %v774
    %898 = vmatprep.subr.mxu0 %v779
    %899 = vmatpush1.msra.mxu0 %v778
    %900 = vmatprep.subr.mxu0 %v783
    %901 = vmatpush1.msra.mxu0 %v782
    %902 = vmatprep.subr.mxu0 %v787
    %903 = vmatpush1.msra.mxu0 %v786
    %904 = vmatprep.subr.mxu0 %v791
    %905 = vmatpush1.msra.mxu0 %v790
    %906 = vmatprep.subr.mxu0 %v795
    %907 = vmatpush1.msra.mxu0 %v794
    %908 = vmatprep.subr.mxu0 %v799
    %909 = vmatpush1.msra.mxu0 %v798
    %910 = vmatprep.subr.mxu0 %v803
    %911 = vmatpush1.msra.mxu0 %v802
    %912 = vmatprep.subr.mxu0 %v807
    %913 = vmatpush1.msra.mxu0 %v806
    %914 = vmatprep.subr.mxu0 %v811
    %915 = vmatpush1.msra.mxu0 %v810
    %916 = vmatprep.subr.mxu0 %v815
    %917 = vmatpush1.msra.mxu0 %v814
    %918 = vmatprep.subr.mxu0 %v819
    %919 = vmatpush1.msra.mxu0 %v818
    %920 = vmatprep.subr.mxu0 %v823
    %921 = vmatpush1.msra.mxu0 %v822
    %922 = vmatprep.subr.mxu0 %v827
    %923 = vmatpush1.msra.mxu0 %v826
    %924 = vmatprep.subr.mxu0 %v831
    %925 = vmatpush1.msra.mxu0 %v830
    %926 = vmatprep.subr.mxu0 %v835
    %927 = vmatpush1.msra.mxu0 %v834
    %928 = vmatprep.subr.mxu0 %v839
    %929 = vmatpush1.msra.mxu0 %v838
    %930 = vmatprep.subr.mxu0 %v843
    %931 = vmatpush1.msra.mxu0 %v842
    %932 = vmatprep.subr.mxu0 %v847
    %933 = vmatpush1.msra.mxu0 %v846
    %934 = vmatprep.subr.mxu0 %v851
    %935 = vmatpush1.msra.mxu0 %v850
    %936 = vmatprep.subr.mxu0 %v855
    %937 = vmatpush1.msra.mxu0 %v854
    %938 = vmatprep.subr.mxu0 %v859
    %939 = vmatpush1.msra.mxu0 %v858
    %940 = vmatprep.subr.mxu0 %v863
    %941 = vmatpush1.msra.mxu0 %v862
    %942 = vmatprep.subr.mxu0 %v867
    %943 = vmatpush1.msra.mxu0 %v866
    %944 = vmatprep.subr.mxu0 %v871
    %945 = vmatpush1.msra.mxu0 %v870
    %946 = vmatprep.subr.mxu0 %v875
    %947 = vmatpush1.msra.mxu0 %v874
    %948 = vmatprep.subr.mxu0 %v879
    %949 = vmatpush1.msra.mxu0 %v878
    %950 = vmatprep.subr.mxu0 %v883
    %951 = vmatpush1.msra.mxu0 %v882
    %952 = vmatprep.subr.mxu0 %v887
    %953 = vmatpush1.msra.mxu0 %v886
    %954 = vmatprep.mubr.f32.mxu0 %v605
    %955 = vmatmul.mubr.f32.gmra.mrb[0].mxu0 %v604
    %v956 = vpop.f32.mrb[0].mxu0
    %v957 = vadd.f32 %v580, %v956
    %v958 = vpop.f32.mrb[0].mxu0
    %v959 = vadd.f32 %v584, %v958
    %960 = vdwg.mxu0
    %961 = vmatprep.subr.mxu0 %v765
    %962 = vmatpush1.msra.mxu0 %v764
    %963 = vmatprep.subr.mxu0 %v769
    %964 = vmatpush1.msra.mxu0 %v768
    %965 = vmatprep.subr.mxu0 %v773
    %966 = vmatpush1.msra.mxu0 %v772
    %967 = vmatprep.subr.mxu0 %v777
    %968 = vmatpush1.msra.mxu0 %v776
    %969 = vmatprep.subr.mxu0 %v781
    %970 = vmatpush1.msra.mxu0 %v780
    %971 = vmatprep.subr.mxu0 %v785
    %972 = vmatpush1.msra.mxu0 %v784
    %973 = vmatprep.subr.mxu0 %v789
    %974 = vmatpush1.msra.mxu0 %v788
    %975 = vmatprep.subr.mxu0 %v793
    %976 = vmatpush1.msra.mxu0 %v792
    %977 = vmatprep.subr.mxu0 %v797
    %978 = vmatpush1.msra.mxu0 %v796
    %979 = vmatprep.subr.mxu0 %v801
    %980 = vmatpush1.msra.mxu0 %v800
    %981 = vmatprep.subr.mxu0 %v805
    %982 = vmatpush1.msra.mxu0 %v804
    %983 = vmatprep.subr.mxu0 %v809
    %984 = vmatpush1.msra.mxu0 %v808
    %985 = vmatprep.subr.mxu0 %v813
    %986 = vmatpush1.msra.mxu0 %v812
    %987 = vmatprep.subr.mxu0 %v817
    %988 = vmatpush1.msra.mxu0 %v816
    %989 = vmatprep.subr.mxu0 %v821
    %990 = vmatpush1.msra.mxu0 %v820
    %991 = vmatprep.subr.mxu0 %v825
    %992 = vmatpush1.msra.mxu0 %v824
    %993 = vmatprep.subr.mxu0 %v829
    %994 = vmatpush1.msra.mxu0 %v828
    %995 = vmatprep.subr.mxu0 %v833
    %996 = vmatpush1.msra.mxu0 %v832
    %997 = vmatprep.subr.mxu0 %v837
    %998 = vmatpush1.msra.mxu0 %v836
    %999 = vmatprep.subr.mxu0 %v841
    %1000 = vmatpush1.msra.mxu0 %v840
    %1001 = vmatprep.subr.mxu0 %v845
    %1002 = vmatpush1.msra.mxu0 %v844
    %1003 = vmatprep.subr.mxu0 %v849
    %1004 = vmatpush1.msra.mxu0 %v848
    %1005 = vmatprep.subr.mxu0 %v853
    %1006 = vmatpush1.msra.mxu0 %v852
    %1007 = vmatprep.subr.mxu0 %v857
    %1008 = vmatpush1.msra.mxu0 %v856
    %1009 = vmatprep.subr.mxu0 %v861
    %1010 = vmatpush1.msra.mxu0 %v860
    %1011 = vmatprep.subr.mxu0 %v865
    %1012 = vmatpush1.msra.mxu0 %v864
    %1013 = vmatprep.subr.mxu0 %v869
    %1014 = vmatpush1.msra.mxu0 %v868
    %1015 = vmatprep.subr.mxu0 %v873
    %1016 = vmatpush1.msra.mxu0 %v872
    %1017 = vmatprep.subr.mxu0 %v877
    %1018 = vmatpush1.msra.mxu0 %v876
    %1019 = vmatprep.subr.mxu0 %v881
    %1020 = vmatpush1.msra.mxu0 %v880
    %1021 = vmatprep.subr.mxu0 %v885
    %1022 = vmatpush1.msra.mxu0 %v884
    %1023 = vmatprep.subr.mxu0 %v889
    %1024 = vmatpush1.msra.mxu0 %v888
    %1025 = vmatprep.mubr.f32.mxu0 %v605
    %1026 = vmatmul.mubr.f32.gmra.mrb[0].mxu0 %v604
    %v1027 = vpop.f32.mrb[0].mxu0
    %v1028 = vadd.f32 %v588, %v1027
    %v1029 = vpop.f32.mrb[0].mxu0
    %v1030 = vadd.f32 %v592, %v1029
    %1031 = vdwg.mxu0
    %vm1032 = vcmp.ge.f32.partialorder %v957, 0.0
    %vm1033 = vcmp.ge.f32.partialorder %v959, 0.0
    %vm1034 = vcmp.ge.f32.partialorder %v1028, 0.0
    %vm1035 = vcmp.ge.f32.partialorder %v1030, 0.0
    %v1036 = vmul.f32 %v957, 0.1
    %v1037 = vmul.f32 %v959, 0.1
    %v1038 = vmul.f32 %v1028, 0.1
    %v1039 = vmul.f32 %v1030, 0.1
    %v1040 = vsel %vm1032, %v957, %v1036
    %v1041 = vsel %vm1033, %v959, %v1037
    %v1042 = vsel %vm1034, %v1028, %v1038
    %v1043 = vsel %vm1035, %v1030, %v1039
    %v1044 = vld [vmem:[#allocation4] sm:$0xff]
    %v1045 = vld [vmem:[#allocation4 + $0x8] sm:$0xff]
    %v1046 = vld [vmem:[#allocation4 + $0x10] sm:$0xff]
    %v1047 = vld [vmem:[#allocation4 + $0x18] sm:$0xff]
    %v1048 = vld [vmem:[#allocation4 + $0x20] sm:$0xff]
    %v1049 = vld [vmem:[#allocation4 + $0x28] sm:$0xff]
    %v1050 = vld [vmem:[#allocation4 + $0x30] sm:$0xff]
    %v1051 = vld [vmem:[#allocation4 + $0x38] sm:$0xff]
    %v1052 = vld [vmem:[#allocation4 + $0x40] sm:$0xff]
    %v1053 = vld [vmem:[#allocation4 + $0x48] sm:$0xff]
    %v1054 = vld [vmem:[#allocation4 + $0x50] sm:$0xff]
    %v1055 = vld [vmem:[#allocation4 + $0x58] sm:$0xff]
    %v1056 = vld [vmem:[#allocation4 + $0x60] sm:$0xff]
    %v1057 = vld [vmem:[#allocation4 + $0x68] sm:$0xff]
    %v1058 = vld [vmem:[#allocation4 + $0x70] sm:$0xff]
    %v1059 = vld [vmem:[#allocation4 + $0x78] sm:$0xff]
    %v1060 = vld [vmem:[#allocation4 + $0x80] sm:$0xff]
    %v1061 = vld [vmem:[#allocation4 + $0x88] sm:$0xff]
    %v1062 = vld [vmem:[#allocation4 + $0x90] sm:$0xff]
    %v1063 = vld [vmem:[#allocation4 + $0x98] sm:$0xff]
    %v1064 = vld [vmem:[#allocation4 + $0xa0] sm:$0xff]
    %v1065 = vld [vmem:[#allocation4 + $0xa8] sm:$0xff]
    %v1066 = vld [vmem:[#allocation4 + $0xb0] sm:$0xff]
    %v1067 = vld [vmem:[#allocation4 + $0xb8] sm:$0xff]
    %v1068 = vld [vmem:[#allocation4 + $0xc0] sm:$0xff]
    %v1069 = vld [vmem:[#allocation4 + $0xc8] sm:$0xff]
    %v1070 = vld [vmem:[#allocation4 + $0xd0] sm:$0xff]
    %v1071 = vld [vmem:[#allocation4 + $0xd8] sm:$0xff]
    %v1072 = vld [vmem:[#allocation4 + $0xe0] sm:$0xff]
    %v1073 = vld [vmem:[#allocation4 + $0xe8] sm:$0xff]
    %v1074 = vld [vmem:[#allocation4 + $0xf0] sm:$0xff]
    %v1075 = vld [vmem:[#allocation4 + $0xf8] sm:$0xff]
    %v1076 = vld [vmem:[#allocation4 + $0x100] sm:$0xff]
    %v1077 = vld [vmem:[#allocation4 + $0x108] sm:$0xff]
    %v1078 = vld [vmem:[#allocation4 + $0x110] sm:$0xff]
    %v1079 = vld [vmem:[#allocation4 + $0x118] sm:$0xff]
    %v1080 = vld [vmem:[#allocation4 + $0x120] sm:$0xff]
    %v1081 = vld [vmem:[#allocation4 + $0x128] sm:$0xff]
    %v1082 = vld [vmem:[#allocation4 + $0x130] sm:$0xff]
    %v1083 = vld [vmem:[#allocation4 + $0x138] sm:$0xff]
    %v1084 = vld [vmem:[#allocation4 + $0x140] sm:$0xff]
    %v1085 = vld [vmem:[#allocation4 + $0x148] sm:$0xff]
    %v1086 = vld [vmem:[#allocation4 + $0x150] sm:$0xff]
    %v1087 = vld [vmem:[#allocation4 + $0x158] sm:$0xff]
    %v1088 = vld [vmem:[#allocation4 + $0x160] sm:$0xff]
    %v1089 = vld [vmem:[#allocation4 + $0x168] sm:$0xff]
    %v1090 = vld [vmem:[#allocation4 + $0x170] sm:$0xff]
    %v1091 = vld [vmem:[#allocation4 + $0x178] sm:$0xff]
    %v1092 = vld [vmem:[#allocation4 + $0x180] sm:$0xff]
    %v1093 = vld [vmem:[#allocation4 + $0x188] sm:$0xff]
    %v1094 = vld [vmem:[#allocation4 + $0x190] sm:$0xff]
    %v1095 = vld [vmem:[#allocation4 + $0x198] sm:$0xff]
    %v1096 = vld [vmem:[#allocation4 + $0x1a0] sm:$0xff]
    %v1097 = vld [vmem:[#allocation4 + $0x1a8] sm:$0xff]
    %v1098 = vld [vmem:[#allocation4 + $0x1b0] sm:$0xff]
    %v1099 = vld [vmem:[#allocation4 + $0x1b8] sm:$0xff]
    %v1100 = vld [vmem:[#allocation4 + $0x1c0] sm:$0xff]
    %v1101 = vld [vmem:[#allocation4 + $0x1c8] sm:$0xff]
    %v1102 = vld [vmem:[#allocation4 + $0x1d0] sm:$0xff]
    %v1103 = vld [vmem:[#allocation4 + $0x1d8] sm:$0xff]
    %v1104 = vld [vmem:[#allocation4 + $0x1e0] sm:$0xff]
    %v1105 = vld [vmem:[#allocation4 + $0x1e8] sm:$0xff]
    %v1106 = vld [vmem:[#allocation4 + $0x1f0] sm:$0xff]
    %v1107 = vld [vmem:[#allocation4 + $0x1f8] sm:$0xff]
    %v1108 = vld [vmem:[#allocation4 + $0x200] sm:$0xff]
    %v1109 = vld [vmem:[#allocation4 + $0x208] sm:$0xff]
    %v1110 = vld [vmem:[#allocation4 + $0x210] sm:$0xff]
    %v1111 = vld [vmem:[#allocation4 + $0x218] sm:$0xff]
    %v1112 = vld [vmem:[#allocation4 + $0x220] sm:$0xff]
    %v1113 = vld [vmem:[#allocation4 + $0x228] sm:$0xff]
    %v1114 = vld [vmem:[#allocation4 + $0x230] sm:$0xff]
    %v1115 = vld [vmem:[#allocation4 + $0x238] sm:$0xff]
    %v1116 = vld [vmem:[#allocation4 + $0x240] sm:$0xff]
    %v1117 = vld [vmem:[#allocation4 + $0x248] sm:$0xff]
    %v1118 = vld [vmem:[#allocation4 + $0x250] sm:$0xff]
    %v1119 = vld [vmem:[#allocation4 + $0x258] sm:$0xff]
    %v1120 = vld [vmem:[#allocation4 + $0x260] sm:$0xff]
    %v1121 = vld [vmem:[#allocation4 + $0x268] sm:$0xff]
    %v1122 = vld [vmem:[#allocation4 + $0x270] sm:$0xff]
    %v1123 = vld [vmem:[#allocation4 + $0x278] sm:$0xff]
    %v1124 = vld [vmem:[#allocation4 + $0x280] sm:$0xff]
    %v1125 = vld [vmem:[#allocation4 + $0x288] sm:$0xff]
    %v1126 = vld [vmem:[#allocation4 + $0x290] sm:$0xff]
    %v1127 = vld [vmem:[#allocation4 + $0x298] sm:$0xff]
    %v1128 = vld [vmem:[#allocation4 + $0x2a0] sm:$0xff]
    %v1129 = vld [vmem:[#allocation4 + $0x2a8] sm:$0xff]
    %v1130 = vld [vmem:[#allocation4 + $0x2b0] sm:$0xff]
    %v1131 = vld [vmem:[#allocation4 + $0x2b8] sm:$0xff]
    %v1132 = vld [vmem:[#allocation4 + $0x2c0] sm:$0xff]
    %v1133 = vld [vmem:[#allocation4 + $0x2c8] sm:$0xff]
    %v1134 = vld [vmem:[#allocation4 + $0x2d0] sm:$0xff]
    %v1135 = vld [vmem:[#allocation4 + $0x2d8] sm:$0xff]
    %v1136 = vld [vmem:[#allocation4 + $0x2e0] sm:$0xff]
    %v1137 = vld [vmem:[#allocation4 + $0x2e8] sm:$0xff]
    %v1138 = vld [vmem:[#allocation4 + $0x2f0] sm:$0xff]
    %v1139 = vld [vmem:[#allocation4 + $0x2f8] sm:$0xff]
    %v1140 = vld [vmem:[#allocation4 + $0x300] sm:$0xff]
    %v1141 = vld [vmem:[#allocation4 + $0x308] sm:$0xff]
    %v1142 = vld [vmem:[#allocation4 + $0x310] sm:$0xff]
    %v1143 = vld [vmem:[#allocation4 + $0x318] sm:$0xff]
    %v1144 = vld [vmem:[#allocation4 + $0x320] sm:$0xff]
    %v1145 = vld [vmem:[#allocation4 + $0x328] sm:$0xff]
    %v1146 = vld [vmem:[#allocation4 + $0x330] sm:$0xff]
    %v1147 = vld [vmem:[#allocation4 + $0x338] sm:$0xff]
    %v1148 = vld [vmem:[#allocation4 + $0x340] sm:$0xff]
    %v1149 = vld [vmem:[#allocation4 + $0x348] sm:$0xff]
    %v1150 = vld [vmem:[#allocation4 + $0x350] sm:$0xff]
    %v1151 = vld [vmem:[#allocation4 + $0x358] sm:$0xff]
    %v1152 = vld [vmem:[#allocation4 + $0x360] sm:$0xff]
    %v1153 = vld [vmem:[#allocation4 + $0x368] sm:$0xff]
    %v1154 = vld [vmem:[#allocation4 + $0x370] sm:$0xff]
    %v1155 = vld [vmem:[#allocation4 + $0x378] sm:$0xff]
    %v1156 = vld [vmem:[#allocation4 + $0x380] sm:$0xff]
    %v1157 = vld [vmem:[#allocation4 + $0x388] sm:$0xff]
    %v1158 = vld [vmem:[#allocation4 + $0x390] sm:$0xff]
    %v1159 = vld [vmem:[#allocation4 + $0x398] sm:$0xff]
    %v1160 = vld [vmem:[#allocation4 + $0x3a0] sm:$0xff]
    %v1161 = vld [vmem:[#allocation4 + $0x3a8] sm:$0xff]
    %v1162 = vld [vmem:[#allocation4 + $0x3b0] sm:$0xff]
    %v1163 = vld [vmem:[#allocation4 + $0x3b8] sm:$0xff]
    %v1164 = vld [vmem:[#allocation4 + $0x3c0] sm:$0xff]
    %v1165 = vld [vmem:[#allocation4 + $0x3c8] sm:$0xff]
    %v1166 = vld [vmem:[#allocation4 + $0x3d0] sm:$0xff]
    %v1167 = vld [vmem:[#allocation4 + $0x3d8] sm:$0xff]
    %v1168 = vld [vmem:[#allocation4 + $0x3e0] sm:$0xff]
    %v1169 = vld [vmem:[#allocation4 + $0x3e8] sm:$0xff]
    %v1170 = vld [vmem:[#allocation4 + $0x3f0] sm:$0xff]
    %v1171 = vld [vmem:[#allocation4 + $0x3f8] sm:$0xff]
    %1172 = vmatprep.subr.mxu0 %v1045
    %1173 = vmatpush1.msra.mxu0 %v1044
    %1174 = vmatprep.subr.mxu0 %v1049
    %1175 = vmatpush1.msra.mxu0 %v1048
    %1176 = vmatprep.subr.mxu0 %v1053
    %1177 = vmatpush1.msra.mxu0 %v1052
    %1178 = vmatprep.subr.mxu0 %v1057
    %1179 = vmatpush1.msra.mxu0 %v1056
    %1180 = vmatprep.subr.mxu0 %v1061
    %1181 = vmatpush1.msra.mxu0 %v1060
    %1182 = vmatprep.subr.mxu0 %v1065
    %1183 = vmatpush1.msra.mxu0 %v1064
    %1184 = vmatprep.subr.mxu0 %v1069
    %1185 = vmatpush1.msra.mxu0 %v1068
    %1186 = vmatprep.subr.mxu0 %v1073
    %1187 = vmatpush1.msra.mxu0 %v1072
    %1188 = vmatprep.subr.mxu0 %v1077
    %1189 = vmatpush1.msra.mxu0 %v1076
    %1190 = vmatprep.subr.mxu0 %v1081
    %1191 = vmatpush1.msra.mxu0 %v1080
    %1192 = vmatprep.subr.mxu0 %v1085
    %1193 = vmatpush1.msra.mxu0 %v1084
    %1194 = vmatprep.subr.mxu0 %v1089
    %1195 = vmatpush1.msra.mxu0 %v1088
    %1196 = vmatprep.subr.mxu0 %v1093
    %1197 = vmatpush1.msra.mxu0 %v1092
    %1198 = vmatprep.subr.mxu0 %v1097
    %1199 = vmatpush1.msra.mxu0 %v1096
    %1200 = vmatprep.subr.mxu0 %v1101
    %1201 = vmatpush1.msra.mxu0 %v1100
    %1202 = vmatprep.subr.mxu0 %v1105
    %1203 = vmatpush1.msra.mxu0 %v1104
    %1204 = vmatprep.subr.mxu0 %v1109
    %1205 = vmatpush1.msra.mxu0 %v1108
    %1206 = vmatprep.subr.mxu0 %v1113
    %1207 = vmatpush1.msra.mxu0 %v1112
    %1208 = vmatprep.subr.mxu0 %v1117
    %1209 = vmatpush1.msra.mxu0 %v1116
    %1210 = vmatprep.subr.mxu0 %v1121
    %1211 = vmatpush1.msra.mxu0 %v1120
    %1212 = vmatprep.subr.mxu0 %v1125
    %1213 = vmatpush1.msra.mxu0 %v1124
    %1214 = vmatprep.subr.mxu0 %v1129
    %1215 = vmatpush1.msra.mxu0 %v1128
    %1216 = vmatprep.subr.mxu0 %v1133
    %1217 = vmatpush1.msra.mxu0 %v1132
    %1218 = vmatprep.subr.mxu0 %v1137
    %1219 = vmatpush1.msra.mxu0 %v1136
    %1220 = vmatprep.subr.mxu0 %v1141
    %1221 = vmatpush1.msra.mxu0 %v1140
    %1222 = vmatprep.subr.mxu0 %v1145
    %1223 = vmatpush1.msra.mxu0 %v1144
    %1224 = vmatprep.subr.mxu0 %v1149
    %1225 = vmatpush1.msra.mxu0 %v1148
    %1226 = vmatprep.subr.mxu0 %v1153
    %1227 = vmatpush1.msra.mxu0 %v1152
    %1228 = vmatprep.subr.mxu0 %v1157
    %1229 = vmatpush1.msra.mxu0 %v1156
    %1230 = vmatprep.subr.mxu0 %v1161
    %1231 = vmatpush1.msra.mxu0 %v1160
    %1232 = vmatprep.subr.mxu0 %v1165
    %1233 = vmatpush1.msra.mxu0 %v1164
    %1234 = vmatprep.subr.mxu0 %v1169
    %1235 = vmatpush1.msra.mxu0 %v1168
    %1236 = vmatprep.mubr.f32.mxu0 %v605
    %1237 = vmatmul.mubr.f32.gmra.mrb[0].mxu0 %v604
    %v1238 = vpop.f32.mrb[0].mxu0
    %v1239 = vadd.f32 %v580, %v1238
    %v1240 = vpop.f32.mrb[0].mxu0
    %v1241 = vadd.f32 %v584, %v1240
    %1242 = vdwg.mxu0
    %1243 = vmatprep.subr.mxu0 %v1047
    %1244 = vmatpush1.msra.mxu0 %v1046
    %1245 = vmatprep.subr.mxu0 %v1051
    %1246 = vmatpush1.msra.mxu0 %v1050
    %1247 = vmatprep.subr.mxu0 %v1055
    %1248 = vmatpush1.msra.mxu0 %v1054
    %1249 = vmatprep.subr.mxu0 %v1059
    %1250 = vmatpush1.msra.mxu0 %v1058
    %1251 = vmatprep.subr.mxu0 %v1063
    %1252 = vmatpush1.msra.mxu0 %v1062
    %1253 = vmatprep.subr.mxu0 %v1067
    %1254 = vmatpush1.msra.mxu0 %v1066
    %1255 = vmatprep.subr.mxu0 %v1071
    %1256 = vmatpush1.msra.mxu0 %v1070
    %1257 = vmatprep.subr.mxu0 %v1075
    %1258 = vmatpush1.msra.mxu0 %v1074
    %1259 = vmatprep.subr.mxu0 %v1079
    %1260 = vmatpush1.msra.mxu0 %v1078
    %1261 = vmatprep.subr.mxu0 %v1083
    %1262 = vmatpush1.msra.mxu0 %v1082
    %1263 = vmatprep.subr.mxu0 %v1087
    %1264 = vmatpush1.msra.mxu0 %v1086
    %1265 = vmatprep.subr.mxu0 %v1091
    %1266 = vmatpush1.msra.mxu0 %v1090
    %1267 = vmatprep.subr.mxu0 %v1095
    %1268 = vmatpush1.msra.mxu0 %v1094
    %1269 = vmatprep.subr.mxu0 %v1099
    %1270 = vmatpush1.msra.mxu0 %v1098
    %1271 = vmatprep.subr.mxu0 %v1103
    %1272 = vmatpush1.msra.mxu0 %v1102
    %1273 = vmatprep.subr.mxu0 %v1107
    %1274 = vmatpush1.msra.mxu0 %v1106
    %1275 = vmatprep.subr.mxu0 %v1111
    %1276 = vmatpush1.msra.mxu0 %v1110
    %1277 = vmatprep.subr.mxu0 %v1115
    %1278 = vmatpush1.msra.mxu0 %v1114
    %1279 = vmatprep.subr.mxu0 %v1119
    %1280 = vmatpush1.msra.mxu0 %v1118
    %1281 = vmatprep.subr.mxu0 %v1123
    %1282 = vmatpush1.msra.mxu0 %v1122
    %1283 = vmatprep.subr.mxu0 %v1127
    %1284 = vmatpush1.msra.mxu0 %v1126
    %1285 = vmatprep.subr.mxu0 %v1131
    %1286 = vmatpush1.msra.mxu0 %v1130
    %1287 = vmatprep.subr.mxu0 %v1135
    %1288 = vmatpush1.msra.mxu0 %v1134
    %1289 = vmatprep.subr.mxu0 %v1139
    %1290 = vmatpush1.msra.mxu0 %v1138
    %1291 = vmatprep.subr.mxu0 %v1143
    %1292 = vmatpush1.msra.mxu0 %v1142
    %1293 = vmatprep.subr.mxu0 %v1147
    %1294 = vmatpush1.msra.mxu0 %v1146
    %1295 = vmatprep.subr.mxu0 %v1151
    %1296 = vmatpush1.msra.mxu0 %v1150
    %1297 = vmatprep.subr.mxu0 %v1155
    %1298 = vmatpush1.msra.mxu0 %v1154
    %1299 = vmatprep.subr.mxu0 %v1159
    %1300 = vmatpush1.msra.mxu0 %v1158
    %1301 = vmatprep.subr.mxu0 %v1163
    %1302 = vmatpush1.msra.mxu0 %v1162
    %1303 = vmatprep.subr.mxu0 %v1167
    %1304 = vmatpush1.msra.mxu0 %v1166
    %1305 = vmatprep.subr.mxu0 %v1171
    %1306 = vmatpush1.msra.mxu0 %v1170
    %1307 = vmatprep.mubr.f32.mxu0 %v605
    %1308 = vmatmul.mubr.f32.gmra.mrb[0].mxu0 %v604
    %v1309 = vpop.f32.mrb[0].mxu0
    %v1310 = vadd.f32 %v588, %v1309
    %v1311 = vpop.f32.mrb[0].mxu0
    %v1312 = vadd.f32 %v592, %v1311
    %1313 = vdwg.mxu0
    %vm1314 = vcmp.ge.f32.partialorder %v1239, 0.0
    %vm1315 = vcmp.ge.f32.partialorder %v1241, 0.0
    %vm1316 = vcmp.ge.f32.partialorder %v1310, 0.0
    %vm1317 = vcmp.ge.f32.partialorder %v1312, 0.0
    %v1318 = vmul.f32 %v1239, 0.1
    %v1319 = vmul.f32 %v1241, 0.1
    %v1320 = vmul.f32 %v1310, 0.1
    %v1321 = vmul.f32 %v1312, 0.1
    %v1322 = vsel %vm1314, %v1239, %v1318
    %v1323 = vsel %vm1315, %v1241, %v1319
    %v1324 = vsel %vm1316, %v1310, %v1320
    %v1325 = vsel %vm1317, %v1312, %v1321
    %v1326 = vld [vmem:[#allocation6] sm:$0xff]
    %v1327 = vld [vmem:[#allocation6 + $0x8] sm:$0xff]
    %v1328 = vld [vmem:[#allocation6 + $0x10] sm:$0xff]
    %v1329 = vld [vmem:[#allocation6 + $0x18] sm:$0xff]
    %v1330 = vld [vmem:[#allocation6 + $0x20] sm:$0xff]
    %v1331 = vld [vmem:[#allocation6 + $0x28] sm:$0xff]
    %v1332 = vld [vmem:[#allocation6 + $0x30] sm:$0xff]
    %v1333 = vld [vmem:[#allocation6 + $0x38] sm:$0xff]
    %v1334 = vld [vmem:[#allocation6 + $0x40] sm:$0xff]
    %v1335 = vld [vmem:[#allocation6 + $0x48] sm:$0xff]
    %v1336 = vld [vmem:[#allocation6 + $0x50] sm:$0xff]
    %v1337 = vld [vmem:[#allocation6 + $0x58] sm:$0xff]
    %v1338 = vld [vmem:[#allocation6 + $0x60] sm:$0xff]
    %v1339 = vld [vmem:[#allocation6 + $0x68] sm:$0xff]
    %v1340 = vld [vmem:[#allocation6 + $0x70] sm:$0xff]
    %v1341 = vld [vmem:[#allocation6 + $0x78] sm:$0xff]
    %v1342 = vld [vmem:[#allocation6 + $0x80] sm:$0xff]
    %v1343 = vld [vmem:[#allocation6 + $0x88] sm:$0xff]
    %v1344 = vld [vmem:[#allocation6 + $0x90] sm:$0xff]
    %v1345 = vld [vmem:[#allocation6 + $0x98] sm:$0xff]
    %v1346 = vld [vmem:[#allocation6 + $0xa0] sm:$0xff]
    %v1347 = vld [vmem:[#allocation6 + $0xa8] sm:$0xff]
    %v1348 = vld [vmem:[#allocation6 + $0xb0] sm:$0xff]
    %v1349 = vld [vmem:[#allocation6 + $0xb8] sm:$0xff]
    %v1350 = vld [vmem:[#allocation6 + $0xc0] sm:$0xff]
    %v1351 = vld [vmem:[#allocation6 + $0xc8] sm:$0xff]
    %v1352 = vld [vmem:[#allocation6 + $0xd0] sm:$0xff]
    %v1353 = vld [vmem:[#allocation6 + $0xd8] sm:$0xff]
    %v1354 = vld [vmem:[#allocation6 + $0xe0] sm:$0xff]
    %v1355 = vld [vmem:[#allocation6 + $0xe8] sm:$0xff]
    %v1356 = vld [vmem:[#allocation6 + $0xf0] sm:$0xff]
    %v1357 = vld [vmem:[#allocation6 + $0xf8] sm:$0xff]
    %v1358 = vld [vmem:[#allocation6 + $0x100] sm:$0xff]
    %v1359 = vld [vmem:[#allocation6 + $0x108] sm:$0xff]
    %v1360 = vld [vmem:[#allocation6 + $0x110] sm:$0xff]
    %v1361 = vld [vmem:[#allocation6 + $0x118] sm:$0xff]
    %v1362 = vld [vmem:[#allocation6 + $0x120] sm:$0xff]
    %v1363 = vld [vmem:[#allocation6 + $0x128] sm:$0xff]
    %v1364 = vld [vmem:[#allocation6 + $0x130] sm:$0xff]
    %v1365 = vld [vmem:[#allocation6 + $0x138] sm:$0xff]
    %v1366 = vld [vmem:[#allocation6 + $0x140] sm:$0xff]
    %v1367 = vld [vmem:[#allocation6 + $0x148] sm:$0xff]
    %v1368 = vld [vmem:[#allocation6 + $0x150] sm:$0xff]
    %v1369 = vld [vmem:[#allocation6 + $0x158] sm:$0xff]
    %v1370 = vld [vmem:[#allocation6 + $0x160] sm:$0xff]
    %v1371 = vld [vmem:[#allocation6 + $0x168] sm:$0xff]
    %v1372 = vld [vmem:[#allocation6 + $0x170] sm:$0xff]
    %v1373 = vld [vmem:[#allocation6 + $0x178] sm:$0xff]
    %v1374 = vld [vmem:[#allocation6 + $0x180] sm:$0xff]
    %v1375 = vld [vmem:[#allocation6 + $0x188] sm:$0xff]
    %v1376 = vld [vmem:[#allocation6 + $0x190] sm:$0xff]
    %v1377 = vld [vmem:[#allocation6 + $0x198] sm:$0xff]
    %v1378 = vld [vmem:[#allocation6 + $0x1a0] sm:$0xff]
    %v1379 = vld [vmem:[#allocation6 + $0x1a8] sm:$0xff]
    %v1380 = vld [vmem:[#allocation6 + $0x1b0] sm:$0xff]
    %v1381 = vld [vmem:[#allocation6 + $0x1b8] sm:$0xff]
    %v1382 = vld [vmem:[#allocation6 + $0x1c0] sm:$0xff]
    %v1383 = vld [vmem:[#allocation6 + $0x1c8] sm:$0xff]
    %v1384 = vld [vmem:[#allocation6 + $0x1d0] sm:$0xff]
    %v1385 = vld [vmem:[#allocation6 + $0x1d8] sm:$0xff]
    %v1386 = vld [vmem:[#allocation6 + $0x1e0] sm:$0xff]
    %v1387 = vld [vmem:[#allocation6 + $0x1e8] sm:$0xff]
    %v1388 = vld [vmem:[#allocation6 + $0x1f0] sm:$0xff]
    %v1389 = vld [vmem:[#allocation6 + $0x1f8] sm:$0xff]
    %v1390 = vld [vmem:[#allocation6 + $0x200] sm:$0xff]
    %v1391 = vld [vmem:[#allocation6 + $0x208] sm:$0xff]
    %v1392 = vld [vmem:[#allocation6 + $0x210] sm:$0xff]
    %v1393 = vld [vmem:[#allocation6 + $0x218] sm:$0xff]
    %v1394 = vld [vmem:[#allocation6 + $0x220] sm:$0xff]
    %v1395 = vld [vmem:[#allocation6 + $0x228] sm:$0xff]
    %v1396 = vld [vmem:[#allocation6 + $0x230] sm:$0xff]
    %v1397 = vld [vmem:[#allocation6 + $0x238] sm:$0xff]
    %v1398 = vld [vmem:[#allocation6 + $0x240] sm:$0xff]
    %v1399 = vld [vmem:[#allocation6 + $0x248] sm:$0xff]
    %v1400 = vld [vmem:[#allocation6 + $0x250] sm:$0xff]
    %v1401 = vld [vmem:[#allocation6 + $0x258] sm:$0xff]
    %v1402 = vld [vmem:[#allocation6 + $0x260] sm:$0xff]
    %v1403 = vld [vmem:[#allocation6 + $0x268] sm:$0xff]
    %v1404 = vld [vmem:[#allocation6 + $0x270] sm:$0xff]
    %v1405 = vld [vmem:[#allocation6 + $0x278] sm:$0xff]
    %v1406 = vld [vmem:[#allocation6 + $0x280] sm:$0xff]
    %v1407 = vld [vmem:[#allocation6 + $0x288] sm:$0xff]
    %v1408 = vld [vmem:[#allocation6 + $0x290] sm:$0xff]
    %v1409 = vld [vmem:[#allocation6 + $0x298] sm:$0xff]
    %v1410 = vld [vmem:[#allocation6 + $0x2a0] sm:$0xff]
    %v1411 = vld [vmem:[#allocation6 + $0x2a8] sm:$0xff]
    %v1412 = vld [vmem:[#allocation6 + $0x2b0] sm:$0xff]
    %v1413 = vld [vmem:[#allocation6 + $0x2b8] sm:$0xff]
    %v1414 = vld [vmem:[#allocation6 + $0x2c0] sm:$0xff]
    %v1415 = vld [vmem:[#allocation6 + $0x2c8] sm:$0xff]
    %v1416 = vld [vmem:[#allocation6 + $0x2d0] sm:$0xff]
    %v1417 = vld [vmem:[#allocation6 + $0x2d8] sm:$0xff]
    %v1418 = vld [vmem:[#allocation6 + $0x2e0] sm:$0xff]
    %v1419 = vld [vmem:[#allocation6 + $0x2e8] sm:$0xff]
    %v1420 = vld [vmem:[#allocation6 + $0x2f0] sm:$0xff]
    %v1421 = vld [vmem:[#allocation6 + $0x2f8] sm:$0xff]
    %v1422 = vld [vmem:[#allocation6 + $0x300] sm:$0xff]
    %v1423 = vld [vmem:[#allocation6 + $0x308] sm:$0xff]
    %v1424 = vld [vmem:[#allocation6 + $0x310] sm:$0xff]
    %v1425 = vld [vmem:[#allocation6 + $0x318] sm:$0xff]
    %v1426 = vld [vmem:[#allocation6 + $0x320] sm:$0xff]
    %v1427 = vld [vmem:[#allocation6 + $0x328] sm:$0xff]
    %v1428 = vld [vmem:[#allocation6 + $0x330] sm:$0xff]
    %v1429 = vld [vmem:[#allocation6 + $0x338] sm:$0xff]
    %v1430 = vld [vmem:[#allocation6 + $0x340] sm:$0xff]
    %v1431 = vld [vmem:[#allocation6 + $0x348] sm:$0xff]
    %v1432 = vld [vmem:[#allocation6 + $0x350] sm:$0xff]
    %v1433 = vld [vmem:[#allocation6 + $0x358] sm:$0xff]
    %v1434 = vld [vmem:[#allocation6 + $0x360] sm:$0xff]
    %v1435 = vld [vmem:[#allocation6 + $0x368] sm:$0xff]
    %v1436 = vld [vmem:[#allocation6 + $0x370] sm:$0xff]
    %v1437 = vld [vmem:[#allocation6 + $0x378] sm:$0xff]
    %v1438 = vld [vmem:[#allocation6 + $0x380] sm:$0xff]
    %v1439 = vld [vmem:[#allocation6 + $0x388] sm:$0xff]
    %v1440 = vld [vmem:[#allocation6 + $0x390] sm:$0xff]
    %v1441 = vld [vmem:[#allocation6 + $0x398] sm:$0xff]
    %v1442 = vld [vmem:[#allocation6 + $0x3a0] sm:$0xff]
    %v1443 = vld [vmem:[#allocation6 + $0x3a8] sm:$0xff]
    %v1444 = vld [vmem:[#allocation6 + $0x3b0] sm:$0xff]
    %v1445 = vld [vmem:[#allocation6 + $0x3b8] sm:$0xff]
    %v1446 = vld [vmem:[#allocation6 + $0x3c0] sm:$0xff]
    %v1447 = vld [vmem:[#allocation6 + $0x3c8] sm:$0xff]
    %v1448 = vld [vmem:[#allocation6 + $0x3d0] sm:$0xff]
    %v1449 = vld [vmem:[#allocation6 + $0x3d8] sm:$0xff]
    %v1450 = vld [vmem:[#allocation6 + $0x3e0] sm:$0xff]
    %v1451 = vld [vmem:[#allocation6 + $0x3e8] sm:$0xff]
    %v1452 = vld [vmem:[#allocation6 + $0x3f0] sm:$0xff]
    %v1453 = vld [vmem:[#allocation6 + $0x3f8] sm:$0xff]
    %1454 = vmatprep.subr.mxu0 %v1327
    %1455 = vmatpush1.msra.mxu0 %v1326
    %1456 = vmatprep.subr.mxu0 %v1331
    %1457 = vmatpush1.msra.mxu0 %v1330
    %1458 = vmatprep.subr.mxu0 %v1335
    %1459 = vmatpush1.msra.mxu0 %v1334
    %1460 = vmatprep.subr.mxu0 %v1339
    %1461 = vmatpush1.msra.mxu0 %v1338
    %1462 = vmatprep.subr.mxu0 %v1343
    %1463 = vmatpush1.msra.mxu0 %v1342
    %1464 = vmatprep.subr.mxu0 %v1347
    %1465 = vmatpush1.msra.mxu0 %v1346
    %1466 = vmatprep.subr.mxu0 %v1351
    %1467 = vmatpush1.msra.mxu0 %v1350
    %1468 = vmatprep.subr.mxu0 %v1355
    %1469 = vmatpush1.msra.mxu0 %v1354
    %1470 = vmatprep.subr.mxu0 %v1359
    %1471 = vmatpush1.msra.mxu0 %v1358
    %1472 = vmatprep.subr.mxu0 %v1363
    %1473 = vmatpush1.msra.mxu0 %v1362
    %1474 = vmatprep.subr.mxu0 %v1367
    %1475 = vmatpush1.msra.mxu0 %v1366
    %1476 = vmatprep.subr.mxu0 %v1371
    %1477 = vmatpush1.msra.mxu0 %v1370
    %1478 = vmatprep.subr.mxu0 %v1375
    %1479 = vmatpush1.msra.mxu0 %v1374
    %1480 = vmatprep.subr.mxu0 %v1379
    %1481 = vmatpush1.msra.mxu0 %v1378
    %1482 = vmatprep.subr.mxu0 %v1383
    %1483 = vmatpush1.msra.mxu0 %v1382
    %1484 = vmatprep.subr.mxu0 %v1387
    %1485 = vmatpush1.msra.mxu0 %v1386
    %1486 = vmatprep.subr.mxu0 %v1391
    %1487 = vmatpush1.msra.mxu0 %v1390
    %1488 = vmatprep.subr.mxu0 %v1395
    %1489 = vmatpush1.msra.mxu0 %v1394
    %1490 = vmatprep.subr.mxu0 %v1399
    %1491 = vmatpush1.msra.mxu0 %v1398
    %1492 = vmatprep.subr.mxu0 %v1403
    %1493 = vmatpush1.msra.mxu0 %v1402
    %1494 = vmatprep.subr.mxu0 %v1407
    %1495 = vmatpush1.msra.mxu0 %v1406
    %1496 = vmatprep.subr.mxu0 %v1411
    %1497 = vmatpush1.msra.mxu0 %v1410
    %1498 = vmatprep.subr.mxu0 %v1415
    %1499 = vmatpush1.msra.mxu0 %v1414
    %1500 = vmatprep.subr.mxu0 %v1419
    %1501 = vmatpush1.msra.mxu0 %v1418
    %1502 = vmatprep.subr.mxu0 %v1423
    %1503 = vmatpush1.msra.mxu0 %v1422
    %1504 = vmatprep.subr.mxu0 %v1427
    %1505 = vmatpush1.msra.mxu0 %v1426
    %1506 = vmatprep.subr.mxu0 %v1431
    %1507 = vmatpush1.msra.mxu0 %v1430
    %1508 = vmatprep.subr.mxu0 %v1435
    %1509 = vmatpush1.msra.mxu0 %v1434
    %1510 = vmatprep.subr.mxu0 %v1439
    %1511 = vmatpush1.msra.mxu0 %v1438
    %1512 = vmatprep.subr.mxu0 %v1443
    %1513 = vmatpush1.msra.mxu0 %v1442
    %1514 = vmatprep.subr.mxu0 %v1447
    %1515 = vmatpush1.msra.mxu0 %v1446
    %1516 = vmatprep.subr.mxu0 %v1451
    %1517 = vmatpush1.msra.mxu0 %v1450
    %1518 = vmatprep.mubr.f32.mxu0 %v605
    %1519 = vmatmul.mubr.f32.gmra.mrb[0].mxu0 %v604
    %v1520 = vpop.f32.mrb[0].mxu0
    %v1521 = vadd.f32 %v580, %v1520
    %v1522 = vpop.f32.mrb[0].mxu0
    %v1523 = vadd.f32 %v584, %v1522
    %1524 = vdwg.mxu0
    %1525 = vmatprep.subr.mxu0 %v1329
    %1526 = vmatpush1.msra.mxu0 %v1328
    %1527 = vmatprep.subr.mxu0 %v1333
    %1528 = vmatpush1.msra.mxu0 %v1332
    %1529 = vmatprep.subr.mxu0 %v1337
    %1530 = vmatpush1.msra.mxu0 %v1336
    %1531 = vmatprep.subr.mxu0 %v1341
    %1532 = vmatpush1.msra.mxu0 %v1340
    %1533 = vmatprep.subr.mxu0 %v1345
    %1534 = vmatpush1.msra.mxu0 %v1344
    %1535 = vmatprep.subr.mxu0 %v1349
    %1536 = vmatpush1.msra.mxu0 %v1348
    %1537 = vmatprep.subr.mxu0 %v1353
    %1538 = vmatpush1.msra.mxu0 %v1352
    %1539 = vmatprep.subr.mxu0 %v1357
    %1540 = vmatpush1.msra.mxu0 %v1356
    %1541 = vmatprep.subr.mxu0 %v1361
    %1542 = vmatpush1.msra.mxu0 %v1360
    %1543 = vmatprep.subr.mxu0 %v1365
    %1544 = vmatpush1.msra.mxu0 %v1364
    %1545 = vmatprep.subr.mxu0 %v1369
    %1546 = vmatpush1.msra.mxu0 %v1368
    %1547 = vmatprep.subr.mxu0 %v1373
    %1548 = vmatpush1.msra.mxu0 %v1372
    %1549 = vmatprep.subr.mxu0 %v1377
    %1550 = vmatpush1.msra.mxu0 %v1376
    %1551 = vmatprep.subr.mxu0 %v1381
    %1552 = vmatpush1.msra.mxu0 %v1380
    %1553 = vmatprep.subr.mxu0 %v1385
    %1554 = vmatpush1.msra.mxu0 %v1384
    %1555 = vmatprep.subr.mxu0 %v1389
    %1556 = vmatpush1.msra.mxu0 %v1388
    %1557 = vmatprep.subr.mxu0 %v1393
    %1558 = vmatpush1.msra.mxu0 %v1392
    %1559 = vmatprep.subr.mxu0 %v1397
    %1560 = vmatpush1.msra.mxu0 %v1396
    %1561 = vmatprep.subr.mxu0 %v1401
    %1562 = vmatpush1.msra.mxu0 %v1400
    %1563 = vmatprep.subr.mxu0 %v1405
    %1564 = vmatpush1.msra.mxu0 %v1404
    %1565 = vmatprep.subr.mxu0 %v1409
    %1566 = vmatpush1.msra.mxu0 %v1408
    %1567 = vmatprep.subr.mxu0 %v1413
    %1568 = vmatpush1.msra.mxu0 %v1412
    %1569 = vmatprep.subr.mxu0 %v1417
    %1570 = vmatpush1.msra.mxu0 %v1416
    %1571 = vmatprep.subr.mxu0 %v1421
    %1572 = vmatpush1.msra.mxu0 %v1420
    %1573 = vmatprep.subr.mxu0 %v1425
    %1574 = vmatpush1.msra.mxu0 %v1424
    %1575 = vmatprep.subr.mxu0 %v1429
    %1576 = vmatpush1.msra.mxu0 %v1428
    %1577 = vmatprep.subr.mxu0 %v1433
    %1578 = vmatpush1.msra.mxu0 %v1432
    %1579 = vmatprep.subr.mxu0 %v1437
    %1580 = vmatpush1.msra.mxu0 %v1436
    %1581 = vmatprep.subr.mxu0 %v1441
    %1582 = vmatpush1.msra.mxu0 %v1440
    %1583 = vmatprep.subr.mxu0 %v1445
    %1584 = vmatpush1.msra.mxu0 %v1444
    %1585 = vmatprep.subr.mxu0 %v1449
    %1586 = vmatpush1.msra.mxu0 %v1448
    %1587 = vmatprep.subr.mxu0 %v1453
    %1588 = vmatpush1.msra.mxu0 %v1452
    %1589 = vmatprep.mubr.f32.mxu0 %v605
    %1590 = vmatmul.mubr.f32.gmra.mrb[0].mxu0 %v604
    %v1591 = vpop.f32.mrb[0].mxu0
    %v1592 = vadd.f32 %v588, %v1591
    %v1593 = vpop.f32.mrb[0].mxu0
    %v1594 = vadd.f32 %v592, %v1593
    %1595 = vdwg.mxu0
    %vm1596 = vcmp.ge.f32.partialorder %v1521, 0.0
    %vm1597 = vcmp.ge.f32.partialorder %v1523, 0.0
    %vm1598 = vcmp.ge.f32.partialorder %v1592, 0.0
    %vm1599 = vcmp.ge.f32.partialorder %v1594, 0.0
    %v1600 = vmul.f32 %v1521, 0.1
    %v1601 = vmul.f32 %v1523, 0.1
    %v1602 = vmul.f32 %v1592, 0.1
    %v1603 = vmul.f32 %v1594, 0.1
    %v1604 = vsel %vm1596, %v1521, %v1600
    %v1605 = vsel %vm1597, %v1523, %v1601
    %v1606 = vsel %vm1598, %v1592, %v1602
    %v1607 = vsel %vm1599, %v1594, %v1603
    %vm1608 = vcmask 1041408
    %v1609 = vsel %vm1608, %v758, 0.0
    %v1610 = vrot.slane %v1609, 4
    %v1611 = vadd.f32 %v1609, %v1610
    %v1612 = vrot.slane %v1611, 2
    %v1613 = vadd.f32 %v1611, %v1612
    %v1614 = vrot.slane %v1613, 1
    %v1615 = vadd.f32 %v1613, %v1614
    %v1616 = vsel %vm1608, %v759, 0.0
    %v1617 = vrot.slane %v1616, 4
    %v1618 = vadd.f32 %v1616, %v1617
    %v1619 = vrot.slane %v1618, 2
    %v1620 = vadd.f32 %v1618, %v1619
    %v1621 = vrot.slane %v1620, 1
    %v1622 = vadd.f32 %v1620, %v1621
    %v1623 = vsel %vm1608, %v760, 0.0
    %v1624 = vrot.slane %v1623, 4
    %v1625 = vadd.f32 %v1623, %v1624
    %v1626 = vrot.slane %v1625, 2
    %v1627 = vadd.f32 %v1625, %v1626
    %v1628 = vrot.slane %v1627, 1
    %v1629 = vadd.f32 %v1627, %v1628
    %v1630 = vsel %vm1608, %v761, 0.0
    %v1631 = vrot.slane %v1630, 4
    %v1632 = vadd.f32 %v1630, %v1631
    %v1633 = vrot.slane %v1632, 2
    %v1634 = vadd.f32 %v1632, %v1633
    %v1635 = vrot.slane %v1634, 1
    %v1636 = vadd.f32 %v1634, %v1635
    %v1637 = vld [vmem:[%s13] sm:$0xff]
    %v1638 = vld [vmem:[%s13 + $0x8] sm:$0xff]
    %v1639 = vld [vmem:[%s13 + $0x10] sm:$0xff]
    %v1640 = vld [vmem:[%s13 + $0x18] sm:$0xff]
    %v1641 = vld [vmem:[%s13 + $0x20] sm:$0xff]
    %v1642 = vld [vmem:[%s13 + $0x28] sm:$0xff]
    %v1643 = vld [vmem:[%s13 + $0x30] sm:$0xff]
    %v1644 = vld [vmem:[%s13 + $0x38] sm:$0xff]
    %v1645 = vld [vmem:[%s13 + $0x40] sm:$0xff]
    %v1646 = vld [vmem:[%s13 + $0x48] sm:$0xff]
    %v1647 = vld [vmem:[%s13 + $0x50] sm:$0xff]
    %v1648 = vld [vmem:[%s13 + $0x58] sm:$0xff]
    %v1649 = vld [vmem:[%s13 + $0x60] sm:$0xff]
    %v1650 = vld [vmem:[%s13 + $0x68] sm:$0xff]
    %v1651 = vld [vmem:[%s13 + $0x70] sm:$0xff]
    %v1652 = vld [vmem:[%s13 + $0x78] sm:$0xff]
    %v1653 = vld [vmem:[%s13 + $0x80] sm:$0xff]
    %v1654 = vld [vmem:[%s13 + $0x88] sm:$0xff]
    %v1655 = vld [vmem:[%s13 + $0x90] sm:$0xff]
    %v1656 = vld [vmem:[%s13 + $0x98] sm:$0xff]
    %v1657 = vld [vmem:[%s13 + $0xa0] sm:$0xff]
    %v1658 = vld [vmem:[%s13 + $0xa8] sm:$0xff]
    %v1659 = vld [vmem:[%s13 + $0xb0] sm:$0xff]
    %v1660 = vld [vmem:[%s13 + $0xb8] sm:$0xff]
    %v1661 = vld [vmem:[%s13 + $0xc0] sm:$0xff]
    %v1662 = vld [vmem:[%s13 + $0xc8] sm:$0xff]
    %v1663 = vld [vmem:[%s13 + $0xd0] sm:$0xff]
    %v1664 = vld [vmem:[%s13 + $0xd8] sm:$0xff]
    %v1665 = vld [vmem:[%s13 + $0xe0] sm:$0xff]
    %v1666 = vld [vmem:[%s13 + $0xe8] sm:$0xff]
    %v1667 = vld [vmem:[%s13 + $0xf0] sm:$0xff]
    %v1668 = vld [vmem:[%s13 + $0xf8] sm:$0xff]
    %v1669 = vld [vmem:[%s13 + $0x100] sm:$0xff]
    %v1670 = vld [vmem:[%s13 + $0x108] sm:$0xff]
    %v1671 = vld [vmem:[%s13 + $0x110] sm:$0xff]
    %v1672 = vld [vmem:[%s13 + $0x118] sm:$0xff]
    %v1673 = vld [vmem:[%s13 + $0x120] sm:$0xff]
    %v1674 = vld [vmem:[%s13 + $0x128] sm:$0xff]
    %v1675 = vld [vmem:[%s13 + $0x130] sm:$0xff]
    %v1676 = vld [vmem:[%s13 + $0x138] sm:$0xff]
    %v1677 = vld [vmem:[%s13 + $0x140] sm:$0xff]
    %v1678 = vld [vmem:[%s13 + $0x148] sm:$0xff]
    %v1679 = vld [vmem:[%s13 + $0x150] sm:$0xff]
    %v1680 = vld [vmem:[%s13 + $0x158] sm:$0xff]
    %v1681 = vld [vmem:[%s13 + $0x160] sm:$0xff]
    %v1682 = vld [vmem:[%s13 + $0x168] sm:$0xff]
    %v1683 = vld [vmem:[%s13 + $0x170] sm:$0xff]
    %v1684 = vld [vmem:[%s13 + $0x178] sm:$0xff]
    %v1685 = vld [vmem:[%s13 + $0x180] sm:$0xff]
    %v1686 = vld [vmem:[%s13 + $0x188] sm:$0xff]
    %v1687 = vld [vmem:[%s13 + $0x190] sm:$0xff]
    %v1688 = vld [vmem:[%s13 + $0x198] sm:$0xff]
    %v1689 = vld [vmem:[%s13 + $0x1a0] sm:$0xff]
    %v1690 = vld [vmem:[%s13 + $0x1a8] sm:$0xff]
    %v1691 = vld [vmem:[%s13 + $0x1b0] sm:$0xff]
    %v1692 = vld [vmem:[%s13 + $0x1b8] sm:$0xff]
    %v1693 = vld [vmem:[%s13 + $0x1c0] sm:$0xff]
    %v1694 = vld [vmem:[%s13 + $0x1c8] sm:$0xff]
    %v1695 = vld [vmem:[%s13 + $0x1d0] sm:$0xff]
    %v1696 = vld [vmem:[%s13 + $0x1d8] sm:$0xff]
    %v1697 = vld [vmem:[%s13 + $0x1e0] sm:$0xff]
    %v1698 = vld [vmem:[%s13 + $0x1e8] sm:$0xff]
    %v1699 = vld [vmem:[%s13 + $0x1f0] sm:$0xff]
    %v1700 = vld [vmem:[%s13 + $0x1f8] sm:$0xff]
    %v1701 = vmul.f32 %v758, %v758
    %v1702 = vmul.f32 %v759, %v759
    %v1703 = vmul.f32 %v760, %v760
    %v1704 = vmul.f32 %v761, %v761
    %v1705 = vsel %vm1608, %v1701, 0.0
    %v1706 = vrot.slane %v1705, 4
    %v1707 = vadd.f32 %v1705, %v1706
    %v1708 = vrot.slane %v1707, 2
    %v1709 = vadd.f32 %v1707, %v1708
    %v1710 = vrot.slane %v1709, 1
    %v1711 = vadd.f32 %v1709, %v1710
    %v1712 = vsel %vm1608, %v1702, 0.0
    %v1713 = vrot.slane %v1712, 4
    %v1714 = vadd.f32 %v1712, %v1713
    %v1715 = vrot.slane %v1714, 2
    %v1716 = vadd.f32 %v1714, %v1715
    %v1717 = vrot.slane %v1716, 1
    %v1718 = vadd.f32 %v1716, %v1717
    %v1719 = vsel %vm1608, %v1703, 0.0
    %v1720 = vrot.slane %v1719, 4
    %v1721 = vadd.f32 %v1719, %v1720
    %v1722 = vrot.slane %v1721, 2
    %v1723 = vadd.f32 %v1721, %v1722
    %v1724 = vrot.slane %v1723, 1
    %v1725 = vadd.f32 %v1723, %v1724
    %v1726 = vsel %vm1608, %v1704, 0.0
    %v1727 = vrot.slane %v1726, 4
    %v1728 = vadd.f32 %v1726, %v1727
    %v1729 = vrot.slane %v1728, 2
    %v1730 = vadd.f32 %v1728, %v1729
    %v1731 = vrot.slane %v1730, 1
    %v1732 = vadd.f32 %v1730, %v1731
    %v1733 = vsel %vm1608, %v1040, 0.0
    %v1734 = vrot.slane %v1733, 4
    %v1735 = vadd.f32 %v1733, %v1734
    %v1736 = vrot.slane %v1735, 2
    %v1737 = vadd.f32 %v1735, %v1736
    %v1738 = vrot.slane %v1737, 1
    %v1739 = vadd.f32 %v1737, %v1738
    %v1740 = vsel %vm1608, %v1041, 0.0
    %v1741 = vrot.slane %v1740, 4
    %v1742 = vadd.f32 %v1740, %v1741
    %v1743 = vrot.slane %v1742, 2
    %v1744 = vadd.f32 %v1742, %v1743
    %v1745 = vrot.slane %v1744, 1
    %v1746 = vadd.f32 %v1744, %v1745
    %v1747 = vsel %vm1608, %v1042, 0.0
    %v1748 = vrot.slane %v1747, 4
    %v1749 = vadd.f32 %v1747, %v1748
    %v1750 = vrot.slane %v1749, 2
    %v1751 = vadd.f32 %v1749, %v1750
    %v1752 = vrot.slane %v1751, 1
    %v1753 = vadd.f32 %v1751, %v1752
    %v1754 = vsel %vm1608, %v1043, 0.0
    %v1755 = vrot.slane %v1754, 4
    %v1756 = vadd.f32 %v1754, %v1755
    %v1757 = vrot.slane %v1756, 2
    %v1758 = vadd.f32 %v1756, %v1757
    %v1759 = vrot.slane %v1758, 1
    %v1760 = vadd.f32 %v1758, %v1759
    %1761 = vmatprep.subr.mxu0 0.0
    %1762 = vmatpush1.msra.mxu0 %v1637
    %1763 = vmatprep.subr.mxu0 0.0
    %1764 = vmatpush1.msra.mxu0 %v1638
    %1765 = vmatprep.subr.mxu0 0.0
    %1766 = vmatpush1.msra.mxu0 %v1639
    %1767 = vmatprep.subr.mxu0 0.0
    %1768 = vmatpush1.msra.mxu0 %v1640
    %1769 = vmatprep.subr.mxu0 0.0
    %1770 = vmatpush1.msra.mxu0 %v1641
    %1771 = vmatprep.subr.mxu0 0.0
    %1772 = vmatpush1.msra.mxu0 %v1642
    %1773 = vmatprep.subr.mxu0 0.0
    %1774 = vmatpush1.msra.mxu0 %v1643
    %1775 = vmatprep.subr.mxu0 0.0
    %1776 = vmatpush1.msra.mxu0 %v1644
    %1777 = vmatprep.subr.mxu0 0.0
    %1778 = vmatpush1.msra.mxu0 %v1645
    %1779 = vmatprep.subr.mxu0 0.0
    %1780 = vmatpush1.msra.mxu0 %v1646
    %1781 = vmatprep.subr.mxu0 0.0
    %1782 = vmatpush1.msra.mxu0 %v1647
    %1783 = vmatprep.subr.mxu0 0.0
    %1784 = vmatpush1.msra.mxu0 %v1648
    %1785 = vmatprep.subr.mxu0 0.0
    %1786 = vmatpush1.msra.mxu0 %v1649
    %1787 = vmatprep.subr.mxu0 0.0
    %1788 = vmatpush1.msra.mxu0 %v1650
    %1789 = vmatprep.subr.mxu0 0.0
    %1790 = vmatpush1.msra.mxu0 %v1651
    %1791 = vmatprep.subr.mxu0 0.0
    %1792 = vmatpush1.msra.mxu0 %v1652
    %1793 = vmatprep.subr.mxu0 0.0
    %1794 = vmatpush1.msra.mxu0 %v1653
    %1795 = vmatprep.subr.mxu0 0.0
    %1796 = vmatpush1.msra.mxu0 %v1654
    %1797 = vmatprep.subr.mxu0 0.0
    %1798 = vmatpush1.msra.mxu0 %v1655
    %1799 = vmatprep.subr.mxu0 0.0
    %1800 = vmatpush1.msra.mxu0 %v1656
    %1801 = vmatprep.subr.mxu0 0.0
    %1802 = vmatpush1.msra.mxu0 %v1657
    %1803 = vmatprep.subr.mxu0 0.0
    %1804 = vmatpush1.msra.mxu0 %v1658
    %1805 = vmatprep.subr.mxu0 0.0
    %1806 = vmatpush1.msra.mxu0 %v1659
    %1807 = vmatprep.subr.mxu0 0.0
    %1808 = vmatpush1.msra.mxu0 %v1660
    %1809 = vmatprep.subr.mxu0 0.0
    %1810 = vmatpush1.msra.mxu0 %v1661
    %1811 = vmatprep.subr.mxu0 0.0
    %1812 = vmatpush1.msra.mxu0 %v1662
    %1813 = vmatprep.subr.mxu0 0.0
    %1814 = vmatpush1.msra.mxu0 %v1663
    %1815 = vmatprep.subr.mxu0 0.0
    %1816 = vmatpush1.msra.mxu0 %v1664
    %1817 = vmatprep.subr.mxu0 0.0
    %1818 = vmatpush1.msra.mxu0 %v1665
    %1819 = vmatprep.subr.mxu0 0.0
    %1820 = vmatpush1.msra.mxu0 %v1666
    %1821 = vmatprep.subr.mxu0 0.0
    %1822 = vmatpush1.msra.mxu0 %v1667
    %1823 = vmatprep.subr.mxu0 0.0
    %1824 = vmatpush1.msra.mxu0 %v1668
    %1825 = vmatprep.mubr.f32.mxu0 %v1746
    %1826 = vmatmul.mubr.f32.gmra.mrb[0].mxu0 %v1739
    %v1827 = vpop.f32.mrb[0].mxu0
    %v1828 = vadd.f32 0.0, %v1827
    %v1829 = vpop.f32.mrb[0].mxu0
    %1830 = vdwg.mxu0
    %1831 = vmatprep.subr.mxu0 0.0
    %1832 = vmatpush1.msra.mxu0 %v1669
    %1833 = vmatprep.subr.mxu0 0.0
    %1834 = vmatpush1.msra.mxu0 %v1670
    %1835 = vmatprep.subr.mxu0 0.0
    %1836 = vmatpush1.msra.mxu0 %v1671
    %1837 = vmatprep.subr.mxu0 0.0
    %1838 = vmatpush1.msra.mxu0 %v1672
    %1839 = vmatprep.subr.mxu0 0.0
    %1840 = vmatpush1.msra.mxu0 %v1673
    %1841 = vmatprep.subr.mxu0 0.0
    %1842 = vmatpush1.msra.mxu0 %v1674
    %1843 = vmatprep.subr.mxu0 0.0
    %1844 = vmatpush1.msra.mxu0 %v1675
    %1845 = vmatprep.subr.mxu0 0.0
    %1846 = vmatpush1.msra.mxu0 %v1676
    %1847 = vmatprep.subr.mxu0 0.0
    %1848 = vmatpush1.msra.mxu0 %v1677
    %1849 = vmatprep.subr.mxu0 0.0
    %1850 = vmatpush1.msra.mxu0 %v1678
    %1851 = vmatprep.subr.mxu0 0.0
    %1852 = vmatpush1.msra.mxu0 %v1679
    %1853 = vmatprep.subr.mxu0 0.0
    %1854 = vmatpush1.msra.mxu0 %v1680
    %1855 = vmatprep.subr.mxu0 0.0
    %1856 = vmatpush1.msra.mxu0 %v1681
    %1857 = vmatprep.subr.mxu0 0.0
    %1858 = vmatpush1.msra.mxu0 %v1682
    %1859 = vmatprep.subr.mxu0 0.0
    %1860 = vmatpush1.msra.mxu0 %v1683
    %1861 = vmatprep.subr.mxu0 0.0
    %1862 = vmatpush1.msra.mxu0 %v1684
    %1863 = vmatprep.subr.mxu0 0.0
    %1864 = vmatpush1.msra.mxu0 %v1685
    %1865 = vmatprep.subr.mxu0 0.0
    %1866 = vmatpush1.msra.mxu0 %v1686
    %1867 = vmatprep.subr.mxu0 0.0
    %1868 = vmatpush1.msra.mxu0 %v1687
    %1869 = vmatprep.subr.mxu0 0.0
    %1870 = vmatpush1.msra.mxu0 %v1688
    %1871 = vmatprep.subr.mxu0 0.0
    %1872 = vmatpush1.msra.mxu0 %v1689
    %1873 = vmatprep.subr.mxu0 0.0
    %1874 = vmatpush1.msra.mxu0 %v1690
    %1875 = vmatprep.subr.mxu0 0.0
    %1876 = vmatpush1.msra.mxu0 %v1691
    %1877 = vmatprep.subr.mxu0 0.0
    %1878 = vmatpush1.msra.mxu0 %v1692
    %1879 = vmatprep.subr.mxu0 0.0
    %1880 = vmatpush1.msra.mxu0 %v1693
    %1881 = vmatprep.subr.mxu0 0.0
    %1882 = vmatpush1.msra.mxu0 %v1694
    %1883 = vmatprep.subr.mxu0 0.0
    %1884 = vmatpush1.msra.mxu0 %v1695
    %1885 = vmatprep.subr.mxu0 0.0
    %1886 = vmatpush1.msra.mxu0 %v1696
    %1887 = vmatprep.subr.mxu0 0.0
    %1888 = vmatpush1.msra.mxu0 %v1697
    %1889 = vmatprep.subr.mxu0 0.0
    %1890 = vmatpush1.msra.mxu0 %v1698
    %1891 = vmatprep.subr.mxu0 0.0
    %1892 = vmatpush1.msra.mxu0 %v1699
    %1893 = vmatprep.subr.mxu0 0.0
    %1894 = vmatpush1.msra.mxu0 %v1700
    %1895 = vmatprep.mubr.f32.mxu0 %v1760
    %1896 = vmatmul.mubr.f32.gmra.mrb[0].mxu0 %v1753
    %v1897 = vpop.f32.mrb[0].mxu0
    %v1898 = vadd.f32 %v1828, %v1897
    %v1899 = vpop.f32.mrb[0].mxu0
    %1900 = vdwg.mxu0
    %1901 = vmatprep.subr.mxu0 0.0
    %1902 = vmatpush1.msra.mxu0 %v1637
    %1903 = vmatprep.subr.mxu0 0.0
    %1904 = vmatpush1.msra.mxu0 %v1638
    %1905 = vmatprep.subr.mxu0 0.0
    %1906 = vmatpush1.msra.mxu0 %v1639
    %1907 = vmatprep.subr.mxu0 0.0
    %1908 = vmatpush1.msra.mxu0 %v1640
    %1909 = vmatprep.subr.mxu0 0.0
    %1910 = vmatpush1.msra.mxu0 %v1641
    %1911 = vmatprep.subr.mxu0 0.0
    %1912 = vmatpush1.msra.mxu0 %v1642
    %1913 = vmatprep.subr.mxu0 0.0
    %1914 = vmatpush1.msra.mxu0 %v1643
    %1915 = vmatprep.subr.mxu0 0.0
    %1916 = vmatpush1.msra.mxu0 %v1644
    %1917 = vmatprep.subr.mxu0 0.0
    %1918 = vmatpush1.msra.mxu0 %v1645
    %1919 = vmatprep.subr.mxu0 0.0
    %1920 = vmatpush1.msra.mxu0 %v1646
    %1921 = vmatprep.subr.mxu0 0.0
    %1922 = vmatpush1.msra.mxu0 %v1647
    %1923 = vmatprep.subr.mxu0 0.0
    %1924 = vmatpush1.msra.mxu0 %v1648
    %1925 = vmatprep.subr.mxu0 0.0
    %1926 = vmatpush1.msra.mxu0 %v1649
    %1927 = vmatprep.subr.mxu0 0.0
    %1928 = vmatpush1.msra.mxu0 %v1650
    %1929 = vmatprep.subr.mxu0 0.0
    %1930 = vmatpush1.msra.mxu0 %v1651
    %1931 = vmatprep.subr.mxu0 0.0
    %1932 = vmatpush1.msra.mxu0 %v1652
    %1933 = vmatprep.subr.mxu0 0.0
    %1934 = vmatpush1.msra.mxu0 %v1653
    %1935 = vmatprep.subr.mxu0 0.0
    %1936 = vmatpush1.msra.mxu0 %v1654
    %1937 = vmatprep.subr.mxu0 0.0
    %1938 = vmatpush1.msra.mxu0 %v1655
    %1939 = vmatprep.subr.mxu0 0.0
    %1940 = vmatpush1.msra.mxu0 %v1656
    %1941 = vmatprep.subr.mxu0 0.0
    %1942 = vmatpush1.msra.mxu0 %v1657
    %1943 = vmatprep.subr.mxu0 0.0
    %1944 = vmatpush1.msra.mxu0 %v1658
    %1945 = vmatprep.subr.mxu0 0.0
    %1946 = vmatpush1.msra.mxu0 %v1659
    %1947 = vmatprep.subr.mxu0 0.0
    %1948 = vmatpush1.msra.mxu0 %v1660
    %1949 = vmatprep.subr.mxu0 0.0
    %1950 = vmatpush1.msra.mxu0 %v1661
    %1951 = vmatprep.subr.mxu0 0.0
    %1952 = vmatpush1.msra.mxu0 %v1662
    %1953 = vmatprep.subr.mxu0 0.0
    %1954 = vmatpush1.msra.mxu0 %v1663
    %1955 = vmatprep.subr.mxu0 0.0
    %1956 = vmatpush1.msra.mxu0 %v1664
    %1957 = vmatprep.subr.mxu0 0.0
    %1958 = vmatpush1.msra.mxu0 %v1665
    %1959 = vmatprep.subr.mxu0 0.0
    %1960 = vmatpush1.msra.mxu0 %v1666
    %1961 = vmatprep.subr.mxu0 0.0
    %1962 = vmatpush1.msra.mxu0 %v1667
    %1963 = vmatprep.subr.mxu0 0.0
    %1964 = vmatpush1.msra.mxu0 %v1668
    %1965 = vmatprep.mubr.f32.mxu0 %v1622
    %1966 = vmatmul.mubr.f32.gmra.mrb[0].mxu0 %v1615
    %v1967 = vpop.f32.mrb[0].mxu0
    %v1968 = vadd.f32 %v1898, %v1967
    %v1969 = vpop.f32.mrb[0].mxu0
    %1970 = vdwg.mxu0
    %1971 = vmatprep.subr.mxu0 0.0
    %1972 = vmatpush1.msra.mxu0 %v1669
    %1973 = vmatprep.subr.mxu0 0.0
    %1974 = vmatpush1.msra.mxu0 %v1670
    %1975 = vmatprep.subr.mxu0 0.0
    %1976 = vmatpush1.msra.mxu0 %v1671
    %1977 = vmatprep.subr.mxu0 0.0
    %1978 = vmatpush1.msra.mxu0 %v1672
    %1979 = vmatprep.subr.mxu0 0.0
    %1980 = vmatpush1.msra.mxu0 %v1673
    %1981 = vmatprep.subr.mxu0 0.0
    %1982 = vmatpush1.msra.mxu0 %v1674
    %1983 = vmatprep.subr.mxu0 0.0
    %1984 = vmatpush1.msra.mxu0 %v1675
    %1985 = vmatprep.subr.mxu0 0.0
    %1986 = vmatpush1.msra.mxu0 %v1676
    %1987 = vmatprep.subr.mxu0 0.0
    %1988 = vmatpush1.msra.mxu0 %v1677
    %1989 = vmatprep.subr.mxu0 0.0
    %1990 = vmatpush1.msra.mxu0 %v1678
    %1991 = vmatprep.subr.mxu0 0.0
    %1992 = vmatpush1.msra.mxu0 %v1679
    %1993 = vmatprep.subr.mxu0 0.0
    %1994 = vmatpush1.msra.mxu0 %v1680
    %1995 = vmatprep.subr.mxu0 0.0
    %1996 = vmatpush1.msra.mxu0 %v1681
    %1997 = vmatprep.subr.mxu0 0.0
    %1998 = vmatpush1.msra.mxu0 %v1682
    %1999 = vmatprep.subr.mxu0 0.0
    %2000 = vmatpush1.msra.mxu0 %v1683
    %2001 = vmatprep.subr.mxu0 0.0
    %2002 = vmatpush1.msra.mxu0 %v1684
    %2003 = vmatprep.subr.mxu0 0.0
    %2004 = vmatpush1.msra.mxu0 %v1685
    %2005 = vmatprep.subr.mxu0 0.0
    %2006 = vmatpush1.msra.mxu0 %v1686
    %2007 = vmatprep.subr.mxu0 0.0
    %2008 = vmatpush1.msra.mxu0 %v1687
    %2009 = vmatprep.subr.mxu0 0.0
    %2010 = vmatpush1.msra.mxu0 %v1688
    %2011 = vmatprep.subr.mxu0 0.0
    %2012 = vmatpush1.msra.mxu0 %v1689
    %2013 = vmatprep.subr.mxu0 0.0
    %2014 = vmatpush1.msra.mxu0 %v1690
    %2015 = vmatprep.subr.mxu0 0.0
    %2016 = vmatpush1.msra.mxu0 %v1691
    %2017 = vmatprep.subr.mxu0 0.0
    %2018 = vmatpush1.msra.mxu0 %v1692
    %2019 = vmatprep.subr.mxu0 0.0
    %2020 = vmatpush1.msra.mxu0 %v1693
    %2021 = vmatprep.subr.mxu0 0.0
    %2022 = vmatpush1.msra.mxu0 %v1694
    %2023 = vmatprep.subr.mxu0 0.0
    %2024 = vmatpush1.msra.mxu0 %v1695
    %2025 = vmatprep.subr.mxu0 0.0
    %2026 = vmatpush1.msra.mxu0 %v1696
    %2027 = vmatprep.subr.mxu0 0.0
    %2028 = vmatpush1.msra.mxu0 %v1697
    %2029 = vmatprep.subr.mxu0 0.0
    %2030 = vmatpush1.msra.mxu0 %v1698
    %2031 = vmatprep.subr.mxu0 0.0
    %2032 = vmatpush1.msra.mxu0 %v1699
    %2033 = vmatprep.subr.mxu0 0.0
    %2034 = vmatpush1.msra.mxu0 %v1700
    %2035 = vmatprep.mubr.f32.mxu0 %v1636
    %2036 = vmatmul.mubr.f32.gmra.mrb[0].mxu0 %v1629
    %v2037 = vpop.f32.mrb[0].mxu0
    %v2038 = vadd.f32 %v1968, %v2037
    %v2039 = vpop.f32.mrb[0].mxu0
    %2040 = vdwg.mxu0
    %v2041 = vmul.f32 %v1040, %v1040
    %v2042 = vmul.f32 %v1041, %v1041
    %v2043 = vmul.f32 %v1042, %v1042
    %v2044 = vmul.f32 %v1043, %v1043
    %v2045 = vsel %vm1608, %v2041, 0.0
    %v2046 = vrot.slane %v2045, 4
    %v2047 = vadd.f32 %v2045, %v2046
    %v2048 = vrot.slane %v2047, 2
    %v2049 = vadd.f32 %v2047, %v2048
    %v2050 = vrot.slane %v2049, 1
    %v2051 = vadd.f32 %v2049, %v2050
    %v2052 = vsel %vm1608, %v2042, 0.0
    %v2053 = vrot.slane %v2052, 4
    %v2054 = vadd.f32 %v2052, %v2053
    %v2055 = vrot.slane %v2054, 2
    %v2056 = vadd.f32 %v2054, %v2055
    %v2057 = vrot.slane %v2056, 1
    %v2058 = vadd.f32 %v2056, %v2057
    %v2059 = vsel %vm1608, %v2043, 0.0
    %v2060 = vrot.slane %v2059, 4
    %v2061 = vadd.f32 %v2059, %v2060
    %v2062 = vrot.slane %v2061, 2
    %v2063 = vadd.f32 %v2061, %v2062
    %v2064 = vrot.slane %v2063, 1
    %v2065 = vadd.f32 %v2063, %v2064
    %v2066 = vsel %vm1608, %v2044, 0.0
    %v2067 = vrot.slane %v2066, 4
    %v2068 = vadd.f32 %v2066, %v2067
    %v2069 = vrot.slane %v2068, 2
    %v2070 = vadd.f32 %v2068, %v2069
    %v2071 = vrot.slane %v2070, 1
    %v2072 = vadd.f32 %v2070, %v2071
    %2073 = vmatprep.subr.mxu0 0.0
    %2074 = vmatpush1.msra.mxu0 %v1637
    %2075 = vmatprep.subr.mxu0 0.0
    %2076 = vmatpush1.msra.mxu0 %v1638
    %2077 = vmatprep.subr.mxu0 0.0
    %2078 = vmatpush1.msra.mxu0 %v1639
    %2079 = vmatprep.subr.mxu0 0.0
    %2080 = vmatpush1.msra.mxu0 %v1640
    %2081 = vmatprep.subr.mxu0 0.0
    %2082 = vmatpush1.msra.mxu0 %v1641
    %2083 = vmatprep.subr.mxu0 0.0
    %2084 = vmatpush1.msra.mxu0 %v1642
    %2085 = vmatprep.subr.mxu0 0.0
    %2086 = vmatpush1.msra.mxu0 %v1643
    %2087 = vmatprep.subr.mxu0 0.0
    %2088 = vmatpush1.msra.mxu0 %v1644
    %2089 = vmatprep.subr.mxu0 0.0
    %2090 = vmatpush1.msra.mxu0 %v1645
    %2091 = vmatprep.subr.mxu0 0.0
    %2092 = vmatpush1.msra.mxu0 %v1646
    %2093 = vmatprep.subr.mxu0 0.0
    %2094 = vmatpush1.msra.mxu0 %v1647
    %2095 = vmatprep.subr.mxu0 0.0
    %2096 = vmatpush1.msra.mxu0 %v1648
    %2097 = vmatprep.subr.mxu0 0.0
    %2098 = vmatpush1.msra.mxu0 %v1649
    %2099 = vmatprep.subr.mxu0 0.0
    %2100 = vmatpush1.msra.mxu0 %v1650
    %2101 = vmatprep.subr.mxu0 0.0
    %2102 = vmatpush1.msra.mxu0 %v1651
    %2103 = vmatprep.subr.mxu0 0.0
    %2104 = vmatpush1.msra.mxu0 %v1652
    %2105 = vmatprep.subr.mxu0 0.0
    %2106 = vmatpush1.msra.mxu0 %v1653
    %2107 = vmatprep.subr.mxu0 0.0
    %2108 = vmatpush1.msra.mxu0 %v1654
    %2109 = vmatprep.subr.mxu0 0.0
    %2110 = vmatpush1.msra.mxu0 %v1655
    %2111 = vmatprep.subr.mxu0 0.0
    %2112 = vmatpush1.msra.mxu0 %v1656
    %2113 = vmatprep.subr.mxu0 0.0
    %2114 = vmatpush1.msra.mxu0 %v1657
    %2115 = vmatprep.subr.mxu0 0.0
    %2116 = vmatpush1.msra.mxu0 %v1658
    %2117 = vmatprep.subr.mxu0 0.0
    %2118 = vmatpush1.msra.mxu0 %v1659
    %2119 = vmatprep.subr.mxu0 0.0
    %2120 = vmatpush1.msra.mxu0 %v1660
    %2121 = vmatprep.subr.mxu0 0.0
    %2122 = vmatpush1.msra.mxu0 %v1661
    %2123 = vmatprep.subr.mxu0 0.0
    %2124 = vmatpush1.msra.mxu0 %v1662
    %2125 = vmatprep.subr.mxu0 0.0
    %2126 = vmatpush1.msra.mxu0 %v1663
    %2127 = vmatprep.subr.mxu0 0.0
    %2128 = vmatpush1.msra.mxu0 %v1664
    %2129 = vmatprep.subr.mxu0 0.0
    %2130 = vmatpush1.msra.mxu0 %v1665
    %2131 = vmatprep.subr.mxu0 0.0
    %2132 = vmatpush1.msra.mxu0 %v1666
    %2133 = vmatprep.subr.mxu0 0.0
    %2134 = vmatpush1.msra.mxu0 %v1667
    %2135 = vmatprep.subr.mxu0 0.0
    %2136 = vmatpush1.msra.mxu0 %v1668
    %2137 = vmatprep.mubr.f32.mxu0 %v2058
    %2138 = vmatmul.mubr.f32.gmra.mrb[0].mxu0 %v2051
    %v2139 = vpop.f32.mrb[0].mxu0
    %v2140 = vadd.f32 0.0, %v2139
    %v2141 = vpop.f32.mrb[0].mxu0
    %2142 = vdwg.mxu0
    %2143 = vmatprep.subr.mxu0 0.0
    %2144 = vmatpush1.msra.mxu0 %v1669
    %2145 = vmatprep.subr.mxu0 0.0
    %2146 = vmatpush1.msra.mxu0 %v1670
    %2147 = vmatprep.subr.mxu0 0.0
    %2148 = vmatpush1.msra.mxu0 %v1671
    %2149 = vmatprep.subr.mxu0 0.0
    %2150 = vmatpush1.msra.mxu0 %v1672
    %2151 = vmatprep.subr.mxu0 0.0
    %2152 = vmatpush1.msra.mxu0 %v1673
    %2153 = vmatprep.subr.mxu0 0.0
    %2154 = vmatpush1.msra.mxu0 %v1674
    %2155 = vmatprep.subr.mxu0 0.0
    %2156 = vmatpush1.msra.mxu0 %v1675
    %2157 = vmatprep.subr.mxu0 0.0
    %2158 = vmatpush1.msra.mxu0 %v1676
    %2159 = vmatprep.subr.mxu0 0.0
    %2160 = vmatpush1.msra.mxu0 %v1677
    %2161 = vmatprep.subr.mxu0 0.0
    %2162 = vmatpush1.msra.mxu0 %v1678
    %2163 = vmatprep.subr.mxu0 0.0
    %2164 = vmatpush1.msra.mxu0 %v1679
    %2165 = vmatprep.subr.mxu0 0.0
    %2166 = vmatpush1.msra.mxu0 %v1680
    %2167 = vmatprep.subr.mxu0 0.0
    %2168 = vmatpush1.msra.mxu0 %v1681
    %2169 = vmatprep.subr.mxu0 0.0
    %2170 = vmatpush1.msra.mxu0 %v1682
    %2171 = vmatprep.subr.mxu0 0.0
    %2172 = vmatpush1.msra.mxu0 %v1683
    %2173 = vmatprep.subr.mxu0 0.0
    %2174 = vmatpush1.msra.mxu0 %v1684
    %2175 = vmatprep.subr.mxu0 0.0
    %2176 = vmatpush1.msra.mxu0 %v1685
    %2177 = vmatprep.subr.mxu0 0.0
    %2178 = vmatpush1.msra.mxu0 %v1686
    %2179 = vmatprep.subr.mxu0 0.0
    %2180 = vmatpush1.msra.mxu0 %v1687
    %2181 = vmatprep.subr.mxu0 0.0
    %2182 = vmatpush1.msra.mxu0 %v1688
    %2183 = vmatprep.subr.mxu0 0.0
    %2184 = vmatpush1.msra.mxu0 %v1689
    %2185 = vmatprep.subr.mxu0 0.0
    %2186 = vmatpush1.msra.mxu0 %v1690
    %2187 = vmatprep.subr.mxu0 0.0
    %2188 = vmatpush1.msra.mxu0 %v1691
    %2189 = vmatprep.subr.mxu0 0.0
    %2190 = vmatpush1.msra.mxu0 %v1692
    %2191 = vmatprep.subr.mxu0 0.0
    %2192 = vmatpush1.msra.mxu0 %v1693
    %2193 = vmatprep.subr.mxu0 0.0
    %2194 = vmatpush1.msra.mxu0 %v1694
    %2195 = vmatprep.subr.mxu0 0.0
    %2196 = vmatpush1.msra.mxu0 %v1695
    %2197 = vmatprep.subr.mxu0 0.0
    %2198 = vmatpush1.msra.mxu0 %v1696
    %2199 = vmatprep.subr.mxu0 0.0
    %2200 = vmatpush1.msra.mxu0 %v1697
    %2201 = vmatprep.subr.mxu0 0.0
    %2202 = vmatpush1.msra.mxu0 %v1698
    %2203 = vmatprep.subr.mxu0 0.0
    %2204 = vmatpush1.msra.mxu0 %v1699
    %2205 = vmatprep.subr.mxu0 0.0
    %2206 = vmatpush1.msra.mxu0 %v1700
    %2207 = vmatprep.mubr.f32.mxu0 %v2072
    %2208 = vmatmul.mubr.f32.gmra.mrb[0].mxu0 %v2065
    %v2209 = vpop.f32.mrb[0].mxu0
    %v2210 = vadd.f32 %v2140, %v2209
    %v2211 = vpop.f32.mrb[0].mxu0
    %2212 = vdwg.mxu0
    %2213 = vmatprep.subr.mxu0 0.0
    %2214 = vmatpush1.msra.mxu0 %v1637
    %2215 = vmatprep.subr.mxu0 0.0
    %2216 = vmatpush1.msra.mxu0 %v1638
    %2217 = vmatprep.subr.mxu0 0.0
    %2218 = vmatpush1.msra.mxu0 %v1639
    %2219 = vmatprep.subr.mxu0 0.0
    %2220 = vmatpush1.msra.mxu0 %v1640
    %2221 = vmatprep.subr.mxu0 0.0
    %2222 = vmatpush1.msra.mxu0 %v1641
    %2223 = vmatprep.subr.mxu0 0.0
    %2224 = vmatpush1.msra.mxu0 %v1642
    %2225 = vmatprep.subr.mxu0 0.0
    %2226 = vmatpush1.msra.mxu0 %v1643
    %2227 = vmatprep.subr.mxu0 0.0
    %2228 = vmatpush1.msra.mxu0 %v1644
    %2229 = vmatprep.subr.mxu0 0.0
    %2230 = vmatpush1.msra.mxu0 %v1645
    %2231 = vmatprep.subr.mxu0 0.0
    %2232 = vmatpush1.msra.mxu0 %v1646
    %2233 = vmatprep.subr.mxu0 0.0
    %2234 = vmatpush1.msra.mxu0 %v1647
    %2235 = vmatprep.subr.mxu0 0.0
    %2236 = vmatpush1.msra.mxu0 %v1648
    %2237 = vmatprep.subr.mxu0 0.0
    %2238 = vmatpush1.msra.mxu0 %v1649
    %2239 = vmatprep.subr.mxu0 0.0
    %2240 = vmatpush1.msra.mxu0 %v1650
    %2241 = vmatprep.subr.mxu0 0.0
    %2242 = vmatpush1.msra.mxu0 %v1651
    %2243 = vmatprep.subr.mxu0 0.0
    %2244 = vmatpush1.msra.mxu0 %v1652
    %2245 = vmatprep.subr.mxu0 0.0
    %2246 = vmatpush1.msra.mxu0 %v1653
    %2247 = vmatprep.subr.mxu0 0.0
    %2248 = vmatpush1.msra.mxu0 %v1654
    %2249 = vmatprep.subr.mxu0 0.0
    %2250 = vmatpush1.msra.mxu0 %v1655
    %2251 = vmatprep.subr.mxu0 0.0
    %2252 = vmatpush1.msra.mxu0 %v1656
    %2253 = vmatprep.subr.mxu0 0.0
    %2254 = vmatpush1.msra.mxu0 %v1657
    %2255 = vmatprep.subr.mxu0 0.0
    %2256 = vmatpush1.msra.mxu0 %v1658
    %2257 = vmatprep.subr.mxu0 0.0
    %2258 = vmatpush1.msra.mxu0 %v1659
    %2259 = vmatprep.subr.mxu0 0.0
    %2260 = vmatpush1.msra.mxu0 %v1660
    %2261 = vmatprep.subr.mxu0 0.0
    %2262 = vmatpush1.msra.mxu0 %v1661
    %2263 = vmatprep.subr.mxu0 0.0
    %2264 = vmatpush1.msra.mxu0 %v1662
    %2265 = vmatprep.subr.mxu0 0.0
    %2266 = vmatpush1.msra.mxu0 %v1663
    %2267 = vmatprep.subr.mxu0 0.0
    %2268 = vmatpush1.msra.mxu0 %v1664
    %2269 = vmatprep.subr.mxu0 0.0
    %2270 = vmatpush1.msra.mxu0 %v1665
    %2271 = vmatprep.subr.mxu0 0.0
    %2272 = vmatpush1.msra.mxu0 %v1666
    %2273 = vmatprep.subr.mxu0 0.0
    %2274 = vmatpush1.msra.mxu0 %v1667
    %2275 = vmatprep.subr.mxu0 0.0
    %2276 = vmatpush1.msra.mxu0 %v1668
    %2277 = vmatprep.mubr.f32.mxu0 %v1718
    %2278 = vmatmul.mubr.f32.gmra.mrb[0].mxu0 %v1711
    %v2279 = vpop.f32.mrb[0].mxu0
    %v2280 = vadd.f32 %v2210, %v2279
    %v2281 = vpop.f32.mrb[0].mxu0
    %2282 = vdwg.mxu0
    %2283 = vmatprep.subr.mxu0 0.0
    %2284 = vmatpush1.msra.mxu0 %v1669
    %2285 = vmatprep.subr.mxu0 0.0
    %2286 = vmatpush1.msra.mxu0 %v1670
    %2287 = vmatprep.subr.mxu0 0.0
    %2288 = vmatpush1.msra.mxu0 %v1671
    %2289 = vmatprep.subr.mxu0 0.0
    %2290 = vmatpush1.msra.mxu0 %v1672
    %2291 = vmatprep.subr.mxu0 0.0
    %2292 = vmatpush1.msra.mxu0 %v1673
    %2293 = vmatprep.subr.mxu0 0.0
    %2294 = vmatpush1.msra.mxu0 %v1674
    %2295 = vmatprep.subr.mxu0 0.0
    %2296 = vmatpush1.msra.mxu0 %v1675
    %2297 = vmatprep.subr.mxu0 0.0
    %2298 = vmatpush1.msra.mxu0 %v1676
    %2299 = vmatprep.subr.mxu0 0.0
    %2300 = vmatpush1.msra.mxu0 %v1677
    %2301 = vmatprep.subr.mxu0 0.0
    %2302 = vmatpush1.msra.mxu0 %v1678
    %2303 = vmatprep.subr.mxu0 0.0
    %2304 = vmatpush1.msra.mxu0 %v1679
    %2305 = vmatprep.subr.mxu0 0.0
    %2306 = vmatpush1.msra.mxu0 %v1680
    %2307 = vmatprep.subr.mxu0 0.0
    %2308 = vmatpush1.msra.mxu0 %v1681
    %2309 = vmatprep.subr.mxu0 0.0
    %2310 = vmatpush1.msra.mxu0 %v1682
    %2311 = vmatprep.subr.mxu0 0.0
    %2312 = vmatpush1.msra.mxu0 %v1683
    %2313 = vmatprep.subr.mxu0 0.0
    %2314 = vmatpush1.msra.mxu0 %v1684
    %2315 = vmatprep.subr.mxu0 0.0
    %2316 = vmatpush1.msra.mxu0 %v1685
    %2317 = vmatprep.subr.mxu0 0.0
    %2318 = vmatpush1.msra.mxu0 %v1686
    %2319 = vmatprep.subr.mxu0 0.0
    %2320 = vmatpush1.msra.mxu0 %v1687
    %2321 = vmatprep.subr.mxu0 0.0
    %2322 = vmatpush1.msra.mxu0 %v1688
    %2323 = vmatprep.subr.mxu0 0.0
    %2324 = vmatpush1.msra.mxu0 %v1689
    %2325 = vmatprep.subr.mxu0 0.0
    %2326 = vmatpush1.msra.mxu0 %v1690
    %2327 = vmatprep.subr.mxu0 0.0
    %2328 = vmatpush1.msra.mxu0 %v1691
    %2329 = vmatprep.subr.mxu0 0.0
    %2330 = vmatpush1.msra.mxu0 %v1692
    %2331 = vmatprep.subr.mxu0 0.0
    %2332 = vmatpush1.msra.mxu0 %v1693
    %2333 = vmatprep.subr.mxu0 0.0
    %2334 = vmatpush1.msra.mxu0 %v1694
    %2335 = vmatprep.subr.mxu0 0.0
    %2336 = vmatpush1.msra.mxu0 %v1695
    %2337 = vmatprep.subr.mxu0 0.0
    %2338 = vmatpush1.msra.mxu0 %v1696
    %2339 = vmatprep.subr.mxu0 0.0
    %2340 = vmatpush1.msra.mxu0 %v1697
    %2341 = vmatprep.subr.mxu0 0.0
    %2342 = vmatpush1.msra.mxu0 %v1698
    %2343 = vmatprep.subr.mxu0 0.0
    %2344 = vmatpush1.msra.mxu0 %v1699
    %2345 = vmatprep.subr.mxu0 0.0
    %2346 = vmatpush1.msra.mxu0 %v1700
    %2347 = vmatprep.mubr.f32.mxu0 %v1732
    %2348 = vmatmul.mubr.f32.gmra.mrb[0].mxu0 %v1725
    %v2349 = vpop.f32.mrb[0].mxu0
    %v2350 = vadd.f32 %v2280, %v2349
    %v2351 = vpop.f32.mrb[0].mxu0
    %2352 = vdwg.mxu0
    %v2353 = vsel %vm1608, %v1322, 0.0
    %v2354 = vrot.slane %v2353, 4
    %v2355 = vadd.f32 %v2353, %v2354
    %v2356 = vrot.slane %v2355, 2
    %v2357 = vadd.f32 %v2355, %v2356
    %v2358 = vrot.slane %v2357, 1
    %v2359 = vadd.f32 %v2357, %v2358
    %v2360 = vsel %vm1608, %v1323, 0.0
    %v2361 = vrot.slane %v2360, 4
    %v2362 = vadd.f32 %v2360, %v2361
    %v2363 = vrot.slane %v2362, 2
    %v2364 = vadd.f32 %v2362, %v2363
    %v2365 = vrot.slane %v2364, 1
    %v2366 = vadd.f32 %v2364, %v2365
    %v2367 = vsel %vm1608, %v1324, 0.0
    %v2368 = vrot.slane %v2367, 4
    %v2369 = vadd.f32 %v2367, %v2368
    %v2370 = vrot.slane %v2369, 2
    %v2371 = vadd.f32 %v2369, %v2370
    %v2372 = vrot.slane %v2371, 1
    %v2373 = vadd.f32 %v2371, %v2372
    %v2374 = vsel %vm1608, %v1325, 0.0
    %v2375 = vrot.slane %v2374, 4
    %v2376 = vadd.f32 %v2374, %v2375
    %v2377 = vrot.slane %v2376, 2
    %v2378 = vadd.f32 %v2376, %v2377
    %v2379 = vrot.slane %v2378, 1
    %v2380 = vadd.f32 %v2378, %v2379
    %2381 = vmatprep.subr.mxu0 0.0
    %2382 = vmatpush1.msra.mxu0 %v1637
    %2383 = vmatprep.subr.mxu0 0.0
    %2384 = vmatpush1.msra.mxu0 %v1638
    %2385 = vmatprep.subr.mxu0 0.0
    %2386 = vmatpush1.msra.mxu0 %v1639
    %2387 = vmatprep.subr.mxu0 0.0
    %2388 = vmatpush1.msra.mxu0 %v1640
    %2389 = vmatprep.subr.mxu0 0.0
    %2390 = vmatpush1.msra.mxu0 %v1641
    %2391 = vmatprep.subr.mxu0 0.0
    %2392 = vmatpush1.msra.mxu0 %v1642
    %2393 = vmatprep.subr.mxu0 0.0
    %2394 = vmatpush1.msra.mxu0 %v1643
    %2395 = vmatprep.subr.mxu0 0.0
    %2396 = vmatpush1.msra.mxu0 %v1644
    %2397 = vmatprep.subr.mxu0 0.0
    %2398 = vmatpush1.msra.mxu0 %v1645
    %2399 = vmatprep.subr.mxu0 0.0
    %2400 = vmatpush1.msra.mxu0 %v1646
    %2401 = vmatprep.subr.mxu0 0.0
    %2402 = vmatpush1.msra.mxu0 %v1647
    %2403 = vmatprep.subr.mxu0 0.0
    %2404 = vmatpush1.msra.mxu0 %v1648
    %2405 = vmatprep.subr.mxu0 0.0
    %2406 = vmatpush1.msra.mxu0 %v1649
    %2407 = vmatprep.subr.mxu0 0.0
    %2408 = vmatpush1.msra.mxu0 %v1650
    %2409 = vmatprep.subr.mxu0 0.0
    %2410 = vmatpush1.msra.mxu0 %v1651
    %2411 = vmatprep.subr.mxu0 0.0
    %2412 = vmatpush1.msra.mxu0 %v1652
    %2413 = vmatprep.subr.mxu0 0.0
    %2414 = vmatpush1.msra.mxu0 %v1653
    %2415 = vmatprep.subr.mxu0 0.0
    %2416 = vmatpush1.msra.mxu0 %v1654
    %2417 = vmatprep.subr.mxu0 0.0
    %2418 = vmatpush1.msra.mxu0 %v1655
    %2419 = vmatprep.subr.mxu0 0.0
    %2420 = vmatpush1.msra.mxu0 %v1656
    %2421 = vmatprep.subr.mxu0 0.0
    %2422 = vmatpush1.msra.mxu0 %v1657
    %2423 = vmatprep.subr.mxu0 0.0
    %2424 = vmatpush1.msra.mxu0 %v1658
    %2425 = vmatprep.subr.mxu0 0.0
    %2426 = vmatpush1.msra.mxu0 %v1659
    %2427 = vmatprep.subr.mxu0 0.0
    %2428 = vmatpush1.msra.mxu0 %v1660
    %2429 = vmatprep.subr.mxu0 0.0
    %2430 = vmatpush1.msra.mxu0 %v1661
    %2431 = vmatprep.subr.mxu0 0.0
    %2432 = vmatpush1.msra.mxu0 %v1662
    %2433 = vmatprep.subr.mxu0 0.0
    %2434 = vmatpush1.msra.mxu0 %v1663
    %2435 = vmatprep.subr.mxu0 0.0
    %2436 = vmatpush1.msra.mxu0 %v1664
    %2437 = vmatprep.subr.mxu0 0.0
    %2438 = vmatpush1.msra.mxu0 %v1665
    %2439 = vmatprep.subr.mxu0 0.0
    %2440 = vmatpush1.msra.mxu0 %v1666
    %2441 = vmatprep.subr.mxu0 0.0
    %2442 = vmatpush1.msra.mxu0 %v1667
    %2443 = vmatprep.subr.mxu0 0.0
    %2444 = vmatpush1.msra.mxu0 %v1668
    %2445 = vmatprep.mubr.f32.mxu0 %v2366
    %2446 = vmatmul.mubr.f32.gmra.mrb[0].mxu0 %v2359
    %v2447 = vpop.f32.mrb[0].mxu0
    %v2448 = vadd.f32 0.0, %v2447
    %v2449 = vpop.f32.mrb[0].mxu0
    %2450 = vdwg.mxu0
    %2451 = vmatprep.subr.mxu0 0.0
    %2452 = vmatpush1.msra.mxu0 %v1669
    %2453 = vmatprep.subr.mxu0 0.0
    %2454 = vmatpush1.msra.mxu0 %v1670
    %2455 = vmatprep.subr.mxu0 0.0
    %2456 = vmatpush1.msra.mxu0 %v1671
    %2457 = vmatprep.subr.mxu0 0.0
    %2458 = vmatpush1.msra.mxu0 %v1672
    %2459 = vmatprep.subr.mxu0 0.0
    %2460 = vmatpush1.msra.mxu0 %v1673
    %2461 = vmatprep.subr.mxu0 0.0
    %2462 = vmatpush1.msra.mxu0 %v1674
    %2463 = vmatprep.subr.mxu0 0.0
    %2464 = vmatpush1.msra.mxu0 %v1675
    %2465 = vmatprep.subr.mxu0 0.0
    %2466 = vmatpush1.msra.mxu0 %v1676
    %2467 = vmatprep.subr.mxu0 0.0
    %2468 = vmatpush1.msra.mxu0 %v1677
    %2469 = vmatprep.subr.mxu0 0.0
    %2470 = vmatpush1.msra.mxu0 %v1678
    %2471 = vmatprep.subr.mxu0 0.0
    %2472 = vmatpush1.msra.mxu0 %v1679
    %2473 = vmatprep.subr.mxu0 0.0
    %2474 = vmatpush1.msra.mxu0 %v1680
    %2475 = vmatprep.subr.mxu0 0.0
    %2476 = vmatpush1.msra.mxu0 %v1681
    %2477 = vmatprep.subr.mxu0 0.0
    %2478 = vmatpush1.msra.mxu0 %v1682
    %2479 = vmatprep.subr.mxu0 0.0
    %2480 = vmatpush1.msra.mxu0 %v1683
    %2481 = vmatprep.subr.mxu0 0.0
    %2482 = vmatpush1.msra.mxu0 %v1684
    %2483 = vmatprep.subr.mxu0 0.0
    %2484 = vmatpush1.msra.mxu0 %v1685
    %2485 = vmatprep.subr.mxu0 0.0
    %2486 = vmatpush1.msra.mxu0 %v1686
    %2487 = vmatprep.subr.mxu0 0.0
    %2488 = vmatpush1.msra.mxu0 %v1687
    %2489 = vmatprep.subr.mxu0 0.0
    %2490 = vmatpush1.msra.mxu0 %v1688
    %2491 = vmatprep.subr.mxu0 0.0
    %2492 = vmatpush1.msra.mxu0 %v1689
    %2493 = vmatprep.subr.mxu0 0.0
    %2494 = vmatpush1.msra.mxu0 %v1690
    %2495 = vmatprep.subr.mxu0 0.0
    %2496 = vmatpush1.msra.mxu0 %v1691
    %2497 = vmatprep.subr.mxu0 0.0
    %2498 = vmatpush1.msra.mxu0 %v1692
    %2499 = vmatprep.subr.mxu0 0.0
    %2500 = vmatpush1.msra.mxu0 %v1693
    %2501 = vmatprep.subr.mxu0 0.0
    %2502 = vmatpush1.msra.mxu0 %v1694
    %2503 = vmatprep.subr.mxu0 0.0
    %2504 = vmatpush1.msra.mxu0 %v1695
    %2505 = vmatprep.subr.mxu0 0.0
    %2506 = vmatpush1.msra.mxu0 %v1696
    %2507 = vmatprep.subr.mxu0 0.0
    %2508 = vmatpush1.msra.mxu0 %v1697
    %2509 = vmatprep.subr.mxu0 0.0
    %2510 = vmatpush1.msra.mxu0 %v1698
    %2511 = vmatprep.subr.mxu0 0.0
    %2512 = vmatpush1.msra.mxu0 %v1699
    %2513 = vmatprep.subr.mxu0 0.0
    %2514 = vmatpush1.msra.mxu0 %v1700
    %2515 = vmatprep.mubr.f32.mxu0 %v2380
    %2516 = vmatmul.mubr.f32.gmra.mrb[0].mxu0 %v2373
    %v2517 = vpop.f32.mrb[0].mxu0
    %v2518 = vadd.f32 %v2448, %v2517
    %v2519 = vpop.f32.mrb[0].mxu0
    %2520 = vdwg.mxu0
    %v2521 = vadd.f32 %v2038, %v2518
    %v2522 = vmul.f32 %v1322, %v1322
    %v2523 = vmul.f32 %v1323, %v1323
    %v2524 = vmul.f32 %v1324, %v1324
    %v2525 = vmul.f32 %v1325, %v1325
    %v2526 = vsel %vm1608, %v2522, 0.0
    %v2527 = vrot.slane %v2526, 4
    %v2528 = vadd.f32 %v2526, %v2527
    %v2529 = vrot.slane %v2528, 2
    %v2530 = vadd.f32 %v2528, %v2529
    %v2531 = vrot.slane %v2530, 1
    %v2532 = vadd.f32 %v2530, %v2531
    %v2533 = vsel %vm1608, %v2523, 0.0
    %v2534 = vrot.slane %v2533, 4
    %v2535 = vadd.f32 %v2533, %v2534
    %v2536 = vrot.slane %v2535, 2
    %v2537 = vadd.f32 %v2535, %v2536
    %v2538 = vrot.slane %v2537, 1
    %v2539 = vadd.f32 %v2537, %v2538
    %v2540 = vsel %vm1608, %v2524, 0.0
    %v2541 = vrot.slane %v2540, 4
    %v2542 = vadd.f32 %v2540, %v2541
    %v2543 = vrot.slane %v2542, 2
    %v2544 = vadd.f32 %v2542, %v2543
    %v2545 = vrot.slane %v2544, 1
    %v2546 = vadd.f32 %v2544, %v2545
    %v2547 = vsel %vm1608, %v2525, 0.0
    %v2548 = vrot.slane %v2547, 4
    %v2549 = vadd.f32 %v2547, %v2548
    %v2550 = vrot.slane %v2549, 2
    %v2551 = vadd.f32 %v2549, %v2550
    %v2552 = vrot.slane %v2551, 1
    %v2553 = vadd.f32 %v2551, %v2552
    %2554 = vmatprep.subr.mxu0 0.0
    %2555 = vmatpush1.msra.mxu0 %v1637
    %2556 = vmatprep.subr.mxu0 0.0
    %2557 = vmatpush1.msra.mxu0 %v1638
    %2558 = vmatprep.subr.mxu0 0.0
    %2559 = vmatpush1.msra.mxu0 %v1639
    %2560 = vmatprep.subr.mxu0 0.0
    %2561 = vmatpush1.msra.mxu0 %v1640
    %2562 = vmatprep.subr.mxu0 0.0
    %2563 = vmatpush1.msra.mxu0 %v1641
    %2564 = vmatprep.subr.mxu0 0.0
    %2565 = vmatpush1.msra.mxu0 %v1642
    %2566 = vmatprep.subr.mxu0 0.0
    %2567 = vmatpush1.msra.mxu0 %v1643
    %2568 = vmatprep.subr.mxu0 0.0
    %2569 = vmatpush1.msra.mxu0 %v1644
    %2570 = vmatprep.subr.mxu0 0.0
    %2571 = vmatpush1.msra.mxu0 %v1645
    %2572 = vmatprep.subr.mxu0 0.0
    %2573 = vmatpush1.msra.mxu0 %v1646
    %2574 = vmatprep.subr.mxu0 0.0
    %2575 = vmatpush1.msra.mxu0 %v1647
    %2576 = vmatprep.subr.mxu0 0.0
    %2577 = vmatpush1.msra.mxu0 %v1648
    %2578 = vmatprep.subr.mxu0 0.0
    %2579 = vmatpush1.msra.mxu0 %v1649
    %2580 = vmatprep.subr.mxu0 0.0
    %2581 = vmatpush1.msra.mxu0 %v1650
    %2582 = vmatprep.subr.mxu0 0.0
    %2583 = vmatpush1.msra.mxu0 %v1651
    %2584 = vmatprep.subr.mxu0 0.0
    %2585 = vmatpush1.msra.mxu0 %v1652
    %2586 = vmatprep.subr.mxu0 0.0
    %2587 = vmatpush1.msra.mxu0 %v1653
    %2588 = vmatprep.subr.mxu0 0.0
    %2589 = vmatpush1.msra.mxu0 %v1654
    %2590 = vmatprep.subr.mxu0 0.0
    %2591 = vmatpush1.msra.mxu0 %v1655
    %2592 = vmatprep.subr.mxu0 0.0
    %2593 = vmatpush1.msra.mxu0 %v1656
    %2594 = vmatprep.subr.mxu0 0.0
    %2595 = vmatpush1.msra.mxu0 %v1657
    %2596 = vmatprep.subr.mxu0 0.0
    %2597 = vmatpush1.msra.mxu0 %v1658
    %2598 = vmatprep.subr.mxu0 0.0
    %2599 = vmatpush1.msra.mxu0 %v1659
    %2600 = vmatprep.subr.mxu0 0.0
    %2601 = vmatpush1.msra.mxu0 %v1660
    %2602 = vmatprep.subr.mxu0 0.0
    %2603 = vmatpush1.msra.mxu0 %v1661
    %2604 = vmatprep.subr.mxu0 0.0
    %2605 = vmatpush1.msra.mxu0 %v1662
    %2606 = vmatprep.subr.mxu0 0.0
    %2607 = vmatpush1.msra.mxu0 %v1663
    %2608 = vmatprep.subr.mxu0 0.0
    %2609 = vmatpush1.msra.mxu0 %v1664
    %2610 = vmatprep.subr.mxu0 0.0
    %2611 = vmatpush1.msra.mxu0 %v1665
    %2612 = vmatprep.subr.mxu0 0.0
    %2613 = vmatpush1.msra.mxu0 %v1666
    %2614 = vmatprep.subr.mxu0 0.0
    %2615 = vmatpush1.msra.mxu0 %v1667
    %2616 = vmatprep.subr.mxu0 0.0
    %2617 = vmatpush1.msra.mxu0 %v1668
    %2618 = vmatprep.mubr.f32.mxu0 %v2539
    %2619 = vmatmul.mubr.f32.gmra.mrb[0].mxu0 %v2532
    %v2620 = vpop.f32.mrb[0].mxu0
    %v2621 = vadd.f32 0.0, %v2620
    %v2622 = vpop.f32.mrb[0].mxu0
    %2623 = vdwg.mxu0
    %2624 = vmatprep.subr.mxu0 0.0
    %2625 = vmatpush1.msra.mxu0 %v1669
    %2626 = vmatprep.subr.mxu0 0.0
    %2627 = vmatpush1.msra.mxu0 %v1670
    %2628 = vmatprep.subr.mxu0 0.0
    %2629 = vmatpush1.msra.mxu0 %v1671
    %2630 = vmatprep.subr.mxu0 0.0
    %2631 = vmatpush1.msra.mxu0 %v1672
    %2632 = vmatprep.subr.mxu0 0.0
    %2633 = vmatpush1.msra.mxu0 %v1673
    %2634 = vmatprep.subr.mxu0 0.0
    %2635 = vmatpush1.msra.mxu0 %v1674
    %2636 = vmatprep.subr.mxu0 0.0
    %2637 = vmatpush1.msra.mxu0 %v1675
    %2638 = vmatprep.subr.mxu0 0.0
    %2639 = vmatpush1.msra.mxu0 %v1676
    %2640 = vmatprep.subr.mxu0 0.0
    %2641 = vmatpush1.msra.mxu0 %v1677
    %2642 = vmatprep.subr.mxu0 0.0
    %2643 = vmatpush1.msra.mxu0 %v1678
    %2644 = vmatprep.subr.mxu0 0.0
    %2645 = vmatpush1.msra.mxu0 %v1679
    %2646 = vmatprep.subr.mxu0 0.0
    %2647 = vmatpush1.msra.mxu0 %v1680
    %2648 = vmatprep.subr.mxu0 0.0
    %2649 = vmatpush1.msra.mxu0 %v1681
    %2650 = vmatprep.subr.mxu0 0.0
    %2651 = vmatpush1.msra.mxu0 %v1682
    %2652 = vmatprep.subr.mxu0 0.0
    %2653 = vmatpush1.msra.mxu0 %v1683
    %2654 = vmatprep.subr.mxu0 0.0
    %2655 = vmatpush1.msra.mxu0 %v1684
    %2656 = vmatprep.subr.mxu0 0.0
    %2657 = vmatpush1.msra.mxu0 %v1685
    %2658 = vmatprep.subr.mxu0 0.0
    %2659 = vmatpush1.msra.mxu0 %v1686
    %2660 = vmatprep.subr.mxu0 0.0
    %2661 = vmatpush1.msra.mxu0 %v1687
    %2662 = vmatprep.subr.mxu0 0.0
    %2663 = vmatpush1.msra.mxu0 %v1688
    %2664 = vmatprep.subr.mxu0 0.0
    %2665 = vmatpush1.msra.mxu0 %v1689
    %2666 = vmatprep.subr.mxu0 0.0
    %2667 = vmatpush1.msra.mxu0 %v1690
    %2668 = vmatprep.subr.mxu0 0.0
    %2669 = vmatpush1.msra.mxu0 %v1691
    %2670 = vmatprep.subr.mxu0 0.0
    %2671 = vmatpush1.msra.mxu0 %v1692
    %2672 = vmatprep.subr.mxu0 0.0
    %2673 = vmatpush1.msra.mxu0 %v1693
    %2674 = vmatprep.subr.mxu0 0.0
    %2675 = vmatpush1.msra.mxu0 %v1694
    %2676 = vmatprep.subr.mxu0 0.0
    %2677 = vmatpush1.msra.mxu0 %v1695
    %2678 = vmatprep.subr.mxu0 0.0
    %2679 = vmatpush1.msra.mxu0 %v1696
    %2680 = vmatprep.subr.mxu0 0.0
    %2681 = vmatpush1.msra.mxu0 %v1697
    %2682 = vmatprep.subr.mxu0 0.0
    %2683 = vmatpush1.msra.mxu0 %v1698
    %2684 = vmatprep.subr.mxu0 0.0
    %2685 = vmatpush1.msra.mxu0 %v1699
    %2686 = vmatprep.subr.mxu0 0.0
    %2687 = vmatpush1.msra.mxu0 %v1700
    %2688 = vmatprep.mubr.f32.mxu0 %v2553
    %2689 = vmatmul.mubr.f32.gmra.mrb[0].mxu0 %v2546
    %v2690 = vpop.f32.mrb[0].mxu0
    %v2691 = vadd.f32 %v2621, %v2690
    %v2692 = vpop.f32.mrb[0].mxu0
    %2693 = vdwg.mxu0
    %v2694 = vadd.f32 %v2350, %v2691
    %v2695 = vsel %vm1608, %v1604, 0.0
    %v2696 = vrot.slane %v2695, 4
    %v2697 = vadd.f32 %v2695, %v2696
    %v2698 = vrot.slane %v2697, 2
    %v2699 = vadd.f32 %v2697, %v2698
    %v2700 = vrot.slane %v2699, 1
    %v2701 = vadd.f32 %v2699, %v2700
    %v2702 = vsel %vm1608, %v1605, 0.0
    %v2703 = vrot.slane %v2702, 4
    %v2704 = vadd.f32 %v2702, %v2703
    %v2705 = vrot.slane %v2704, 2
    %v2706 = vadd.f32 %v2704, %v2705
    %v2707 = vrot.slane %v2706, 1
    %v2708 = vadd.f32 %v2706, %v2707
    %v2709 = vsel %vm1608, %v1606, 0.0
    %v2710 = vrot.slane %v2709, 4
    %v2711 = vadd.f32 %v2709, %v2710
    %v2712 = vrot.slane %v2711, 2
    %v2713 = vadd.f32 %v2711, %v2712
    %v2714 = vrot.slane %v2713, 1
    %v2715 = vadd.f32 %v2713, %v2714
    %v2716 = vsel %vm1608, %v1607, 0.0
    %v2717 = vrot.slane %v2716, 4
    %v2718 = vadd.f32 %v2716, %v2717
    %v2719 = vrot.slane %v2718, 2
    %v2720 = vadd.f32 %v2718, %v2719
    %v2721 = vrot.slane %v2720, 1
    %v2722 = vadd.f32 %v2720, %v2721
    %2723 = vmatprep.subr.mxu0 0.0
    %2724 = vmatpush1.msra.mxu0 %v1637
    %2725 = vmatprep.subr.mxu0 0.0
    %2726 = vmatpush1.msra.mxu0 %v1638
    %2727 = vmatprep.subr.mxu0 0.0
    %2728 = vmatpush1.msra.mxu0 %v1639
    %2729 = vmatprep.subr.mxu0 0.0
    %2730 = vmatpush1.msra.mxu0 %v1640
    %2731 = vmatprep.subr.mxu0 0.0
    %2732 = vmatpush1.msra.mxu0 %v1641
    %2733 = vmatprep.subr.mxu0 0.0
    %2734 = vmatpush1.msra.mxu0 %v1642
    %2735 = vmatprep.subr.mxu0 0.0
    %2736 = vmatpush1.msra.mxu0 %v1643
    %2737 = vmatprep.subr.mxu0 0.0
    %2738 = vmatpush1.msra.mxu0 %v1644
    %2739 = vmatprep.subr.mxu0 0.0
    %2740 = vmatpush1.msra.mxu0 %v1645
    %2741 = vmatprep.subr.mxu0 0.0
    %2742 = vmatpush1.msra.mxu0 %v1646
    %2743 = vmatprep.subr.mxu0 0.0
    %2744 = vmatpush1.msra.mxu0 %v1647
    %2745 = vmatprep.subr.mxu0 0.0
    %2746 = vmatpush1.msra.mxu0 %v1648
    %2747 = vmatprep.subr.mxu0 0.0
    %2748 = vmatpush1.msra.mxu0 %v1649
    %2749 = vmatprep.subr.mxu0 0.0
    %2750 = vmatpush1.msra.mxu0 %v1650
    %2751 = vmatprep.subr.mxu0 0.0
    %2752 = vmatpush1.msra.mxu0 %v1651
    %2753 = vmatprep.subr.mxu0 0.0
    %2754 = vmatpush1.msra.mxu0 %v1652
    %2755 = vmatprep.subr.mxu0 0.0
    %2756 = vmatpush1.msra.mxu0 %v1653
    %2757 = vmatprep.subr.mxu0 0.0
    %2758 = vmatpush1.msra.mxu0 %v1654
    %2759 = vmatprep.subr.mxu0 0.0
    %2760 = vmatpush1.msra.mxu0 %v1655
    %2761 = vmatprep.subr.mxu0 0.0
    %2762 = vmatpush1.msra.mxu0 %v1656
    %2763 = vmatprep.subr.mxu0 0.0
    %2764 = vmatpush1.msra.mxu0 %v1657
    %2765 = vmatprep.subr.mxu0 0.0
    %2766 = vmatpush1.msra.mxu0 %v1658
    %2767 = vmatprep.subr.mxu0 0.0
    %2768 = vmatpush1.msra.mxu0 %v1659
    %2769 = vmatprep.subr.mxu0 0.0
    %2770 = vmatpush1.msra.mxu0 %v1660
    %2771 = vmatprep.subr.mxu0 0.0
    %2772 = vmatpush1.msra.mxu0 %v1661
    %2773 = vmatprep.subr.mxu0 0.0
    %2774 = vmatpush1.msra.mxu0 %v1662
    %2775 = vmatprep.subr.mxu0 0.0
    %2776 = vmatpush1.msra.mxu0 %v1663
    %2777 = vmatprep.subr.mxu0 0.0
    %2778 = vmatpush1.msra.mxu0 %v1664
    %2779 = vmatprep.subr.mxu0 0.0
    %2780 = vmatpush1.msra.mxu0 %v1665
    %2781 = vmatprep.subr.mxu0 0.0
    %2782 = vmatpush1.msra.mxu0 %v1666
    %2783 = vmatprep.subr.mxu0 0.0
    %2784 = vmatpush1.msra.mxu0 %v1667
    %2785 = vmatprep.subr.mxu0 0.0
    %2786 = vmatpush1.msra.mxu0 %v1668
    %2787 = vmatprep.mubr.f32.mxu0 %v2708
    %2788 = vmatmul.mubr.f32.gmra.mrb[0].mxu0 %v2701
    %v2789 = vpop.f32.mrb[0].mxu0
    %v2790 = vadd.f32 0.0, %v2789
    %v2791 = vpop.f32.mrb[0].mxu0
    %2792 = vdwg.mxu0
    %2793 = vmatprep.subr.mxu0 0.0
    %2794 = vmatpush1.msra.mxu0 %v1669
    %2795 = vmatprep.subr.mxu0 0.0
    %2796 = vmatpush1.msra.mxu0 %v1670
    %2797 = vmatprep.subr.mxu0 0.0
    %2798 = vmatpush1.msra.mxu0 %v1671
    %2799 = vmatprep.subr.mxu0 0.0
    %2800 = vmatpush1.msra.mxu0 %v1672
    %2801 = vmatprep.subr.mxu0 0.0
    %2802 = vmatpush1.msra.mxu0 %v1673
    %2803 = vmatprep.subr.mxu0 0.0
    %2804 = vmatpush1.msra.mxu0 %v1674
    %2805 = vmatprep.subr.mxu0 0.0
    %2806 = vmatpush1.msra.mxu0 %v1675
    %2807 = vmatprep.subr.mxu0 0.0
    %2808 = vmatpush1.msra.mxu0 %v1676
    %2809 = vmatprep.subr.mxu0 0.0
    %2810 = vmatpush1.msra.mxu0 %v1677
    %2811 = vmatprep.subr.mxu0 0.0
    %2812 = vmatpush1.msra.mxu0 %v1678
    %2813 = vmatprep.subr.mxu0 0.0
    %2814 = vmatpush1.msra.mxu0 %v1679
    %2815 = vmatprep.subr.mxu0 0.0
    %2816 = vmatpush1.msra.mxu0 %v1680
    %2817 = vmatprep.subr.mxu0 0.0
    %2818 = vmatpush1.msra.mxu0 %v1681
    %2819 = vmatprep.subr.mxu0 0.0
    %2820 = vmatpush1.msra.mxu0 %v1682
    %2821 = vmatprep.subr.mxu0 0.0
    %2822 = vmatpush1.msra.mxu0 %v1683
    %2823 = vmatprep.subr.mxu0 0.0
    %2824 = vmatpush1.msra.mxu0 %v1684
    %2825 = vmatprep.subr.mxu0 0.0
    %2826 = vmatpush1.msra.mxu0 %v1685
    %2827 = vmatprep.subr.mxu0 0.0
    %2828 = vmatpush1.msra.mxu0 %v1686
    %2829 = vmatprep.subr.mxu0 0.0
    %2830 = vmatpush1.msra.mxu0 %v1687
    %2831 = vmatprep.subr.mxu0 0.0
    %2832 = vmatpush1.msra.mxu0 %v1688
    %2833 = vmatprep.subr.mxu0 0.0
    %2834 = vmatpush1.msra.mxu0 %v1689
    %2835 = vmatprep.subr.mxu0 0.0
    %2836 = vmatpush1.msra.mxu0 %v1690
    %2837 = vmatprep.subr.mxu0 0.0
    %2838 = vmatpush1.msra.mxu0 %v1691
    %2839 = vmatprep.subr.mxu0 0.0
    %2840 = vmatpush1.msra.mxu0 %v1692
    %2841 = vmatprep.subr.mxu0 0.0
    %2842 = vmatpush1.msra.mxu0 %v1693
    %2843 = vmatprep.subr.mxu0 0.0
    %2844 = vmatpush1.msra.mxu0 %v1694
    %2845 = vmatprep.subr.mxu0 0.0
    %2846 = vmatpush1.msra.mxu0 %v1695
    %2847 = vmatprep.subr.mxu0 0.0
    %2848 = vmatpush1.msra.mxu0 %v1696
    %2849 = vmatprep.subr.mxu0 0.0
    %2850 = vmatpush1.msra.mxu0 %v1697
    %2851 = vmatprep.subr.mxu0 0.0
    %2852 = vmatpush1.msra.mxu0 %v1698
    %2853 = vmatprep.subr.mxu0 0.0
    %2854 = vmatpush1.msra.mxu0 %v1699
    %2855 = vmatprep.subr.mxu0 0.0
    %2856 = vmatpush1.msra.mxu0 %v1700
    %2857 = vmatprep.mubr.f32.mxu0 %v2722
    %2858 = vmatmul.mubr.f32.gmra.mrb[0].mxu0 %v2715
    %v2859 = vpop.f32.mrb[0].mxu0
    %v2860 = vadd.f32 %v2790, %v2859
    %v2861 = vpop.f32.mrb[0].mxu0
    %2862 = vdwg.mxu0
    %v2863 = vadd.f32 %v2521, %v2860
    %v2864 = vmul.f32 %v1604, %v1604
    %v2865 = vmul.f32 %v1605, %v1605
    %v2866 = vmul.f32 %v1606, %v1606
    %v2867 = vmul.f32 %v1607, %v1607
    %v2868 = vsel %vm1608, %v2864, 0.0
    %v2869 = vrot.slane %v2868, 4
    %v2870 = vadd.f32 %v2868, %v2869
    %v2871 = vrot.slane %v2870, 2
    %v2872 = vadd.f32 %v2870, %v2871
    %v2873 = vrot.slane %v2872, 1
    %v2874 = vadd.f32 %v2872, %v2873
    %v2875 = vsel %vm1608, %v2865, 0.0
    %v2876 = vrot.slane %v2875, 4
    %v2877 = vadd.f32 %v2875, %v2876
    %v2878 = vrot.slane %v2877, 2
    %v2879 = vadd.f32 %v2877, %v2878
    %v2880 = vrot.slane %v2879, 1
    %v2881 = vadd.f32 %v2879, %v2880
    %v2882 = vsel %vm1608, %v2866, 0.0
    %v2883 = vrot.slane %v2882, 4
    %v2884 = vadd.f32 %v2882, %v2883
    %v2885 = vrot.slane %v2884, 2
    %v2886 = vadd.f32 %v2884, %v2885
    %v2887 = vrot.slane %v2886, 1
    %v2888 = vadd.f32 %v2886, %v2887
    %v2889 = vsel %vm1608, %v2867, 0.0
    %v2890 = vrot.slane %v2889, 4
    %v2891 = vadd.f32 %v2889, %v2890
    %v2892 = vrot.slane %v2891, 2
    %v2893 = vadd.f32 %v2891, %v2892
    %v2894 = vrot.slane %v2893, 1
    %v2895 = vadd.f32 %v2893, %v2894
    %2896 = vmatprep.subr.mxu0 0.0
    %2897 = vmatpush1.msra.mxu0 %v1637
    %2898 = vmatprep.subr.mxu0 0.0
    %2899 = vmatpush1.msra.mxu0 %v1638
    %2900 = vmatprep.subr.mxu0 0.0
    %2901 = vmatpush1.msra.mxu0 %v1639
    %2902 = vmatprep.subr.mxu0 0.0
    %2903 = vmatpush1.msra.mxu0 %v1640
    %2904 = vmatprep.subr.mxu0 0.0
    %2905 = vmatpush1.msra.mxu0 %v1641
    %2906 = vmatprep.subr.mxu0 0.0
    %2907 = vmatpush1.msra.mxu0 %v1642
    %2908 = vmatprep.subr.mxu0 0.0
    %2909 = vmatpush1.msra.mxu0 %v1643
    %2910 = vmatprep.subr.mxu0 0.0
    %2911 = vmatpush1.msra.mxu0 %v1644
    %2912 = vmatprep.subr.mxu0 0.0
    %2913 = vmatpush1.msra.mxu0 %v1645
    %2914 = vmatprep.subr.mxu0 0.0
    %2915 = vmatpush1.msra.mxu0 %v1646
    %2916 = vmatprep.subr.mxu0 0.0
    %2917 = vmatpush1.msra.mxu0 %v1647
    %2918 = vmatprep.subr.mxu0 0.0
    %2919 = vmatpush1.msra.mxu0 %v1648
    %2920 = vmatprep.subr.mxu0 0.0
    %2921 = vmatpush1.msra.mxu0 %v1649
    %2922 = vmatprep.subr.mxu0 0.0
    %2923 = vmatpush1.msra.mxu0 %v1650
    %2924 = vmatprep.subr.mxu0 0.0
    %2925 = vmatpush1.msra.mxu0 %v1651
    %2926 = vmatprep.subr.mxu0 0.0
    %2927 = vmatpush1.msra.mxu0 %v1652
    %2928 = vmatprep.subr.mxu0 0.0
    %2929 = vmatpush1.msra.mxu0 %v1653
    %2930 = vmatprep.subr.mxu0 0.0
    %2931 = vmatpush1.msra.mxu0 %v1654
    %2932 = vmatprep.subr.mxu0 0.0
    %2933 = vmatpush1.msra.mxu0 %v1655
    %2934 = vmatprep.subr.mxu0 0.0
    %2935 = vmatpush1.msra.mxu0 %v1656
    %2936 = vmatprep.subr.mxu0 0.0
    %2937 = vmatpush1.msra.mxu0 %v1657
    %2938 = vmatprep.subr.mxu0 0.0
    %2939 = vmatpush1.msra.mxu0 %v1658
    %2940 = vmatprep.subr.mxu0 0.0
    %2941 = vmatpush1.msra.mxu0 %v1659
    %2942 = vmatprep.subr.mxu0 0.0
    %2943 = vmatpush1.msra.mxu0 %v1660
    %2944 = vmatprep.subr.mxu0 0.0
    %2945 = vmatpush1.msra.mxu0 %v1661
    %2946 = vmatprep.subr.mxu0 0.0
    %2947 = vmatpush1.msra.mxu0 %v1662
    %2948 = vmatprep.subr.mxu0 0.0
    %2949 = vmatpush1.msra.mxu0 %v1663
    %2950 = vmatprep.subr.mxu0 0.0
    %2951 = vmatpush1.msra.mxu0 %v1664
    %2952 = vmatprep.subr.mxu0 0.0
    %2953 = vmatpush1.msra.mxu0 %v1665
    %2954 = vmatprep.subr.mxu0 0.0
    %2955 = vmatpush1.msra.mxu0 %v1666
    %2956 = vmatprep.subr.mxu0 0.0
    %2957 = vmatpush1.msra.mxu0 %v1667
    %2958 = vmatprep.subr.mxu0 0.0
    %2959 = vmatpush1.msra.mxu0 %v1668
    %2960 = vmatprep.mubr.f32.mxu0 %v2881
    %2961 = vmatmul.mubr.f32.gmra.mrb[0].mxu0 %v2874
    %v2962 = vpop.f32.mrb[0].mxu0
    %v2963 = vadd.f32 0.0, %v2962
    %v2964 = vpop.f32.mrb[0].mxu0
    %2965 = vdwg.mxu0
    %2966 = vmatprep.subr.mxu0 0.0
    %2967 = vmatpush1.msra.mxu0 %v1669
    %2968 = vmatprep.subr.mxu0 0.0
    %2969 = vmatpush1.msra.mxu0 %v1670
    %2970 = vmatprep.subr.mxu0 0.0
    %2971 = vmatpush1.msra.mxu0 %v1671
    %2972 = vmatprep.subr.mxu0 0.0
    %2973 = vmatpush1.msra.mxu0 %v1672
    %2974 = vmatprep.subr.mxu0 0.0
    %2975 = vmatpush1.msra.mxu0 %v1673
    %2976 = vmatprep.subr.mxu0 0.0
    %2977 = vmatpush1.msra.mxu0 %v1674
    %2978 = vmatprep.subr.mxu0 0.0
    %2979 = vmatpush1.msra.mxu0 %v1675
    %2980 = vmatprep.subr.mxu0 0.0
    %2981 = vmatpush1.msra.mxu0 %v1676
    %2982 = vmatprep.subr.mxu0 0.0
    %2983 = vmatpush1.msra.mxu0 %v1677
    %2984 = vmatprep.subr.mxu0 0.0
    %2985 = vmatpush1.msra.mxu0 %v1678
    %2986 = vmatprep.subr.mxu0 0.0
    %2987 = vmatpush1.msra.mxu0 %v1679
    %2988 = vmatprep.subr.mxu0 0.0
    %2989 = vmatpush1.msra.mxu0 %v1680
    %2990 = vmatprep.subr.mxu0 0.0
    %2991 = vmatpush1.msra.mxu0 %v1681
    %2992 = vmatprep.subr.mxu0 0.0
    %2993 = vmatpush1.msra.mxu0 %v1682
    %2994 = vmatprep.subr.mxu0 0.0
    %2995 = vmatpush1.msra.mxu0 %v1683
    %2996 = vmatprep.subr.mxu0 0.0
    %2997 = vmatpush1.msra.mxu0 %v1684
    %2998 = vmatprep.subr.mxu0 0.0
    %2999 = vmatpush1.msra.mxu0 %v1685
    %3000 = vmatprep.subr.mxu0 0.0
    %3001 = vmatpush1.msra.mxu0 %v1686
    %3002 = vmatprep.subr.mxu0 0.0
    %3003 = vmatpush1.msra.mxu0 %v1687
    %3004 = vmatprep.subr.mxu0 0.0
    %3005 = vmatpush1.msra.mxu0 %v1688
    %3006 = vmatprep.subr.mxu0 0.0
    %3007 = vmatpush1.msra.mxu0 %v1689
    %3008 = vmatprep.subr.mxu0 0.0
    %3009 = vmatpush1.msra.mxu0 %v1690
    %3010 = vmatprep.subr.mxu0 0.0
    %3011 = vmatpush1.msra.mxu0 %v1691
    %3012 = vmatprep.subr.mxu0 0.0
    %3013 = vmatpush1.msra.mxu0 %v1692
    %3014 = vmatprep.subr.mxu0 0.0
    %3015 = vmatpush1.msra.mxu0 %v1693
    %3016 = vmatprep.subr.mxu0 0.0
    %3017 = vmatpush1.msra.mxu0 %v1694
    %3018 = vmatprep.subr.mxu0 0.0
    %3019 = vmatpush1.msra.mxu0 %v1695
    %3020 = vmatprep.subr.mxu0 0.0
    %3021 = vmatpush1.msra.mxu0 %v1696
    %3022 = vmatprep.subr.mxu0 0.0
    %3023 = vmatpush1.msra.mxu0 %v1697
    %3024 = vmatprep.subr.mxu0 0.0
    %3025 = vmatpush1.msra.mxu0 %v1698
    %3026 = vmatprep.subr.mxu0 0.0
    %3027 = vmatpush1.msra.mxu0 %v1699
    %3028 = vmatprep.subr.mxu0 0.0
    %3029 = vmatpush1.msra.mxu0 %v1700
    %3030 = vmatprep.mubr.f32.mxu0 %v2895
    %3031 = vmatmul.mubr.f32.gmra.mrb[0].mxu0 %v2888
    %v3032 = vpop.f32.mrb[0].mxu0
    %v3033 = vadd.f32 %v2963, %v3032
    %v3034 = vpop.f32.mrb[0].mxu0
    %3035 = vdwg.mxu0
    %v3036 = vadd.f32 %v2694, %v3033
    %v3037 = vmul.f32 %v2863, 0.001953125
    %v3038 = vmul.f32 %v3036, 0.001953125
    %v3039 = vmul.f32 %v3037, %v3037
    %v3040 = vsub.f32 %v3038, %v3039
    %v3041 = vmax.f32 %v3040, 0.0
    %v3042 = vadd.f32 %v3041, 1e-05
    %v3043 = vrsqrt.pop %v3042
    %v3044 = vld [vmem:[#allocation10] sm:$0x1]
    %v3045 = vmul.f32 %v3044, %v3043
    %v3046 = vld [vmem:[#allocation12] sm:$0x1]
    %v3047 = vmul.f32 %v3045, %v3037
    %v3048 = vsub.f32 %v3046, %v3047
    %v3049 = vld [vmem:[#allocation9] sm:$0xff]
    %v3050 = vld [vmem:[#allocation9 + $0x8] sm:$0xff]
    %v3051 = vld [vmem:[#allocation9 + $0x10] sm:$0xff]
    %v3052 = vld [vmem:[#allocation9 + $0x18] sm:$0xff]
    %vm3053 = vcmask 64512
    %v3055 = vsel %vm3053, %v3045, 0
    %3057 = vmatprep.subr.mxu0 %v3050
    %3058 = vmatpush1.msra.mxu0 %v3049
    %3059 = vmatprep.subr.mxu0 0.0
    %3060 = vmatpush1.msra.mxu0 0.0
    %3061 = vmatprep.subr.mxu0 0.0
    %3062 = vmatpush1.msra.mxu0 0.0
    %3063 = vmatprep.subr.mxu0 0.0
    %3064 = vmatpush1.msra.mxu0 0.0
    %3065 = vmatprep.subr.mxu0 0.0
    %3066 = vmatpush1.msra.mxu0 0.0
    %3067 = vmatprep.subr.mxu0 0.0
    %3068 = vmatpush1.msra.mxu0 0.0
    %3069 = vmatprep.subr.mxu0 0.0
    %3070 = vmatpush1.msra.mxu0 0.0
    %3071 = vmatprep.subr.mxu0 0.0
    %3072 = vmatpush1.msra.mxu0 0.0
    %3073 = vmatprep.subr.mxu0 0.0
    %3074 = vmatpush1.msra.mxu0 0.0
    %3075 = vmatprep.subr.mxu0 0.0
    %3076 = vmatpush1.msra.mxu0 0.0
    %3077 = vmatprep.subr.mxu0 0.0
    %3078 = vmatpush1.msra.mxu0 0.0
    %3079 = vmatprep.subr.mxu0 0.0
    %3080 = vmatpush1.msra.mxu0 0.0
    %3081 = vmatprep.subr.mxu0 0.0
    %3082 = vmatpush1.msra.mxu0 0.0
    %3083 = vmatprep.subr.mxu0 0.0
    %3084 = vmatpush1.msra.mxu0 0.0
    %3085 = vmatprep.subr.mxu0 0.0
    %3086 = vmatpush1.msra.mxu0 0.0
    %3087 = vmatprep.subr.mxu0 0.0
    %3088 = vmatpush1.msra.mxu0 0.0
    %3089 = vmatprep.subr.mxu0 0.0
    %3090 = vmatpush1.msra.mxu0 0.0
    %3091 = vmatprep.subr.mxu0 0.0
    %3092 = vmatpush1.msra.mxu0 0.0
    %3093 = vmatprep.subr.mxu0 0.0
    %3094 = vmatpush1.msra.mxu0 0.0
    %3095 = vmatprep.subr.mxu0 0.0
    %3096 = vmatpush1.msra.mxu0 0.0
    %3097 = vmatprep.subr.mxu0 0.0
    %3098 = vmatpush1.msra.mxu0 0.0
    %3099 = vmatprep.subr.mxu0 0.0
    %3100 = vmatpush1.msra.mxu0 0.0
    %3101 = vmatprep.subr.mxu0 0.0
    %3102 = vmatpush1.msra.mxu0 0.0
    %3103 = vmatprep.subr.mxu0 0.0
    %3104 = vmatpush1.msra.mxu0 0.0
    %3105 = vmatprep.subr.mxu0 0.0
    %3106 = vmatpush1.msra.mxu0 0.0
    %3107 = vmatprep.subr.mxu0 0.0
    %3108 = vmatpush1.msra.mxu0 0.0
    %3109 = vmatprep.subr.mxu0 0.0
    %3110 = vmatpush1.msra.mxu0 0.0
    %3111 = vmatprep.subr.mxu0 0.0
    %3112 = vmatpush1.msra.mxu0 0.0
    %3113 = vmatprep.subr.mxu0 0.0
    %3114 = vmatpush1.msra.mxu0 0.0
    %3115 = vmatprep.subr.mxu0 0.0
    %3116 = vmatpush1.msra.mxu0 0.0
    %3117 = vmatprep.subr.mxu0 0.0
    %3118 = vmatpush1.msra.mxu0 0.0
    %3119 = vmatprep.subr.mxu0 0.0
    %3120 = vmatpush1.msra.mxu0 0.0
    %3121 = vmatprep.mubr.f32.mxu0 0.0
    %3122 = vmatmul.mubr.f32.gmra.mrb[0].mxu0 %v3055
    %v3123 = vpop.f32.mrb[0].mxu0
    %v3124 = vadd.f32 0.0, %v3123
    %v3125 = vpop.f32.mrb[0].mxu0
    %v3126 = vadd.f32 0.0, %v3125
    %3127 = vdwg.mxu0
    %3128 = vmatprep.subr.mxu0 %v3052
    %3129 = vmatpush1.msra.mxu0 %v3051
    %3130 = vmatprep.subr.mxu0 0.0
    %3131 = vmatpush1.msra.mxu0 0.0
    %3132 = vmatprep.subr.mxu0 0.0
    %3133 = vmatpush1.msra.mxu0 0.0
    %3134 = vmatprep.subr.mxu0 0.0
    %3135 = vmatpush1.msra.mxu0 0.0
    %3136 = vmatprep.subr.mxu0 0.0
    %3137 = vmatpush1.msra.mxu0 0.0
    %3138 = vmatprep.subr.mxu0 0.0
    %3139 = vmatpush1.msra.mxu0 0.0
    %3140 = vmatprep.subr.mxu0 0.0
    %3141 = vmatpush1.msra.mxu0 0.0
    %3142 = vmatprep.subr.mxu0 0.0
    %3143 = vmatpush1.msra.mxu0 0.0
    %3144 = vmatprep.subr.mxu0 0.0
    %3145 = vmatpush1.msra.mxu0 0.0
    %3146 = vmatprep.subr.mxu0 0.0
    %3147 = vmatpush1.msra.mxu0 0.0
    %3148 = vmatprep.subr.mxu0 0.0
    %3149 = vmatpush1.msra.mxu0 0.0
    %3150 = vmatprep.subr.mxu0 0.0
    %3151 = vmatpush1.msra.mxu0 0.0
    %3152 = vmatprep.subr.mxu0 0.0
    %3153 = vmatpush1.msra.mxu0 0.0
    %3154 = vmatprep.subr.mxu0 0.0
    %3155 = vmatpush1.msra.mxu0 0.0
    %3156 = vmatprep.subr.mxu0 0.0
    %3157 = vmatpush1.msra.mxu0 0.0
    %3158 = vmatprep.subr.mxu0 0.0
    %3159 = vmatpush1.msra.mxu0 0.0
    %3160 = vmatprep.subr.mxu0 0.0
    %3161 = vmatpush1.msra.mxu0 0.0
    %3162 = vmatprep.subr.mxu0 0.0
    %3163 = vmatpush1.msra.mxu0 0.0
    %3164 = vmatprep.subr.mxu0 0.0
    %3165 = vmatpush1.msra.mxu0 0.0
    %3166 = vmatprep.subr.mxu0 0.0
    %3167 = vmatpush1.msra.mxu0 0.0
    %3168 = vmatprep.subr.mxu0 0.0
    %3169 = vmatpush1.msra.mxu0 0.0
    %3170 = vmatprep.subr.mxu0 0.0
    %3171 = vmatpush1.msra.mxu0 0.0
    %3172 = vmatprep.subr.mxu0 0.0
    %3173 = vmatpush1.msra.mxu0 0.0
    %3174 = vmatprep.subr.mxu0 0.0
    %3175 = vmatpush1.msra.mxu0 0.0
    %3176 = vmatprep.subr.mxu0 0.0
    %3177 = vmatpush1.msra.mxu0 0.0
    %3178 = vmatprep.subr.mxu0 0.0
    %3179 = vmatpush1.msra.mxu0 0.0
    %3180 = vmatprep.subr.mxu0 0.0
    %3181 = vmatpush1.msra.mxu0 0.0
    %3182 = vmatprep.subr.mxu0 0.0
    %3183 = vmatpush1.msra.mxu0 0.0
    %3184 = vmatprep.subr.mxu0 0.0
    %3185 = vmatpush1.msra.mxu0 0.0
    %3186 = vmatprep.subr.mxu0 0.0
    %3187 = vmatpush1.msra.mxu0 0.0
    %3188 = vmatprep.subr.mxu0 0.0
    %3189 = vmatpush1.msra.mxu0 0.0
    %3190 = vmatprep.subr.mxu0 0.0
    %3191 = vmatpush1.msra.mxu0 0.0
    %3192 = vmatprep.mubr.f32.mxu0 0.0
    %3193 = vmatmul.mubr.f32.gmra.mrb[0].mxu0 %v3055
    %v3194 = vpop.f32.mrb[0].mxu0
    %v3195 = vadd.f32 0.0, %v3194
    %v3196 = vpop.f32.mrb[0].mxu0
    %v3197 = vadd.f32 0.0, %v3196
    %3198 = vdwg.mxu0
    %v3200 = vsel %vm3053, %v3048, 0
    %3202 = vmatprep.subr.mxu0 %v3050
    %3203 = vmatpush1.msra.mxu0 %v3049
    %3204 = vmatprep.subr.mxu0 0.0
    %3205 = vmatpush1.msra.mxu0 0.0
    %3206 = vmatprep.subr.mxu0 0.0
    %3207 = vmatpush1.msra.mxu0 0.0
    %3208 = vmatprep.subr.mxu0 0.0
    %3209 = vmatpush1.msra.mxu0 0.0
    %3210 = vmatprep.subr.mxu0 0.0
    %3211 = vmatpush1.msra.mxu0 0.0
    %3212 = vmatprep.subr.mxu0 0.0
    %3213 = vmatpush1.msra.mxu0 0.0
    %3214 = vmatprep.subr.mxu0 0.0
    %3215 = vmatpush1.msra.mxu0 0.0
    %3216 = vmatprep.subr.mxu0 0.0
    %3217 = vmatpush1.msra.mxu0 0.0
    %3218 = vmatprep.subr.mxu0 0.0
    %3219 = vmatpush1.msra.mxu0 0.0
    %3220 = vmatprep.subr.mxu0 0.0
    %3221 = vmatpush1.msra.mxu0 0.0
    %3222 = vmatprep.subr.mxu0 0.0
    %3223 = vmatpush1.msra.mxu0 0.0
    %3224 = vmatprep.subr.mxu0 0.0
    %3225 = vmatpush1.msra.mxu0 0.0
    %3226 = vmatprep.subr.mxu0 0.0
    %3227 = vmatpush1.msra.mxu0 0.0
    %3228 = vmatprep.subr.mxu0 0.0
    %3229 = vmatpush1.msra.mxu0 0.0
    %3230 = vmatprep.subr.mxu0 0.0
    %3231 = vmatpush1.msra.mxu0 0.0
    %3232 = vmatprep.subr.mxu0 0.0
    %3233 = vmatpush1.msra.mxu0 0.0
    %3234 = vmatprep.subr.mxu0 0.0
    %3235 = vmatpush1.msra.mxu0 0.0
    %3236 = vmatprep.subr.mxu0 0.0
    %3237 = vmatpush1.msra.mxu0 0.0
    %3238 = vmatprep.subr.mxu0 0.0
    %3239 = vmatpush1.msra.mxu0 0.0
    %3240 = vmatprep.subr.mxu0 0.0
    %3241 = vmatpush1.msra.mxu0 0.0
    %3242 = vmatprep.subr.mxu0 0.0
    %3243 = vmatpush1.msra.mxu0 0.0
    %3244 = vmatprep.subr.mxu0 0.0
    %3245 = vmatpush1.msra.mxu0 0.0
    %3246 = vmatprep.subr.mxu0 0.0
    %3247 = vmatpush1.msra.mxu0 0.0
    %3248 = vmatprep.subr.mxu0 0.0
    %3249 = vmatpush1.msra.mxu0 0.0
    %3250 = vmatprep.subr.mxu0 0.0
    %3251 = vmatpush1.msra.mxu0 0.0
    %3252 = vmatprep.subr.mxu0 0.0
    %3253 = vmatpush1.msra.mxu0 0.0
    %3254 = vmatprep.subr.mxu0 0.0
    %3255 = vmatpush1.msra.mxu0 0.0
    %3256 = vmatprep.subr.mxu0 0.0
    %3257 = vmatpush1.msra.mxu0 0.0
    %3258 = vmatprep.subr.mxu0 0.0
    %3259 = vmatpush1.msra.mxu0 0.0
    %3260 = vmatprep.subr.mxu0 0.0
    %3261 = vmatpush1.msra.mxu0 0.0
    %3262 = vmatprep.subr.mxu0 0.0
    %3263 = vmatpush1.msra.mxu0 0.0
    %3264 = vmatprep.subr.mxu0 0.0
    %3265 = vmatpush1.msra.mxu0 0.0
    %3266 = vmatprep.mubr.f32.mxu0 0.0
    %3267 = vmatmul.mubr.f32.gmra.mrb[0].mxu0 %v3200
    %v3268 = vpop.f32.mrb[0].mxu0
    %v3269 = vadd.f32 0.0, %v3268
    %v3270 = vpop.f32.mrb[0].mxu0
    %v3271 = vadd.f32 0.0, %v3270
    %3272 = vdwg.mxu0
    %3273 = vmatprep.subr.mxu0 %v3052
    %3274 = vmatpush1.msra.mxu0 %v3051
    %3275 = vmatprep.subr.mxu0 0.0
    %3276 = vmatpush1.msra.mxu0 0.0
    %3277 = vmatprep.subr.mxu0 0.0
    %3278 = vmatpush1.msra.mxu0 0.0
    %3279 = vmatprep.subr.mxu0 0.0
    %3280 = vmatpush1.msra.mxu0 0.0
    %3281 = vmatprep.subr.mxu0 0.0
    %3282 = vmatpush1.msra.mxu0 0.0
    %3283 = vmatprep.subr.mxu0 0.0
    %3284 = vmatpush1.msra.mxu0 0.0
    %3285 = vmatprep.subr.mxu0 0.0
    %3286 = vmatpush1.msra.mxu0 0.0
    %3287 = vmatprep.subr.mxu0 0.0
    %3288 = vmatpush1.msra.mxu0 0.0
    %3289 = vmatprep.subr.mxu0 0.0
    %3290 = vmatpush1.msra.mxu0 0.0
    %3291 = vmatprep.subr.mxu0 0.0
    %3292 = vmatpush1.msra.mxu0 0.0
    %3293 = vmatprep.subr.mxu0 0.0
    %3294 = vmatpush1.msra.mxu0 0.0
    %3295 = vmatprep.subr.mxu0 0.0
    %3296 = vmatpush1.msra.mxu0 0.0
    %3297 = vmatprep.subr.mxu0 0.0
    %3298 = vmatpush1.msra.mxu0 0.0
    %3299 = vmatprep.subr.mxu0 0.0
    %3300 = vmatpush1.msra.mxu0 0.0
    %3301 = vmatprep.subr.mxu0 0.0
    %3302 = vmatpush1.msra.mxu0 0.0
    %3303 = vmatprep.subr.mxu0 0.0
    %3304 = vmatpush1.msra.mxu0 0.0
    %3305 = vmatprep.subr.mxu0 0.0
    %3306 = vmatpush1.msra.mxu0 0.0
    %3307 = vmatprep.subr.mxu0 0.0
    %3308 = vmatpush1.msra.mxu0 0.0
    %3309 = vmatprep.subr.mxu0 0.0
    %3310 = vmatpush1.msra.mxu0 0.0
    %3311 = vmatprep.subr.mxu0 0.0
    %3312 = vmatpush1.msra.mxu0 0.0
    %3313 = vmatprep.subr.mxu0 0.0
    %3314 = vmatpush1.msra.mxu0 0.0
    %3315 = vmatprep.subr.mxu0 0.0
    %3316 = vmatpush1.msra.mxu0 0.0
    %3317 = vmatprep.subr.mxu0 0.0
    %3318 = vmatpush1.msra.mxu0 0.0
    %3319 = vmatprep.subr.mxu0 0.0
    %3320 = vmatpush1.msra.mxu0 0.0
    %3321 = vmatprep.subr.mxu0 0.0
    %3322 = vmatpush1.msra.mxu0 0.0
    %3323 = vmatprep.subr.mxu0 0.0
    %3324 = vmatpush1.msra.mxu0 0.0
    %3325 = vmatprep.subr.mxu0 0.0
    %3326 = vmatpush1.msra.mxu0 0.0
    %3327 = vmatprep.subr.mxu0 0.0
    %3328 = vmatpush1.msra.mxu0 0.0
    %3329 = vmatprep.subr.mxu0 0.0
    %3330 = vmatpush1.msra.mxu0 0.0
    %3331 = vmatprep.subr.mxu0 0.0
    %3332 = vmatpush1.msra.mxu0 0.0
    %3333 = vmatprep.subr.mxu0 0.0
    %3334 = vmatpush1.msra.mxu0 0.0
    %3335 = vmatprep.subr.mxu0 0.0
    %3336 = vmatpush1.msra.mxu0 0.0
    %3337 = vmatprep.mubr.f32.mxu0 0.0
    %3338 = vmatmul.mubr.f32.gmra.mrb[0].mxu0 %v3200
    %v3339 = vpop.f32.mrb[0].mxu0
    %v3340 = vadd.f32 0.0, %v3339
    %v3341 = vpop.f32.mrb[0].mxu0
    %v3342 = vadd.f32 0.0, %v3341
    %3343 = vdwg.mxu0
    %v3344 = vlaneseq
    %v3345 = vshrl.u32 %v3344, 7
    %v3346 = vsub.s32 0, %v3345
    %v3347 = vrot.slane %v3124, %v3346
    %v3348 = vlaneseq
    %v3349 = vshrl.u32 %v3348, 7
    %v3350 = vsub.s32 0, %v3349
    %v3351 = vrot.slane %v3126, %v3350
    %v3352 = vlaneseq
    %v3353 = vshrl.u32 %v3352, 7
    %v3354 = vsub.s32 0, %v3353
    %v3355 = vrot.slane %v3195, %v3354
    %v3356 = vlaneseq
    %v3357 = vshrl.u32 %v3356, 7
    %v3358 = vsub.s32 0, %v3357
    %v3359 = vrot.slane %v3197, %v3358
    %v3360 = vmul.f32 %v758, %v3347
    %v3361 = vmul.f32 %v759, %v3351
    %v3362 = vmul.f32 %v760, %v3355
    %v3363 = vmul.f32 %v761, %v3359
    %v3364 = vlaneseq
    %v3365 = vshrl.u32 %v3364, 7
    %v3366 = vsub.s32 0, %v3365
    %v3367 = vrot.slane %v3269, %v3366
    %v3368 = vlaneseq
    %v3369 = vshrl.u32 %v3368, 7
    %v3370 = vsub.s32 0, %v3369
    %v3371 = vrot.slane %v3271, %v3370
    %v3372 = vlaneseq
    %v3373 = vshrl.u32 %v3372, 7
    %v3374 = vsub.s32 0, %v3373
    %v3375 = vrot.slane %v3340, %v3374
    %v3376 = vlaneseq
    %v3377 = vshrl.u32 %v3376, 7
    %v3378 = vsub.s32 0, %v3377
    %v3379 = vrot.slane %v3342, %v3378
    %v3380 = vadd.f32 %v3360, %v3367
    %v3381 = vadd.f32 %v3361, %v3371
    %v3382 = vadd.f32 %v3362, %v3375
    %v3383 = vadd.f32 %v3363, %v3379
    %v3384 = vmul.f32 %v1040, %v3347
    %v3385 = vmul.f32 %v1041, %v3351
    %v3386 = vmul.f32 %v1042, %v3355
    %v3387 = vmul.f32 %v1043, %v3359
    %v3388 = vadd.f32 %v3384, %v3367
    %v3389 = vadd.f32 %v3385, %v3371
    %v3390 = vadd.f32 %v3386, %v3375
    %v3391 = vadd.f32 %v3387, %v3379
    %v3392 = vmul.f32 %v1322, %v3347
    %v3393 = vmul.f32 %v1323, %v3351
    %v3394 = vmul.f32 %v1324, %v3355
    %v3395 = vmul.f32 %v1325, %v3359
    %v3396 = vadd.f32 %v3392, %v3367
    %v3397 = vadd.f32 %v3393, %v3371
    %v3398 = vadd.f32 %v3394, %v3375
    %v3399 = vadd.f32 %v3395, %v3379
    %v3400 = vmul.f32 %v1604, %v3347
    %v3401 = vmul.f32 %v1605, %v3351
    %v3402 = vmul.f32 %v1606, %v3355
    %v3403 = vmul.f32 %v1607, %v3359
    %v3404 = vadd.f32 %v3400, %v3367
    %v3405 = vadd.f32 %v3401, %v3371
    %v3406 = vadd.f32 %v3402, %v3375
    %v3407 = vadd.f32 %v3403, %v3379
    %v3408 = vmax.f32 %v3380, %v3388
    %v3409 = vmax.f32 %v3381, %v3389
    %v3410 = vmax.f32 %v3382, %v3390
    %v3411 = vmax.f32 %v3383, %v3391
    %v3412 = vmax.f32 %v3396, %v3404
    %v3413 = vmax.f32 %v3397, %v3405
    %v3414 = vmax.f32 %v3398, %v3406
    %v3415 = vmax.f32 %v3399, %v3407
    %v3416 = vmax.f32 %v3408, %v3412
    %v3417 = vmax.f32 %v3409, %v3413
    %v3418 = vmax.f32 %v3410, %v3414
    %v3419 = vmax.f32 %v3411, %v3415
    %v3420 = vld [vmem:[%s21] sm:$0xff]
    %v3421 = vld [vmem:[%s21 + $0x8] sm:$0xff]
    %v3422 = vld [vmem:[%s21 + $0x10] sm:$0xff]
    %v3423 = vld [vmem:[%s21 + $0x18] sm:$0xff]
    %v3424 = vld [vmem:[%s21 + $0x20] sm:$0xff]
    %v3425 = vld [vmem:[%s21 + $0x28] sm:$0xff]
    %v3426 = vld [vmem:[%s21 + $0x30] sm:$0xff]
    %v3427 = vld [vmem:[%s21 + $0x38] sm:$0xff]
    %v3428 = vld [vmem:[%s21 + $0x40] sm:$0xff]
    %v3429 = vld [vmem:[%s21 + $0x48] sm:$0xff]
    %v3430 = vld [vmem:[%s21 + $0x50] sm:$0xff]
    %v3431 = vld [vmem:[%s21 + $0x58] sm:$0xff]
    %v3432 = vld [vmem:[%s21 + $0x60] sm:$0xff]
    %v3433 = vld [vmem:[%s21 + $0x68] sm:$0xff]
    %v3434 = vld [vmem:[%s21 + $0x70] sm:$0xff]
    %v3435 = vld [vmem:[%s21 + $0x78] sm:$0xff]
    %v3436 = vld [vmem:[%s21 + $0x80] sm:$0xff]
    %v3437 = vld [vmem:[%s21 + $0x88] sm:$0xff]
    %v3438 = vld [vmem:[%s21 + $0x90] sm:$0xff]
    %v3439 = vld [vmem:[%s21 + $0x98] sm:$0xff]
    %v3440 = vld [vmem:[%s21 + $0xa0] sm:$0xff]
    %v3441 = vld [vmem:[%s21 + $0xa8] sm:$0xff]
    %v3442 = vld [vmem:[%s21 + $0xb0] sm:$0xff]
    %v3443 = vld [vmem:[%s21 + $0xb8] sm:$0xff]
    %v3444 = vld [vmem:[%s21 + $0xc0] sm:$0xff]
    %v3445 = vld [vmem:[%s21 + $0xc8] sm:$0xff]
    %v3446 = vld [vmem:[%s21 + $0xd0] sm:$0xff]
    %v3447 = vld [vmem:[%s21 + $0xd8] sm:$0xff]
    %v3448 = vld [vmem:[%s21 + $0xe0] sm:$0xff]
    %v3449 = vld [vmem:[%s21 + $0xe8] sm:$0xff]
    %v3450 = vld [vmem:[%s21 + $0xf0] sm:$0xff]
    %v3451 = vld [vmem:[%s21 + $0xf8] sm:$0xff]
    %v3452 = vld [vmem:[%s21 + $0x100] sm:$0xff]
    %v3453 = vld [vmem:[%s21 + $0x108] sm:$0xff]
    %v3454 = vld [vmem:[%s21 + $0x110] sm:$0xff]
    %v3455 = vld [vmem:[%s21 + $0x118] sm:$0xff]
    %v3456 = vld [vmem:[%s21 + $0x120] sm:$0xff]
    %v3457 = vld [vmem:[%s21 + $0x128] sm:$0xff]
    %v3458 = vld [vmem:[%s21 + $0x130] sm:$0xff]
    %v3459 = vld [vmem:[%s21 + $0x138] sm:$0xff]
    %v3460 = vld [vmem:[%s21 + $0x140] sm:$0xff]
    %v3461 = vld [vmem:[%s21 + $0x148] sm:$0xff]
    %v3462 = vld [vmem:[%s21 + $0x150] sm:$0xff]
    %v3463 = vld [vmem:[%s21 + $0x158] sm:$0xff]
    %v3464 = vld [vmem:[%s21 + $0x160] sm:$0xff]
    %v3465 = vld [vmem:[%s21 + $0x168] sm:$0xff]
    %v3466 = vld [vmem:[%s21 + $0x170] sm:$0xff]
    %v3467 = vld [vmem:[%s21 + $0x178] sm:$0xff]
    %v3468 = vld [vmem:[%s21 + $0x180] sm:$0xff]
    %v3469 = vld [vmem:[%s21 + $0x188] sm:$0xff]
    %v3470 = vld [vmem:[%s21 + $0x190] sm:$0xff]
    %v3471 = vld [vmem:[%s21 + $0x198] sm:$0xff]
    %v3472 = vld [vmem:[%s21 + $0x1a0] sm:$0xff]
    %v3473 = vld [vmem:[%s21 + $0x1a8] sm:$0xff]
    %v3474 = vld [vmem:[%s21 + $0x1b0] sm:$0xff]
    %v3475 = vld [vmem:[%s21 + $0x1b8] sm:$0xff]
    %v3476 = vld [vmem:[%s21 + $0x1c0] sm:$0xff]
    %v3477 = vld [vmem:[%s21 + $0x1c8] sm:$0xff]
    %v3478 = vld [vmem:[%s21 + $0x1d0] sm:$0xff]
    %v3479 = vld [vmem:[%s21 + $0x1d8] sm:$0xff]
    %v3480 = vld [vmem:[%s21 + $0x1e0] sm:$0xff]
    %v3481 = vld [vmem:[%s21 + $0x1e8] sm:$0xff]
    %v3482 = vld [vmem:[%s21 + $0x1f0] sm:$0xff]
    %v3483 = vld [vmem:[%s21 + $0x1f8] sm:$0xff]
    %v3484 = vld [vmem:[%s21 + $0x200] sm:$0xff]
    %v3485 = vld [vmem:[%s21 + $0x208] sm:$0xff]
    %v3486 = vld [vmem:[%s21 + $0x210] sm:$0xff]
    %v3487 = vld [vmem:[%s21 + $0x218] sm:$0xff]
    %v3488 = vld [vmem:[%s21 + $0x220] sm:$0xff]
    %v3489 = vld [vmem:[%s21 + $0x228] sm:$0xff]
    %v3490 = vld [vmem:[%s21 + $0x230] sm:$0xff]
    %v3491 = vld [vmem:[%s21 + $0x238] sm:$0xff]
    %v3492 = vld [vmem:[%s21 + $0x240] sm:$0xff]
    %v3493 = vld [vmem:[%s21 + $0x248] sm:$0xff]
    %v3494 = vld [vmem:[%s21 + $0x250] sm:$0xff]
    %v3495 = vld [vmem:[%s21 + $0x258] sm:$0xff]
    %v3496 = vld [vmem:[%s21 + $0x260] sm:$0xff]
    %v3497 = vld [vmem:[%s21 + $0x268] sm:$0xff]
    %v3498 = vld [vmem:[%s21 + $0x270] sm:$0xff]
    %v3499 = vld [vmem:[%s21 + $0x278] sm:$0xff]
    %v3500 = vld [vmem:[%s21 + $0x280] sm:$0xff]
    %v3501 = vld [vmem:[%s21 + $0x288] sm:$0xff]
    %v3502 = vld [vmem:[%s21 + $0x290] sm:$0xff]
    %v3503 = vld [vmem:[%s21 + $0x298] sm:$0xff]
    %v3504 = vld [vmem:[%s21 + $0x2a0] sm:$0xff]
    %v3505 = vld [vmem:[%s21 + $0x2a8] sm:$0xff]
    %v3506 = vld [vmem:[%s21 + $0x2b0] sm:$0xff]
    %v3507 = vld [vmem:[%s21 + $0x2b8] sm:$0xff]
    %v3508 = vld [vmem:[%s21 + $0x2c0] sm:$0xff]
    %v3509 = vld [vmem:[%s21 + $0x2c8] sm:$0xff]
    %v3510 = vld [vmem:[%s21 + $0x2d0] sm:$0xff]
    %v3511 = vld [vmem:[%s21 + $0x2d8] sm:$0xff]
    %v3512 = vld [vmem:[%s21 + $0x2e0] sm:$0xff]
    %v3513 = vld [vmem:[%s21 + $0x2e8] sm:$0xff]
    %v3514 = vld [vmem:[%s21 + $0x2f0] sm:$0xff]
    %v3515 = vld [vmem:[%s21 + $0x2f8] sm:$0xff]
    %v3516 = vld [vmem:[%s21 + $0x300] sm:$0xff]
    %v3517 = vld [vmem:[%s21 + $0x308] sm:$0xff]
    %v3518 = vld [vmem:[%s21 + $0x310] sm:$0xff]
    %v3519 = vld [vmem:[%s21 + $0x318] sm:$0xff]
    %v3520 = vld [vmem:[%s21 + $0x320] sm:$0xff]
    %v3521 = vld [vmem:[%s21 + $0x328] sm:$0xff]
    %v3522 = vld [vmem:[%s21 + $0x330] sm:$0xff]
    %v3523 = vld [vmem:[%s21 + $0x338] sm:$0xff]
    %v3524 = vld [vmem:[%s21 + $0x340] sm:$0xff]
    %v3525 = vld [vmem:[%s21 + $0x348] sm:$0xff]
    %v3526 = vld [vmem:[%s21 + $0x350] sm:$0xff]
    %v3527 = vld [vmem:[%s21 + $0x358] sm:$0xff]
    %v3528 = vld [vmem:[%s21 + $0x360] sm:$0xff]
    %v3529 = vld [vmem:[%s21 + $0x368] sm:$0xff]
    %v3530 = vld [vmem:[%s21 + $0x370] sm:$0xff]
    %v3531 = vld [vmem:[%s21 + $0x378] sm:$0xff]
    %v3532 = vld [vmem:[%s21 + $0x380] sm:$0xff]
    %v3533 = vld [vmem:[%s21 + $0x388] sm:$0xff]
    %v3534 = vld [vmem:[%s21 + $0x390] sm:$0xff]
    %v3535 = vld [vmem:[%s21 + $0x398] sm:$0xff]
    %v3536 = vld [vmem:[%s21 + $0x3a0] sm:$0xff]
    %v3537 = vld [vmem:[%s21 + $0x3a8] sm:$0xff]
    %v3538 = vld [vmem:[%s21 + $0x3b0] sm:$0xff]
    %v3539 = vld [vmem:[%s21 + $0x3b8] sm:$0xff]
    %v3540 = vld [vmem:[%s21 + $0x3c0] sm:$0xff]
    %v3541 = vld [vmem:[%s21 + $0x3c8] sm:$0xff]
    %v3542 = vld [vmem:[%s21 + $0x3d0] sm:$0xff]
    %v3543 = vld [vmem:[%s21 + $0x3d8] sm:$0xff]
    %v3544 = vld [vmem:[%s21 + $0x3e0] sm:$0xff]
    %v3545 = vld [vmem:[%s21 + $0x3e8] sm:$0xff]
    %v3546 = vld [vmem:[%s21 + $0x3f0] sm:$0xff]
    %v3547 = vld [vmem:[%s21 + $0x3f8] sm:$0xff]
    %v3548 = vld [vmem:[#allocation13] sm:$0x3]
    %v3550 = vlaneseq
    %v3551 = vshrl.u32 %v3550, 7
    %v3552 = vsub.s32 0, %v3551
    %v3553 = vrot.slane %v3548, %v3552
    %v3554 = vlaneseq
    %v3555 = vshrl.u32 %v3554, 7
    %v3556 = vsub.s32 1, %v3555
    %v3557 = vrot.slane %v3548, %v3556
    %3560 = vmatprep.subr.mxu0 %v3421
    %3561 = vmatpush1.msra.mxu0 %v3420
    %3562 = vmatprep.subr.mxu0 %v3423
    %3563 = vmatpush1.msra.mxu0 %v3422
    %3564 = vmatprep.subr.mxu0 %v3425
    %3565 = vmatpush1.msra.mxu0 %v3424
    %3566 = vmatprep.subr.mxu0 %v3427
    %3567 = vmatpush1.msra.mxu0 %v3426
    %3568 = vmatprep.subr.mxu0 %v3429
    %3569 = vmatpush1.msra.mxu0 %v3428
    %3570 = vmatprep.subr.mxu0 %v3431
    %3571 = vmatpush1.msra.mxu0 %v3430
    %3572 = vmatprep.subr.mxu0 %v3433
    %3573 = vmatpush1.msra.mxu0 %v3432
    %3574 = vmatprep.subr.mxu0 %v3435
    %3575 = vmatpush1.msra.mxu0 %v3434
    %3576 = vmatprep.subr.mxu0 %v3437
    %3577 = vmatpush1.msra.mxu0 %v3436
    %3578 = vmatprep.subr.mxu0 %v3439
    %3579 = vmatpush1.msra.mxu0 %v3438
    %3580 = vmatprep.subr.mxu0 %v3441
    %3581 = vmatpush1.msra.mxu0 %v3440
    %3582 = vmatprep.subr.mxu0 %v3443
    %3583 = vmatpush1.msra.mxu0 %v3442
    %3584 = vmatprep.subr.mxu0 %v3445
    %3585 = vmatpush1.msra.mxu0 %v3444
    %3586 = vmatprep.subr.mxu0 %v3447
    %3587 = vmatpush1.msra.mxu0 %v3446
    %3588 = vmatprep.subr.mxu0 %v3449
    %3589 = vmatpush1.msra.mxu0 %v3448
    %3590 = vmatprep.subr.mxu0 %v3451
    %3591 = vmatpush1.msra.mxu0 %v3450
    %3592 = vmatprep.subr.mxu0 %v3453
    %3593 = vmatpush1.msra.mxu0 %v3452
    %3594 = vmatprep.subr.mxu0 %v3455
    %3595 = vmatpush1.msra.mxu0 %v3454
    %3596 = vmatprep.subr.mxu0 %v3457
    %3597 = vmatpush1.msra.mxu0 %v3456
    %3598 = vmatprep.subr.mxu0 %v3459
    %3599 = vmatpush1.msra.mxu0 %v3458
    %3600 = vmatprep.subr.mxu0 %v3461
    %3601 = vmatpush1.msra.mxu0 %v3460
    %3602 = vmatprep.subr.mxu0 %v3463
    %3603 = vmatpush1.msra.mxu0 %v3462
    %3604 = vmatprep.subr.mxu0 %v3465
    %3605 = vmatpush1.msra.mxu0 %v3464
    %3606 = vmatprep.subr.mxu0 %v3467
    %3607 = vmatpush1.msra.mxu0 %v3466
    %3608 = vmatprep.subr.mxu0 %v3469
    %3609 = vmatpush1.msra.mxu0 %v3468
    %3610 = vmatprep.subr.mxu0 %v3471
    %3611 = vmatpush1.msra.mxu0 %v3470
    %3612 = vmatprep.subr.mxu0 %v3473
    %3613 = vmatpush1.msra.mxu0 %v3472
    %3614 = vmatprep.subr.mxu0 %v3475
    %3615 = vmatpush1.msra.mxu0 %v3474
    %3616 = vmatprep.subr.mxu0 %v3477
    %3617 = vmatpush1.msra.mxu0 %v3476
    %3618 = vmatprep.subr.mxu0 %v3479
    %3619 = vmatpush1.msra.mxu0 %v3478
    %3620 = vmatprep.subr.mxu0 %v3481
    %3621 = vmatpush1.msra.mxu0 %v3480
    %3622 = vmatprep.subr.mxu0 %v3483
    %3623 = vmatpush1.msra.mxu0 %v3482
    %3624 = vmatprep.mubr.f32.mxu0 %v3417
    %3625 = vmatmul.mubr.f32.gmra.mrb[0].mxu0 %v3416
    %v3626 = vpop.f32.mrb[0].mxu0
    %v3627 = vadd.f32 %v3553, %v3626
    %v3628 = vpop.f32.mrb[0].mxu0
    %v3629 = vadd.f32 %v3557, %v3628
    %3630 = vdwg.mxu0
    %3631 = vmatprep.subr.mxu0 %v3485
    %3632 = vmatpush1.msra.mxu0 %v3484
    %3633 = vmatprep.subr.mxu0 %v3487
    %3634 = vmatpush1.msra.mxu0 %v3486
    %3635 = vmatprep.subr.mxu0 %v3489
    %3636 = vmatpush1.msra.mxu0 %v3488
    %3637 = vmatprep.subr.mxu0 %v3491
    %3638 = vmatpush1.msra.mxu0 %v3490
    %3639 = vmatprep.subr.mxu0 %v3493
    %3640 = vmatpush1.msra.mxu0 %v3492
    %3641 = vmatprep.subr.mxu0 %v3495
    %3642 = vmatpush1.msra.mxu0 %v3494
    %3643 = vmatprep.subr.mxu0 %v3497
    %3644 = vmatpush1.msra.mxu0 %v3496
    %3645 = vmatprep.subr.mxu0 %v3499
    %3646 = vmatpush1.msra.mxu0 %v3498
    %3647 = vmatprep.subr.mxu0 %v3501
    %3648 = vmatpush1.msra.mxu0 %v3500
    %3649 = vmatprep.subr.mxu0 %v3503
    %3650 = vmatpush1.msra.mxu0 %v3502
    %3651 = vmatprep.subr.mxu0 %v3505
    %3652 = vmatpush1.msra.mxu0 %v3504
    %3653 = vmatprep.subr.mxu0 %v3507
    %3654 = vmatpush1.msra.mxu0 %v3506
    %3655 = vmatprep.subr.mxu0 %v3509
    %3656 = vmatpush1.msra.mxu0 %v3508
    %3657 = vmatprep.subr.mxu0 %v3511
    %3658 = vmatpush1.msra.mxu0 %v3510
    %3659 = vmatprep.subr.mxu0 %v3513
    %3660 = vmatpush1.msra.mxu0 %v3512
    %3661 = vmatprep.subr.mxu0 %v3515
    %3662 = vmatpush1.msra.mxu0 %v3514
    %3663 = vmatprep.subr.mxu0 %v3517
    %3664 = vmatpush1.msra.mxu0 %v3516
    %3665 = vmatprep.subr.mxu0 %v3519
    %3666 = vmatpush1.msra.mxu0 %v3518
    %3667 = vmatprep.subr.mxu0 %v3521
    %3668 = vmatpush1.msra.mxu0 %v3520
    %3669 = vmatprep.subr.mxu0 %v3523
    %3670 = vmatpush1.msra.mxu0 %v3522
    %3671 = vmatprep.subr.mxu0 %v3525
    %3672 = vmatpush1.msra.mxu0 %v3524
    %3673 = vmatprep.subr.mxu0 %v3527
    %3674 = vmatpush1.msra.mxu0 %v3526
    %3675 = vmatprep.subr.mxu0 %v3529
    %3676 = vmatpush1.msra.mxu0 %v3528
    %3677 = vmatprep.subr.mxu0 %v3531
    %3678 = vmatpush1.msra.mxu0 %v3530
    %3679 = vmatprep.subr.mxu0 %v3533
    %3680 = vmatpush1.msra.mxu0 %v3532
    %3681 = vmatprep.subr.mxu0 %v3535
    %3682 = vmatpush1.msra.mxu0 %v3534
    %3683 = vmatprep.subr.mxu0 %v3537
    %3684 = vmatpush1.msra.mxu0 %v3536
    %3685 = vmatprep.subr.mxu0 %v3539
    %3686 = vmatpush1.msra.mxu0 %v3538
    %3687 = vmatprep.subr.mxu0 %v3541
    %3688 = vmatpush1.msra.mxu0 %v3540
    %3689 = vmatprep.subr.mxu0 %v3543
    %3690 = vmatpush1.msra.mxu0 %v3542
    %3691 = vmatprep.subr.mxu0 %v3545
    %3692 = vmatpush1.msra.mxu0 %v3544
    %3693 = vmatprep.subr.mxu0 %v3547
    %3694 = vmatpush1.msra.mxu0 %v3546
    %3695 = vmatprep.mubr.f32.mxu0 %v3419
    %3696 = vmatmul.mubr.f32.gmra.mrb[0].mxu0 %v3418
    %v3697 = vpop.f32.mrb[0].mxu0
    %v3698 = vadd.f32 %v3627, %v3697
    %v3699 = vpop.f32.mrb[0].mxu0
    %v3700 = vadd.f32 %v3629, %v3699
    %3701 = vdwg.mxu0
    %vm3702 = vcmp.ge.f32.partialorder %v3698, 0.0
    %vm3703 = vcmp.ge.f32.partialorder %v3700, 0.0
    %v3704 = vmul.f32 %v3698, 0.1
    %v3705 = vmul.f32 %v3700, 0.1
    %v3706 = vsel %vm3702, %v3698, %v3704
    %v3707 = vsel %vm3703, %v3700, %v3705
    %v3708 = vsel %vm1608, %v3706, 0.0
    %v3709 = vrot.slane %v3708, 4
    %v3710 = vadd.f32 %v3708, %v3709
    %v3711 = vrot.slane %v3710, 2
    %v3712 = vadd.f32 %v3710, %v3711
    %v3713 = vrot.slane %v3712, 1
    %v3714 = vadd.f32 %v3712, %v3713
    %vm3715 = vcmask 123904
    %v3716 = vsel %vm3715, %v3707, 0.0
    %v3717 = vrot.slane %v3716, 4
    %v3718 = vadd.f32 %v3716, %v3717
    %v3719 = vrot.slane %v3718, 2
    %v3720 = vadd.f32 %v3718, %v3719
    %v3721 = vrot.slane %v3720, 1
    %v3722 = vadd.f32 %v3720, %v3721
    %v3723 = vld [vmem:[%s25] sm:$0xff]
    %v3724 = vld [vmem:[%s25 + $0x8] sm:$0xff]
    %v3725 = vld [vmem:[%s25 + $0x10] sm:$0xff]
    %v3726 = vld [vmem:[%s25 + $0x18] sm:$0xff]
    %v3727 = vld [vmem:[%s25 + $0x20] sm:$0xff]
    %v3728 = vld [vmem:[%s25 + $0x28] sm:$0xff]
    %v3729 = vld [vmem:[%s25 + $0x30] sm:$0xff]
    %v3730 = vld [vmem:[%s25 + $0x38] sm:$0xff]
    %v3731 = vld [vmem:[%s25 + $0x40] sm:$0xff]
    %v3732 = vld [vmem:[%s25 + $0x48] sm:$0xff]
    %v3733 = vld [vmem:[%s25 + $0x50] sm:$0xff]
    %v3734 = vld [vmem:[%s25 + $0x58] sm:$0xff]
    %v3735 = vld [vmem:[%s25 + $0x60] sm:$0xff]
    %v3736 = vld [vmem:[%s25 + $0x68] sm:$0xff]
    %v3737 = vld [vmem:[%s25 + $0x70] sm:$0xff]
    %v3738 = vld [vmem:[%s25 + $0x78] sm:$0xff]
    %v3739 = vld [vmem:[%s25 + $0x80] sm:$0xff]
    %v3740 = vld [vmem:[%s25 + $0x88] sm:$0xff]
    %vm3741 = vcmask 130048
    %v3743 = vsel %vm3741, %v3722, 0
    %3745 = vmatprep.subr.mxu0 0.0
    %3746 = vmatpush1.msra.mxu0 %v3723
    %3747 = vmatprep.subr.mxu0 0.0
    %3748 = vmatpush1.msra.mxu0 %v3724
    %3749 = vmatprep.subr.mxu0 0.0
    %3750 = vmatpush1.msra.mxu0 %v3725
    %3751 = vmatprep.subr.mxu0 0.0
    %3752 = vmatpush1.msra.mxu0 %v3726
    %3753 = vmatprep.subr.mxu0 0.0
    %3754 = vmatpush1.msra.mxu0 %v3727
    %3755 = vmatprep.subr.mxu0 0.0
    %3756 = vmatpush1.msra.mxu0 %v3728
    %3757 = vmatprep.subr.mxu0 0.0
    %3758 = vmatpush1.msra.mxu0 %v3729
    %3759 = vmatprep.subr.mxu0 0.0
    %3760 = vmatpush1.msra.mxu0 %v3730
    %3761 = vmatprep.subr.mxu0 0.0
    %3762 = vmatpush1.msra.mxu0 %v3731
    %3763 = vmatprep.subr.mxu0 0.0
    %3764 = vmatpush1.msra.mxu0 %v3732
    %3765 = vmatprep.subr.mxu0 0.0
    %3766 = vmatpush1.msra.mxu0 %v3733
    %3767 = vmatprep.subr.mxu0 0.0
    %3768 = vmatpush1.msra.mxu0 %v3734
    %3769 = vmatprep.subr.mxu0 0.0
    %3770 = vmatpush1.msra.mxu0 %v3735
    %3771 = vmatprep.subr.mxu0 0.0
    %3772 = vmatpush1.msra.mxu0 %v3736
    %3773 = vmatprep.subr.mxu0 0.0
    %3774 = vmatpush1.msra.mxu0 %v3737
    %3775 = vmatprep.subr.mxu0 0.0
    %3776 = vmatpush1.msra.mxu0 %v3738
    %3777 = vmatprep.subr.mxu0 0.0
    %3778 = vmatpush1.msra.mxu0 %v3739
    %3779 = vmatprep.subr.mxu0 0.0
    %3780 = vmatpush1.msra.mxu0 %v3740
    %3781 = vmatprep.subr.mxu0 0.0
    %3782 = vmatpush1.msra.mxu0 0.0
    %3783 = vmatprep.subr.mxu0 0.0
    %3784 = vmatpush1.msra.mxu0 0.0
    %3785 = vmatprep.subr.mxu0 0.0
    %3786 = vmatpush1.msra.mxu0 0.0
    %3787 = vmatprep.subr.mxu0 0.0
    %3788 = vmatpush1.msra.mxu0 0.0
    %3789 = vmatprep.subr.mxu0 0.0
    %3790 = vmatpush1.msra.mxu0 0.0
    %3791 = vmatprep.subr.mxu0 0.0
    %3792 = vmatpush1.msra.mxu0 0.0
    %3793 = vmatprep.subr.mxu0 0.0
    %3794 = vmatpush1.msra.mxu0 0.0
    %3795 = vmatprep.subr.mxu0 0.0
    %3796 = vmatpush1.msra.mxu0 0.0
    %3797 = vmatprep.subr.mxu0 0.0
    %3798 = vmatpush1.msra.mxu0 0.0
    %3799 = vmatprep.subr.mxu0 0.0
    %3800 = vmatpush1.msra.mxu0 0.0
    %3801 = vmatprep.subr.mxu0 0.0
    %3802 = vmatpush1.msra.mxu0 0.0
    %3803 = vmatprep.subr.mxu0 0.0
    %3804 = vmatpush1.msra.mxu0 0.0
    %3805 = vmatprep.subr.mxu0 0.0
    %3806 = vmatpush1.msra.mxu0 0.0
    %3807 = vmatprep.subr.mxu0 0.0
    %3808 = vmatpush1.msra.mxu0 0.0
    %3809 = vmatprep.mubr.f32.mxu0 %v3743
    %3810 = vmatmul.mubr.f32.gmra.mrb[0].mxu0 %v3714
    %v3811 = vpop.f32.mrb[0].mxu0
    %v3812 = vadd.f32 0.0, %v3811
    %v3813 = vpop.f32.mrb[0].mxu0
    %3814 = vdwg.mxu0
    %v3815 = vmul.f32 %v3706, %v3706
    %v3816 = vmul.f32 %v3707, %v3707
    %v3817 = vsel %vm1608, %v3815, 0.0
    %v3818 = vrot.slane %v3817, 4
    %v3819 = vadd.f32 %v3817, %v3818
    %v3820 = vrot.slane %v3819, 2
    %v3821 = vadd.f32 %v3819, %v3820
    %v3822 = vrot.slane %v3821, 1
    %v3823 = vadd.f32 %v3821, %v3822
    %v3824 = vsel %vm3715, %v3816, 0.0
    %v3825 = vrot.slane %v3824, 4
    %v3826 = vadd.f32 %v3824, %v3825
    %v3827 = vrot.slane %v3826, 2
    %v3828 = vadd.f32 %v3826, %v3827
    %v3829 = vrot.slane %v3828, 1
    %v3830 = vadd.f32 %v3828, %v3829
    %v3832 = vsel %vm3741, %v3830, 0
    %3834 = vmatprep.subr.mxu0 0.0
    %3835 = vmatpush1.msra.mxu0 %v3723
    %3836 = vmatprep.subr.mxu0 0.0
    %3837 = vmatpush1.msra.mxu0 %v3724
    %3838 = vmatprep.subr.mxu0 0.0
    %3839 = vmatpush1.msra.mxu0 %v3725
    %3840 = vmatprep.subr.mxu0 0.0
    %3841 = vmatpush1.msra.mxu0 %v3726
    %3842 = vmatprep.subr.mxu0 0.0
    %3843 = vmatpush1.msra.mxu0 %v3727
    %3844 = vmatprep.subr.mxu0 0.0
    %3845 = vmatpush1.msra.mxu0 %v3728
    %3846 = vmatprep.subr.mxu0 0.0
    %3847 = vmatpush1.msra.mxu0 %v3729
    %3848 = vmatprep.subr.mxu0 0.0
    %3849 = vmatpush1.msra.mxu0 %v3730
    %3850 = vmatprep.subr.mxu0 0.0
    %3851 = vmatpush1.msra.mxu0 %v3731
    %3852 = vmatprep.subr.mxu0 0.0
    %3853 = vmatpush1.msra.mxu0 %v3732
    %3854 = vmatprep.subr.mxu0 0.0
    %3855 = vmatpush1.msra.mxu0 %v3733
    %3856 = vmatprep.subr.mxu0 0.0
    %3857 = vmatpush1.msra.mxu0 %v3734
    %3858 = vmatprep.subr.mxu0 0.0
    %3859 = vmatpush1.msra.mxu0 %v3735
    %3860 = vmatprep.subr.mxu0 0.0
    %3861 = vmatpush1.msra.mxu0 %v3736
    %3862 = vmatprep.subr.mxu0 0.0
    %3863 = vmatpush1.msra.mxu0 %v3737
    %3864 = vmatprep.subr.mxu0 0.0
    %3865 = vmatpush1.msra.mxu0 %v3738
    %3866 = vmatprep.subr.mxu0 0.0
    %3867 = vmatpush1.msra.mxu0 %v3739
    %3868 = vmatprep.subr.mxu0 0.0
    %3869 = vmatpush1.msra.mxu0 %v3740
    %3870 = vmatprep.subr.mxu0 0.0
    %3871 = vmatpush1.msra.mxu0 0.0
    %3872 = vmatprep.subr.mxu0 0.0
    %3873 = vmatpush1.msra.mxu0 0.0
    %3874 = vmatprep.subr.mxu0 0.0
    %3875 = vmatpush1.msra.mxu0 0.0
    %3876 = vmatprep.subr.mxu0 0.0
    %3877 = vmatpush1.msra.mxu0 0.0
    %3878 = vmatprep.subr.mxu0 0.0
    %3879 = vmatpush1.msra.mxu0 0.0
    %3880 = vmatprep.subr.mxu0 0.0
    %3881 = vmatpush1.msra.mxu0 0.0
    %3882 = vmatprep.subr.mxu0 0.0
    %3883 = vmatpush1.msra.mxu0 0.0
    %3884 = vmatprep.subr.mxu0 0.0
    %3885 = vmatpush1.msra.mxu0 0.0
    %3886 = vmatprep.subr.mxu0 0.0
    %3887 = vmatpush1.msra.mxu0 0.0
    %3888 = vmatprep.subr.mxu0 0.0
    %3889 = vmatpush1.msra.mxu0 0.0
    %3890 = vmatprep.subr.mxu0 0.0
    %3891 = vmatpush1.msra.mxu0 0.0
    %3892 = vmatprep.subr.mxu0 0.0
    %3893 = vmatpush1.msra.mxu0 0.0
    %3894 = vmatprep.subr.mxu0 0.0
    %3895 = vmatpush1.msra.mxu0 0.0
    %3896 = vmatprep.subr.mxu0 0.0
    %3897 = vmatpush1.msra.mxu0 0.0
    %3898 = vmatprep.mubr.f32.mxu0 %v3832
    %3899 = vmatmul.mubr.f32.gmra.mrb[0].mxu0 %v3823
    %v3900 = vpop.f32.mrb[0].mxu0
    %v3901 = vadd.f32 0.0, %v3900
    %v3902 = vpop.f32.mrb[0].mxu0
    %3903 = vdwg.mxu0
    %v3904 = vmul.f32 %v3812, 0.055555556
    %v3905 = vmul.f32 %v3901, 0.055555556
    %v3906 = vmul.f32 %v3904, %v3904
    %v3907 = vsub.f32 %v3905, %v3906
    %v3908 = vmax.f32 %v3907, 0.0
    %v3909 = vadd.f32 %v3908, 1e-05
    %v3910 = vrsqrt.pop %v3909
    %v3911 = vld [vmem:[#allocation16] sm:$0x1]
    %v3912 = vmul.f32 %v3911, %v3910
    %v3913 = vld [vmem:[#allocation18] sm:$0x1]
    %v3914 = vmul.f32 %v3912, %v3904
    %v3915 = vsub.f32 %v3913, %v3914
    %v3916 = vld [vmem:[#allocation15] sm:$0xff]
    %v3917 = vld [vmem:[#allocation15 + $0x8] sm:$0xff]
    %v3918 = vld [vmem:[#allocation15 + $0x10] sm:$0xff]
    %v3919 = vld [vmem:[#allocation15 + $0x18] sm:$0xff]
    %v3921 = vsel %vm3741, %v3912, 0
    %3923 = vmatprep.subr.mxu0 %v3917
    %3924 = vmatpush1.msra.mxu0 %v3916
    %3925 = vmatprep.subr.mxu0 %v3919
    %3926 = vmatpush1.msra.mxu0 %v3918
    %3927 = vmatprep.subr.mxu0 0.0
    %3928 = vmatpush1.msra.mxu0 0.0
    %3929 = vmatprep.subr.mxu0 0.0
    %3930 = vmatpush1.msra.mxu0 0.0
    %3931 = vmatprep.subr.mxu0 0.0
    %3932 = vmatpush1.msra.mxu0 0.0
    %3933 = vmatprep.subr.mxu0 0.0
    %3934 = vmatpush1.msra.mxu0 0.0
    %3935 = vmatprep.subr.mxu0 0.0
    %3936 = vmatpush1.msra.mxu0 0.0
    %3937 = vmatprep.subr.mxu0 0.0
    %3938 = vmatpush1.msra.mxu0 0.0
    %3939 = vmatprep.subr.mxu0 0.0
    %3940 = vmatpush1.msra.mxu0 0.0
    %3941 = vmatprep.subr.mxu0 0.0
    %3942 = vmatpush1.msra.mxu0 0.0
    %3943 = vmatprep.subr.mxu0 0.0
    %3944 = vmatpush1.msra.mxu0 0.0
    %3945 = vmatprep.subr.mxu0 0.0
    %3946 = vmatpush1.msra.mxu0 0.0
    %3947 = vmatprep.subr.mxu0 0.0
    %3948 = vmatpush1.msra.mxu0 0.0
    %3949 = vmatprep.subr.mxu0 0.0
    %3950 = vmatpush1.msra.mxu0 0.0
    %3951 = vmatprep.subr.mxu0 0.0
    %3952 = vmatpush1.msra.mxu0 0.0
    %3953 = vmatprep.subr.mxu0 0.0
    %3954 = vmatpush1.msra.mxu0 0.0
    %3955 = vmatprep.subr.mxu0 0.0
    %3956 = vmatpush1.msra.mxu0 0.0
    %3957 = vmatprep.subr.mxu0 0.0
    %3958 = vmatpush1.msra.mxu0 0.0
    %3959 = vmatprep.subr.mxu0 0.0
    %3960 = vmatpush1.msra.mxu0 0.0
    %3961 = vmatprep.subr.mxu0 0.0
    %3962 = vmatpush1.msra.mxu0 0.0
    %3963 = vmatprep.subr.mxu0 0.0
    %3964 = vmatpush1.msra.mxu0 0.0
    %3965 = vmatprep.subr.mxu0 0.0
    %3966 = vmatpush1.msra.mxu0 0.0
    %3967 = vmatprep.subr.mxu0 0.0
    %3968 = vmatpush1.msra.mxu0 0.0
    %3969 = vmatprep.subr.mxu0 0.0
    %3970 = vmatpush1.msra.mxu0 0.0
    %3971 = vmatprep.subr.mxu0 0.0
    %3972 = vmatpush1.msra.mxu0 0.0
    %3973 = vmatprep.subr.mxu0 0.0
    %3974 = vmatpush1.msra.mxu0 0.0
    %3975 = vmatprep.subr.mxu0 0.0
    %3976 = vmatpush1.msra.mxu0 0.0
    %3977 = vmatprep.subr.mxu0 0.0
    %3978 = vmatpush1.msra.mxu0 0.0
    %3979 = vmatprep.subr.mxu0 0.0
    %3980 = vmatpush1.msra.mxu0 0.0
    %3981 = vmatprep.subr.mxu0 0.0
    %3982 = vmatpush1.msra.mxu0 0.0
    %3983 = vmatprep.subr.mxu0 0.0
    %3984 = vmatpush1.msra.mxu0 0.0
    %3985 = vmatprep.subr.mxu0 0.0
    %3986 = vmatpush1.msra.mxu0 0.0
    %3987 = vmatprep.mubr.f32.mxu0 0.0
    %3988 = vmatmul.mubr.f32.gmra.mrb[0].mxu0 %v3921
    %v3989 = vpop.f32.mrb[0].mxu0
    %v3990 = vadd.f32 0.0, %v3989
    %v3991 = vpop.f32.mrb[0].mxu0
    %v3992 = vadd.f32 0.0, %v3991
    %3993 = vdwg.mxu0
    %v3995 = vsel %vm3741, %v3915, 0
    %3997 = vmatprep.subr.mxu0 %v3917
    %3998 = vmatpush1.msra.mxu0 %v3916
    %3999 = vmatprep.subr.mxu0 %v3919
    %4000 = vmatpush1.msra.mxu0 %v3918
    %4001 = vmatprep.subr.mxu0 0.0
    %4002 = vmatpush1.msra.mxu0 0.0
    %4003 = vmatprep.subr.mxu0 0.0
    %4004 = vmatpush1.msra.mxu0 0.0
    %4005 = vmatprep.subr.mxu0 0.0
    %4006 = vmatpush1.msra.mxu0 0.0
    %4007 = vmatprep.subr.mxu0 0.0
    %4008 = vmatpush1.msra.mxu0 0.0
    %4009 = vmatprep.subr.mxu0 0.0
    %4010 = vmatpush1.msra.mxu0 0.0
    %4011 = vmatprep.subr.mxu0 0.0
    %4012 = vmatpush1.msra.mxu0 0.0
    %4013 = vmatprep.subr.mxu0 0.0
    %4014 = vmatpush1.msra.mxu0 0.0
    %4015 = vmatprep.subr.mxu0 0.0
    %4016 = vmatpush1.msra.mxu0 0.0
    %4017 = vmatprep.subr.mxu0 0.0
    %4018 = vmatpush1.msra.mxu0 0.0
    %4019 = vmatprep.subr.mxu0 0.0
    %4020 = vmatpush1.msra.mxu0 0.0
    %4021 = vmatprep.subr.mxu0 0.0
    %4022 = vmatpush1.msra.mxu0 0.0
    %4023 = vmatprep.subr.mxu0 0.0
    %4024 = vmatpush1.msra.mxu0 0.0
    %4025 = vmatprep.subr.mxu0 0.0
    %4026 = vmatpush1.msra.mxu0 0.0
    %4027 = vmatprep.subr.mxu0 0.0
    %4028 = vmatpush1.msra.mxu0 0.0
    %4029 = vmatprep.subr.mxu0 0.0
    %4030 = vmatpush1.msra.mxu0 0.0
    %4031 = vmatprep.subr.mxu0 0.0
    %4032 = vmatpush1.msra.mxu0 0.0
    %4033 = vmatprep.subr.mxu0 0.0
    %4034 = vmatpush1.msra.mxu0 0.0
    %4035 = vmatprep.subr.mxu0 0.0
    %4036 = vmatpush1.msra.mxu0 0.0
    %4037 = vmatprep.subr.mxu0 0.0
    %4038 = vmatpush1.msra.mxu0 0.0
    %4039 = vmatprep.subr.mxu0 0.0
    %4040 = vmatpush1.msra.mxu0 0.0
    %4041 = vmatprep.subr.mxu0 0.0
    %4042 = vmatpush1.msra.mxu0 0.0
    %4043 = vmatprep.subr.mxu0 0.0
    %4044 = vmatpush1.msra.mxu0 0.0
    %4045 = vmatprep.subr.mxu0 0.0
    %4046 = vmatpush1.msra.mxu0 0.0
    %4047 = vmatprep.subr.mxu0 0.0
    %4048 = vmatpush1.msra.mxu0 0.0
    %4049 = vmatprep.subr.mxu0 0.0
    %4050 = vmatpush1.msra.mxu0 0.0
    %4051 = vmatprep.subr.mxu0 0.0
    %4052 = vmatpush1.msra.mxu0 0.0
    %4053 = vmatprep.subr.mxu0 0.0
    %4054 = vmatpush1.msra.mxu0 0.0
    %4055 = vmatprep.subr.mxu0 0.0
    %4056 = vmatpush1.msra.mxu0 0.0
    %4057 = vmatprep.subr.mxu0 0.0
    %4058 = vmatpush1.msra.mxu0 0.0
    %4059 = vmatprep.subr.mxu0 0.0
    %4060 = vmatpush1.msra.mxu0 0.0
    %4061 = vmatprep.mubr.f32.mxu0 0.0
    %4062 = vmatmul.mubr.f32.gmra.mrb[0].mxu0 %v3995
    %v4063 = vpop.f32.mrb[0].mxu0
    %v4064 = vadd.f32 0.0, %v4063
    %v4065 = vpop.f32.mrb[0].mxu0
    %v4066 = vadd.f32 0.0, %v4065
    %4067 = vdwg.mxu0
    %v4068 = vlaneseq
    %v4069 = vshrl.u32 %v4068, 7
    %v4070 = vsub.s32 0, %v4069
    %v4071 = vrot.slane %v3990, %v4070
    %v4072 = vlaneseq
    %v4073 = vshrl.u32 %v4072, 7
    %v4074 = vsub.s32 0, %v4073
    %v4075 = vrot.slane %v3992, %v4074
    %v4076 = vmul.f32 %v3706, %v4071
    %v4077 = vmul.f32 %v3707, %v4075
    %v4078 = vlaneseq
    %v4079 = vshrl.u32 %v4078, 7
    %v4080 = vsub.s32 0, %v4079
    %v4081 = vrot.slane %v4064, %v4080
    %v4082 = vlaneseq
    %v4083 = vshrl.u32 %v4082, 7
    %v4084 = vsub.s32 0, %v4083
    %v4085 = vrot.slane %v4066, %v4084
    %v4086 = vadd.f32 %v4076, %v4081
    %v4087 = vadd.f32 %v4077, %v4085
    %v4088 = vld [vmem:[%s33] sm:$0xff]
    %v4089 = vld [vmem:[%s33 + $0x8] sm:$0xff]
    %v4090 = vld [vmem:[%s33 + $0x10] sm:$0xff]
    %v4091 = vld [vmem:[%s33 + $0x18] sm:$0xff]
    %v4092 = vld [vmem:[%s33 + $0x20] sm:$0xff]
    %v4093 = vld [vmem:[%s33 + $0x28] sm:$0xff]
    %v4094 = vld [vmem:[%s33 + $0x30] sm:$0xff]
    %v4095 = vld [vmem:[%s33 + $0x38] sm:$0xff]
    %v4096 = vld [vmem:[%s33 + $0x40] sm:$0xff]
    %v4097 = vld [vmem:[%s33 + $0x48] sm:$0xff]
    %v4098 = vld [vmem:[%s33 + $0x50] sm:$0xff]
    %v4099 = vld [vmem:[%s33 + $0x58] sm:$0xff]
    %v4100 = vld [vmem:[%s33 + $0x60] sm:$0xff]
    %v4101 = vld [vmem:[%s33 + $0x68] sm:$0xff]
    %v4102 = vld [vmem:[%s33 + $0x70] sm:$0xff]
    %v4103 = vld [vmem:[%s33 + $0x78] sm:$0xff]
    %v4104 = vld [vmem:[%s33 + $0x80] sm:$0xff]
    %v4105 = vld [vmem:[%s33 + $0x88] sm:$0xff]
    %v4106 = vld [vmem:[#allocation19] sm:$0x1]
    %v4108 = vlaneseq
    %v4109 = vshrl.u32 %v4108, 7
    %v4110 = vsub.s32 0, %v4109
    %v4111 = vrot.slane %v4106, %v4110
    %v4114 = vsel %vm3741, %v4087, 0
    %4116 = vmatprep.subr.mxu0 0.0
    %4117 = vmatpush1.msra.mxu0 %v4088
    %4118 = vmatprep.subr.mxu0 0.0
    %4119 = vmatpush1.msra.mxu0 %v4089
    %4120 = vmatprep.subr.mxu0 0.0
    %4121 = vmatpush1.msra.mxu0 %v4090
    %4122 = vmatprep.subr.mxu0 0.0
    %4123 = vmatpush1.msra.mxu0 %v4091
    %4124 = vmatprep.subr.mxu0 0.0
    %4125 = vmatpush1.msra.mxu0 %v4092
    %4126 = vmatprep.subr.mxu0 0.0
    %4127 = vmatpush1.msra.mxu0 %v4093
    %4128 = vmatprep.subr.mxu0 0.0
    %4129 = vmatpush1.msra.mxu0 %v4094
    %4130 = vmatprep.subr.mxu0 0.0
    %4131 = vmatpush1.msra.mxu0 %v4095
    %4132 = vmatprep.subr.mxu0 0.0
    %4133 = vmatpush1.msra.mxu0 %v4096
    %4134 = vmatprep.subr.mxu0 0.0
    %4135 = vmatpush1.msra.mxu0 %v4097
    %4136 = vmatprep.subr.mxu0 0.0
    %4137 = vmatpush1.msra.mxu0 %v4098
    %4138 = vmatprep.subr.mxu0 0.0
    %4139 = vmatpush1.msra.mxu0 %v4099
    %4140 = vmatprep.subr.mxu0 0.0
    %4141 = vmatpush1.msra.mxu0 %v4100
    %4142 = vmatprep.subr.mxu0 0.0
    %4143 = vmatpush1.msra.mxu0 %v4101
    %4144 = vmatprep.subr.mxu0 0.0
    %4145 = vmatpush1.msra.mxu0 %v4102
    %4146 = vmatprep.subr.mxu0 0.0
    %4147 = vmatpush1.msra.mxu0 %v4103
    %4148 = vmatprep.subr.mxu0 0.0
    %4149 = vmatpush1.msra.mxu0 %v4104
    %4150 = vmatprep.subr.mxu0 0.0
    %4151 = vmatpush1.msra.mxu0 %v4105
    %4152 = vmatprep.subr.mxu0 0.0
    %4153 = vmatpush1.msra.mxu0 0.0
    %4154 = vmatprep.subr.mxu0 0.0
    %4155 = vmatpush1.msra.mxu0 0.0
    %4156 = vmatprep.subr.mxu0 0.0
    %4157 = vmatpush1.msra.mxu0 0.0
    %4158 = vmatprep.subr.mxu0 0.0
    %4159 = vmatpush1.msra.mxu0 0.0
    %4160 = vmatprep.subr.mxu0 0.0
    %4161 = vmatpush1.msra.mxu0 0.0
    %4162 = vmatprep.subr.mxu0 0.0
    %4163 = vmatpush1.msra.mxu0 0.0
    %4164 = vmatprep.subr.mxu0 0.0
    %4165 = vmatpush1.msra.mxu0 0.0
    %4166 = vmatprep.subr.mxu0 0.0
    %4167 = vmatpush1.msra.mxu0 0.0
    %4168 = vmatprep.subr.mxu0 0.0
    %4169 = vmatpush1.msra.mxu0 0.0
    %4170 = vmatprep.subr.mxu0 0.0
    %4171 = vmatpush1.msra.mxu0 0.0
    %4172 = vmatprep.subr.mxu0 0.0
    %4173 = vmatpush1.msra.mxu0 0.0
    %4174 = vmatprep.subr.mxu0 0.0
    %4175 = vmatpush1.msra.mxu0 0.0
    %4176 = vmatprep.subr.mxu0 0.0
    %4177 = vmatpush1.msra.mxu0 0.0
    %4178 = vmatprep.subr.mxu0 0.0
    %4179 = vmatpush1.msra.mxu0 0.0
    %4180 = vmatprep.mubr.f32.mxu0 %v4114
    %4181 = vmatmul.mubr.f32.gmra.mrb[0].mxu0 %v4086
    %v4182 = vpop.f32.mrb[0].mxu0
    %v4183 = vadd.f32 %v4111, %v4182
    %v4184 = vpop.f32.mrb[0].mxu0
    %4185 = vdwg.mxu0
    %v4186 = vld [vmem:[#allocation21] sm:$0xff]
    %v4187 = vld [vmem:[#allocation21 + $0x8] sm:$0xff]
    %v4188 = vld [vmem:[#allocation21 + $0x10] sm:$0xff]
    %v4189 = vld [vmem:[#allocation21 + $0x18] sm:$0xff]
    %v4190 = vld [vmem:[#allocation21 + $0x20] sm:$0x3]
    %v4191 = vld [vmem:[#allocation21 + $0x28] sm:$0x3]
    %v4192 = vld [vmem:[#allocation22] sm:$0x3]
    %v4194 = vlaneseq
    %v4195 = vshrl.u32 %v4194, 7
    %v4196 = vsub.s32 0, %v4195
    %v4197 = vrot.slane %v4192, %v4196
    %v4198 = vlaneseq
    %v4199 = vshrl.u32 %v4198, 7
    %v4200 = vsub.s32 1, %v4199
    %v4201 = vrot.slane %v4192, %v4200
    %vm4204 = vcmask 146432
    %v4206 = vsel %vm4204, %v4183, 0
    %v4209 = vsel %vm1608, %v4190, 0
    %v4212 = vsel %vm1608, %v4191, 0
    %4214 = vmatprep.subr.mxu0 %v4187
    %4215 = vmatpush1.msra.mxu0 %v4186
    %4216 = vmatprep.subr.mxu0 %v4189
    %4217 = vmatpush1.msra.mxu0 %v4188
    %4218 = vmatprep.subr.mxu0 %v4212
    %4219 = vmatpush1.msra.mxu0 %v4209
    %4220 = vmatprep.subr.mxu0 0.0
    %4221 = vmatpush1.msra.mxu0 0.0
    %4222 = vmatprep.subr.mxu0 0.0
    %4223 = vmatpush1.msra.mxu0 0.0
    %4224 = vmatprep.subr.mxu0 0.0
    %4225 = vmatpush1.msra.mxu0 0.0
    %4226 = vmatprep.subr.mxu0 0.0
    %4227 = vmatpush1.msra.mxu0 0.0
    %4228 = vmatprep.subr.mxu0 0.0
    %4229 = vmatpush1.msra.mxu0 0.0
    %4230 = vmatprep.subr.mxu0 0.0
    %4231 = vmatpush1.msra.mxu0 0.0
    %4232 = vmatprep.subr.mxu0 0.0
    %4233 = vmatpush1.msra.mxu0 0.0
    %4234 = vmatprep.subr.mxu0 0.0
    %4235 = vmatpush1.msra.mxu0 0.0
    %4236 = vmatprep.subr.mxu0 0.0
    %4237 = vmatpush1.msra.mxu0 0.0
    %4238 = vmatprep.subr.mxu0 0.0
    %4239 = vmatpush1.msra.mxu0 0.0
    %4240 = vmatprep.subr.mxu0 0.0
    %4241 = vmatpush1.msra.mxu0 0.0
    %4242 = vmatprep.subr.mxu0 0.0
    %4243 = vmatpush1.msra.mxu0 0.0
    %4244 = vmatprep.subr.mxu0 0.0
    %4245 = vmatpush1.msra.mxu0 0.0
    %4246 = vmatprep.subr.mxu0 0.0
    %4247 = vmatpush1.msra.mxu0 0.0
    %4248 = vmatprep.subr.mxu0 0.0
    %4249 = vmatpush1.msra.mxu0 0.0
    %4250 = vmatprep.subr.mxu0 0.0
    %4251 = vmatpush1.msra.mxu0 0.0
    %4252 = vmatprep.subr.mxu0 0.0
    %4253 = vmatpush1.msra.mxu0 0.0
    %4254 = vmatprep.subr.mxu0 0.0
    %4255 = vmatpush1.msra.mxu0 0.0
    %4256 = vmatprep.subr.mxu0 0.0
    %4257 = vmatpush1.msra.mxu0 0.0
    %4258 = vmatprep.subr.mxu0 0.0
    %4259 = vmatpush1.msra.mxu0 0.0
    %4260 = vmatprep.subr.mxu0 0.0
    %4261 = vmatpush1.msra.mxu0 0.0
    %4262 = vmatprep.subr.mxu0 0.0
    %4263 = vmatpush1.msra.mxu0 0.0
    %4264 = vmatprep.subr.mxu0 0.0
    %4265 = vmatpush1.msra.mxu0 0.0
    %4266 = vmatprep.subr.mxu0 0.0
    %4267 = vmatpush1.msra.mxu0 0.0
    %4268 = vmatprep.subr.mxu0 0.0
    %4269 = vmatpush1.msra.mxu0 0.0
    %4270 = vmatprep.subr.mxu0 0.0
    %4271 = vmatpush1.msra.mxu0 0.0
    %4272 = vmatprep.subr.mxu0 0.0
    %4273 = vmatpush1.msra.mxu0 0.0
    %4274 = vmatprep.subr.mxu0 0.0
    %4275 = vmatpush1.msra.mxu0 0.0
    %4276 = vmatprep.subr.mxu0 0.0
    %4277 = vmatpush1.msra.mxu0 0.0
    %4278 = vmatprep.mubr.f32.mxu0 0.0
    %4279 = vmatmul.mubr.f32.gmra.mrb[0].mxu0 %v4206
    %v4280 = vpop.f32.mrb[0].mxu0
    %v4281 = vadd.f32 %v4197, %v4280
    %v4282 = vpop.f32.mrb[0].mxu0
    %v4283 = vadd.f32 %v4201, %v4282
    %4284 = vdwg.mxu0
    %vm4285 = vcmp.ge.f32.partialorder %v4281, 0.0
    %vm4286 = vcmp.ge.f32.partialorder %v4283, 0.0
    %v4287 = vmul.f32 %v4281, 0.1
    %v4288 = vmul.f32 %v4283, 0.1
    %v4289 = vsel %vm4285, %v4281, %v4287
    %v4290 = vsel %vm4286, %v4283, %v4288
    %v4291 = vsel %vm1608, %v4289, 0.0
    %v4292 = vrot.slane %v4291, 4
    %v4293 = vadd.f32 %v4291, %v4292
    %v4294 = vrot.slane %v4293, 2
    %v4295 = vadd.f32 %v4293, %v4294
    %v4296 = vrot.slane %v4295, 1
    %v4297 = vadd.f32 %v4295, %v4296
    %v4298 = vsel %vm3715, %v4290, 0.0
    %v4299 = vrot.slane %v4298, 4
    %v4300 = vadd.f32 %v4298, %v4299
    %v4301 = vrot.slane %v4300, 2
    %v4302 = vadd.f32 %v4300, %v4301
    %v4303 = vrot.slane %v4302, 1
    %v4304 = vadd.f32 %v4302, %v4303
    %v4305 = vld [vmem:[%s41] sm:$0xff]
    %v4306 = vld [vmem:[%s41 + $0x8] sm:$0xff]
    %v4307 = vld [vmem:[%s41 + $0x10] sm:$0xff]
    %v4308 = vld [vmem:[%s41 + $0x18] sm:$0xff]
    %v4309 = vld [vmem:[%s41 + $0x20] sm:$0xff]
    %v4310 = vld [vmem:[%s41 + $0x28] sm:$0xff]
    %v4311 = vld [vmem:[%s41 + $0x30] sm:$0xff]
    %v4312 = vld [vmem:[%s41 + $0x38] sm:$0xff]
    %v4313 = vld [vmem:[%s41 + $0x40] sm:$0xff]
    %v4314 = vld [vmem:[%s41 + $0x48] sm:$0xff]
    %v4315 = vld [vmem:[%s41 + $0x50] sm:$0xff]
    %v4316 = vld [vmem:[%s41 + $0x58] sm:$0xff]
    %v4317 = vld [vmem:[%s41 + $0x60] sm:$0xff]
    %v4318 = vld [vmem:[%s41 + $0x68] sm:$0xff]
    %v4319 = vld [vmem:[%s41 + $0x70] sm:$0xff]
    %v4320 = vld [vmem:[%s41 + $0x78] sm:$0xff]
    %v4321 = vld [vmem:[%s41 + $0x80] sm:$0xff]
    %v4322 = vld [vmem:[%s41 + $0x88] sm:$0xff]
    %v4324 = vsel %vm3741, %v4304, 0
    %4326 = vmatprep.subr.mxu0 0.0
    %4327 = vmatpush1.msra.mxu0 %v4305
    %4328 = vmatprep.subr.mxu0 0.0
    %4329 = vmatpush1.msra.mxu0 %v4306
    %4330 = vmatprep.subr.mxu0 0.0
    %4331 = vmatpush1.msra.mxu0 %v4307
    %4332 = vmatprep.subr.mxu0 0.0
    %4333 = vmatpush1.msra.mxu0 %v4308
    %4334 = vmatprep.subr.mxu0 0.0
    %4335 = vmatpush1.msra.mxu0 %v4309
    %4336 = vmatprep.subr.mxu0 0.0
    %4337 = vmatpush1.msra.mxu0 %v4310
    %4338 = vmatprep.subr.mxu0 0.0
    %4339 = vmatpush1.msra.mxu0 %v4311
    %4340 = vmatprep.subr.mxu0 0.0
    %4341 = vmatpush1.msra.mxu0 %v4312
    %4342 = vmatprep.subr.mxu0 0.0
    %4343 = vmatpush1.msra.mxu0 %v4313
    %4344 = vmatprep.subr.mxu0 0.0
    %4345 = vmatpush1.msra.mxu0 %v4314
    %4346 = vmatprep.subr.mxu0 0.0
    %4347 = vmatpush1.msra.mxu0 %v4315
    %4348 = vmatprep.subr.mxu0 0.0
    %4349 = vmatpush1.msra.mxu0 %v4316
    %4350 = vmatprep.subr.mxu0 0.0
    %4351 = vmatpush1.msra.mxu0 %v4317
    %4352 = vmatprep.subr.mxu0 0.0
    %4353 = vmatpush1.msra.mxu0 %v4318
    %4354 = vmatprep.subr.mxu0 0.0
    %4355 = vmatpush1.msra.mxu0 %v4319
    %4356 = vmatprep.subr.mxu0 0.0
    %4357 = vmatpush1.msra.mxu0 %v4320
    %4358 = vmatprep.subr.mxu0 0.0
    %4359 = vmatpush1.msra.mxu0 %v4321
    %4360 = vmatprep.subr.mxu0 0.0
    %4361 = vmatpush1.msra.mxu0 %v4322
    %4362 = vmatprep.subr.mxu0 0.0
    %4363 = vmatpush1.msra.mxu0 0.0
    %4364 = vmatprep.subr.mxu0 0.0
    %4365 = vmatpush1.msra.mxu0 0.0
    %4366 = vmatprep.subr.mxu0 0.0
    %4367 = vmatpush1.msra.mxu0 0.0
    %4368 = vmatprep.subr.mxu0 0.0
    %4369 = vmatpush1.msra.mxu0 0.0
    %4370 = vmatprep.subr.mxu0 0.0
    %4371 = vmatpush1.msra.mxu0 0.0
    %4372 = vmatprep.subr.mxu0 0.0
    %4373 = vmatpush1.msra.mxu0 0.0
    %4374 = vmatprep.subr.mxu0 0.0
    %4375 = vmatpush1.msra.mxu0 0.0
    %4376 = vmatprep.subr.mxu0 0.0
    %4377 = vmatpush1.msra.mxu0 0.0
    %4378 = vmatprep.subr.mxu0 0.0
    %4379 = vmatpush1.msra.mxu0 0.0
    %4380 = vmatprep.subr.mxu0 0.0
    %4381 = vmatpush1.msra.mxu0 0.0
    %4382 = vmatprep.subr.mxu0 0.0
    %4383 = vmatpush1.msra.mxu0 0.0
    %4384 = vmatprep.subr.mxu0 0.0
    %4385 = vmatpush1.msra.mxu0 0.0
    %4386 = vmatprep.subr.mxu0 0.0
    %4387 = vmatpush1.msra.mxu0 0.0
    %4388 = vmatprep.subr.mxu0 0.0
    %4389 = vmatpush1.msra.mxu0 0.0
    %4390 = vmatprep.mubr.f32.mxu0 %v4324
    %4391 = vmatmul.mubr.f32.gmra.mrb[0].mxu0 %v4297
    %v4392 = vpop.f32.mrb[0].mxu0
    %v4393 = vadd.f32 0.0, %v4392
    %v4394 = vpop.f32.mrb[0].mxu0
    %4395 = vdwg.mxu0
    %v4396 = vmul.f32 %v4289, %v4289
    %v4397 = vmul.f32 %v4290, %v4290
    %v4398 = vsel %vm1608, %v4396, 0.0
    %v4399 = vrot.slane %v4398, 4
    %v4400 = vadd.f32 %v4398, %v4399
    %v4401 = vrot.slane %v4400, 2
    %v4402 = vadd.f32 %v4400, %v4401
    %v4403 = vrot.slane %v4402, 1
    %v4404 = vadd.f32 %v4402, %v4403
    %v4405 = vsel %vm3715, %v4397, 0.0
    %v4406 = vrot.slane %v4405, 4
    %v4407 = vadd.f32 %v4405, %v4406
    %v4408 = vrot.slane %v4407, 2
    %v4409 = vadd.f32 %v4407, %v4408
    %v4410 = vrot.slane %v4409, 1
    %v4411 = vadd.f32 %v4409, %v4410
    %v4413 = vsel %vm3741, %v4411, 0
    %4415 = vmatprep.subr.mxu0 0.0
    %4416 = vmatpush1.msra.mxu0 %v4305
    %4417 = vmatprep.subr.mxu0 0.0
    %4418 = vmatpush1.msra.mxu0 %v4306
    %4419 = vmatprep.subr.mxu0 0.0
    %4420 = vmatpush1.msra.mxu0 %v4307
    %4421 = vmatprep.subr.mxu0 0.0
    %4422 = vmatpush1.msra.mxu0 %v4308
    %4423 = vmatprep.subr.mxu0 0.0
    %4424 = vmatpush1.msra.mxu0 %v4309
    %4425 = vmatprep.subr.mxu0 0.0
    %4426 = vmatpush1.msra.mxu0 %v4310
    %4427 = vmatprep.subr.mxu0 0.0
    %4428 = vmatpush1.msra.mxu0 %v4311
    %4429 = vmatprep.subr.mxu0 0.0
    %4430 = vmatpush1.msra.mxu0 %v4312
    %4431 = vmatprep.subr.mxu0 0.0
    %4432 = vmatpush1.msra.mxu0 %v4313
    %4433 = vmatprep.subr.mxu0 0.0
    %4434 = vmatpush1.msra.mxu0 %v4314
    %4435 = vmatprep.subr.mxu0 0.0
    %4436 = vmatpush1.msra.mxu0 %v4315
    %4437 = vmatprep.subr.mxu0 0.0
    %4438 = vmatpush1.msra.mxu0 %v4316
    %4439 = vmatprep.subr.mxu0 0.0
    %4440 = vmatpush1.msra.mxu0 %v4317
    %4441 = vmatprep.subr.mxu0 0.0
    %4442 = vmatpush1.msra.mxu0 %v4318
    %4443 = vmatprep.subr.mxu0 0.0
    %4444 = vmatpush1.msra.mxu0 %v4319
    %4445 = vmatprep.subr.mxu0 0.0
    %4446 = vmatpush1.msra.mxu0 %v4320
    %4447 = vmatprep.subr.mxu0 0.0
    %4448 = vmatpush1.msra.mxu0 %v4321
    %4449 = vmatprep.subr.mxu0 0.0
    %4450 = vmatpush1.msra.mxu0 %v4322
    %4451 = vmatprep.subr.mxu0 0.0
    %4452 = vmatpush1.msra.mxu0 0.0
    %4453 = vmatprep.subr.mxu0 0.0
    %4454 = vmatpush1.msra.mxu0 0.0
    %4455 = vmatprep.subr.mxu0 0.0
    %4456 = vmatpush1.msra.mxu0 0.0
    %4457 = vmatprep.subr.mxu0 0.0
    %4458 = vmatpush1.msra.mxu0 0.0
    %4459 = vmatprep.subr.mxu0 0.0
    %4460 = vmatpush1.msra.mxu0 0.0
    %4461 = vmatprep.subr.mxu0 0.0
    %4462 = vmatpush1.msra.mxu0 0.0
    %4463 = vmatprep.subr.mxu0 0.0
    %4464 = vmatpush1.msra.mxu0 0.0
    %4465 = vmatprep.subr.mxu0 0.0
    %4466 = vmatpush1.msra.mxu0 0.0
    %4467 = vmatprep.subr.mxu0 0.0
    %4468 = vmatpush1.msra.mxu0 0.0
    %4469 = vmatprep.subr.mxu0 0.0
    %4470 = vmatpush1.msra.mxu0 0.0
    %4471 = vmatprep.subr.mxu0 0.0
    %4472 = vmatpush1.msra.mxu0 0.0
    %4473 = vmatprep.subr.mxu0 0.0
    %4474 = vmatpush1.msra.mxu0 0.0
    %4475 = vmatprep.subr.mxu0 0.0
    %4476 = vmatpush1.msra.mxu0 0.0
    %4477 = vmatprep.subr.mxu0 0.0
    %4478 = vmatpush1.msra.mxu0 0.0
    %4479 = vmatprep.mubr.f32.mxu0 %v4413
    %4480 = vmatmul.mubr.f32.gmra.mrb[0].mxu0 %v4404
    %v4481 = vpop.f32.mrb[0].mxu0
    %v4482 = vadd.f32 0.0, %v4481
    %v4483 = vpop.f32.mrb[0].mxu0
    %4484 = vdwg.mxu0
    %v4485 = vmul.f32 %v4393, 0.055555556
    %v4486 = vmul.f32 %v4482, 0.055555556
    %v4487 = vmul.f32 %v4485, %v4485
    %v4488 = vsub.f32 %v4486, %v4487
    %v4489 = vmax.f32 %v4488, 0.0
    %v4490 = vadd.f32 %v4489, 1e-05
    %v4491 = vrsqrt.pop %v4490
    %v4492 = vld [vmem:[#allocation25] sm:$0x1]
    %v4493 = vmul.f32 %v4492, %v4491
    %v4494 = vld [vmem:[#allocation27] sm:$0x1]
    %v4495 = vmul.f32 %v4493, %v4485
    %v4496 = vsub.f32 %v4494, %v4495
    %v4497 = vld [vmem:[#allocation24] sm:$0xff]
    %v4498 = vld [vmem:[#allocation24 + $0x8] sm:$0xff]
    %v4499 = vld [vmem:[#allocation24 + $0x10] sm:$0xff]
    %v4500 = vld [vmem:[#allocation24 + $0x18] sm:$0xff]
    %v4502 = vsel %vm3741, %v4493, 0
    %4504 = vmatprep.subr.mxu0 %v4498
    %4505 = vmatpush1.msra.mxu0 %v4497
    %4506 = vmatprep.subr.mxu0 %v4500
    %4507 = vmatpush1.msra.mxu0 %v4499
    %4508 = vmatprep.subr.mxu0 0.0
    %4509 = vmatpush1.msra.mxu0 0.0
    %4510 = vmatprep.subr.mxu0 0.0
    %4511 = vmatpush1.msra.mxu0 0.0
    %4512 = vmatprep.subr.mxu0 0.0
    %4513 = vmatpush1.msra.mxu0 0.0
    %4514 = vmatprep.subr.mxu0 0.0
    %4515 = vmatpush1.msra.mxu0 0.0
    %4516 = vmatprep.subr.mxu0 0.0
    %4517 = vmatpush1.msra.mxu0 0.0
    %4518 = vmatprep.subr.mxu0 0.0
    %4519 = vmatpush1.msra.mxu0 0.0
    %4520 = vmatprep.subr.mxu0 0.0
    %4521 = vmatpush1.msra.mxu0 0.0
    %4522 = vmatprep.subr.mxu0 0.0
    %4523 = vmatpush1.msra.mxu0 0.0
    %4524 = vmatprep.subr.mxu0 0.0
    %4525 = vmatpush1.msra.mxu0 0.0
    %4526 = vmatprep.subr.mxu0 0.0
    %4527 = vmatpush1.msra.mxu0 0.0
    %4528 = vmatprep.subr.mxu0 0.0
    %4529 = vmatpush1.msra.mxu0 0.0
    %4530 = vmatprep.subr.mxu0 0.0
    %4531 = vmatpush1.msra.mxu0 0.0
    %4532 = vmatprep.subr.mxu0 0.0
    %4533 = vmatpush1.msra.mxu0 0.0
    %4534 = vmatprep.subr.mxu0 0.0
    %4535 = vmatpush1.msra.mxu0 0.0
    %4536 = vmatprep.subr.mxu0 0.0
    %4537 = vmatpush1.msra.mxu0 0.0
    %4538 = vmatprep.subr.mxu0 0.0
    %4539 = vmatpush1.msra.mxu0 0.0
    %4540 = vmatprep.subr.mxu0 0.0
    %4541 = vmatpush1.msra.mxu0 0.0
    %4542 = vmatprep.subr.mxu0 0.0
    %4543 = vmatpush1.msra.mxu0 0.0
    %4544 = vmatprep.subr.mxu0 0.0
    %4545 = vmatpush1.msra.mxu0 0.0
    %4546 = vmatprep.subr.mxu0 0.0
    %4547 = vmatpush1.msra.mxu0 0.0
    %4548 = vmatprep.subr.mxu0 0.0
    %4549 = vmatpush1.msra.mxu0 0.0
    %4550 = vmatprep.subr.mxu0 0.0
    %4551 = vmatpush1.msra.mxu0 0.0
    %4552 = vmatprep.subr.mxu0 0.0
    %4553 = vmatpush1.msra.mxu0 0.0
    %4554 = vmatprep.subr.mxu0 0.0
    %4555 = vmatpush1.msra.mxu0 0.0
    %4556 = vmatprep.subr.mxu0 0.0
    %4557 = vmatpush1.msra.mxu0 0.0
    %4558 = vmatprep.subr.mxu0 0.0
    %4559 = vmatpush1.msra.mxu0 0.0
    %4560 = vmatprep.subr.mxu0 0.0
    %4561 = vmatpush1.msra.mxu0 0.0
    %4562 = vmatprep.subr.mxu0 0.0
    %4563 = vmatpush1.msra.mxu0 0.0
    %4564 = vmatprep.subr.mxu0 0.0
    %4565 = vmatpush1.msra.mxu0 0.0
    %4566 = vmatprep.subr.mxu0 0.0
    %4567 = vmatpush1.msra.mxu0 0.0
    %4568 = vmatprep.mubr.f32.mxu0 0.0
    %4569 = vmatmul.mubr.f32.gmra.mrb[0].mxu0 %v4502
    %v4570 = vpop.f32.mrb[0].mxu0
    %v4571 = vadd.f32 0.0, %v4570
    %v4572 = vpop.f32.mrb[0].mxu0
    %v4573 = vadd.f32 0.0, %v4572
    %4574 = vdwg.mxu0
    %v4576 = vsel %vm3741, %v4496, 0
    %4578 = vmatprep.subr.mxu0 %v4498
    %4579 = vmatpush1.msra.mxu0 %v4497
    %4580 = vmatprep.subr.mxu0 %v4500
    %4581 = vmatpush1.msra.mxu0 %v4499
    %4582 = vmatprep.subr.mxu0 0.0
    %4583 = vmatpush1.msra.mxu0 0.0
    %4584 = vmatprep.subr.mxu0 0.0
    %4585 = vmatpush1.msra.mxu0 0.0
    %4586 = vmatprep.subr.mxu0 0.0
    %4587 = vmatpush1.msra.mxu0 0.0
    %4588 = vmatprep.subr.mxu0 0.0
    %4589 = vmatpush1.msra.mxu0 0.0
    %4590 = vmatprep.subr.mxu0 0.0
    %4591 = vmatpush1.msra.mxu0 0.0
    %4592 = vmatprep.subr.mxu0 0.0
    %4593 = vmatpush1.msra.mxu0 0.0
    %4594 = vmatprep.subr.mxu0 0.0
    %4595 = vmatpush1.msra.mxu0 0.0
    %4596 = vmatprep.subr.mxu0 0.0
    %4597 = vmatpush1.msra.mxu0 0.0
    %4598 = vmatprep.subr.mxu0 0.0
    %4599 = vmatpush1.msra.mxu0 0.0
    %4600 = vmatprep.subr.mxu0 0.0
    %4601 = vmatpush1.msra.mxu0 0.0
    %4602 = vmatprep.subr.mxu0 0.0
    %4603 = vmatpush1.msra.mxu0 0.0
    %4604 = vmatprep.subr.mxu0 0.0
    %4605 = vmatpush1.msra.mxu0 0.0
    %4606 = vmatprep.subr.mxu0 0.0
    %4607 = vmatpush1.msra.mxu0 0.0
    %4608 = vmatprep.subr.mxu0 0.0
    %4609 = vmatpush1.msra.mxu0 0.0
    %4610 = vmatprep.subr.mxu0 0.0
    %4611 = vmatpush1.msra.mxu0 0.0
    %4612 = vmatprep.subr.mxu0 0.0
    %4613 = vmatpush1.msra.mxu0 0.0
    %4614 = vmatprep.subr.mxu0 0.0
    %4615 = vmatpush1.msra.mxu0 0.0
    %4616 = vmatprep.subr.mxu0 0.0
    %4617 = vmatpush1.msra.mxu0 0.0
    %4618 = vmatprep.subr.mxu0 0.0
    %4619 = vmatpush1.msra.mxu0 0.0
    %4620 = vmatprep.subr.mxu0 0.0
    %4621 = vmatpush1.msra.mxu0 0.0
    %4622 = vmatprep.subr.mxu0 0.0
    %4623 = vmatpush1.msra.mxu0 0.0
    %4624 = vmatprep.subr.mxu0 0.0
    %4625 = vmatpush1.msra.mxu0 0.0
    %4626 = vmatprep.subr.mxu0 0.0
    %4627 = vmatpush1.msra.mxu0 0.0
    %4628 = vmatprep.subr.mxu0 0.0
    %4629 = vmatpush1.msra.mxu0 0.0
    %4630 = vmatprep.subr.mxu0 0.0
    %4631 = vmatpush1.msra.mxu0 0.0
    %4632 = vmatprep.subr.mxu0 0.0
    %4633 = vmatpush1.msra.mxu0 0.0
    %4634 = vmatprep.subr.mxu0 0.0
    %4635 = vmatpush1.msra.mxu0 0.0
    %4636 = vmatprep.subr.mxu0 0.0
    %4637 = vmatpush1.msra.mxu0 0.0
    %4638 = vmatprep.subr.mxu0 0.0
    %4639 = vmatpush1.msra.mxu0 0.0
    %4640 = vmatprep.subr.mxu0 0.0
    %4641 = vmatpush1.msra.mxu0 0.0
    %4642 = vmatprep.mubr.f32.mxu0 0.0
    %4643 = vmatmul.mubr.f32.gmra.mrb[0].mxu0 %v4576
    %v4644 = vpop.f32.mrb[0].mxu0
    %v4645 = vadd.f32 0.0, %v4644
    %v4646 = vpop.f32.mrb[0].mxu0
    %v4647 = vadd.f32 0.0, %v4646
    %4648 = vdwg.mxu0
    %v4649 = vlaneseq
    %v4650 = vshrl.u32 %v4649, 7
    %v4651 = vsub.s32 0, %v4650
    %v4652 = vrot.slane %v4571, %v4651
    %v4653 = vlaneseq
    %v4654 = vshrl.u32 %v4653, 7
    %v4655 = vsub.s32 0, %v4654
    %v4656 = vrot.slane %v4573, %v4655
    %v4657 = vmul.f32 %v4289, %v4652
    %v4658 = vmul.f32 %v4290, %v4656
    %v4659 = vlaneseq
    %v4660 = vshrl.u32 %v4659, 7
    %v4661 = vsub.s32 0, %v4660
    %v4662 = vrot.slane %v4645, %v4661
    %v4663 = vlaneseq
    %v4664 = vshrl.u32 %v4663, 7
    %v4665 = vsub.s32 0, %v4664
    %v4666 = vrot.slane %v4647, %v4665
    %v4667 = vadd.f32 %v4657, %v4662
    %v4668 = vadd.f32 %v4658, %v4666
    %v4669 = vld [vmem:[#allocation28] sm:$0xff]
    %v4670 = vld [vmem:[#allocation28 + $0x8] sm:$0xff]
    %v4671 = vld [vmem:[#allocation28 + $0x10] sm:$0xff]
    %v4672 = vld [vmem:[#allocation28 + $0x18] sm:$0xff]
    %v4673 = vld [vmem:[#allocation28 + $0x20] sm:$0xff]
    %v4674 = vld [vmem:[#allocation28 + $0x28] sm:$0xff]
    %v4675 = vld [vmem:[#allocation28 + $0x30] sm:$0xff]
    %v4676 = vld [vmem:[#allocation28 + $0x38] sm:$0xff]
    %v4677 = vld [vmem:[#allocation28 + $0x40] sm:$0xff]
    %v4678 = vld [vmem:[#allocation28 + $0x48] sm:$0xff]
    %v4679 = vld [vmem:[#allocation28 + $0x50] sm:$0xff]
    %v4680 = vld [vmem:[#allocation28 + $0x58] sm:$0xff]
    %v4681 = vld [vmem:[#allocation28 + $0x60] sm:$0xff]
    %v4682 = vld [vmem:[#allocation28 + $0x68] sm:$0xff]
    %v4683 = vld [vmem:[#allocation28 + $0x70] sm:$0xff]
    %v4684 = vld [vmem:[#allocation28 + $0x78] sm:$0xff]
    %v4685 = vld [vmem:[#allocation28 + $0x80] sm:$0xff]
    %v4686 = vld [vmem:[#allocation28 + $0x88] sm:$0xff]
    %v4687 = vld [vmem:[#allocation28 + $0x90] sm:$0xff]
    %v4688 = vld [vmem:[#allocation28 + $0x98] sm:$0xff]
    %v4689 = vld [vmem:[#allocation28 + $0xa0] sm:$0xff]
    %v4690 = vld [vmem:[#allocation28 + $0xa8] sm:$0xff]
    %v4691 = vld [vmem:[#allocation28 + $0xb0] sm:$0xff]
    %v4692 = vld [vmem:[#allocation28 + $0xb8] sm:$0xff]
    %v4693 = vld [vmem:[#allocation28 + $0xc0] sm:$0xff]
    %v4694 = vld [vmem:[#allocation28 + $0xc8] sm:$0xff]
    %v4695 = vld [vmem:[#allocation28 + $0xd0] sm:$0xff]
    %v4696 = vld [vmem:[#allocation28 + $0xd8] sm:$0xff]
    %v4697 = vld [vmem:[#allocation28 + $0xe0] sm:$0xff]
    %v4698 = vld [vmem:[#allocation28 + $0xe8] sm:$0xff]
    %v4699 = vld [vmem:[#allocation28 + $0xf0] sm:$0xff]
    %v4700 = vld [vmem:[#allocation28 + $0xf8] sm:$0xff]
    %v4701 = vld [vmem:[#allocation28 + $0x100] sm:$0xff]
    %v4702 = vld [vmem:[#allocation28 + $0x108] sm:$0xff]
    %v4703 = vld [vmem:[#allocation28 + $0x110] sm:$0xff]
    %v4704 = vld [vmem:[#allocation28 + $0x118] sm:$0xff]
    %v4705 = vld [vmem:[#allocation28 + $0x120] sm:$0xff]
    %v4706 = vld [vmem:[#allocation28 + $0x128] sm:$0xff]
    %v4707 = vld [vmem:[#allocation28 + $0x130] sm:$0xff]
    %v4708 = vld [vmem:[#allocation28 + $0x138] sm:$0xff]
    %v4709 = vld [vmem:[#allocation28 + $0x140] sm:$0xff]
    %v4710 = vld [vmem:[#allocation28 + $0x148] sm:$0xff]
    %v4711 = vld [vmem:[#allocation28 + $0x150] sm:$0xff]
    %v4712 = vld [vmem:[#allocation28 + $0x158] sm:$0xff]
    %v4713 = vld [vmem:[#allocation28 + $0x160] sm:$0xff]
    %v4714 = vld [vmem:[#allocation28 + $0x168] sm:$0xff]
    %v4715 = vld [vmem:[#allocation28 + $0x170] sm:$0xff]
    %v4716 = vld [vmem:[#allocation28 + $0x178] sm:$0xff]
    %v4717 = vld [vmem:[#allocation28 + $0x180] sm:$0xff]
    %v4718 = vld [vmem:[#allocation28 + $0x188] sm:$0xff]
    %v4719 = vld [vmem:[#allocation28 + $0x190] sm:$0xff]
    %v4720 = vld [vmem:[#allocation28 + $0x198] sm:$0xff]
    %v4721 = vld [vmem:[#allocation28 + $0x1a0] sm:$0xff]
    %v4722 = vld [vmem:[#allocation28 + $0x1a8] sm:$0xff]
    %v4723 = vld [vmem:[#allocation28 + $0x1b0] sm:$0xff]
    %v4724 = vld [vmem:[#allocation28 + $0x1b8] sm:$0xff]
    %v4725 = vld [vmem:[#allocation28 + $0x1c0] sm:$0xff]
    %v4726 = vld [vmem:[#allocation28 + $0x1c8] sm:$0xff]
    %v4727 = vld [vmem:[#allocation28 + $0x1d0] sm:$0xff]
    %v4728 = vld [vmem:[#allocation28 + $0x1d8] sm:$0xff]
    %v4729 = vld [vmem:[#allocation28 + $0x1e0] sm:$0xff]
    %v4730 = vld [vmem:[#allocation28 + $0x1e8] sm:$0xff]
    %v4731 = vld [vmem:[#allocation28 + $0x1f0] sm:$0xff]
    %v4732 = vld [vmem:[#allocation28 + $0x1f8] sm:$0xff]
    %v4733 = vld [vmem:[#allocation28 + $0x200] sm:$0xff]
    %v4734 = vld [vmem:[#allocation28 + $0x208] sm:$0xff]
    %v4735 = vld [vmem:[#allocation28 + $0x210] sm:$0xff]
    %v4736 = vld [vmem:[#allocation28 + $0x218] sm:$0xff]
    %v4737 = vld [vmem:[#allocation28 + $0x220] sm:$0xff]
    %v4738 = vld [vmem:[#allocation28 + $0x228] sm:$0xff]
    %v4739 = vld [vmem:[#allocation28 + $0x230] sm:$0xff]
    %v4740 = vld [vmem:[#allocation28 + $0x238] sm:$0xff]
    %v4741 = vld [vmem:[#allocation30] sm:$0xf]
    %v4743 = vlaneseq
    %v4744 = vshrl.u32 %v4743, 7
    %v4745 = vsub.s32 0, %v4744
    %v4746 = vrot.slane %v4741, %v4745
    %v4747 = vlaneseq
    %v4748 = vshrl.u32 %v4747, 7
    %v4749 = vsub.s32 1, %v4748
    %v4750 = vrot.slane %v4741, %v4749
    %v4751 = vlaneseq
    %v4752 = vshrl.u32 %v4751, 7
    %v4753 = vsub.s32 2, %v4752
    %v4754 = vrot.slane %v4741, %v4753
    %v4755 = vlaneseq
    %v4756 = vshrl.u32 %v4755, 7
    %v4757 = vsub.s32 3, %v4756
    %v4758 = vrot.slane %v4741, %v4757
    %v4764 = vsel %vm3741, %v4668, 0
    %4766 = vmatprep.subr.mxu0 %v4670
    %4767 = vmatpush1.msra.mxu0 %v4669
    %4768 = vmatprep.subr.mxu0 %v4674
    %4769 = vmatpush1.msra.mxu0 %v4673
    %4770 = vmatprep.subr.mxu0 %v4678
    %4771 = vmatpush1.msra.mxu0 %v4677
    %4772 = vmatprep.subr.mxu0 %v4682
    %4773 = vmatpush1.msra.mxu0 %v4681
    %4774 = vmatprep.subr.mxu0 %v4686
    %4775 = vmatpush1.msra.mxu0 %v4685
    %4776 = vmatprep.subr.mxu0 %v4690
    %4777 = vmatpush1.msra.mxu0 %v4689
    %4778 = vmatprep.subr.mxu0 %v4694
    %4779 = vmatpush1.msra.mxu0 %v4693
    %4780 = vmatprep.subr.mxu0 %v4698
    %4781 = vmatpush1.msra.mxu0 %v4697
    %4782 = vmatprep.subr.mxu0 %v4702
    %4783 = vmatpush1.msra.mxu0 %v4701
    %4784 = vmatprep.subr.mxu0 %v4706
    %4785 = vmatpush1.msra.mxu0 %v4705
    %4786 = vmatprep.subr.mxu0 %v4710
    %4787 = vmatpush1.msra.mxu0 %v4709
    %4788 = vmatprep.subr.mxu0 %v4714
    %4789 = vmatpush1.msra.mxu0 %v4713
    %4790 = vmatprep.subr.mxu0 %v4718
    %4791 = vmatpush1.msra.mxu0 %v4717
    %4792 = vmatprep.subr.mxu0 %v4722
    %4793 = vmatpush1.msra.mxu0 %v4721
    %4794 = vmatprep.subr.mxu0 %v4726
    %4795 = vmatpush1.msra.mxu0 %v4725
    %4796 = vmatprep.subr.mxu0 %v4730
    %4797 = vmatpush1.msra.mxu0 %v4729
    %4798 = vmatprep.subr.mxu0 %v4734
    %4799 = vmatpush1.msra.mxu0 %v4733
    %4800 = vmatprep.subr.mxu0 %v4738
    %4801 = vmatpush1.msra.mxu0 %v4737
    %4802 = vmatprep.subr.mxu0 0.0
    %4803 = vmatpush1.msra.mxu0 0.0
    %4804 = vmatprep.subr.mxu0 0.0
    %4805 = vmatpush1.msra.mxu0 0.0
    %4806 = vmatprep.subr.mxu0 0.0
    %4807 = vmatpush1.msra.mxu0 0.0
    %4808 = vmatprep.subr.mxu0 0.0
    %4809 = vmatpush1.msra.mxu0 0.0
    %4810 = vmatprep.subr.mxu0 0.0
    %4811 = vmatpush1.msra.mxu0 0.0
    %4812 = vmatprep.subr.mxu0 0.0
    %4813 = vmatpush1.msra.mxu0 0.0
    %4814 = vmatprep.subr.mxu0 0.0
    %4815 = vmatpush1.msra.mxu0 0.0
    %4816 = vmatprep.subr.mxu0 0.0
    %4817 = vmatpush1.msra.mxu0 0.0
    %4818 = vmatprep.subr.mxu0 0.0
    %4819 = vmatpush1.msra.mxu0 0.0
    %4820 = vmatprep.subr.mxu0 0.0
    %4821 = vmatpush1.msra.mxu0 0.0
    %4822 = vmatprep.subr.mxu0 0.0
    %4823 = vmatpush1.msra.mxu0 0.0
    %4824 = vmatprep.subr.mxu0 0.0
    %4825 = vmatpush1.msra.mxu0 0.0
    %4826 = vmatprep.subr.mxu0 0.0
    %4827 = vmatpush1.msra.mxu0 0.0
    %4828 = vmatprep.subr.mxu0 0.0
    %4829 = vmatpush1.msra.mxu0 0.0
    %4830 = vmatprep.mubr.f32.mxu0 %v4764
    %4831 = vmatmul.mubr.f32.gmra.mrb[0].mxu0 %v4667
    %v4832 = vpop.f32.mrb[0].mxu0
    %v4833 = vadd.f32 %v4746, %v4832
    %v4834 = vpop.f32.mrb[0].mxu0
    %v4835 = vadd.f32 %v4750, %v4834
    %4836 = vdwg.mxu0
    %4837 = vmatprep.subr.mxu0 %v4672
    %4838 = vmatpush1.msra.mxu0 %v4671
    %4839 = vmatprep.subr.mxu0 %v4676
    %4840 = vmatpush1.msra.mxu0 %v4675
    %4841 = vmatprep.subr.mxu0 %v4680
    %4842 = vmatpush1.msra.mxu0 %v4679
    %4843 = vmatprep.subr.mxu0 %v4684
    %4844 = vmatpush1.msra.mxu0 %v4683
    %4845 = vmatprep.subr.mxu0 %v4688
    %4846 = vmatpush1.msra.mxu0 %v4687
    %4847 = vmatprep.subr.mxu0 %v4692
    %4848 = vmatpush1.msra.mxu0 %v4691
    %4849 = vmatprep.subr.mxu0 %v4696
    %4850 = vmatpush1.msra.mxu0 %v4695
    %4851 = vmatprep.subr.mxu0 %v4700
    %4852 = vmatpush1.msra.mxu0 %v4699
    %4853 = vmatprep.subr.mxu0 %v4704
    %4854 = vmatpush1.msra.mxu0 %v4703
    %4855 = vmatprep.subr.mxu0 %v4708
    %4856 = vmatpush1.msra.mxu0 %v4707
    %4857 = vmatprep.subr.mxu0 %v4712
    %4858 = vmatpush1.msra.mxu0 %v4711
    %4859 = vmatprep.subr.mxu0 %v4716
    %4860 = vmatpush1.msra.mxu0 %v4715
    %4861 = vmatprep.subr.mxu0 %v4720
    %4862 = vmatpush1.msra.mxu0 %v4719
    %4863 = vmatprep.subr.mxu0 %v4724
    %4864 = vmatpush1.msra.mxu0 %v4723
    %4865 = vmatprep.subr.mxu0 %v4728
    %4866 = vmatpush1.msra.mxu0 %v4727
    %4867 = vmatprep.subr.mxu0 %v4732
    %4868 = vmatpush1.msra.mxu0 %v4731
    %4869 = vmatprep.subr.mxu0 %v4736
    %4870 = vmatpush1.msra.mxu0 %v4735
    %4871 = vmatprep.subr.mxu0 %v4740
    %4872 = vmatpush1.msra.mxu0 %v4739
    %4873 = vmatprep.subr.mxu0 0.0
    %4874 = vmatpush1.msra.mxu0 0.0
    %4875 = vmatprep.subr.mxu0 0.0
    %4876 = vmatpush1.msra.mxu0 0.0
    %4877 = vmatprep.subr.mxu0 0.0
    %4878 = vmatpush1.msra.mxu0 0.0
    %4879 = vmatprep.subr.mxu0 0.0
    %4880 = vmatpush1.msra.mxu0 0.0
    %4881 = vmatprep.subr.mxu0 0.0
    %4882 = vmatpush1.msra.mxu0 0.0
    %4883 = vmatprep.subr.mxu0 0.0
    %4884 = vmatpush1.msra.mxu0 0.0
    %4885 = vmatprep.subr.mxu0 0.0
    %4886 = vmatpush1.msra.mxu0 0.0
    %4887 = vmatprep.subr.mxu0 0.0
    %4888 = vmatpush1.msra.mxu0 0.0
    %4889 = vmatprep.subr.mxu0 0.0
    %4890 = vmatpush1.msra.mxu0 0.0
    %4891 = vmatprep.subr.mxu0 0.0
    %4892 = vmatpush1.msra.mxu0 0.0
    %4893 = vmatprep.subr.mxu0 0.0
    %4894 = vmatpush1.msra.mxu0 0.0
    %4895 = vmatprep.subr.mxu0 0.0
    %4896 = vmatpush1.msra.mxu0 0.0
    %4897 = vmatprep.subr.mxu0 0.0
    %4898 = vmatpush1.msra.mxu0 0.0
    %4899 = vmatprep.subr.mxu0 0.0
    %4900 = vmatpush1.msra.mxu0 0.0
    %4901 = vmatprep.mubr.f32.mxu0 %v4764
    %4902 = vmatmul.mubr.f32.gmra.mrb[0].mxu0 %v4667
    %v4903 = vpop.f32.mrb[0].mxu0
    %v4904 = vadd.f32 %v4754, %v4903
    %v4905 = vpop.f32.mrb[0].mxu0
    %v4906 = vadd.f32 %v4758, %v4905
    %4907 = vdwg.mxu0
    %v4908 = vld [vmem:[#allocation31] sm:$0xff]
    %v4909 = vld [vmem:[#allocation31 + $0x8] sm:$0xff]
    %v4910 = vld [vmem:[#allocation31 + $0x10] sm:$0xff]
    %v4911 = vld [vmem:[#allocation31 + $0x18] sm:$0xff]
    %v4912 = vld [vmem:[#allocation31 + $0x20] sm:$0xff]
    %v4913 = vld [vmem:[#allocation31 + $0x28] sm:$0xff]
    %v4914 = vld [vmem:[#allocation31 + $0x30] sm:$0xff]
    %v4915 = vld [vmem:[#allocation31 + $0x38] sm:$0xff]
    %v4916 = vld [vmem:[#allocation31 + $0x40] sm:$0xff]
    %v4917 = vld [vmem:[#allocation31 + $0x48] sm:$0xff]
    %v4918 = vld [vmem:[#allocation31 + $0x50] sm:$0xff]
    %v4919 = vld [vmem:[#allocation31 + $0x58] sm:$0xff]
    %v4920 = vld [vmem:[#allocation31 + $0x60] sm:$0xff]
    %v4921 = vld [vmem:[#allocation31 + $0x68] sm:$0xff]
    %v4922 = vld [vmem:[#allocation31 + $0x70] sm:$0xff]
    %v4923 = vld [vmem:[#allocation31 + $0x78] sm:$0xff]
    %v4924 = vld [vmem:[#allocation31 + $0x80] sm:$0xff]
    %v4925 = vld [vmem:[#allocation31 + $0x88] sm:$0xff]
    %v4926 = vld [vmem:[#allocation31 + $0x90] sm:$0xff]
    %v4927 = vld [vmem:[#allocation31 + $0x98] sm:$0xff]
    %v4928 = vld [vmem:[#allocation31 + $0xa0] sm:$0xff]
    %v4929 = vld [vmem:[#allocation31 + $0xa8] sm:$0xff]
    %v4930 = vld [vmem:[#allocation31 + $0xb0] sm:$0xff]
    %v4931 = vld [vmem:[#allocation31 + $0xb8] sm:$0xff]
    %v4932 = vld [vmem:[#allocation31 + $0xc0] sm:$0xff]
    %v4933 = vld [vmem:[#allocation31 + $0xc8] sm:$0xff]
    %v4934 = vld [vmem:[#allocation31 + $0xd0] sm:$0xff]
    %v4935 = vld [vmem:[#allocation31 + $0xd8] sm:$0xff]
    %v4936 = vld [vmem:[#allocation31 + $0xe0] sm:$0xff]
    %v4937 = vld [vmem:[#allocation31 + $0xe8] sm:$0xff]
    %v4938 = vld [vmem:[#allocation31 + $0xf0] sm:$0xff]
    %v4939 = vld [vmem:[#allocation31 + $0xf8] sm:$0xff]
    %v4940 = vld [vmem:[#allocation31 + $0x100] sm:$0xff]
    %v4941 = vld [vmem:[#allocation31 + $0x108] sm:$0xff]
    %v4942 = vld [vmem:[#allocation31 + $0x110] sm:$0xff]
    %v4943 = vld [vmem:[#allocation31 + $0x118] sm:$0xff]
    %v4944 = vld [vmem:[#allocation31 + $0x120] sm:$0xff]
    %v4945 = vld [vmem:[#allocation31 + $0x128] sm:$0xff]
    %v4946 = vld [vmem:[#allocation31 + $0x130] sm:$0xff]
    %v4947 = vld [vmem:[#allocation31 + $0x138] sm:$0xff]
    %v4948 = vld [vmem:[#allocation31 + $0x140] sm:$0xff]
    %v4949 = vld [vmem:[#allocation31 + $0x148] sm:$0xff]
    %v4950 = vld [vmem:[#allocation31 + $0x150] sm:$0xff]
    %v4951 = vld [vmem:[#allocation31 + $0x158] sm:$0xff]
    %v4952 = vld [vmem:[#allocation31 + $0x160] sm:$0xff]
    %v4953 = vld [vmem:[#allocation31 + $0x168] sm:$0xff]
    %v4954 = vld [vmem:[#allocation31 + $0x170] sm:$0xff]
    %v4955 = vld [vmem:[#allocation31 + $0x178] sm:$0xff]
    %v4956 = vld [vmem:[#allocation31 + $0x180] sm:$0xff]
    %v4957 = vld [vmem:[#allocation31 + $0x188] sm:$0xff]
    %v4958 = vld [vmem:[#allocation31 + $0x190] sm:$0xff]
    %v4959 = vld [vmem:[#allocation31 + $0x198] sm:$0xff]
    %v4960 = vld [vmem:[#allocation31 + $0x1a0] sm:$0xff]
    %v4961 = vld [vmem:[#allocation31 + $0x1a8] sm:$0xff]
    %v4962 = vld [vmem:[#allocation31 + $0x1b0] sm:$0xff]
    %v4963 = vld [vmem:[#allocation31 + $0x1b8] sm:$0xff]
    %v4964 = vld [vmem:[#allocation31 + $0x1c0] sm:$0xff]
    %v4965 = vld [vmem:[#allocation31 + $0x1c8] sm:$0xff]
    %v4966 = vld [vmem:[#allocation31 + $0x1d0] sm:$0xff]
    %v4967 = vld [vmem:[#allocation31 + $0x1d8] sm:$0xff]
    %v4968 = vld [vmem:[#allocation31 + $0x1e0] sm:$0xff]
    %v4969 = vld [vmem:[#allocation31 + $0x1e8] sm:$0xff]
    %v4970 = vld [vmem:[#allocation31 + $0x1f0] sm:$0xff]
    %v4971 = vld [vmem:[#allocation31 + $0x1f8] sm:$0xff]
    %v4972 = vld [vmem:[#allocation31 + $0x200] sm:$0xff]
    %v4973 = vld [vmem:[#allocation31 + $0x208] sm:$0xff]
    %v4974 = vld [vmem:[#allocation31 + $0x210] sm:$0xff]
    %v4975 = vld [vmem:[#allocation31 + $0x218] sm:$0xff]
    %v4976 = vld [vmem:[#allocation31 + $0x220] sm:$0xff]
    %v4977 = vld [vmem:[#allocation31 + $0x228] sm:$0xff]
    %v4978 = vld [vmem:[#allocation31 + $0x230] sm:$0xff]
    %v4979 = vld [vmem:[#allocation31 + $0x238] sm:$0xff]
    %v4980 = vld [vmem:[#allocation31 + $0x240] sm:$0xff]
    %v4981 = vld [vmem:[#allocation31 + $0x248] sm:$0xff]
    %v4982 = vld [vmem:[#allocation31 + $0x250] sm:$0xff]
    %v4983 = vld [vmem:[#allocation31 + $0x258] sm:$0xff]
    %v4984 = vld [vmem:[#allocation31 + $0x260] sm:$0xff]
    %v4985 = vld [vmem:[#allocation31 + $0x268] sm:$0xff]
    %v4986 = vld [vmem:[#allocation31 + $0x270] sm:$0xff]
    %v4987 = vld [vmem:[#allocation31 + $0x278] sm:$0xff]
    %v4988 = vld [vmem:[#allocation31 + $0x280] sm:$0xff]
    %v4989 = vld [vmem:[#allocation31 + $0x288] sm:$0xff]
    %v4990 = vld [vmem:[#allocation31 + $0x290] sm:$0xff]
    %v4991 = vld [vmem:[#allocation31 + $0x298] sm:$0xff]
    %v4992 = vld [vmem:[#allocation31 + $0x2a0] sm:$0xff]
    %v4993 = vld [vmem:[#allocation31 + $0x2a8] sm:$0xff]
    %v4994 = vld [vmem:[#allocation31 + $0x2b0] sm:$0xff]
    %v4995 = vld [vmem:[#allocation31 + $0x2b8] sm:$0xff]
    %v4996 = vld [vmem:[#allocation31 + $0x2c0] sm:$0xff]
    %v4997 = vld [vmem:[#allocation31 + $0x2c8] sm:$0xff]
    %v4998 = vld [vmem:[#allocation31 + $0x2d0] sm:$0xff]
    %v4999 = vld [vmem:[#allocation31 + $0x2d8] sm:$0xff]
    %v5000 = vld [vmem:[#allocation31 + $0x2e0] sm:$0xff]
    %v5001 = vld [vmem:[#allocation31 + $0x2e8] sm:$0xff]
    %v5002 = vld [vmem:[#allocation31 + $0x2f0] sm:$0xff]
    %v5003 = vld [vmem:[#allocation31 + $0x2f8] sm:$0xff]
    %v5004 = vld [vmem:[#allocation31 + $0x300] sm:$0xff]
    %v5005 = vld [vmem:[#allocation31 + $0x308] sm:$0xff]
    %v5006 = vld [vmem:[#allocation31 + $0x310] sm:$0xff]
    %v5007 = vld [vmem:[#allocation31 + $0x318] sm:$0xff]
    %v5008 = vld [vmem:[#allocation31 + $0x320] sm:$0xff]
    %v5009 = vld [vmem:[#allocation31 + $0x328] sm:$0xff]
    %v5010 = vld [vmem:[#allocation31 + $0x330] sm:$0xff]
    %v5011 = vld [vmem:[#allocation31 + $0x338] sm:$0xff]
    %v5012 = vld [vmem:[#allocation31 + $0x340] sm:$0xff]
    %v5013 = vld [vmem:[#allocation31 + $0x348] sm:$0xff]
    %v5014 = vld [vmem:[#allocation31 + $0x350] sm:$0xff]
    %v5015 = vld [vmem:[#allocation31 + $0x358] sm:$0xff]
    %v5016 = vld [vmem:[#allocation31 + $0x360] sm:$0xff]
    %v5017 = vld [vmem:[#allocation31 + $0x368] sm:$0xff]
    %v5018 = vld [vmem:[#allocation31 + $0x370] sm:$0xff]
    %v5019 = vld [vmem:[#allocation31 + $0x378] sm:$0xff]
    %v5020 = vld [vmem:[#allocation31 + $0x380] sm:$0xff]
    %v5021 = vld [vmem:[#allocation31 + $0x388] sm:$0xff]
    %v5022 = vld [vmem:[#allocation31 + $0x390] sm:$0xff]
    %v5023 = vld [vmem:[#allocation31 + $0x398] sm:$0xff]
    %v5024 = vld [vmem:[#allocation31 + $0x3a0] sm:$0xff]
    %v5025 = vld [vmem:[#allocation31 + $0x3a8] sm:$0xff]
    %v5026 = vld [vmem:[#allocation31 + $0x3b0] sm:$0xff]
    %v5027 = vld [vmem:[#allocation31 + $0x3b8] sm:$0xff]
    %v5028 = vld [vmem:[#allocation31 + $0x3c0] sm:$0xff]
    %v5029 = vld [vmem:[#allocation31 + $0x3c8] sm:$0xff]
    %v5030 = vld [vmem:[#allocation31 + $0x3d0] sm:$0xff]
    %v5031 = vld [vmem:[#allocation31 + $0x3d8] sm:$0xff]
    %v5032 = vld [vmem:[#allocation31 + $0x3e0] sm:$0xff]
    %v5033 = vld [vmem:[#allocation31 + $0x3e8] sm:$0xff]
    %v5034 = vld [vmem:[#allocation31 + $0x3f0] sm:$0xff]
    %v5035 = vld [vmem:[#allocation31 + $0x3f8] sm:$0xff]
    %v5036 = vld [vmem:[#allocation31 + $0x400] sm:$0xff]
    %v5037 = vld [vmem:[#allocation31 + $0x408] sm:$0xff]
    %v5038 = vld [vmem:[#allocation31 + $0x410] sm:$0xff]
    %v5039 = vld [vmem:[#allocation31 + $0x418] sm:$0xff]
    %v5040 = vld [vmem:[#allocation31 + $0x420] sm:$0xff]
    %v5041 = vld [vmem:[#allocation31 + $0x428] sm:$0xff]
    %v5042 = vld [vmem:[#allocation31 + $0x430] sm:$0xff]
    %v5043 = vld [vmem:[#allocation31 + $0x438] sm:$0xff]
    %v5044 = vld [vmem:[#allocation31 + $0x440] sm:$0xff]
    %v5045 = vld [vmem:[#allocation31 + $0x448] sm:$0xff]
    %v5046 = vld [vmem:[#allocation31 + $0x450] sm:$0xff]
    %v5047 = vld [vmem:[#allocation31 + $0x458] sm:$0xff]
    %v5048 = vld [vmem:[#allocation31 + $0x460] sm:$0xff]
    %v5049 = vld [vmem:[#allocation31 + $0x468] sm:$0xff]
    %v5050 = vld [vmem:[#allocation31 + $0x470] sm:$0xff]
    %v5051 = vld [vmem:[#allocation31 + $0x478] sm:$0xff]
    %v5052 = vld [vmem:[#allocation31 + $0x480] sm:$0xff]
    %v5053 = vld [vmem:[#allocation31 + $0x488] sm:$0xff]
    %v5054 = vld [vmem:[#allocation31 + $0x490] sm:$0xff]
    %v5055 = vld [vmem:[#allocation31 + $0x498] sm:$0xff]
    %v5056 = vld [vmem:[#allocation31 + $0x4a0] sm:$0xff]
    %v5057 = vld [vmem:[#allocation31 + $0x4a8] sm:$0xff]
    %v5058 = vld [vmem:[#allocation31 + $0x4b0] sm:$0xff]
    %v5059 = vld [vmem:[#allocation31 + $0x4b8] sm:$0xff]
    %v5060 = vld [vmem:[#allocation31 + $0x4c0] sm:$0xff]
    %v5061 = vld [vmem:[#allocation31 + $0x4c8] sm:$0xff]
    %v5062 = vld [vmem:[#allocation31 + $0x4d0] sm:$0xff]
    %v5063 = vld [vmem:[#allocation31 + $0x4d8] sm:$0xff]
    %v5064 = vld [vmem:[#allocation31 + $0x4e0] sm:$0xff]
    %v5065 = vld [vmem:[#allocation31 + $0x4e8] sm:$0xff]
    %v5066 = vld [vmem:[#allocation31 + $0x4f0] sm:$0xff]
    %v5067 = vld [vmem:[#allocation31 + $0x4f8] sm:$0xff]
    %v5068 = vld [vmem:[#allocation31 + $0x500] sm:$0xff]
    %v5069 = vld [vmem:[#allocation31 + $0x508] sm:$0xff]
    %v5070 = vld [vmem:[#allocation31 + $0x510] sm:$0xff]
    %v5071 = vld [vmem:[#allocation31 + $0x518] sm:$0xff]
    %v5072 = vld [vmem:[#allocation31 + $0x520] sm:$0xff]
    %v5073 = vld [vmem:[#allocation31 + $0x528] sm:$0xff]
    %v5074 = vld [vmem:[#allocation31 + $0x530] sm:$0xff]
    %v5075 = vld [vmem:[#allocation31 + $0x538] sm:$0xff]
    %v5076 = vld [vmem:[#allocation31 + $0x540] sm:$0xff]
    %v5077 = vld [vmem:[#allocation31 + $0x548] sm:$0xff]
    %v5078 = vld [vmem:[#allocation31 + $0x550] sm:$0xff]
    %v5079 = vld [vmem:[#allocation31 + $0x558] sm:$0xff]
    %v5080 = vld [vmem:[#allocation31 + $0x560] sm:$0xff]
    %v5081 = vld [vmem:[#allocation31 + $0x568] sm:$0xff]
    %v5082 = vld [vmem:[#allocation31 + $0x570] sm:$0xff]
    %v5083 = vld [vmem:[#allocation31 + $0x578] sm:$0xff]
    %v5084 = vld [vmem:[#allocation31 + $0x580] sm:$0xff]
    %v5085 = vld [vmem:[#allocation31 + $0x588] sm:$0xff]
    %v5086 = vld [vmem:[#allocation31 + $0x590] sm:$0xff]
    %v5087 = vld [vmem:[#allocation31 + $0x598] sm:$0xff]
    %v5088 = vld [vmem:[#allocation31 + $0x5a0] sm:$0xff]
    %v5089 = vld [vmem:[#allocation31 + $0x5a8] sm:$0xff]
    %v5090 = vld [vmem:[#allocation31 + $0x5b0] sm:$0xff]
    %v5091 = vld [vmem:[#allocation31 + $0x5b8] sm:$0xff]
    %v5092 = vld [vmem:[#allocation31 + $0x5c0] sm:$0xff]
    %v5093 = vld [vmem:[#allocation31 + $0x5c8] sm:$0xff]
    %v5094 = vld [vmem:[#allocation31 + $0x5d0] sm:$0xff]
    %v5095 = vld [vmem:[#allocation31 + $0x5d8] sm:$0xff]
    %v5096 = vld [vmem:[#allocation31 + $0x5e0] sm:$0xff]
    %v5097 = vld [vmem:[#allocation31 + $0x5e8] sm:$0xff]
    %v5098 = vld [vmem:[#allocation31 + $0x5f0] sm:$0xff]
    %v5099 = vld [vmem:[#allocation31 + $0x5f8] sm:$0xff]
    %v5100 = vld [vmem:[#allocation31 + $0x600] sm:$0xff]
    %v5101 = vld [vmem:[#allocation31 + $0x608] sm:$0xff]
    %v5102 = vld [vmem:[#allocation31 + $0x610] sm:$0xff]
    %v5103 = vld [vmem:[#allocation31 + $0x618] sm:$0xff]
    %v5104 = vld [vmem:[#allocation31 + $0x620] sm:$0xff]
    %v5105 = vld [vmem:[#allocation31 + $0x628] sm:$0xff]
    %v5106 = vld [vmem:[#allocation31 + $0x630] sm:$0xff]
    %v5107 = vld [vmem:[#allocation31 + $0x638] sm:$0xff]
    %v5108 = vld [vmem:[#allocation31 + $0x640] sm:$0xff]
    %v5109 = vld [vmem:[#allocation31 + $0x648] sm:$0xff]
    %v5110 = vld [vmem:[#allocation31 + $0x650] sm:$0xff]
    %v5111 = vld [vmem:[#allocation31 + $0x658] sm:$0xff]
    %v5112 = vld [vmem:[#allocation31 + $0x660] sm:$0xff]
    %v5113 = vld [vmem:[#allocation31 + $0x668] sm:$0xff]
    %v5114 = vld [vmem:[#allocation31 + $0x670] sm:$0xff]
    %v5115 = vld [vmem:[#allocation31 + $0x678] sm:$0xff]
    %v5116 = vld [vmem:[#allocation31 + $0x680] sm:$0xff]
    %v5117 = vld [vmem:[#allocation31 + $0x688] sm:$0xff]
    %v5118 = vld [vmem:[#allocation31 + $0x690] sm:$0xff]
    %v5119 = vld [vmem:[#allocation31 + $0x698] sm:$0xff]
    %v5120 = vld [vmem:[#allocation31 + $0x6a0] sm:$0xff]
    %v5121 = vld [vmem:[#allocation31 + $0x6a8] sm:$0xff]
    %v5122 = vld [vmem:[#allocation31 + $0x6b0] sm:$0xff]
    %v5123 = vld [vmem:[#allocation31 + $0x6b8] sm:$0xff]
    %v5124 = vld [vmem:[#allocation31 + $0x6c0] sm:$0xff]
    %v5125 = vld [vmem:[#allocation31 + $0x6c8] sm:$0xff]
    %v5126 = vld [vmem:[#allocation31 + $0x6d0] sm:$0xff]
    %v5127 = vld [vmem:[#allocation31 + $0x6d8] sm:$0xff]
    %v5128 = vld [vmem:[#allocation31 + $0x6e0] sm:$0xff]
    %v5129 = vld [vmem:[#allocation31 + $0x6e8] sm:$0xff]
    %v5130 = vld [vmem:[#allocation31 + $0x6f0] sm:$0xff]
    %v5131 = vld [vmem:[#allocation31 + $0x6f8] sm:$0xff]
    %v5132 = vld [vmem:[#allocation31 + $0x700] sm:$0xff]
    %v5133 = vld [vmem:[#allocation31 + $0x708] sm:$0xff]
    %v5134 = vld [vmem:[#allocation31 + $0x710] sm:$0xff]
    %v5135 = vld [vmem:[#allocation31 + $0x718] sm:$0xff]
    %v5136 = vld [vmem:[#allocation31 + $0x720] sm:$0xff]
    %v5137 = vld [vmem:[#allocation31 + $0x728] sm:$0xff]
    %v5138 = vld [vmem:[#allocation31 + $0x730] sm:$0xff]
    %v5139 = vld [vmem:[#allocation31 + $0x738] sm:$0xff]
    %v5140 = vld [vmem:[#allocation31 + $0x740] sm:$0xff]
    %v5141 = vld [vmem:[#allocation31 + $0x748] sm:$0xff]
    %v5142 = vld [vmem:[#allocation31 + $0x750] sm:$0xff]
    %v5143 = vld [vmem:[#allocation31 + $0x758] sm:$0xff]
    %v5144 = vld [vmem:[#allocation31 + $0x760] sm:$0xff]
    %v5145 = vld [vmem:[#allocation31 + $0x768] sm:$0xff]
    %v5146 = vld [vmem:[#allocation31 + $0x770] sm:$0xff]
    %v5147 = vld [vmem:[#allocation31 + $0x778] sm:$0xff]
    %v5148 = vld [vmem:[#allocation31 + $0x780] sm:$0xff]
    %v5149 = vld [vmem:[#allocation31 + $0x788] sm:$0xff]
    %v5150 = vld [vmem:[#allocation31 + $0x790] sm:$0xff]
    %v5151 = vld [vmem:[#allocation31 + $0x798] sm:$0xff]
    %v5152 = vld [vmem:[#allocation31 + $0x7a0] sm:$0xff]
    %v5153 = vld [vmem:[#allocation31 + $0x7a8] sm:$0xff]
    %v5154 = vld [vmem:[#allocation31 + $0x7b0] sm:$0xff]
    %v5155 = vld [vmem:[#allocation31 + $0x7b8] sm:$0xff]
    %v5156 = vld [vmem:[#allocation31 + $0x7c0] sm:$0xff]
    %v5157 = vld [vmem:[#allocation31 + $0x7c8] sm:$0xff]
    %v5158 = vld [vmem:[#allocation31 + $0x7d0] sm:$0xff]
    %v5159 = vld [vmem:[#allocation31 + $0x7d8] sm:$0xff]
    %v5160 = vld [vmem:[#allocation31 + $0x7e0] sm:$0xff]
    %v5161 = vld [vmem:[#allocation31 + $0x7e8] sm:$0xff]
    %v5162 = vld [vmem:[#allocation31 + $0x7f0] sm:$0xff]
    %v5163 = vld [vmem:[#allocation31 + $0x7f8] sm:$0xff]
    %v5164 = vld [vmem:[#allocation31 + $0x800] sm:$0xff]
    %v5165 = vld [vmem:[#allocation31 + $0x808] sm:$0xff]
    %v5166 = vld [vmem:[#allocation31 + $0x810] sm:$0xff]
    %v5167 = vld [vmem:[#allocation31 + $0x818] sm:$0xff]
    %v5168 = vld [vmem:[#allocation31 + $0x820] sm:$0xff]
    %v5169 = vld [vmem:[#allocation31 + $0x828] sm:$0xff]
    %v5170 = vld [vmem:[#allocation31 + $0x830] sm:$0xff]
    %v5171 = vld [vmem:[#allocation31 + $0x838] sm:$0xff]
    %v5172 = vld [vmem:[#allocation31 + $0x840] sm:$0xff]
    %v5173 = vld [vmem:[#allocation31 + $0x848] sm:$0xff]
    %v5174 = vld [vmem:[#allocation31 + $0x850] sm:$0xff]
    %v5175 = vld [vmem:[#allocation31 + $0x858] sm:$0xff]
    %v5176 = vld [vmem:[#allocation31 + $0x860] sm:$0xff]
    %v5177 = vld [vmem:[#allocation31 + $0x868] sm:$0xff]
    %v5178 = vld [vmem:[#allocation31 + $0x870] sm:$0xff]
    %v5179 = vld [vmem:[#allocation31 + $0x878] sm:$0xff]
    %v5180 = vld [vmem:[#allocation31 + $0x880] sm:$0xff]
    %v5181 = vld [vmem:[#allocation31 + $0x888] sm:$0xff]
    %v5182 = vld [vmem:[#allocation31 + $0x890] sm:$0xff]
    %v5183 = vld [vmem:[#allocation31 + $0x898] sm:$0xff]
    %v5184 = vld [vmem:[#allocation31 + $0x8a0] sm:$0xff]
    %v5185 = vld [vmem:[#allocation31 + $0x8a8] sm:$0xff]
    %v5186 = vld [vmem:[#allocation31 + $0x8b0] sm:$0xff]
    %v5187 = vld [vmem:[#allocation31 + $0x8b8] sm:$0xff]
    %v5188 = vld [vmem:[#allocation31 + $0x8c0] sm:$0xff]
    %v5189 = vld [vmem:[#allocation31 + $0x8c8] sm:$0xff]
    %v5190 = vld [vmem:[#allocation31 + $0x8d0] sm:$0xff]
    %v5191 = vld [vmem:[#allocation31 + $0x8d8] sm:$0xff]
    %v5192 = vld [vmem:[#allocation31 + $0x8e0] sm:$0xff]
    %v5193 = vld [vmem:[#allocation31 + $0x8e8] sm:$0xff]
    %v5194 = vld [vmem:[#allocation31 + $0x8f0] sm:$0xff]
    %v5195 = vld [vmem:[#allocation31 + $0x8f8] sm:$0xff]
    %v5196 = vld [vmem:[#allocation31 + $0x900] sm:$0xff]
    %v5197 = vld [vmem:[#allocation31 + $0x908] sm:$0xff]
    %v5198 = vld [vmem:[#allocation31 + $0x910] sm:$0xff]
    %v5199 = vld [vmem:[#allocation31 + $0x918] sm:$0xff]
    %v5200 = vld [vmem:[#allocation31 + $0x920] sm:$0xff]
    %v5201 = vld [vmem:[#allocation31 + $0x928] sm:$0xff]
    %v5202 = vld [vmem:[#allocation31 + $0x930] sm:$0xff]
    %v5203 = vld [vmem:[#allocation31 + $0x938] sm:$0xff]
    %v5204 = vld [vmem:[#allocation31 + $0x940] sm:$0xff]
    %v5205 = vld [vmem:[#allocation31 + $0x948] sm:$0xff]
    %v5206 = vld [vmem:[#allocation31 + $0x950] sm:$0xff]
    %v5207 = vld [vmem:[#allocation31 + $0x958] sm:$0xff]
    %v5208 = vld [vmem:[#allocation31 + $0x960] sm:$0xff]
    %v5209 = vld [vmem:[#allocation31 + $0x968] sm:$0xff]
    %v5210 = vld [vmem:[#allocation31 + $0x970] sm:$0xff]
    %v5211 = vld [vmem:[#allocation31 + $0x978] sm:$0xff]
    %v5212 = vld [vmem:[#allocation31 + $0x980] sm:$0xff]
    %v5213 = vld [vmem:[#allocation31 + $0x988] sm:$0xff]
    %v5214 = vld [vmem:[#allocation31 + $0x990] sm:$0xff]
    %v5215 = vld [vmem:[#allocation31 + $0x998] sm:$0xff]
    %v5216 = vld [vmem:[#allocation31 + $0x9a0] sm:$0xff]
    %v5217 = vld [vmem:[#allocation31 + $0x9a8] sm:$0xff]
    %v5218 = vld [vmem:[#allocation31 + $0x9b0] sm:$0xff]
    %v5219 = vld [vmem:[#allocation31 + $0x9b8] sm:$0xff]
    %v5220 = vld [vmem:[#allocation31 + $0x9c0] sm:$0xff]
    %v5221 = vld [vmem:[#allocation31 + $0x9c8] sm:$0xff]
    %v5222 = vld [vmem:[#allocation31 + $0x9d0] sm:$0xff]
    %v5223 = vld [vmem:[#allocation31 + $0x9d8] sm:$0xff]
    %v5224 = vld [vmem:[#allocation31 + $0x9e0] sm:$0xff]
    %v5225 = vld [vmem:[#allocation31 + $0x9e8] sm:$0xff]
    %v5226 = vld [vmem:[#allocation31 + $0x9f0] sm:$0xff]
    %v5227 = vld [vmem:[#allocation31 + $0x9f8] sm:$0xff]
    %v5228 = vld [vmem:[#allocation31 + $0xa00] sm:$0xff]
    %v5229 = vld [vmem:[#allocation31 + $0xa08] sm:$0xff]
    %v5230 = vld [vmem:[#allocation31 + $0xa10] sm:$0xff]
    %v5231 = vld [vmem:[#allocation31 + $0xa18] sm:$0xff]
    %v5232 = vld [vmem:[#allocation31 + $0xa20] sm:$0xff]
    %v5233 = vld [vmem:[#allocation31 + $0xa28] sm:$0xff]
    %v5234 = vld [vmem:[#allocation31 + $0xa30] sm:$0xff]
    %v5235 = vld [vmem:[#allocation31 + $0xa38] sm:$0xff]
    %v5236 = vld [vmem:[#allocation31 + $0xa40] sm:$0xff]
    %v5237 = vld [vmem:[#allocation31 + $0xa48] sm:$0xff]
    %v5238 = vld [vmem:[#allocation31 + $0xa50] sm:$0xff]
    %v5239 = vld [vmem:[#allocation31 + $0xa58] sm:$0xff]
    %v5240 = vld [vmem:[#allocation31 + $0xa60] sm:$0xff]
    %v5241 = vld [vmem:[#allocation31 + $0xa68] sm:$0xff]
    %v5242 = vld [vmem:[#allocation31 + $0xa70] sm:$0xff]
    %v5243 = vld [vmem:[#allocation31 + $0xa78] sm:$0xff]
    %v5244 = vld [vmem:[#allocation31 + $0xa80] sm:$0xff]
    %v5245 = vld [vmem:[#allocation31 + $0xa88] sm:$0xff]
    %v5246 = vld [vmem:[#allocation31 + $0xa90] sm:$0xff]
    %v5247 = vld [vmem:[#allocation31 + $0xa98] sm:$0xff]
    %v5248 = vld [vmem:[#allocation31 + $0xaa0] sm:$0xff]
    %v5249 = vld [vmem:[#allocation31 + $0xaa8] sm:$0xff]
    %v5250 = vld [vmem:[#allocation31 + $0xab0] sm:$0xff]
    %v5251 = vld [vmem:[#allocation31 + $0xab8] sm:$0xff]
    %v5252 = vld [vmem:[#allocation31 + $0xac0] sm:$0xff]
    %v5253 = vld [vmem:[#allocation31 + $0xac8] sm:$0xff]
    %v5254 = vld [vmem:[#allocation31 + $0xad0] sm:$0xff]
    %v5255 = vld [vmem:[#allocation31 + $0xad8] sm:$0xff]
    %v5256 = vld [vmem:[#allocation31 + $0xae0] sm:$0xff]
    %v5257 = vld [vmem:[#allocation31 + $0xae8] sm:$0xff]
    %v5258 = vld [vmem:[#allocation31 + $0xaf0] sm:$0xff]
    %v5259 = vld [vmem:[#allocation31 + $0xaf8] sm:$0xff]
    %v5260 = vld [vmem:[#allocation31 + $0xb00] sm:$0xff]
    %v5261 = vld [vmem:[#allocation31 + $0xb08] sm:$0xff]
    %v5262 = vld [vmem:[#allocation31 + $0xb10] sm:$0xff]
    %v5263 = vld [vmem:[#allocation31 + $0xb18] sm:$0xff]
    %v5264 = vld [vmem:[#allocation31 + $0xb20] sm:$0xff]
    %v5265 = vld [vmem:[#allocation31 + $0xb28] sm:$0xff]
    %v5266 = vld [vmem:[#allocation31 + $0xb30] sm:$0xff]
    %v5267 = vld [vmem:[#allocation31 + $0xb38] sm:$0xff]
    %v5268 = vld [vmem:[#allocation31 + $0xb40] sm:$0xff]
    %v5269 = vld [vmem:[#allocation31 + $0xb48] sm:$0xff]
    %v5270 = vld [vmem:[#allocation31 + $0xb50] sm:$0xff]
    %v5271 = vld [vmem:[#allocation31 + $0xb58] sm:$0xff]
    %v5272 = vld [vmem:[#allocation31 + $0xb60] sm:$0xff]
    %v5273 = vld [vmem:[#allocation31 + $0xb68] sm:$0xff]
    %v5274 = vld [vmem:[#allocation31 + $0xb70] sm:$0xff]
    %v5275 = vld [vmem:[#allocation31 + $0xb78] sm:$0xff]
    %v5276 = vld [vmem:[#allocation31 + $0xb80] sm:$0xff]
    %v5277 = vld [vmem:[#allocation31 + $0xb88] sm:$0xff]
    %v5278 = vld [vmem:[#allocation31 + $0xb90] sm:$0xff]
    %v5279 = vld [vmem:[#allocation31 + $0xb98] sm:$0xff]
    %v5280 = vld [vmem:[#allocation31 + $0xba0] sm:$0xff]
    %v5281 = vld [vmem:[#allocation31 + $0xba8] sm:$0xff]
    %v5282 = vld [vmem:[#allocation31 + $0xbb0] sm:$0xff]
    %v5283 = vld [vmem:[#allocation31 + $0xbb8] sm:$0xff]
    %v5284 = vld [vmem:[#allocation31 + $0xbc0] sm:$0xff]
    %v5285 = vld [vmem:[#allocation31 + $0xbc8] sm:$0xff]
    %v5286 = vld [vmem:[#allocation31 + $0xbd0] sm:$0xff]
    %v5287 = vld [vmem:[#allocation31 + $0xbd8] sm:$0xff]
    %v5288 = vld [vmem:[#allocation31 + $0xbe0] sm:$0xff]
    %v5289 = vld [vmem:[#allocation31 + $0xbe8] sm:$0xff]
    %v5290 = vld [vmem:[#allocation31 + $0xbf0] sm:$0xff]
    %v5291 = vld [vmem:[#allocation31 + $0xbf8] sm:$0xff]
    %v5292 = vld [vmem:[#allocation31 + $0xc00] sm:$0xff]
    %v5293 = vld [vmem:[#allocation31 + $0xc08] sm:$0xff]
    %v5294 = vld [vmem:[#allocation31 + $0xc10] sm:$0xff]
    %v5295 = vld [vmem:[#allocation31 + $0xc18] sm:$0xff]
    %v5296 = vld [vmem:[#allocation31 + $0xc20] sm:$0xff]
    %v5297 = vld [vmem:[#allocation31 + $0xc28] sm:$0xff]
    %v5298 = vld [vmem:[#allocation31 + $0xc30] sm:$0xff]
    %v5299 = vld [vmem:[#allocation31 + $0xc38] sm:$0xff]
    %v5300 = vld [vmem:[#allocation31 + $0xc40] sm:$0xff]
    %v5301 = vld [vmem:[#allocation31 + $0xc48] sm:$0xff]
    %v5302 = vld [vmem:[#allocation31 + $0xc50] sm:$0xff]
    %v5303 = vld [vmem:[#allocation31 + $0xc58] sm:$0xff]
    %v5304 = vld [vmem:[#allocation31 + $0xc60] sm:$0xff]
    %v5305 = vld [vmem:[#allocation31 + $0xc68] sm:$0xff]
    %v5306 = vld [vmem:[#allocation31 + $0xc70] sm:$0xff]
    %v5307 = vld [vmem:[#allocation31 + $0xc78] sm:$0xff]
    %v5308 = vld [vmem:[#allocation31 + $0xc80] sm:$0xff]
    %v5309 = vld [vmem:[#allocation31 + $0xc88] sm:$0xff]
    %v5310 = vld [vmem:[#allocation31 + $0xc90] sm:$0xff]
    %v5311 = vld [vmem:[#allocation31 + $0xc98] sm:$0xff]
    %v5312 = vld [vmem:[#allocation31 + $0xca0] sm:$0xff]
    %v5313 = vld [vmem:[#allocation31 + $0xca8] sm:$0xff]
    %v5314 = vld [vmem:[#allocation31 + $0xcb0] sm:$0xff]
    %v5315 = vld [vmem:[#allocation31 + $0xcb8] sm:$0xff]
    %v5316 = vld [vmem:[#allocation31 + $0xcc0] sm:$0xff]
    %v5317 = vld [vmem:[#allocation31 + $0xcc8] sm:$0xff]
    %v5318 = vld [vmem:[#allocation31 + $0xcd0] sm:$0xff]
    %v5319 = vld [vmem:[#allocation31 + $0xcd8] sm:$0xff]
    %v5320 = vld [vmem:[#allocation31 + $0xce0] sm:$0xff]
    %v5321 = vld [vmem:[#allocation31 + $0xce8] sm:$0xff]
    %v5322 = vld [vmem:[#allocation31 + $0xcf0] sm:$0xff]
    %v5323 = vld [vmem:[#allocation31 + $0xcf8] sm:$0xff]
    %v5324 = vld [vmem:[#allocation31 + $0xd00] sm:$0xff]
    %v5325 = vld [vmem:[#allocation31 + $0xd08] sm:$0xff]
    %v5326 = vld [vmem:[#allocation31 + $0xd10] sm:$0xff]
    %v5327 = vld [vmem:[#allocation31 + $0xd18] sm:$0xff]
    %v5328 = vld [vmem:[#allocation31 + $0xd20] sm:$0xff]
    %v5329 = vld [vmem:[#allocation31 + $0xd28] sm:$0xff]
    %v5330 = vld [vmem:[#allocation31 + $0xd30] sm:$0xff]
    %v5331 = vld [vmem:[#allocation31 + $0xd38] sm:$0xff]
    %v5332 = vld [vmem:[#allocation31 + $0xd40] sm:$0xff]
    %v5333 = vld [vmem:[#allocation31 + $0xd48] sm:$0xff]
    %v5334 = vld [vmem:[#allocation31 + $0xd50] sm:$0xff]
    %v5335 = vld [vmem:[#allocation31 + $0xd58] sm:$0xff]
    %v5336 = vld [vmem:[#allocation31 + $0xd60] sm:$0xff]
    %v5337 = vld [vmem:[#allocation31 + $0xd68] sm:$0xff]
    %v5338 = vld [vmem:[#allocation31 + $0xd70] sm:$0xff]
    %v5339 = vld [vmem:[#allocation31 + $0xd78] sm:$0xff]
    %v5340 = vld [vmem:[#allocation31 + $0xd80] sm:$0xff]
    %v5341 = vld [vmem:[#allocation31 + $0xd88] sm:$0xff]
    %v5342 = vld [vmem:[#allocation31 + $0xd90] sm:$0xff]
    %v5343 = vld [vmem:[#allocation31 + $0xd98] sm:$0xff]
    %v5344 = vld [vmem:[#allocation31 + $0xda0] sm:$0xff]
    %v5345 = vld [vmem:[#allocation31 + $0xda8] sm:$0xff]
    %v5346 = vld [vmem:[#allocation31 + $0xdb0] sm:$0xff]
    %v5347 = vld [vmem:[#allocation31 + $0xdb8] sm:$0xff]
    %v5348 = vld [vmem:[#allocation31 + $0xdc0] sm:$0xff]
    %v5349 = vld [vmem:[#allocation31 + $0xdc8] sm:$0xff]
    %v5350 = vld [vmem:[#allocation31 + $0xdd0] sm:$0xff]
    %v5351 = vld [vmem:[#allocation31 + $0xdd8] sm:$0xff]
    %v5352 = vld [vmem:[#allocation31 + $0xde0] sm:$0xff]
    %v5353 = vld [vmem:[#allocation31 + $0xde8] sm:$0xff]
    %v5354 = vld [vmem:[#allocation31 + $0xdf0] sm:$0xff]
    %v5355 = vld [vmem:[#allocation31 + $0xdf8] sm:$0xff]
    %v5356 = vld [vmem:[#allocation31 + $0xe00] sm:$0xff]
    %v5357 = vld [vmem:[#allocation31 + $0xe08] sm:$0xff]
    %v5358 = vld [vmem:[#allocation31 + $0xe10] sm:$0xff]
    %v5359 = vld [vmem:[#allocation31 + $0xe18] sm:$0xff]
    %v5360 = vld [vmem:[#allocation31 + $0xe20] sm:$0xff]
    %v5361 = vld [vmem:[#allocation31 + $0xe28] sm:$0xff]
    %v5362 = vld [vmem:[#allocation31 + $0xe30] sm:$0xff]
    %v5363 = vld [vmem:[#allocation31 + $0xe38] sm:$0xff]
    %v5364 = vld [vmem:[#allocation31 + $0xe40] sm:$0xff]
    %v5365 = vld [vmem:[#allocation31 + $0xe48] sm:$0xff]
    %v5366 = vld [vmem:[#allocation31 + $0xe50] sm:$0xff]
    %v5367 = vld [vmem:[#allocation31 + $0xe58] sm:$0xff]
    %v5368 = vld [vmem:[#allocation31 + $0xe60] sm:$0xff]
    %v5369 = vld [vmem:[#allocation31 + $0xe68] sm:$0xff]
    %v5370 = vld [vmem:[#allocation31 + $0xe70] sm:$0xff]
    %v5371 = vld [vmem:[#allocation31 + $0xe78] sm:$0xff]
    %v5372 = vld [vmem:[#allocation31 + $0xe80] sm:$0xff]
    %v5373 = vld [vmem:[#allocation31 + $0xe88] sm:$0xff]
    %v5374 = vld [vmem:[#allocation31 + $0xe90] sm:$0xff]
    %v5375 = vld [vmem:[#allocation31 + $0xe98] sm:$0xff]
    %v5376 = vld [vmem:[#allocation31 + $0xea0] sm:$0xff]
    %v5377 = vld [vmem:[#allocation31 + $0xea8] sm:$0xff]
    %v5378 = vld [vmem:[#allocation31 + $0xeb0] sm:$0xff]
    %v5379 = vld [vmem:[#allocation31 + $0xeb8] sm:$0xff]
    %v5380 = vld [vmem:[#allocation31 + $0xec0] sm:$0xff]
    %v5381 = vld [vmem:[#allocation31 + $0xec8] sm:$0xff]
    %v5382 = vld [vmem:[#allocation31 + $0xed0] sm:$0xff]
    %v5383 = vld [vmem:[#allocation31 + $0xed8] sm:$0xff]
    %v5384 = vld [vmem:[#allocation31 + $0xee0] sm:$0xff]
    %v5385 = vld [vmem:[#allocation31 + $0xee8] sm:$0xff]
    %v5386 = vld [vmem:[#allocation31 + $0xef0] sm:$0xff]
    %v5387 = vld [vmem:[#allocation31 + $0xef8] sm:$0xff]
    %v5388 = vld [vmem:[#allocation31 + $0xf00] sm:$0xff]
    %v5389 = vld [vmem:[#allocation31 + $0xf08] sm:$0xff]
    %v5390 = vld [vmem:[#allocation31 + $0xf10] sm:$0xff]
    %v5391 = vld [vmem:[#allocation31 + $0xf18] sm:$0xff]
    %v5392 = vld [vmem:[#allocation31 + $0xf20] sm:$0xff]
    %v5393 = vld [vmem:[#allocation31 + $0xf28] sm:$0xff]
    %v5394 = vld [vmem:[#allocation31 + $0xf30] sm:$0xff]
    %v5395 = vld [vmem:[#allocation31 + $0xf38] sm:$0xff]
    %v5396 = vld [vmem:[#allocation31 + $0xf40] sm:$0xff]
    %v5397 = vld [vmem:[#allocation31 + $0xf48] sm:$0xff]
    %v5398 = vld [vmem:[#allocation31 + $0xf50] sm:$0xff]
    %v5399 = vld [vmem:[#allocation31 + $0xf58] sm:$0xff]
    %v5400 = vld [vmem:[#allocation31 + $0xf60] sm:$0xff]
    %v5401 = vld [vmem:[#allocation31 + $0xf68] sm:$0xff]
    %v5402 = vld [vmem:[#allocation31 + $0xf70] sm:$0xff]
    %v5403 = vld [vmem:[#allocation31 + $0xf78] sm:$0xff]
    %v5404 = vld [vmem:[#allocation31 + $0xf80] sm:$0xff]
    %v5405 = vld [vmem:[#allocation31 + $0xf88] sm:$0xff]
    %v5406 = vld [vmem:[#allocation31 + $0xf90] sm:$0xff]
    %v5407 = vld [vmem:[#allocation31 + $0xf98] sm:$0xff]
    %v5408 = vld [vmem:[#allocation31 + $0xfa0] sm:$0xff]
    %v5409 = vld [vmem:[#allocation31 + $0xfa8] sm:$0xff]
    %v5410 = vld [vmem:[#allocation31 + $0xfb0] sm:$0xff]
    %v5411 = vld [vmem:[#allocation31 + $0xfb8] sm:$0xff]
    %v5412 = vld [vmem:[#allocation31 + $0xfc0] sm:$0xff]
    %v5413 = vld [vmem:[#allocation31 + $0xfc8] sm:$0xff]
    %v5414 = vld [vmem:[#allocation31 + $0xfd0] sm:$0xff]
    %v5415 = vld [vmem:[#allocation31 + $0xfd8] sm:$0xff]
    %v5416 = vld [vmem:[#allocation31 + $0xfe0] sm:$0xff]
    %v5417 = vld [vmem:[#allocation31 + $0xfe8] sm:$0xff]
    %v5418 = vld [vmem:[#allocation31 + $0xff0] sm:$0xff]
    %v5419 = vld [vmem:[#allocation31 + $0xff8] sm:$0xff]
    %v5420 = vld [vmem:[#allocation31 + $0x1000] sm:$0xff]
    %v5421 = vld [vmem:[#allocation31 + $0x1008] sm:$0xff]
    %v5422 = vld [vmem:[#allocation31 + $0x1010] sm:$0xff]
    %v5423 = vld [vmem:[#allocation31 + $0x1018] sm:$0xff]
    %v5424 = vld [vmem:[#allocation31 + $0x1020] sm:$0xff]
    %v5425 = vld [vmem:[#allocation31 + $0x1028] sm:$0xff]
    %v5426 = vld [vmem:[#allocation31 + $0x1030] sm:$0xff]
    %v5427 = vld [vmem:[#allocation31 + $0x1038] sm:$0xff]
    %v5428 = vld [vmem:[#allocation31 + $0x1040] sm:$0xff]
    %v5429 = vld [vmem:[#allocation31 + $0x1048] sm:$0xff]
    %v5430 = vld [vmem:[#allocation31 + $0x1050] sm:$0xff]
    %v5431 = vld [vmem:[#allocation31 + $0x1058] sm:$0xff]
    %v5432 = vld [vmem:[#allocation31 + $0x1060] sm:$0xff]
    %v5433 = vld [vmem:[#allocation31 + $0x1068] sm:$0xff]
    %v5434 = vld [vmem:[#allocation31 + $0x1070] sm:$0xff]
    %v5435 = vld [vmem:[#allocation31 + $0x1078] sm:$0xff]
    %v5436 = vld [vmem:[#allocation31 + $0x1080] sm:$0xff]
    %v5437 = vld [vmem:[#allocation31 + $0x1088] sm:$0xff]
    %v5438 = vld [vmem:[#allocation31 + $0x1090] sm:$0xff]
    %v5439 = vld [vmem:[#allocation31 + $0x1098] sm:$0xff]
    %v5440 = vld [vmem:[#allocation31 + $0x10a0] sm:$0xff]
    %v5441 = vld [vmem:[#allocation31 + $0x10a8] sm:$0xff]
    %v5442 = vld [vmem:[#allocation31 + $0x10b0] sm:$0xff]
    %v5443 = vld [vmem:[#allocation31 + $0x10b8] sm:$0xff]
    %v5444 = vld [vmem:[#allocation31 + $0x10c0] sm:$0xff]
    %v5445 = vld [vmem:[#allocation31 + $0x10c8] sm:$0xff]
    %v5446 = vld [vmem:[#allocation31 + $0x10d0] sm:$0xff]
    %v5447 = vld [vmem:[#allocation31 + $0x10d8] sm:$0xff]
    %v5448 = vld [vmem:[#allocation31 + $0x10e0] sm:$0xff]
    %v5449 = vld [vmem:[#allocation31 + $0x10e8] sm:$0xff]
    %v5450 = vld [vmem:[#allocation31 + $0x10f0] sm:$0xff]
    %v5451 = vld [vmem:[#allocation31 + $0x10f8] sm:$0xff]
    %v5452 = vld [vmem:[#allocation31 + $0x1100] sm:$0xff]
    %v5453 = vld [vmem:[#allocation31 + $0x1108] sm:$0xff]
    %v5454 = vld [vmem:[#allocation31 + $0x1110] sm:$0xff]
    %v5455 = vld [vmem:[#allocation31 + $0x1118] sm:$0xff]
    %v5456 = vld [vmem:[#allocation31 + $0x1120] sm:$0xff]
    %v5457 = vld [vmem:[#allocation31 + $0x1128] sm:$0xff]
    %v5458 = vld [vmem:[#allocation31 + $0x1130] sm:$0xff]
    %v5459 = vld [vmem:[#allocation31 + $0x1138] sm:$0xff]
    %v5460 = vld [vmem:[#allocation31 + $0x1140] sm:$0xff]
    %v5461 = vld [vmem:[#allocation31 + $0x1148] sm:$0xff]
    %v5462 = vld [vmem:[#allocation31 + $0x1150] sm:$0xff]
    %v5463 = vld [vmem:[#allocation31 + $0x1158] sm:$0xff]
    %v5464 = vld [vmem:[#allocation31 + $0x1160] sm:$0xff]
    %v5465 = vld [vmem:[#allocation31 + $0x1168] sm:$0xff]
    %v5466 = vld [vmem:[#allocation31 + $0x1170] sm:$0xff]
    %v5467 = vld [vmem:[#allocation31 + $0x1178] sm:$0xff]
    %v5468 = vld [vmem:[#allocation31 + $0x1180] sm:$0xff]
    %v5469 = vld [vmem:[#allocation31 + $0x1188] sm:$0xff]
    %v5470 = vld [vmem:[#allocation31 + $0x1190] sm:$0xff]
    %v5471 = vld [vmem:[#allocation31 + $0x1198] sm:$0xff]
    %v5472 = vld [vmem:[#allocation31 + $0x11a0] sm:$0xff]
    %v5473 = vld [vmem:[#allocation31 + $0x11a8] sm:$0xff]
    %v5474 = vld [vmem:[#allocation31 + $0x11b0] sm:$0xff]
    %v5475 = vld [vmem:[#allocation31 + $0x11b8] sm:$0xff]
    %v5476 = vld [vmem:[#allocation31 + $0x11c0] sm:$0xff]
    %v5477 = vld [vmem:[#allocation31 + $0x11c8] sm:$0xff]
    %v5478 = vld [vmem:[#allocation31 + $0x11d0] sm:$0xff]
    %v5479 = vld [vmem:[#allocation31 + $0x11d8] sm:$0xff]
    %v5480 = vld [vmem:[#allocation31 + $0x11e0] sm:$0xff]
    %v5481 = vld [vmem:[#allocation31 + $0x11e8] sm:$0xff]
    %v5482 = vld [vmem:[#allocation31 + $0x11f0] sm:$0xff]
    %v5483 = vld [vmem:[#allocation31 + $0x11f8] sm:$0xff]
    %v5484 = vld [vmem:[#allocation31 + $0x1200] sm:$0xff]
    %v5485 = vld [vmem:[#allocation31 + $0x1208] sm:$0xff]
    %v5486 = vld [vmem:[#allocation31 + $0x1210] sm:$0xff]
    %v5487 = vld [vmem:[#allocation31 + $0x1218] sm:$0xff]
    %v5488 = vld [vmem:[#allocation31 + $0x1220] sm:$0xff]
    %v5489 = vld [vmem:[#allocation31 + $0x1228] sm:$0xff]
    %v5490 = vld [vmem:[#allocation31 + $0x1230] sm:$0xff]
    %v5491 = vld [vmem:[#allocation31 + $0x1238] sm:$0xff]
    %v5492 = vld [vmem:[#allocation31 + $0x1240] sm:$0xff]
    %v5493 = vld [vmem:[#allocation31 + $0x1248] sm:$0xff]
    %v5494 = vld [vmem:[#allocation31 + $0x1250] sm:$0xff]
    %v5495 = vld [vmem:[#allocation31 + $0x1258] sm:$0xff]
    %v5496 = vld [vmem:[#allocation31 + $0x1260] sm:$0xff]
    %v5497 = vld [vmem:[#allocation31 + $0x1268] sm:$0xff]
    %v5498 = vld [vmem:[#allocation31 + $0x1270] sm:$0xff]
    %v5499 = vld [vmem:[#allocation31 + $0x1278] sm:$0xff]
    %v5500 = vld [vmem:[#allocation31 + $0x1280] sm:$0xff]
    %v5501 = vld [vmem:[#allocation31 + $0x1288] sm:$0xff]
    %v5502 = vld [vmem:[#allocation31 + $0x1290] sm:$0xff]
    %v5503 = vld [vmem:[#allocation31 + $0x1298] sm:$0xff]
    %v5504 = vld [vmem:[#allocation31 + $0x12a0] sm:$0xff]
    %v5505 = vld [vmem:[#allocation31 + $0x12a8] sm:$0xff]
    %v5506 = vld [vmem:[#allocation31 + $0x12b0] sm:$0xff]
    %v5507 = vld [vmem:[#allocation31 + $0x12b8] sm:$0xff]
    %v5508 = vld [vmem:[#allocation31 + $0x12c0] sm:$0xff]
    %v5509 = vld [vmem:[#allocation31 + $0x12c8] sm:$0xff]
    %v5510 = vld [vmem:[#allocation31 + $0x12d0] sm:$0xff]
    %v5511 = vld [vmem:[#allocation31 + $0x12d8] sm:$0xff]
    %v5512 = vld [vmem:[#allocation31 + $0x12e0] sm:$0xff]
    %v5513 = vld [vmem:[#allocation31 + $0x12e8] sm:$0xff]
    %v5514 = vld [vmem:[#allocation31 + $0x12f0] sm:$0xff]
    %v5515 = vld [vmem:[#allocation31 + $0x12f8] sm:$0xff]
    %v5516 = vld [vmem:[#allocation31 + $0x1300] sm:$0xff]
    %v5517 = vld [vmem:[#allocation31 + $0x1308] sm:$0xff]
    %v5518 = vld [vmem:[#allocation31 + $0x1310] sm:$0xff]
    %v5519 = vld [vmem:[#allocation31 + $0x1318] sm:$0xff]
    %v5520 = vld [vmem:[#allocation31 + $0x1320] sm:$0xff]
    %v5521 = vld [vmem:[#allocation31 + $0x1328] sm:$0xff]
    %v5522 = vld [vmem:[#allocation31 + $0x1330] sm:$0xff]
    %v5523 = vld [vmem:[#allocation31 + $0x1338] sm:$0xff]
    %v5524 = vld [vmem:[#allocation31 + $0x1340] sm:$0xff]
    %v5525 = vld [vmem:[#allocation31 + $0x1348] sm:$0xff]
    %v5526 = vld [vmem:[#allocation31 + $0x1350] sm:$0xff]
    %v5527 = vld [vmem:[#allocation31 + $0x1358] sm:$0xff]
    %v5528 = vld [vmem:[#allocation31 + $0x1360] sm:$0xff]
    %v5529 = vld [vmem:[#allocation31 + $0x1368] sm:$0xff]
    %v5530 = vld [vmem:[#allocation31 + $0x1370] sm:$0xff]
    %v5531 = vld [vmem:[#allocation31 + $0x1378] sm:$0xff]
    %v5532 = vld [vmem:[#allocation31 + $0x1380] sm:$0xff]
    %v5533 = vld [vmem:[#allocation31 + $0x1388] sm:$0xff]
    %v5534 = vld [vmem:[#allocation31 + $0x1390] sm:$0xff]
    %v5535 = vld [vmem:[#allocation31 + $0x1398] sm:$0xff]
    %v5536 = vld [vmem:[#allocation31 + $0x13a0] sm:$0xff]
    %v5537 = vld [vmem:[#allocation31 + $0x13a8] sm:$0xff]
    %v5538 = vld [vmem:[#allocation31 + $0x13b0] sm:$0xff]
    %v5539 = vld [vmem:[#allocation31 + $0x13b8] sm:$0xff]
    %v5540 = vld [vmem:[#allocation31 + $0x13c0] sm:$0xff]
    %v5541 = vld [vmem:[#allocation31 + $0x13c8] sm:$0xff]
    %v5542 = vld [vmem:[#allocation31 + $0x13d0] sm:$0xff]
    %v5543 = vld [vmem:[#allocation31 + $0x13d8] sm:$0xff]
    %v5544 = vld [vmem:[#allocation31 + $0x13e0] sm:$0xff]
    %v5545 = vld [vmem:[#allocation33] sm:$0xff]
    %v5546 = vld [vmem:[#allocation33 + $0x8] sm:$0x1f]
    %v5549 = vlaneseq
    %v5550 = vshrl.u32 %v5549, 7
    %v5551 = vsub.s32 0, %v5550
    %v5552 = vrot.slane %v5545, %v5551
    %v5553 = vlaneseq
    %v5554 = vshrl.u32 %v5553, 7
    %v5555 = vsub.s32 1, %v5554
    %v5556 = vrot.slane %v5545, %v5555
    %v5557 = vlaneseq
    %v5558 = vshrl.u32 %v5557, 7
    %v5559 = vsub.s32 2, %v5558
    %v5560 = vrot.slane %v5545, %v5559
    %v5561 = vlaneseq
    %v5562 = vshrl.u32 %v5561, 7
    %v5563 = vsub.s32 3, %v5562
    %v5564 = vrot.slane %v5545, %v5563
    %v5565 = vlaneseq
    %v5566 = vshrl.u32 %v5565, 7
    %v5567 = vsub.s32 4, %v5566
    %v5568 = vrot.slane %v5545, %v5567
    %v5569 = vlaneseq
    %v5570 = vshrl.u32 %v5569, 7
    %v5571 = vsub.s32 5, %v5570
    %v5572 = vrot.slane %v5545, %v5571
    %v5573 = vlaneseq
    %v5574 = vshrl.u32 %v5573, 7
    %v5575 = vsub.s32 6, %v5574
    %v5576 = vrot.slane %v5545, %v5575
    %v5577 = vlaneseq
    %v5578 = vshrl.u32 %v5577, 7
    %v5579 = vsub.s32 7, %v5578
    %v5580 = vrot.slane %v5545, %v5579
    %v5581 = vlaneseq
    %v5582 = vshrl.u32 %v5581, 7
    %v5583 = vsub.s32 0, %v5582
    %v5584 = vrot.slane %v5546, %v5583
    %v5585 = vlaneseq
    %v5586 = vshrl.u32 %v5585, 7
    %v5587 = vsub.s32 1, %v5586
    %v5588 = vrot.slane %v5546, %v5587
    %v5589 = vlaneseq
    %v5590 = vshrl.u32 %v5589, 7
    %v5591 = vsub.s32 2, %v5590
    %v5592 = vrot.slane %v5546, %v5591
    %v5593 = vlaneseq
    %v5594 = vshrl.u32 %v5593, 7
    %v5595 = vsub.s32 3, %v5594
    %v5596 = vrot.slane %v5546, %v5595
    %v5597 = vlaneseq
    %v5598 = vshrl.u32 %v5597, 7
    %v5599 = vsub.s32 4, %v5598
    %v5600 = vrot.slane %v5546, %v5599
    %v5615 = vsel %vm3053, %v4906, 0
    %5617 = vmatprep.subr.mxu0 %v4909
    %5618 = vmatpush1.msra.mxu0 %v4908
    %5619 = vmatprep.subr.mxu0 %v4922
    %5620 = vmatpush1.msra.mxu0 %v4921
    %5621 = vmatprep.subr.mxu0 %v4935
    %5622 = vmatpush1.msra.mxu0 %v4934
    %5623 = vmatprep.subr.mxu0 %v4948
    %5624 = vmatpush1.msra.mxu0 %v4947
    %5625 = vmatprep.subr.mxu0 %v4961
    %5626 = vmatpush1.msra.mxu0 %v4960
    %5627 = vmatprep.subr.mxu0 %v4974
    %5628 = vmatpush1.msra.mxu0 %v4973
    %5629 = vmatprep.subr.mxu0 %v4987
    %5630 = vmatpush1.msra.mxu0 %v4986
    %5631 = vmatprep.subr.mxu0 %v5000
    %5632 = vmatpush1.msra.mxu0 %v4999
    %5633 = vmatprep.subr.mxu0 %v5013
    %5634 = vmatpush1.msra.mxu0 %v5012
    %5635 = vmatprep.subr.mxu0 %v5026
    %5636 = vmatpush1.msra.mxu0 %v5025
    %5637 = vmatprep.subr.mxu0 %v5039
    %5638 = vmatpush1.msra.mxu0 %v5038
    %5639 = vmatprep.subr.mxu0 %v5052
    %5640 = vmatpush1.msra.mxu0 %v5051
    %5641 = vmatprep.subr.mxu0 %v5065
    %5642 = vmatpush1.msra.mxu0 %v5064
    %5643 = vmatprep.subr.mxu0 %v5078
    %5644 = vmatpush1.msra.mxu0 %v5077
    %5645 = vmatprep.subr.mxu0 %v5091
    %5646 = vmatpush1.msra.mxu0 %v5090
    %5647 = vmatprep.subr.mxu0 %v5104
    %5648 = vmatpush1.msra.mxu0 %v5103
    %5649 = vmatprep.subr.mxu0 %v5117
    %5650 = vmatpush1.msra.mxu0 %v5116
    %5651 = vmatprep.subr.mxu0 %v5130
    %5652 = vmatpush1.msra.mxu0 %v5129
    %5653 = vmatprep.subr.mxu0 %v5143
    %5654 = vmatpush1.msra.mxu0 %v5142
    %5655 = vmatprep.subr.mxu0 %v5156
    %5656 = vmatpush1.msra.mxu0 %v5155
    %5657 = vmatprep.subr.mxu0 %v5169
    %5658 = vmatpush1.msra.mxu0 %v5168
    %5659 = vmatprep.subr.mxu0 %v5182
    %5660 = vmatpush1.msra.mxu0 %v5181
    %5661 = vmatprep.subr.mxu0 %v5195
    %5662 = vmatpush1.msra.mxu0 %v5194
    %5663 = vmatprep.subr.mxu0 %v5208
    %5664 = vmatpush1.msra.mxu0 %v5207
    %5665 = vmatprep.subr.mxu0 %v5221
    %5666 = vmatpush1.msra.mxu0 %v5220
    %5667 = vmatprep.subr.mxu0 %v5234
    %5668 = vmatpush1.msra.mxu0 %v5233
    %5669 = vmatprep.subr.mxu0 %v5247
    %5670 = vmatpush1.msra.mxu0 %v5246
    %5671 = vmatprep.subr.mxu0 %v5260
    %5672 = vmatpush1.msra.mxu0 %v5259
    %5673 = vmatprep.subr.mxu0 %v5273
    %5674 = vmatpush1.msra.mxu0 %v5272
    %5675 = vmatprep.subr.mxu0 %v5286
    %5676 = vmatpush1.msra.mxu0 %v5285
    %5677 = vmatprep.subr.mxu0 %v5299
    %5678 = vmatpush1.msra.mxu0 %v5298
    %5679 = vmatprep.subr.mxu0 %v5312
    %5680 = vmatpush1.msra.mxu0 %v5311
    %5681 = vmatprep.mubr.f32.mxu0 %v4835
    %5682 = vmatmul.mubr.f32.gmra.mrb[0].mxu0 %v4833
    %v5683 = vpop.f32.mrb[0].mxu0
    %v5684 = vadd.f32 %v5552, %v5683
    %v5685 = vpop.f32.mrb[0].mxu0
    %v5686 = vadd.f32 %v5556, %v5685
    %5687 = vdwg.mxu0
    %5688 = vmatprep.subr.mxu0 %v5325
    %5689 = vmatpush1.msra.mxu0 %v5324
    %5690 = vmatprep.subr.mxu0 %v5338
    %5691 = vmatpush1.msra.mxu0 %v5337
    %5692 = vmatprep.subr.mxu0 %v5351
    %5693 = vmatpush1.msra.mxu0 %v5350
    %5694 = vmatprep.subr.mxu0 %v5364
    %5695 = vmatpush1.msra.mxu0 %v5363
    %5696 = vmatprep.subr.mxu0 %v5377
    %5697 = vmatpush1.msra.mxu0 %v5376
    %5698 = vmatprep.subr.mxu0 %v5390
    %5699 = vmatpush1.msra.mxu0 %v5389
    %5700 = vmatprep.subr.mxu0 %v5403
    %5701 = vmatpush1.msra.mxu0 %v5402
    %5702 = vmatprep.subr.mxu0 %v5416
    %5703 = vmatpush1.msra.mxu0 %v5415
    %5704 = vmatprep.subr.mxu0 %v5429
    %5705 = vmatpush1.msra.mxu0 %v5428
    %5706 = vmatprep.subr.mxu0 %v5442
    %5707 = vmatpush1.msra.mxu0 %v5441
    %5708 = vmatprep.subr.mxu0 %v5455
    %5709 = vmatpush1.msra.mxu0 %v5454
    %5710 = vmatprep.subr.mxu0 %v5468
    %5711 = vmatpush1.msra.mxu0 %v5467
    %5712 = vmatprep.subr.mxu0 %v5481
    %5713 = vmatpush1.msra.mxu0 %v5480
    %5714 = vmatprep.subr.mxu0 %v5494
    %5715 = vmatpush1.msra.mxu0 %v5493
    %5716 = vmatprep.subr.mxu0 %v5507
    %5717 = vmatpush1.msra.mxu0 %v5506
    %5718 = vmatprep.subr.mxu0 %v5520
    %5719 = vmatpush1.msra.mxu0 %v5519
    %5720 = vmatprep.subr.mxu0 %v5533
    %5721 = vmatpush1.msra.mxu0 %v5532
    %5722 = vmatprep.subr.mxu0 0.0
    %5723 = vmatpush1.msra.mxu0 0.0
    %5724 = vmatprep.subr.mxu0 0.0
    %5725 = vmatpush1.msra.mxu0 0.0
    %5726 = vmatprep.subr.mxu0 0.0
    %5727 = vmatpush1.msra.mxu0 0.0
    %5728 = vmatprep.subr.mxu0 0.0
    %5729 = vmatpush1.msra.mxu0 0.0
    %5730 = vmatprep.subr.mxu0 0.0
    %5731 = vmatpush1.msra.mxu0 0.0
    %5732 = vmatprep.subr.mxu0 0.0
    %5733 = vmatpush1.msra.mxu0 0.0
    %5734 = vmatprep.subr.mxu0 0.0
    %5735 = vmatpush1.msra.mxu0 0.0
    %5736 = vmatprep.subr.mxu0 0.0
    %5737 = vmatpush1.msra.mxu0 0.0
    %5738 = vmatprep.subr.mxu0 0.0
    %5739 = vmatpush1.msra.mxu0 0.0
    %5740 = vmatprep.subr.mxu0 0.0
    %5741 = vmatpush1.msra.mxu0 0.0
    %5742 = vmatprep.subr.mxu0 0.0
    %5743 = vmatpush1.msra.mxu0 0.0
    %5744 = vmatprep.subr.mxu0 0.0
    %5745 = vmatpush1.msra.mxu0 0.0
    %5746 = vmatprep.subr.mxu0 0.0
    %5747 = vmatpush1.msra.mxu0 0.0
    %5748 = vmatprep.subr.mxu0 0.0
    %5749 = vmatpush1.msra.mxu0 0.0
    %5750 = vmatprep.subr.mxu0 0.0
    %5751 = vmatpush1.msra.mxu0 0.0
    %5752 = vmatprep.mubr.f32.mxu0 %v5615
    %5753 = vmatmul.mubr.f32.gmra.mrb[0].mxu0 %v4904
    %v5754 = vpop.f32.mrb[0].mxu0
    %v5755 = vadd.f32 %v5684, %v5754
    %v5756 = vpop.f32.mrb[0].mxu0
    %v5757 = vadd.f32 %v5686, %v5756
    %5758 = vdwg.mxu0
    %5759 = vmatprep.subr.mxu0 %v4911
    %5760 = vmatpush1.msra.mxu0 %v4910
    %5761 = vmatprep.subr.mxu0 %v4924
    %5762 = vmatpush1.msra.mxu0 %v4923
    %5763 = vmatprep.subr.mxu0 %v4937
    %5764 = vmatpush1.msra.mxu0 %v4936
    %5765 = vmatprep.subr.mxu0 %v4950
    %5766 = vmatpush1.msra.mxu0 %v4949
    %5767 = vmatprep.subr.mxu0 %v4963
    %5768 = vmatpush1.msra.mxu0 %v4962
    %5769 = vmatprep.subr.mxu0 %v4976
    %5770 = vmatpush1.msra.mxu0 %v4975
    %5771 = vmatprep.subr.mxu0 %v4989
    %5772 = vmatpush1.msra.mxu0 %v4988
    %5773 = vmatprep.subr.mxu0 %v5002
    %5774 = vmatpush1.msra.mxu0 %v5001
    %5775 = vmatprep.subr.mxu0 %v5015
    %5776 = vmatpush1.msra.mxu0 %v5014
    %5777 = vmatprep.subr.mxu0 %v5028
    %5778 = vmatpush1.msra.mxu0 %v5027
    %5779 = vmatprep.subr.mxu0 %v5041
    %5780 = vmatpush1.msra.mxu0 %v5040
    %5781 = vmatprep.subr.mxu0 %v5054
    %5782 = vmatpush1.msra.mxu0 %v5053
    %5783 = vmatprep.subr.mxu0 %v5067
    %5784 = vmatpush1.msra.mxu0 %v5066
    %5785 = vmatprep.subr.mxu0 %v5080
    %5786 = vmatpush1.msra.mxu0 %v5079
    %5787 = vmatprep.subr.mxu0 %v5093
    %5788 = vmatpush1.msra.mxu0 %v5092
    %5789 = vmatprep.subr.mxu0 %v5106
    %5790 = vmatpush1.msra.mxu0 %v5105
    %5791 = vmatprep.subr.mxu0 %v5119
    %5792 = vmatpush1.msra.mxu0 %v5118
    %5793 = vmatprep.subr.mxu0 %v5132
    %5794 = vmatpush1.msra.mxu0 %v5131
    %5795 = vmatprep.subr.mxu0 %v5145
    %5796 = vmatpush1.msra.mxu0 %v5144
    %5797 = vmatprep.subr.mxu0 %v5158
    %5798 = vmatpush1.msra.mxu0 %v5157
    %5799 = vmatprep.subr.mxu0 %v5171
    %5800 = vmatpush1.msra.mxu0 %v5170
    %5801 = vmatprep.subr.mxu0 %v5184
    %5802 = vmatpush1.msra.mxu0 %v5183
    %5803 = vmatprep.subr.mxu0 %v5197
    %5804 = vmatpush1.msra.mxu0 %v5196
    %5805 = vmatprep.subr.mxu0 %v5210
    %5806 = vmatpush1.msra.mxu0 %v5209
    %5807 = vmatprep.subr.mxu0 %v5223
    %5808 = vmatpush1.msra.mxu0 %v5222
    %5809 = vmatprep.subr.mxu0 %v5236
    %5810 = vmatpush1.msra.mxu0 %v5235
    %5811 = vmatprep.subr.mxu0 %v5249
    %5812 = vmatpush1.msra.mxu0 %v5248
    %5813 = vmatprep.subr.mxu0 %v5262
    %5814 = vmatpush1.msra.mxu0 %v5261
    %5815 = vmatprep.subr.mxu0 %v5275
    %5816 = vmatpush1.msra.mxu0 %v5274
    %5817 = vmatprep.subr.mxu0 %v5288
    %5818 = vmatpush1.msra.mxu0 %v5287
    %5819 = vmatprep.subr.mxu0 %v5301
    %5820 = vmatpush1.msra.mxu0 %v5300
    %5821 = vmatprep.subr.mxu0 %v5314
    %5822 = vmatpush1.msra.mxu0 %v5313
    %5823 = vmatprep.mubr.f32.mxu0 %v4835
    %5824 = vmatmul.mubr.f32.gmra.mrb[0].mxu0 %v4833
    %v5825 = vpop.f32.mrb[0].mxu0
    %v5826 = vadd.f32 %v5560, %v5825
    %v5827 = vpop.f32.mrb[0].mxu0
    %v5828 = vadd.f32 %v5564, %v5827
    %5829 = vdwg.mxu0
    %5830 = vmatprep.subr.mxu0 %v5327
    %5831 = vmatpush1.msra.mxu0 %v5326
    %5832 = vmatprep.subr.mxu0 %v5340
    %5833 = vmatpush1.msra.mxu0 %v5339
    %5834 = vmatprep.subr.mxu0 %v5353
    %5835 = vmatpush1.msra.mxu0 %v5352
    %5836 = vmatprep.subr.mxu0 %v5366
    %5837 = vmatpush1.msra.mxu0 %v5365
    %5838 = vmatprep.subr.mxu0 %v5379
    %5839 = vmatpush1.msra.mxu0 %v5378
    %5840 = vmatprep.subr.mxu0 %v5392
    %5841 = vmatpush1.msra.mxu0 %v5391
    %5842 = vmatprep.subr.mxu0 %v5405
    %5843 = vmatpush1.msra.mxu0 %v5404
    %5844 = vmatprep.subr.mxu0 %v5418
    %5845 = vmatpush1.msra.mxu0 %v5417
    %5846 = vmatprep.subr.mxu0 %v5431
    %5847 = vmatpush1.msra.mxu0 %v5430
    %5848 = vmatprep.subr.mxu0 %v5444
    %5849 = vmatpush1.msra.mxu0 %v5443
    %5850 = vmatprep.subr.mxu0 %v5457
    %5851 = vmatpush1.msra.mxu0 %v5456
    %5852 = vmatprep.subr.mxu0 %v5470
    %5853 = vmatpush1.msra.mxu0 %v5469
    %5854 = vmatprep.subr.mxu0 %v5483
    %5855 = vmatpush1.msra.mxu0 %v5482
    %5856 = vmatprep.subr.mxu0 %v5496
    %5857 = vmatpush1.msra.mxu0 %v5495
    %5858 = vmatprep.subr.mxu0 %v5509
    %5859 = vmatpush1.msra.mxu0 %v5508
    %5860 = vmatprep.subr.mxu0 %v5522
    %5861 = vmatpush1.msra.mxu0 %v5521
    %5862 = vmatprep.subr.mxu0 %v5535
    %5863 = vmatpush1.msra.mxu0 %v5534
    %5864 = vmatprep.subr.mxu0 0.0
    %5865 = vmatpush1.msra.mxu0 0.0
    %5866 = vmatprep.subr.mxu0 0.0
    %5867 = vmatpush1.msra.mxu0 0.0
    %5868 = vmatprep.subr.mxu0 0.0
    %5869 = vmatpush1.msra.mxu0 0.0
    %5870 = vmatprep.subr.mxu0 0.0
    %5871 = vmatpush1.msra.mxu0 0.0
    %5872 = vmatprep.subr.mxu0 0.0
    %5873 = vmatpush1.msra.mxu0 0.0
    %5874 = vmatprep.subr.mxu0 0.0
    %5875 = vmatpush1.msra.mxu0 0.0
    %5876 = vmatprep.subr.mxu0 0.0
    %5877 = vmatpush1.msra.mxu0 0.0
    %5878 = vmatprep.subr.mxu0 0.0
    %5879 = vmatpush1.msra.mxu0 0.0
    %5880 = vmatprep.subr.mxu0 0.0
    %5881 = vmatpush1.msra.mxu0 0.0
    %5882 = vmatprep.subr.mxu0 0.0
    %5883 = vmatpush1.msra.mxu0 0.0
    %5884 = vmatprep.subr.mxu0 0.0
    %5885 = vmatpush1.msra.mxu0 0.0
    %5886 = vmatprep.subr.mxu0 0.0
    %5887 = vmatpush1.msra.mxu0 0.0
    %5888 = vmatprep.subr.mxu0 0.0
    %5889 = vmatpush1.msra.mxu0 0.0
    %5890 = vmatprep.subr.mxu0 0.0
    %5891 = vmatpush1.msra.mxu0 0.0
    %5892 = vmatprep.subr.mxu0 0.0
    %5893 = vmatpush1.msra.mxu0 0.0
    %5894 = vmatprep.mubr.f32.mxu0 %v5615
    %5895 = vmatmul.mubr.f32.gmra.mrb[0].mxu0 %v4904
    %v5896 = vpop.f32.mrb[0].mxu0
    %v5897 = vadd.f32 %v5826, %v5896
    %v5898 = vpop.f32.mrb[0].mxu0
    %v5899 = vadd.f32 %v5828, %v5898
    %5900 = vdwg.mxu0
    %5901 = vmatprep.subr.mxu0 %v4913
    %5902 = vmatpush1.msra.mxu0 %v4912
    %5903 = vmatprep.subr.mxu0 %v4926
    %5904 = vmatpush1.msra.mxu0 %v4925
    %5905 = vmatprep.subr.mxu0 %v4939
    %5906 = vmatpush1.msra.mxu0 %v4938
    %5907 = vmatprep.subr.mxu0 %v4952
    %5908 = vmatpush1.msra.mxu0 %v4951
    %5909 = vmatprep.subr.mxu0 %v4965
    %5910 = vmatpush1.msra.mxu0 %v4964
    %5911 = vmatprep.subr.mxu0 %v4978
    %5912 = vmatpush1.msra.mxu0 %v4977
    %5913 = vmatprep.subr.mxu0 %v4991
    %5914 = vmatpush1.msra.mxu0 %v4990
    %5915 = vmatprep.subr.mxu0 %v5004
    %5916 = vmatpush1.msra.mxu0 %v5003
    %5917 = vmatprep.subr.mxu0 %v5017
    %5918 = vmatpush1.msra.mxu0 %v5016
    %5919 = vmatprep.subr.mxu0 %v5030
    %5920 = vmatpush1.msra.mxu0 %v5029
    %5921 = vmatprep.subr.mxu0 %v5043
    %5922 = vmatpush1.msra.mxu0 %v5042
    %5923 = vmatprep.subr.mxu0 %v5056
    %5924 = vmatpush1.msra.mxu0 %v5055
    %5925 = vmatprep.subr.mxu0 %v5069
    %5926 = vmatpush1.msra.mxu0 %v5068
    %5927 = vmatprep.subr.mxu0 %v5082
    %5928 = vmatpush1.msra.mxu0 %v5081
    %5929 = vmatprep.subr.mxu0 %v5095
    %5930 = vmatpush1.msra.mxu0 %v5094
    %5931 = vmatprep.subr.mxu0 %v5108
    %5932 = vmatpush1.msra.mxu0 %v5107
    %5933 = vmatprep.subr.mxu0 %v5121
    %5934 = vmatpush1.msra.mxu0 %v5120
    %5935 = vmatprep.subr.mxu0 %v5134
    %5936 = vmatpush1.msra.mxu0 %v5133
    %5937 = vmatprep.subr.mxu0 %v5147
    %5938 = vmatpush1.msra.mxu0 %v5146
    %5939 = vmatprep.subr.mxu0 %v5160
    %5940 = vmatpush1.msra.mxu0 %v5159
    %5941 = vmatprep.subr.mxu0 %v5173
    %5942 = vmatpush1.msra.mxu0 %v5172
    %5943 = vmatprep.subr.mxu0 %v5186
    %5944 = vmatpush1.msra.mxu0 %v5185
    %5945 = vmatprep.subr.mxu0 %v5199
    %5946 = vmatpush1.msra.mxu0 %v5198
    %5947 = vmatprep.subr.mxu0 %v5212
    %5948 = vmatpush1.msra.mxu0 %v5211
    %5949 = vmatprep.subr.mxu0 %v5225
    %5950 = vmatpush1.msra.mxu0 %v5224
    %5951 = vmatprep.subr.mxu0 %v5238
    %5952 = vmatpush1.msra.mxu0 %v5237
    %5953 = vmatprep.subr.mxu0 %v5251
    %5954 = vmatpush1.msra.mxu0 %v5250
    %5955 = vmatprep.subr.mxu0 %v5264
    %5956 = vmatpush1.msra.mxu0 %v5263
    %5957 = vmatprep.subr.mxu0 %v5277
    %5958 = vmatpush1.msra.mxu0 %v5276
    %5959 = vmatprep.subr.mxu0 %v5290
    %5960 = vmatpush1.msra.mxu0 %v5289
    %5961 = vmatprep.subr.mxu0 %v5303
    %5962 = vmatpush1.msra.mxu0 %v5302
    %5963 = vmatprep.subr.mxu0 %v5316
    %5964 = vmatpush1.msra.mxu0 %v5315
    %5965 = vmatprep.mubr.f32.mxu0 %v4835
    %5966 = vmatmul.mubr.f32.gmra.mrb[0].mxu0 %v4833
    %v5967 = vpop.f32.mrb[0].mxu0
    %v5968 = vadd.f32 %v5568, %v5967
    %v5969 = vpop.f32.mrb[0].mxu0
    %v5970 = vadd.f32 %v5572, %v5969
    %5971 = vdwg.mxu0
    %5972 = vmatprep.subr.mxu0 %v5329
    %5973 = vmatpush1.msra.mxu0 %v5328
    %5974 = vmatprep.subr.mxu0 %v5342
    %5975 = vmatpush1.msra.mxu0 %v5341
    %5976 = vmatprep.subr.mxu0 %v5355
    %5977 = vmatpush1.msra.mxu0 %v5354
    %5978 = vmatprep.subr.mxu0 %v5368
    %5979 = vmatpush1.msra.mxu0 %v5367
    %5980 = vmatprep.subr.mxu0 %v5381
    %5981 = vmatpush1.msra.mxu0 %v5380
    %5982 = vmatprep.subr.mxu0 %v5394
    %5983 = vmatpush1.msra.mxu0 %v5393
    %5984 = vmatprep.subr.mxu0 %v5407
    %5985 = vmatpush1.msra.mxu0 %v5406
    %5986 = vmatprep.subr.mxu0 %v5420
    %5987 = vmatpush1.msra.mxu0 %v5419
    %5988 = vmatprep.subr.mxu0 %v5433
    %5989 = vmatpush1.msra.mxu0 %v5432
    %5990 = vmatprep.subr.mxu0 %v5446
    %5991 = vmatpush1.msra.mxu0 %v5445
    %5992 = vmatprep.subr.mxu0 %v5459
    %5993 = vmatpush1.msra.mxu0 %v5458
    %5994 = vmatprep.subr.mxu0 %v5472
    %5995 = vmatpush1.msra.mxu0 %v5471
    %5996 = vmatprep.subr.mxu0 %v5485
    %5997 = vmatpush1.msra.mxu0 %v5484
    %5998 = vmatprep.subr.mxu0 %v5498
    %5999 = vmatpush1.msra.mxu0 %v5497
    %6000 = vmatprep.subr.mxu0 %v5511
    %6001 = vmatpush1.msra.mxu0 %v5510
    %6002 = vmatprep.subr.mxu0 %v5524
    %6003 = vmatpush1.msra.mxu0 %v5523
    %6004 = vmatprep.subr.mxu0 %v5537
    %6005 = vmatpush1.msra.mxu0 %v5536
    %6006 = vmatprep.subr.mxu0 0.0
    %6007 = vmatpush1.msra.mxu0 0.0
    %6008 = vmatprep.subr.mxu0 0.0
    %6009 = vmatpush1.msra.mxu0 0.0
    %6010 = vmatprep.subr.mxu0 0.0
    %6011 = vmatpush1.msra.mxu0 0.0
    %6012 = vmatprep.subr.mxu0 0.0
    %6013 = vmatpush1.msra.mxu0 0.0
    %6014 = vmatprep.subr.mxu0 0.0
    %6015 = vmatpush1.msra.mxu0 0.0
    %6016 = vmatprep.subr.mxu0 0.0
    %6017 = vmatpush1.msra.mxu0 0.0
    %6018 = vmatprep.subr.mxu0 0.0
    %6019 = vmatpush1.msra.mxu0 0.0
    %6020 = vmatprep.subr.mxu0 0.0
    %6021 = vmatpush1.msra.mxu0 0.0
    %6022 = vmatprep.subr.mxu0 0.0
    %6023 = vmatpush1.msra.mxu0 0.0
    %6024 = vmatprep.subr.mxu0 0.0
    %6025 = vmatpush1.msra.mxu0 0.0
    %6026 = vmatprep.subr.mxu0 0.0
    %6027 = vmatpush1.msra.mxu0 0.0
    %6028 = vmatprep.subr.mxu0 0.0
    %6029 = vmatpush1.msra.mxu0 0.0
    %6030 = vmatprep.subr.mxu0 0.0
    %6031 = vmatpush1.msra.mxu0 0.0
    %6032 = vmatprep.subr.mxu0 0.0
    %6033 = vmatpush1.msra.mxu0 0.0
    %6034 = vmatprep.subr.mxu0 0.0
    %6035 = vmatpush1.msra.mxu0 0.0
    %6036 = vmatprep.mubr.f32.mxu0 %v5615
    %6037 = vmatmul.mubr.f32.gmra.mrb[0].mxu0 %v4904
    %v6038 = vpop.f32.mrb[0].mxu0
    %v6039 = vadd.f32 %v5968, %v6038
    %v6040 = vpop.f32.mrb[0].mxu0
    %v6041 = vadd.f32 %v5970, %v6040
    %6042 = vdwg.mxu0
    %6043 = vmatprep.subr.mxu0 %v4915
    %6044 = vmatpush1.msra.mxu0 %v4914
    %6045 = vmatprep.subr.mxu0 %v4928
    %6046 = vmatpush1.msra.mxu0 %v4927
    %6047 = vmatprep.subr.mxu0 %v4941
    %6048 = vmatpush1.msra.mxu0 %v4940
    %6049 = vmatprep.subr.mxu0 %v4954
    %6050 = vmatpush1.msra.mxu0 %v4953
    %6051 = vmatprep.subr.mxu0 %v4967
    %6052 = vmatpush1.msra.mxu0 %v4966
    %6053 = vmatprep.subr.mxu0 %v4980
    %6054 = vmatpush1.msra.mxu0 %v4979
    %6055 = vmatprep.subr.mxu0 %v4993
    %6056 = vmatpush1.msra.mxu0 %v4992
    %6057 = vmatprep.subr.mxu0 %v5006
    %6058 = vmatpush1.msra.mxu0 %v5005
    %6059 = vmatprep.subr.mxu0 %v5019
    %6060 = vmatpush1.msra.mxu0 %v5018
    %6061 = vmatprep.subr.mxu0 %v5032
    %6062 = vmatpush1.msra.mxu0 %v5031
    %6063 = vmatprep.subr.mxu0 %v5045
    %6064 = vmatpush1.msra.mxu0 %v5044
    %6065 = vmatprep.subr.mxu0 %v5058
    %6066 = vmatpush1.msra.mxu0 %v5057
    %6067 = vmatprep.subr.mxu0 %v5071
    %6068 = vmatpush1.msra.mxu0 %v5070
    %6069 = vmatprep.subr.mxu0 %v5084
    %6070 = vmatpush1.msra.mxu0 %v5083
    %6071 = vmatprep.subr.mxu0 %v5097
    %6072 = vmatpush1.msra.mxu0 %v5096
    %6073 = vmatprep.subr.mxu0 %v5110
    %6074 = vmatpush1.msra.mxu0 %v5109
    %6075 = vmatprep.subr.mxu0 %v5123
    %6076 = vmatpush1.msra.mxu0 %v5122
    %6077 = vmatprep.subr.mxu0 %v5136
    %6078 = vmatpush1.msra.mxu0 %v5135
    %6079 = vmatprep.subr.mxu0 %v5149
    %6080 = vmatpush1.msra.mxu0 %v5148
    %6081 = vmatprep.subr.mxu0 %v5162
    %6082 = vmatpush1.msra.mxu0 %v5161
    %6083 = vmatprep.subr.mxu0 %v5175
    %6084 = vmatpush1.msra.mxu0 %v5174
    %6085 = vmatprep.subr.mxu0 %v5188
    %6086 = vmatpush1.msra.mxu0 %v5187
    %6087 = vmatprep.subr.mxu0 %v5201
    %6088 = vmatpush1.msra.mxu0 %v5200
    %6089 = vmatprep.subr.mxu0 %v5214
    %6090 = vmatpush1.msra.mxu0 %v5213
    %6091 = vmatprep.subr.mxu0 %v5227
    %6092 = vmatpush1.msra.mxu0 %v5226
    %6093 = vmatprep.subr.mxu0 %v5240
    %6094 = vmatpush1.msra.mxu0 %v5239
    %6095 = vmatprep.subr.mxu0 %v5253
    %6096 = vmatpush1.msra.mxu0 %v5252
    %6097 = vmatprep.subr.mxu0 %v5266
    %6098 = vmatpush1.msra.mxu0 %v5265
    %6099 = vmatprep.subr.mxu0 %v5279
    %6100 = vmatpush1.msra.mxu0 %v5278
    %6101 = vmatprep.subr.mxu0 %v5292
    %6102 = vmatpush1.msra.mxu0 %v5291
    %6103 = vmatprep.subr.mxu0 %v5305
    %6104 = vmatpush1.msra.mxu0 %v5304
    %6105 = vmatprep.subr.mxu0 %v5318
    %6106 = vmatpush1.msra.mxu0 %v5317
    %6107 = vmatprep.mubr.f32.mxu0 %v4835
    %6108 = vmatmul.mubr.f32.gmra.mrb[0].mxu0 %v4833
    %v6109 = vpop.f32.mrb[0].mxu0
    %v6110 = vadd.f32 %v5576, %v6109
    %v6111 = vpop.f32.mrb[0].mxu0
    %v6112 = vadd.f32 %v5580, %v6111
    %6113 = vdwg.mxu0
    %6114 = vmatprep.subr.mxu0 %v5331
    %6115 = vmatpush1.msra.mxu0 %v5330
    %6116 = vmatprep.subr.mxu0 %v5344
    %6117 = vmatpush1.msra.mxu0 %v5343
    %6118 = vmatprep.subr.mxu0 %v5357
    %6119 = vmatpush1.msra.mxu0 %v5356
    %6120 = vmatprep.subr.mxu0 %v5370
    %6121 = vmatpush1.msra.mxu0 %v5369
    %6122 = vmatprep.subr.mxu0 %v5383
    %6123 = vmatpush1.msra.mxu0 %v5382
    %6124 = vmatprep.subr.mxu0 %v5396
    %6125 = vmatpush1.msra.mxu0 %v5395
    %6126 = vmatprep.subr.mxu0 %v5409
    %6127 = vmatpush1.msra.mxu0 %v5408
    %6128 = vmatprep.subr.mxu0 %v5422
    %6129 = vmatpush1.msra.mxu0 %v5421
    %6130 = vmatprep.subr.mxu0 %v5435
    %6131 = vmatpush1.msra.mxu0 %v5434
    %6132 = vmatprep.subr.mxu0 %v5448
    %6133 = vmatpush1.msra.mxu0 %v5447
    %6134 = vmatprep.subr.mxu0 %v5461
    %6135 = vmatpush1.msra.mxu0 %v5460
    %6136 = vmatprep.subr.mxu0 %v5474
    %6137 = vmatpush1.msra.mxu0 %v5473
    %6138 = vmatprep.subr.mxu0 %v5487
    %6139 = vmatpush1.msra.mxu0 %v5486
    %6140 = vmatprep.subr.mxu0 %v5500
    %6141 = vmatpush1.msra.mxu0 %v5499
    %6142 = vmatprep.subr.mxu0 %v5513
    %6143 = vmatpush1.msra.mxu0 %v5512
    %6144 = vmatprep.subr.mxu0 %v5526
    %6145 = vmatpush1.msra.mxu0 %v5525
    %6146 = vmatprep.subr.mxu0 %v5539
    %6147 = vmatpush1.msra.mxu0 %v5538
    %6148 = vmatprep.subr.mxu0 0.0
    %6149 = vmatpush1.msra.mxu0 0.0
    %6150 = vmatprep.subr.mxu0 0.0
    %6151 = vmatpush1.msra.mxu0 0.0
    %6152 = vmatprep.subr.mxu0 0.0
    %6153 = vmatpush1.msra.mxu0 0.0
    %6154 = vmatprep.subr.mxu0 0.0
    %6155 = vmatpush1.msra.mxu0 0.0
    %6156 = vmatprep.subr.mxu0 0.0
    %6157 = vmatpush1.msra.mxu0 0.0
    %6158 = vmatprep.subr.mxu0 0.0
    %6159 = vmatpush1.msra.mxu0 0.0
    %6160 = vmatprep.subr.mxu0 0.0
    %6161 = vmatpush1.msra.mxu0 0.0
    %6162 = vmatprep.subr.mxu0 0.0
    %6163 = vmatpush1.msra.mxu0 0.0
    %6164 = vmatprep.subr.mxu0 0.0
    %6165 = vmatpush1.msra.mxu0 0.0
    %6166 = vmatprep.subr.mxu0 0.0
    %6167 = vmatpush1.msra.mxu0 0.0
    %6168 = vmatprep.subr.mxu0 0.0
    %6169 = vmatpush1.msra.mxu0 0.0
    %6170 = vmatprep.subr.mxu0 0.0
    %6171 = vmatpush1.msra.mxu0 0.0
    %6172 = vmatprep.subr.mxu0 0.0
    %6173 = vmatpush1.msra.mxu0 0.0
    %6174 = vmatprep.subr.mxu0 0.0
    %6175 = vmatpush1.msra.mxu0 0.0
    %6176 = vmatprep.subr.mxu0 0.0
    %6177 = vmatpush1.msra.mxu0 0.0
    %6178 = vmatprep.mubr.f32.mxu0 %v5615
    %6179 = vmatmul.mubr.f32.gmra.mrb[0].mxu0 %v4904
    %v6180 = vpop.f32.mrb[0].mxu0
    %v6181 = vadd.f32 %v6110, %v6180
    %v6182 = vpop.f32.mrb[0].mxu0
    %v6183 = vadd.f32 %v6112, %v6182
    %6184 = vdwg.mxu0
    %6185 = vmatprep.subr.mxu0 %v4917
    %6186 = vmatpush1.msra.mxu0 %v4916
    %6187 = vmatprep.subr.mxu0 %v4930
    %6188 = vmatpush1.msra.mxu0 %v4929
    %6189 = vmatprep.subr.mxu0 %v4943
    %6190 = vmatpush1.msra.mxu0 %v4942
    %6191 = vmatprep.subr.mxu0 %v4956
    %6192 = vmatpush1.msra.mxu0 %v4955
    %6193 = vmatprep.subr.mxu0 %v4969
    %6194 = vmatpush1.msra.mxu0 %v4968
    %6195 = vmatprep.subr.mxu0 %v4982
    %6196 = vmatpush1.msra.mxu0 %v4981
    %6197 = vmatprep.subr.mxu0 %v4995
    %6198 = vmatpush1.msra.mxu0 %v4994
    %6199 = vmatprep.subr.mxu0 %v5008
    %6200 = vmatpush1.msra.mxu0 %v5007
    %6201 = vmatprep.subr.mxu0 %v5021
    %6202 = vmatpush1.msra.mxu0 %v5020
    %6203 = vmatprep.subr.mxu0 %v5034
    %6204 = vmatpush1.msra.mxu0 %v5033
    %6205 = vmatprep.subr.mxu0 %v5047
    %6206 = vmatpush1.msra.mxu0 %v5046
    %6207 = vmatprep.subr.mxu0 %v5060
    %6208 = vmatpush1.msra.mxu0 %v5059
    %6209 = vmatprep.subr.mxu0 %v5073
    %6210 = vmatpush1.msra.mxu0 %v5072
    %6211 = vmatprep.subr.mxu0 %v5086
    %6212 = vmatpush1.msra.mxu0 %v5085
    %6213 = vmatprep.subr.mxu0 %v5099
    %6214 = vmatpush1.msra.mxu0 %v5098
    %6215 = vmatprep.subr.mxu0 %v5112
    %6216 = vmatpush1.msra.mxu0 %v5111
    %6217 = vmatprep.subr.mxu0 %v5125
    %6218 = vmatpush1.msra.mxu0 %v5124
    %6219 = vmatprep.subr.mxu0 %v5138
    %6220 = vmatpush1.msra.mxu0 %v5137
    %6221 = vmatprep.subr.mxu0 %v5151
    %6222 = vmatpush1.msra.mxu0 %v5150
    %6223 = vmatprep.subr.mxu0 %v5164
    %6224 = vmatpush1.msra.mxu0 %v5163
    %6225 = vmatprep.subr.mxu0 %v5177
    %6226 = vmatpush1.msra.mxu0 %v5176
    %6227 = vmatprep.subr.mxu0 %v5190
    %6228 = vmatpush1.msra.mxu0 %v5189
    %6229 = vmatprep.subr.mxu0 %v5203
    %6230 = vmatpush1.msra.mxu0 %v5202
    %6231 = vmatprep.subr.mxu0 %v5216
    %6232 = vmatpush1.msra.mxu0 %v5215
    %6233 = vmatprep.subr.mxu0 %v5229
    %6234 = vmatpush1.msra.mxu0 %v5228
    %6235 = vmatprep.subr.mxu0 %v5242
    %6236 = vmatpush1.msra.mxu0 %v5241
    %6237 = vmatprep.subr.mxu0 %v5255
    %6238 = vmatpush1.msra.mxu0 %v5254
    %6239 = vmatprep.subr.mxu0 %v5268
    %6240 = vmatpush1.msra.mxu0 %v5267
    %6241 = vmatprep.subr.mxu0 %v5281
    %6242 = vmatpush1.msra.mxu0 %v5280
    %6243 = vmatprep.subr.mxu0 %v5294
    %6244 = vmatpush1.msra.mxu0 %v5293
    %6245 = vmatprep.subr.mxu0 %v5307
    %6246 = vmatpush1.msra.mxu0 %v5306
    %6247 = vmatprep.subr.mxu0 %v5320
    %6248 = vmatpush1.msra.mxu0 %v5319
    %6249 = vmatprep.mubr.f32.mxu0 %v4835
    %6250 = vmatmul.mubr.f32.gmra.mrb[0].mxu0 %v4833
    %v6251 = vpop.f32.mrb[0].mxu0
    %v6252 = vadd.f32 %v5584, %v6251
    %v6253 = vpop.f32.mrb[0].mxu0
    %v6254 = vadd.f32 %v5588, %v6253
    %6255 = vdwg.mxu0
    %6256 = vmatprep.subr.mxu0 %v5333
    %6257 = vmatpush1.msra.mxu0 %v5332
    %6258 = vmatprep.subr.mxu0 %v5346
    %6259 = vmatpush1.msra.mxu0 %v5345
    %6260 = vmatprep.subr.mxu0 %v5359
    %6261 = vmatpush1.msra.mxu0 %v5358
    %6262 = vmatprep.subr.mxu0 %v5372
    %6263 = vmatpush1.msra.mxu0 %v5371
    %6264 = vmatprep.subr.mxu0 %v5385
    %6265 = vmatpush1.msra.mxu0 %v5384
    %6266 = vmatprep.subr.mxu0 %v5398
    %6267 = vmatpush1.msra.mxu0 %v5397
    %6268 = vmatprep.subr.mxu0 %v5411
    %6269 = vmatpush1.msra.mxu0 %v5410
    %6270 = vmatprep.subr.mxu0 %v5424
    %6271 = vmatpush1.msra.mxu0 %v5423
    %6272 = vmatprep.subr.mxu0 %v5437
    %6273 = vmatpush1.msra.mxu0 %v5436
    %6274 = vmatprep.subr.mxu0 %v5450
    %6275 = vmatpush1.msra.mxu0 %v5449
    %6276 = vmatprep.subr.mxu0 %v5463
    %6277 = vmatpush1.msra.mxu0 %v5462
    %6278 = vmatprep.subr.mxu0 %v5476
    %6279 = vmatpush1.msra.mxu0 %v5475
    %6280 = vmatprep.subr.mxu0 %v5489
    %6281 = vmatpush1.msra.mxu0 %v5488
    %6282 = vmatprep.subr.mxu0 %v5502
    %6283 = vmatpush1.msra.mxu0 %v5501
    %6284 = vmatprep.subr.mxu0 %v5515
    %6285 = vmatpush1.msra.mxu0 %v5514
    %6286 = vmatprep.subr.mxu0 %v5528
    %6287 = vmatpush1.msra.mxu0 %v5527
    %6288 = vmatprep.subr.mxu0 %v5541
    %6289 = vmatpush1.msra.mxu0 %v5540
    %6290 = vmatprep.subr.mxu0 0.0
    %6291 = vmatpush1.msra.mxu0 0.0
    %6292 = vmatprep.subr.mxu0 0.0
    %6293 = vmatpush1.msra.mxu0 0.0
    %6294 = vmatprep.subr.mxu0 0.0
    %6295 = vmatpush1.msra.mxu0 0.0
    %6296 = vmatprep.subr.mxu0 0.0
    %6297 = vmatpush1.msra.mxu0 0.0
    %6298 = vmatprep.subr.mxu0 0.0
    %6299 = vmatpush1.msra.mxu0 0.0
    %6300 = vmatprep.subr.mxu0 0.0
    %6301 = vmatpush1.msra.mxu0 0.0
    %6302 = vmatprep.subr.mxu0 0.0
    %6303 = vmatpush1.msra.mxu0 0.0
    %6304 = vmatprep.subr.mxu0 0.0
    %6305 = vmatpush1.msra.mxu0 0.0
    %6306 = vmatprep.subr.mxu0 0.0
    %6307 = vmatpush1.msra.mxu0 0.0
    %6308 = vmatprep.subr.mxu0 0.0
    %6309 = vmatpush1.msra.mxu0 0.0
    %6310 = vmatprep.subr.mxu0 0.0
    %6311 = vmatpush1.msra.mxu0 0.0
    %6312 = vmatprep.subr.mxu0 0.0
    %6313 = vmatpush1.msra.mxu0 0.0
    %6314 = vmatprep.subr.mxu0 0.0
    %6315 = vmatpush1.msra.mxu0 0.0
    %6316 = vmatprep.subr.mxu0 0.0
    %6317 = vmatpush1.msra.mxu0 0.0
    %6318 = vmatprep.subr.mxu0 0.0
    %6319 = vmatpush1.msra.mxu0 0.0
    %6320 = vmatprep.mubr.f32.mxu0 %v5615
    %6321 = vmatmul.mubr.f32.gmra.mrb[0].mxu0 %v4904
    %v6322 = vpop.f32.mrb[0].mxu0
    %v6323 = vadd.f32 %v6252, %v6322
    %v6324 = vpop.f32.mrb[0].mxu0
    %v6325 = vadd.f32 %v6254, %v6324
    %6326 = vdwg.mxu0
    %6327 = vmatprep.subr.mxu0 %v4919
    %6328 = vmatpush1.msra.mxu0 %v4918
    %6329 = vmatprep.subr.mxu0 %v4932
    %6330 = vmatpush1.msra.mxu0 %v4931
    %6331 = vmatprep.subr.mxu0 %v4945
    %6332 = vmatpush1.msra.mxu0 %v4944
    %6333 = vmatprep.subr.mxu0 %v4958
    %6334 = vmatpush1.msra.mxu0 %v4957
    %6335 = vmatprep.subr.mxu0 %v4971
    %6336 = vmatpush1.msra.mxu0 %v4970
    %6337 = vmatprep.subr.mxu0 %v4984
    %6338 = vmatpush1.msra.mxu0 %v4983
    %6339 = vmatprep.subr.mxu0 %v4997
    %6340 = vmatpush1.msra.mxu0 %v4996
    %6341 = vmatprep.subr.mxu0 %v5010
    %6342 = vmatpush1.msra.mxu0 %v5009
    %6343 = vmatprep.subr.mxu0 %v5023
    %6344 = vmatpush1.msra.mxu0 %v5022
    %6345 = vmatprep.subr.mxu0 %v5036
    %6346 = vmatpush1.msra.mxu0 %v5035
    %6347 = vmatprep.subr.mxu0 %v5049
    %6348 = vmatpush1.msra.mxu0 %v5048
    %6349 = vmatprep.subr.mxu0 %v5062
    %6350 = vmatpush1.msra.mxu0 %v5061
    %6351 = vmatprep.subr.mxu0 %v5075
    %6352 = vmatpush1.msra.mxu0 %v5074
    %6353 = vmatprep.subr.mxu0 %v5088
    %6354 = vmatpush1.msra.mxu0 %v5087
    %6355 = vmatprep.subr.mxu0 %v5101
    %6356 = vmatpush1.msra.mxu0 %v5100
    %6357 = vmatprep.subr.mxu0 %v5114
    %6358 = vmatpush1.msra.mxu0 %v5113
    %6359 = vmatprep.subr.mxu0 %v5127
    %6360 = vmatpush1.msra.mxu0 %v5126
    %6361 = vmatprep.subr.mxu0 %v5140
    %6362 = vmatpush1.msra.mxu0 %v5139
    %6363 = vmatprep.subr.mxu0 %v5153
    %6364 = vmatpush1.msra.mxu0 %v5152
    %6365 = vmatprep.subr.mxu0 %v5166
    %6366 = vmatpush1.msra.mxu0 %v5165
    %6367 = vmatprep.subr.mxu0 %v5179
    %6368 = vmatpush1.msra.mxu0 %v5178
    %6369 = vmatprep.subr.mxu0 %v5192
    %6370 = vmatpush1.msra.mxu0 %v5191
    %6371 = vmatprep.subr.mxu0 %v5205
    %6372 = vmatpush1.msra.mxu0 %v5204
    %6373 = vmatprep.subr.mxu0 %v5218
    %6374 = vmatpush1.msra.mxu0 %v5217
    %6375 = vmatprep.subr.mxu0 %v5231
    %6376 = vmatpush1.msra.mxu0 %v5230
    %6377 = vmatprep.subr.mxu0 %v5244
    %6378 = vmatpush1.msra.mxu0 %v5243
    %6379 = vmatprep.subr.mxu0 %v5257
    %6380 = vmatpush1.msra.mxu0 %v5256
    %6381 = vmatprep.subr.mxu0 %v5270
    %6382 = vmatpush1.msra.mxu0 %v5269
    %6383 = vmatprep.subr.mxu0 %v5283
    %6384 = vmatpush1.msra.mxu0 %v5282
    %6385 = vmatprep.subr.mxu0 %v5296
    %6386 = vmatpush1.msra.mxu0 %v5295
    %6387 = vmatprep.subr.mxu0 %v5309
    %6388 = vmatpush1.msra.mxu0 %v5308
    %6389 = vmatprep.subr.mxu0 %v5322
    %6390 = vmatpush1.msra.mxu0 %v5321
    %6391 = vmatprep.mubr.f32.mxu0 %v4835
    %6392 = vmatmul.mubr.f32.gmra.mrb[0].mxu0 %v4833
    %v6393 = vpop.f32.mrb[0].mxu0
    %v6394 = vadd.f32 %v5592, %v6393
    %v6395 = vpop.f32.mrb[0].mxu0
    %v6396 = vadd.f32 %v5596, %v6395
    %6397 = vdwg.mxu0
    %6398 = vmatprep.subr.mxu0 %v5335
    %6399 = vmatpush1.msra.mxu0 %v5334
    %6400 = vmatprep.subr.mxu0 %v5348
    %6401 = vmatpush1.msra.mxu0 %v5347
    %6402 = vmatprep.subr.mxu0 %v5361
    %6403 = vmatpush1.msra.mxu0 %v5360
    %6404 = vmatprep.subr.mxu0 %v5374
    %6405 = vmatpush1.msra.mxu0 %v5373
    %6406 = vmatprep.subr.mxu0 %v5387
    %6407 = vmatpush1.msra.mxu0 %v5386
    %6408 = vmatprep.subr.mxu0 %v5400
    %6409 = vmatpush1.msra.mxu0 %v5399
    %6410 = vmatprep.subr.mxu0 %v5413
    %6411 = vmatpush1.msra.mxu0 %v5412
    %6412 = vmatprep.subr.mxu0 %v5426
    %6413 = vmatpush1.msra.mxu0 %v5425
    %6414 = vmatprep.subr.mxu0 %v5439
    %6415 = vmatpush1.msra.mxu0 %v5438
    %6416 = vmatprep.subr.mxu0 %v5452
    %6417 = vmatpush1.msra.mxu0 %v5451
    %6418 = vmatprep.subr.mxu0 %v5465
    %6419 = vmatpush1.msra.mxu0 %v5464
    %6420 = vmatprep.subr.mxu0 %v5478
    %6421 = vmatpush1.msra.mxu0 %v5477
    %6422 = vmatprep.subr.mxu0 %v5491
    %6423 = vmatpush1.msra.mxu0 %v5490
    %6424 = vmatprep.subr.mxu0 %v5504
    %6425 = vmatpush1.msra.mxu0 %v5503
    %6426 = vmatprep.subr.mxu0 %v5517
    %6427 = vmatpush1.msra.mxu0 %v5516
    %6428 = vmatprep.subr.mxu0 %v5530
    %6429 = vmatpush1.msra.mxu0 %v5529
    %6430 = vmatprep.subr.mxu0 %v5543
    %6431 = vmatpush1.msra.mxu0 %v5542
    %6432 = vmatprep.subr.mxu0 0.0
    %6433 = vmatpush1.msra.mxu0 0.0
    %6434 = vmatprep.subr.mxu0 0.0
    %6435 = vmatpush1.msra.mxu0 0.0
    %6436 = vmatprep.subr.mxu0 0.0
    %6437 = vmatpush1.msra.mxu0 0.0
    %6438 = vmatprep.subr.mxu0 0.0
    %6439 = vmatpush1.msra.mxu0 0.0
    %6440 = vmatprep.subr.mxu0 0.0
    %6441 = vmatpush1.msra.mxu0 0.0
    %6442 = vmatprep.subr.mxu0 0.0
    %6443 = vmatpush1.msra.mxu0 0.0
    %6444 = vmatprep.subr.mxu0 0.0
    %6445 = vmatpush1.msra.mxu0 0.0
    %6446 = vmatprep.subr.mxu0 0.0
    %6447 = vmatpush1.msra.mxu0 0.0
    %6448 = vmatprep.subr.mxu0 0.0
    %6449 = vmatpush1.msra.mxu0 0.0
    %6450 = vmatprep.subr.mxu0 0.0
    %6451 = vmatpush1.msra.mxu0 0.0
    %6452 = vmatprep.subr.mxu0 0.0
    %6453 = vmatpush1.msra.mxu0 0.0
    %6454 = vmatprep.subr.mxu0 0.0
    %6455 = vmatpush1.msra.mxu0 0.0
    %6456 = vmatprep.subr.mxu0 0.0
    %6457 = vmatpush1.msra.mxu0 0.0
    %6458 = vmatprep.subr.mxu0 0.0
    %6459 = vmatpush1.msra.mxu0 0.0
    %6460 = vmatprep.subr.mxu0 0.0
    %6461 = vmatpush1.msra.mxu0 0.0
    %6462 = vmatprep.mubr.f32.mxu0 %v5615
    %6463 = vmatmul.mubr.f32.gmra.mrb[0].mxu0 %v4904
    %v6464 = vpop.f32.mrb[0].mxu0
    %v6465 = vadd.f32 %v6394, %v6464
    %v6466 = vpop.f32.mrb[0].mxu0
    %v6467 = vadd.f32 %v6396, %v6466
    %6468 = vdwg.mxu0
    %6469 = vmatprep.subr.mxu0 0.0
    %6470 = vmatpush1.msra.mxu0 %v4920
    %6471 = vmatprep.subr.mxu0 0.0
    %6472 = vmatpush1.msra.mxu0 %v4933
    %6473 = vmatprep.subr.mxu0 0.0
    %6474 = vmatpush1.msra.mxu0 %v4946
    %6475 = vmatprep.subr.mxu0 0.0
    %6476 = vmatpush1.msra.mxu0 %v4959
    %6477 = vmatprep.subr.mxu0 0.0
    %6478 = vmatpush1.msra.mxu0 %v4972
    %6479 = vmatprep.subr.mxu0 0.0
    %6480 = vmatpush1.msra.mxu0 %v4985
    %6481 = vmatprep.subr.mxu0 0.0
    %6482 = vmatpush1.msra.mxu0 %v4998
    %6483 = vmatprep.subr.mxu0 0.0
    %6484 = vmatpush1.msra.mxu0 %v5011
    %6485 = vmatprep.subr.mxu0 0.0
    %6486 = vmatpush1.msra.mxu0 %v5024
    %6487 = vmatprep.subr.mxu0 0.0
    %6488 = vmatpush1.msra.mxu0 %v5037
    %6489 = vmatprep.subr.mxu0 0.0
    %6490 = vmatpush1.msra.mxu0 %v5050
    %6491 = vmatprep.subr.mxu0 0.0
    %6492 = vmatpush1.msra.mxu0 %v5063
    %6493 = vmatprep.subr.mxu0 0.0
    %6494 = vmatpush1.msra.mxu0 %v5076
    %6495 = vmatprep.subr.mxu0 0.0
    %6496 = vmatpush1.msra.mxu0 %v5089
    %6497 = vmatprep.subr.mxu0 0.0
    %6498 = vmatpush1.msra.mxu0 %v5102
    %6499 = vmatprep.subr.mxu0 0.0
    %6500 = vmatpush1.msra.mxu0 %v5115
    %6501 = vmatprep.subr.mxu0 0.0
    %6502 = vmatpush1.msra.mxu0 %v5128
    %6503 = vmatprep.subr.mxu0 0.0
    %6504 = vmatpush1.msra.mxu0 %v5141
    %6505 = vmatprep.subr.mxu0 0.0
    %6506 = vmatpush1.msra.mxu0 %v5154
    %6507 = vmatprep.subr.mxu0 0.0
    %6508 = vmatpush1.msra.mxu0 %v5167
    %6509 = vmatprep.subr.mxu0 0.0
    %6510 = vmatpush1.msra.mxu0 %v5180
    %6511 = vmatprep.subr.mxu0 0.0
    %6512 = vmatpush1.msra.mxu0 %v5193
    %6513 = vmatprep.subr.mxu0 0.0
    %6514 = vmatpush1.msra.mxu0 %v5206
    %6515 = vmatprep.subr.mxu0 0.0
    %6516 = vmatpush1.msra.mxu0 %v5219
    %6517 = vmatprep.subr.mxu0 0.0
    %6518 = vmatpush1.msra.mxu0 %v5232
    %6519 = vmatprep.subr.mxu0 0.0
    %6520 = vmatpush1.msra.mxu0 %v5245
    %6521 = vmatprep.subr.mxu0 0.0
    %6522 = vmatpush1.msra.mxu0 %v5258
    %6523 = vmatprep.subr.mxu0 0.0
    %6524 = vmatpush1.msra.mxu0 %v5271
    %6525 = vmatprep.subr.mxu0 0.0
    %6526 = vmatpush1.msra.mxu0 %v5284
    %6527 = vmatprep.subr.mxu0 0.0
    %6528 = vmatpush1.msra.mxu0 %v5297
    %6529 = vmatprep.subr.mxu0 0.0
    %6530 = vmatpush1.msra.mxu0 %v5310
    %6531 = vmatprep.subr.mxu0 0.0
    %6532 = vmatpush1.msra.mxu0 %v5323
    %6533 = vmatprep.mubr.f32.mxu0 %v4835
    %6534 = vmatmul.mubr.f32.gmra.mrb[0].mxu0 %v4833
    %v6535 = vpop.f32.mrb[0].mxu0
    %v6536 = vadd.f32 %v5600, %v6535
    %v6537 = vpop.f32.mrb[0].mxu0
    %6538 = vdwg.mxu0
    %6539 = vmatprep.subr.mxu0 0.0
    %6540 = vmatpush1.msra.mxu0 %v5336
    %6541 = vmatprep.subr.mxu0 0.0
    %6542 = vmatpush1.msra.mxu0 %v5349
    %6543 = vmatprep.subr.mxu0 0.0
    %6544 = vmatpush1.msra.mxu0 %v5362
    %6545 = vmatprep.subr.mxu0 0.0
    %6546 = vmatpush1.msra.mxu0 %v5375
    %6547 = vmatprep.subr.mxu0 0.0
    %6548 = vmatpush1.msra.mxu0 %v5388
    %6549 = vmatprep.subr.mxu0 0.0
    %6550 = vmatpush1.msra.mxu0 %v5401
    %6551 = vmatprep.subr.mxu0 0.0
    %6552 = vmatpush1.msra.mxu0 %v5414
    %6553 = vmatprep.subr.mxu0 0.0
    %6554 = vmatpush1.msra.mxu0 %v5427
    %6555 = vmatprep.subr.mxu0 0.0
    %6556 = vmatpush1.msra.mxu0 %v5440
    %6557 = vmatprep.subr.mxu0 0.0
    %6558 = vmatpush1.msra.mxu0 %v5453
    %6559 = vmatprep.subr.mxu0 0.0
    %6560 = vmatpush1.msra.mxu0 %v5466
    %6561 = vmatprep.subr.mxu0 0.0
    %6562 = vmatpush1.msra.mxu0 %v5479
    %6563 = vmatprep.subr.mxu0 0.0
    %6564 = vmatpush1.msra.mxu0 %v5492
    %6565 = vmatprep.subr.mxu0 0.0
    %6566 = vmatpush1.msra.mxu0 %v5505
    %6567 = vmatprep.subr.mxu0 0.0
    %6568 = vmatpush1.msra.mxu0 %v5518
    %6569 = vmatprep.subr.mxu0 0.0
    %6570 = vmatpush1.msra.mxu0 %v5531
    %6571 = vmatprep.subr.mxu0 0.0
    %6572 = vmatpush1.msra.mxu0 %v5544
    %6573 = vmatprep.subr.mxu0 0.0
    %6574 = vmatpush1.msra.mxu0 0.0
    %6575 = vmatprep.subr.mxu0 0.0
    %6576 = vmatpush1.msra.mxu0 0.0
    %6577 = vmatprep.subr.mxu0 0.0
    %6578 = vmatpush1.msra.mxu0 0.0
    %6579 = vmatprep.subr.mxu0 0.0
    %6580 = vmatpush1.msra.mxu0 0.0
    %6581 = vmatprep.subr.mxu0 0.0
    %6582 = vmatpush1.msra.mxu0 0.0
    %6583 = vmatprep.subr.mxu0 0.0
    %6584 = vmatpush1.msra.mxu0 0.0
    %6585 = vmatprep.subr.mxu0 0.0
    %6586 = vmatpush1.msra.mxu0 0.0
    %6587 = vmatprep.subr.mxu0 0.0
    %6588 = vmatpush1.msra.mxu0 0.0
    %6589 = vmatprep.subr.mxu0 0.0
    %6590 = vmatpush1.msra.mxu0 0.0
    %6591 = vmatprep.subr.mxu0 0.0
    %6592 = vmatpush1.msra.mxu0 0.0
    %6593 = vmatprep.subr.mxu0 0.0
    %6594 = vmatpush1.msra.mxu0 0.0
    %6595 = vmatprep.subr.mxu0 0.0
    %6596 = vmatpush1.msra.mxu0 0.0
    %6597 = vmatprep.subr.mxu0 0.0
    %6598 = vmatpush1.msra.mxu0 0.0
    %6599 = vmatprep.subr.mxu0 0.0
    %6600 = vmatpush1.msra.mxu0 0.0
    %6601 = vmatprep.subr.mxu0 0.0
    %6602 = vmatpush1.msra.mxu0 0.0
    %6603 = vmatprep.mubr.f32.mxu0 %v5615
    %6604 = vmatmul.mubr.f32.gmra.mrb[0].mxu0 %v4904
    %v6605 = vpop.f32.mrb[0].mxu0
    %v6606 = vadd.f32 %v6536, %v6605
    %v6607 = vpop.f32.mrb[0].mxu0
    %6608 = vdwg.mxu0
    %vm6609 = vcmp.ge.f32.partialorder %v5755, 0.0
    %vm6610 = vcmp.ge.f32.partialorder %v5757, 0.0
    %vm6611 = vcmp.ge.f32.partialorder %v5897, 0.0
    %vm6612 = vcmp.ge.f32.partialorder %v5899, 0.0
    %vm6613 = vcmp.ge.f32.partialorder %v6039, 0.0
    %vm6614 = vcmp.ge.f32.partialorder %v6041, 0.0
    %vm6615 = vcmp.ge.f32.partialorder %v6181, 0.0
    %vm6616 = vcmp.ge.f32.partialorder %v6183, 0.0
    %vm6617 = vcmp.ge.f32.partialorder %v6323, 0.0
    %vm6618 = vcmp.ge.f32.partialorder %v6325, 0.0
    %vm6619 = vcmp.ge.f32.partialorder %v6465, 0.0
    %vm6620 = vcmp.ge.f32.partialorder %v6467, 0.0
    %vm6621 = vcmp.ge.f32.partialorder %v6606, 0.0
    %v6622 = vmul.f32 %v5755, 0.1
    %v6623 = vmul.f32 %v5757, 0.1
    %v6624 = vmul.f32 %v5897, 0.1
    %v6625 = vmul.f32 %v5899, 0.1
    %v6626 = vmul.f32 %v6039, 0.1
    %v6627 = vmul.f32 %v6041, 0.1
    %v6628 = vmul.f32 %v6181, 0.1
    %v6629 = vmul.f32 %v6183, 0.1
    %v6630 = vmul.f32 %v6323, 0.1
    %v6631 = vmul.f32 %v6325, 0.1
    %v6632 = vmul.f32 %v6465, 0.1
    %v6633 = vmul.f32 %v6467, 0.1
    %v6634 = vmul.f32 %v6606, 0.1
    %v6635 = vsel %vm6609, %v5755, %v6622
    %v6636 = vsel %vm6610, %v5757, %v6623
    %v6637 = vsel %vm6611, %v5897, %v6624
    %v6638 = vsel %vm6612, %v5899, %v6625
    %v6639 = vsel %vm6613, %v6039, %v6626
    %v6640 = vsel %vm6614, %v6041, %v6627
    %v6641 = vsel %vm6615, %v6181, %v6628
    %v6642 = vsel %vm6616, %v6183, %v6629
    %v6643 = vsel %vm6617, %v6323, %v6630
    %v6644 = vsel %vm6618, %v6325, %v6631
    %v6645 = vsel %vm6619, %v6465, %v6632
    %v6646 = vsel %vm6620, %v6467, %v6633
    %v6647 = vsel %vm6621, %v6606, %v6634
    %v6648 = vsel %vm1608, %v6635, 0.0
    %v6649 = vrot.slane %v6648, 4
    %v6650 = vadd.f32 %v6648, %v6649
    %v6651 = vrot.slane %v6650, 2
    %v6652 = vadd.f32 %v6650, %v6651
    %v6653 = vrot.slane %v6652, 1
    %v6654 = vadd.f32 %v6652, %v6653
    %v6655 = vsel %vm1608, %v6636, 0.0
    %v6656 = vrot.slane %v6655, 4
    %v6657 = vadd.f32 %v6655, %v6656
    %v6658 = vrot.slane %v6657, 2
    %v6659 = vadd.f32 %v6657, %v6658
    %v6660 = vrot.slane %v6659, 1
    %v6661 = vadd.f32 %v6659, %v6660
    %v6662 = vsel %vm1608, %v6637, 0.0
    %v6663 = vrot.slane %v6662, 4
    %v6664 = vadd.f32 %v6662, %v6663
    %v6665 = vrot.slane %v6664, 2
    %v6666 = vadd.f32 %v6664, %v6665
    %v6667 = vrot.slane %v6666, 1
    %v6668 = vadd.f32 %v6666, %v6667
    %v6669 = vsel %vm1608, %v6638, 0.0
    %v6670 = vrot.slane %v6669, 4
    %v6671 = vadd.f32 %v6669, %v6670
    %v6672 = vrot.slane %v6671, 2
    %v6673 = vadd.f32 %v6671, %v6672
    %v6674 = vrot.slane %v6673, 1
    %v6675 = vadd.f32 %v6673, %v6674
    %v6676 = vsel %vm1608, %v6639, 0.0
    %v6677 = vrot.slane %v6676, 4
    %v6678 = vadd.f32 %v6676, %v6677
    %v6679 = vrot.slane %v6678, 2
    %v6680 = vadd.f32 %v6678, %v6679
    %v6681 = vrot.slane %v6680, 1
    %v6682 = vadd.f32 %v6680, %v6681
    %v6683 = vsel %vm1608, %v6640, 0.0
    %v6684 = vrot.slane %v6683, 4
    %v6685 = vadd.f32 %v6683, %v6684
    %v6686 = vrot.slane %v6685, 2
    %v6687 = vadd.f32 %v6685, %v6686
    %v6688 = vrot.slane %v6687, 1
    %v6689 = vadd.f32 %v6687, %v6688
    %v6690 = vsel %vm1608, %v6641, 0.0
    %v6691 = vrot.slane %v6690, 4
    %v6692 = vadd.f32 %v6690, %v6691
    %v6693 = vrot.slane %v6692, 2
    %v6694 = vadd.f32 %v6692, %v6693
    %v6695 = vrot.slane %v6694, 1
    %v6696 = vadd.f32 %v6694, %v6695
    %v6697 = vsel %vm1608, %v6642, 0.0
    %v6698 = vrot.slane %v6697, 4
    %v6699 = vadd.f32 %v6697, %v6698
    %v6700 = vrot.slane %v6699, 2
    %v6701 = vadd.f32 %v6699, %v6700
    %v6702 = vrot.slane %v6701, 1
    %v6703 = vadd.f32 %v6701, %v6702
    %v6704 = vsel %vm1608, %v6643, 0.0
    %v6705 = vrot.slane %v6704, 4
    %v6706 = vadd.f32 %v6704, %v6705
    %v6707 = vrot.slane %v6706, 2
    %v6708 = vadd.f32 %v6706, %v6707
    %v6709 = vrot.slane %v6708, 1
    %v6710 = vadd.f32 %v6708, %v6709
    %v6711 = vsel %vm1608, %v6644, 0.0
    %v6712 = vrot.slane %v6711, 4
    %v6713 = vadd.f32 %v6711, %v6712
    %v6714 = vrot.slane %v6713, 2
    %v6715 = vadd.f32 %v6713, %v6714
    %v6716 = vrot.slane %v6715, 1
    %v6717 = vadd.f32 %v6715, %v6716
    %v6718 = vsel %vm1608, %v6645, 0.0
    %v6719 = vrot.slane %v6718, 4
    %v6720 = vadd.f32 %v6718, %v6719
    %v6721 = vrot.slane %v6720, 2
    %v6722 = vadd.f32 %v6720, %v6721
    %v6723 = vrot.slane %v6722, 1
    %v6724 = vadd.f32 %v6722, %v6723
    %v6725 = vsel %vm1608, %v6646, 0.0
    %v6726 = vrot.slane %v6725, 4
    %v6727 = vadd.f32 %v6725, %v6726
    %v6728 = vrot.slane %v6727, 2
    %v6729 = vadd.f32 %v6727, %v6728
    %v6730 = vrot.slane %v6729, 1
    %v6731 = vadd.f32 %v6729, %v6730
    %vm6732 = vcmask 254976
    %v6733 = vsel %vm6732, %v6647, 0.0
    %v6734 = vrot.slane %v6733, 4
    %v6735 = vadd.f32 %v6733, %v6734
    %v6736 = vrot.slane %v6735, 2
    %v6737 = vadd.f32 %v6735, %v6736
    %v6738 = vrot.slane %v6737, 1
    %v6739 = vadd.f32 %v6737, %v6738
    %v6740 = vld [vmem:[%s57] sm:$0xff]
    %v6741 = vld [vmem:[%s57 + $0x8] sm:$0xff]
    %v6742 = vld [vmem:[%s57 + $0x10] sm:$0xff]
    %v6743 = vld [vmem:[%s57 + $0x18] sm:$0xff]
    %v6744 = vld [vmem:[%s57 + $0x20] sm:$0xff]
    %v6745 = vld [vmem:[%s57 + $0x28] sm:$0xff]
    %v6746 = vld [vmem:[%s57 + $0x30] sm:$0xff]
    %v6747 = vld [vmem:[%s57 + $0x38] sm:$0xff]
    %v6748 = vld [vmem:[%s57 + $0x40] sm:$0xff]
    %v6749 = vld [vmem:[%s57 + $0x48] sm:$0xff]
    %v6750 = vld [vmem:[%s57 + $0x50] sm:$0xff]
    %v6751 = vld [vmem:[%s57 + $0x58] sm:$0xff]
    %v6752 = vld [vmem:[%s57 + $0x60] sm:$0xff]
    %v6753 = vld [vmem:[%s57 + $0x68] sm:$0xff]
    %v6754 = vld [vmem:[%s57 + $0x70] sm:$0xff]
    %v6755 = vld [vmem:[%s57 + $0x78] sm:$0xff]
    %v6756 = vld [vmem:[%s57 + $0x80] sm:$0xff]
    %v6757 = vld [vmem:[%s57 + $0x88] sm:$0xff]
    %v6758 = vld [vmem:[%s57 + $0x90] sm:$0xff]
    %v6759 = vld [vmem:[%s57 + $0x98] sm:$0xff]
    %v6760 = vld [vmem:[%s57 + $0xa0] sm:$0xff]
    %v6761 = vld [vmem:[%s57 + $0xa8] sm:$0xff]
    %v6762 = vld [vmem:[%s57 + $0xb0] sm:$0xff]
    %v6763 = vld [vmem:[%s57 + $0xb8] sm:$0xff]
    %v6764 = vld [vmem:[%s57 + $0xc0] sm:$0xff]
    %v6765 = vld [vmem:[%s57 + $0xc8] sm:$0xff]
    %v6766 = vld [vmem:[%s57 + $0xd0] sm:$0xff]
    %v6767 = vld [vmem:[%s57 + $0xd8] sm:$0xff]
    %v6768 = vld [vmem:[%s57 + $0xe0] sm:$0xff]
    %v6769 = vld [vmem:[%s57 + $0xe8] sm:$0xff]
    %v6770 = vld [vmem:[%s57 + $0xf0] sm:$0xff]
    %v6771 = vld [vmem:[%s57 + $0xf8] sm:$0xff]
    %v6772 = vld [vmem:[%s57 + $0x100] sm:$0xff]
    %v6773 = vld [vmem:[%s57 + $0x108] sm:$0xff]
    %v6774 = vld [vmem:[%s57 + $0x110] sm:$0xff]
    %v6775 = vld [vmem:[%s57 + $0x118] sm:$0xff]
    %v6776 = vld [vmem:[%s57 + $0x120] sm:$0xff]
    %v6777 = vld [vmem:[%s57 + $0x128] sm:$0xff]
    %v6778 = vld [vmem:[%s57 + $0x130] sm:$0xff]
    %v6779 = vld [vmem:[%s57 + $0x138] sm:$0xff]
    %v6780 = vld [vmem:[%s57 + $0x140] sm:$0xff]
    %v6781 = vld [vmem:[%s57 + $0x148] sm:$0xff]
    %v6782 = vld [vmem:[%s57 + $0x150] sm:$0xff]
    %v6783 = vld [vmem:[%s57 + $0x158] sm:$0xff]
    %v6784 = vld [vmem:[%s57 + $0x160] sm:$0xff]
    %v6785 = vld [vmem:[%s57 + $0x168] sm:$0xff]
    %v6786 = vld [vmem:[%s57 + $0x170] sm:$0xff]
    %v6787 = vld [vmem:[%s57 + $0x178] sm:$0xff]
    %v6788 = vld [vmem:[%s57 + $0x180] sm:$0xff]
    %v6789 = vld [vmem:[%s57 + $0x188] sm:$0xff]
    %v6790 = vld [vmem:[%s57 + $0x190] sm:$0xff]
    %v6791 = vld [vmem:[%s57 + $0x198] sm:$0xff]
    %v6792 = vld [vmem:[%s57 + $0x1a0] sm:$0xff]
    %v6793 = vld [vmem:[%s57 + $0x1a8] sm:$0xff]
    %v6794 = vld [vmem:[%s57 + $0x1b0] sm:$0xff]
    %v6795 = vld [vmem:[%s57 + $0x1b8] sm:$0xff]
    %v6796 = vld [vmem:[%s57 + $0x1c0] sm:$0xff]
    %v6797 = vld [vmem:[%s57 + $0x1c8] sm:$0xff]
    %v6798 = vld [vmem:[%s57 + $0x1d0] sm:$0xff]
    %v6799 = vld [vmem:[%s57 + $0x1d8] sm:$0xff]
    %v6800 = vld [vmem:[%s57 + $0x1e0] sm:$0xff]
    %v6801 = vld [vmem:[%s57 + $0x1e8] sm:$0xff]
    %v6802 = vld [vmem:[%s57 + $0x1f0] sm:$0xff]
    %v6803 = vld [vmem:[%s57 + $0x1f8] sm:$0xff]
    %v6804 = vld [vmem:[%s57 + $0x200] sm:$0xff]
    %v6805 = vld [vmem:[%s57 + $0x208] sm:$0xff]
    %v6806 = vld [vmem:[%s57 + $0x210] sm:$0xff]
    %v6807 = vld [vmem:[%s57 + $0x218] sm:$0xff]
    %v6808 = vld [vmem:[%s57 + $0x220] sm:$0xff]
    %v6809 = vld [vmem:[%s57 + $0x228] sm:$0xff]
    %v6810 = vld [vmem:[%s57 + $0x230] sm:$0xff]
    %v6811 = vld [vmem:[%s57 + $0x238] sm:$0xff]
    %v6812 = vld [vmem:[%s57 + $0x240] sm:$0xff]
    %v6813 = vld [vmem:[%s57 + $0x248] sm:$0xff]
    %v6814 = vld [vmem:[%s57 + $0x250] sm:$0xff]
    %v6815 = vld [vmem:[%s57 + $0x258] sm:$0xff]
    %v6816 = vld [vmem:[%s57 + $0x260] sm:$0xff]
    %v6817 = vld [vmem:[%s57 + $0x268] sm:$0xff]
    %v6818 = vld [vmem:[%s57 + $0x270] sm:$0xff]
    %v6819 = vld [vmem:[%s57 + $0x278] sm:$0xff]
    %v6820 = vld [vmem:[%s57 + $0x280] sm:$0xff]
    %v6821 = vld [vmem:[%s57 + $0x288] sm:$0xff]
    %v6822 = vld [vmem:[%s57 + $0x290] sm:$0xff]
    %v6823 = vld [vmem:[%s57 + $0x298] sm:$0xff]
    %v6824 = vld [vmem:[%s57 + $0x2a0] sm:$0xff]
    %v6825 = vld [vmem:[%s57 + $0x2a8] sm:$0xff]
    %v6826 = vld [vmem:[%s57 + $0x2b0] sm:$0xff]
    %v6827 = vld [vmem:[%s57 + $0x2b8] sm:$0xff]
    %v6828 = vld [vmem:[%s57 + $0x2c0] sm:$0xff]
    %v6829 = vld [vmem:[%s57 + $0x2c8] sm:$0xff]
    %v6830 = vld [vmem:[%s57 + $0x2d0] sm:$0xff]
    %v6831 = vld [vmem:[%s57 + $0x2d8] sm:$0xff]
    %v6832 = vld [vmem:[%s57 + $0x2e0] sm:$0xff]
    %v6833 = vld [vmem:[%s57 + $0x2e8] sm:$0xff]
    %v6834 = vld [vmem:[%s57 + $0x2f0] sm:$0xff]
    %v6835 = vld [vmem:[%s57 + $0x2f8] sm:$0xff]
    %v6836 = vld [vmem:[%s57 + $0x300] sm:$0xff]
    %v6837 = vld [vmem:[%s57 + $0x308] sm:$0xff]
    %v6838 = vld [vmem:[%s57 + $0x310] sm:$0xff]
    %v6839 = vld [vmem:[%s57 + $0x318] sm:$0xff]
    %v6840 = vld [vmem:[%s57 + $0x320] sm:$0xff]
    %v6841 = vld [vmem:[%s57 + $0x328] sm:$0xff]
    %v6842 = vld [vmem:[%s57 + $0x330] sm:$0xff]
    %v6843 = vld [vmem:[%s57 + $0x338] sm:$0xff]
    %v6844 = vld [vmem:[%s57 + $0x340] sm:$0xff]
    %v6845 = vld [vmem:[%s57 + $0x348] sm:$0xff]
    %v6846 = vld [vmem:[%s57 + $0x350] sm:$0xff]
    %v6847 = vld [vmem:[%s57 + $0x358] sm:$0xff]
    %v6848 = vld [vmem:[%s57 + $0x360] sm:$0xff]
    %v6849 = vld [vmem:[%s57 + $0x368] sm:$0xff]
    %v6850 = vld [vmem:[%s57 + $0x370] sm:$0xff]
    %v6851 = vld [vmem:[%s57 + $0x378] sm:$0xff]
    %v6852 = vld [vmem:[%s57 + $0x380] sm:$0xff]
    %v6853 = vld [vmem:[%s57 + $0x388] sm:$0xff]
    %v6854 = vld [vmem:[%s57 + $0x390] sm:$0xff]
    %v6855 = vld [vmem:[%s57 + $0x398] sm:$0xff]
    %v6856 = vld [vmem:[%s57 + $0x3a0] sm:$0xff]
    %v6857 = vld [vmem:[%s57 + $0x3a8] sm:$0xff]
    %v6858 = vld [vmem:[%s57 + $0x3b0] sm:$0xff]
    %v6859 = vld [vmem:[%s57 + $0x3b8] sm:$0xff]
    %v6860 = vld [vmem:[%s57 + $0x3c0] sm:$0xff]
    %v6861 = vld [vmem:[%s57 + $0x3c8] sm:$0xff]
    %v6862 = vld [vmem:[%s57 + $0x3d0] sm:$0xff]
    %v6863 = vld [vmem:[%s57 + $0x3d8] sm:$0xff]
    %v6864 = vld [vmem:[%s57 + $0x3e0] sm:$0xff]
    %v6865 = vld [vmem:[%s57 + $0x3e8] sm:$0xff]
    %v6866 = vld [vmem:[%s57 + $0x3f0] sm:$0xff]
    %v6867 = vld [vmem:[%s57 + $0x3f8] sm:$0xff]
    %v6868 = vld [vmem:[%s57 + $0x400] sm:$0xff]
    %v6869 = vld [vmem:[%s57 + $0x408] sm:$0xff]
    %v6870 = vld [vmem:[%s57 + $0x410] sm:$0xff]
    %v6871 = vld [vmem:[%s57 + $0x418] sm:$0xff]
    %v6872 = vld [vmem:[%s57 + $0x420] sm:$0xff]
    %v6873 = vld [vmem:[%s57 + $0x428] sm:$0xff]
    %v6874 = vld [vmem:[%s57 + $0x430] sm:$0xff]
    %v6875 = vld [vmem:[%s57 + $0x438] sm:$0xff]
    %v6876 = vld [vmem:[%s57 + $0x440] sm:$0xff]
    %v6877 = vld [vmem:[%s57 + $0x448] sm:$0xff]
    %v6878 = vld [vmem:[%s57 + $0x450] sm:$0xff]
    %v6879 = vld [vmem:[%s57 + $0x458] sm:$0xff]
    %v6880 = vld [vmem:[%s57 + $0x460] sm:$0xff]
    %v6881 = vld [vmem:[%s57 + $0x468] sm:$0xff]
    %v6882 = vld [vmem:[%s57 + $0x470] sm:$0xff]
    %v6883 = vld [vmem:[%s57 + $0x478] sm:$0xff]
    %v6884 = vld [vmem:[%s57 + $0x480] sm:$0xff]
    %v6885 = vld [vmem:[%s57 + $0x488] sm:$0xff]
    %v6886 = vld [vmem:[%s57 + $0x490] sm:$0xff]
    %v6887 = vld [vmem:[%s57 + $0x498] sm:$0xff]
    %v6888 = vld [vmem:[%s57 + $0x4a0] sm:$0xff]
    %v6889 = vld [vmem:[%s57 + $0x4a8] sm:$0xff]
    %v6890 = vld [vmem:[%s57 + $0x4b0] sm:$0xff]
    %v6891 = vld [vmem:[%s57 + $0x4b8] sm:$0xff]
    %v6892 = vld [vmem:[%s57 + $0x4c0] sm:$0xff]
    %v6893 = vld [vmem:[%s57 + $0x4c8] sm:$0xff]
    %v6894 = vld [vmem:[%s57 + $0x4d0] sm:$0xff]
    %v6895 = vld [vmem:[%s57 + $0x4d8] sm:$0xff]
    %v6896 = vld [vmem:[%s57 + $0x4e0] sm:$0xff]
    %v6897 = vld [vmem:[%s57 + $0x4e8] sm:$0xff]
    %v6898 = vld [vmem:[%s57 + $0x4f0] sm:$0xff]
    %v6899 = vld [vmem:[%s57 + $0x4f8] sm:$0xff]
    %v6900 = vld [vmem:[%s57 + $0x500] sm:$0xff]
    %v6901 = vld [vmem:[%s57 + $0x508] sm:$0xff]
    %v6902 = vld [vmem:[%s57 + $0x510] sm:$0xff]
    %v6903 = vld [vmem:[%s57 + $0x518] sm:$0xff]
    %v6904 = vld [vmem:[%s57 + $0x520] sm:$0xff]
    %v6905 = vld [vmem:[%s57 + $0x528] sm:$0xff]
    %v6906 = vld [vmem:[%s57 + $0x530] sm:$0xff]
    %v6907 = vld [vmem:[%s57 + $0x538] sm:$0xff]
    %v6908 = vld [vmem:[%s57 + $0x540] sm:$0xff]
    %v6909 = vld [vmem:[%s57 + $0x548] sm:$0xff]
    %v6910 = vld [vmem:[%s57 + $0x550] sm:$0xff]
    %v6911 = vld [vmem:[%s57 + $0x558] sm:$0xff]
    %v6912 = vld [vmem:[%s57 + $0x560] sm:$0xff]
    %v6913 = vld [vmem:[%s57 + $0x568] sm:$0xff]
    %v6914 = vld [vmem:[%s57 + $0x570] sm:$0xff]
    %v6915 = vld [vmem:[%s57 + $0x578] sm:$0xff]
    %v6916 = vld [vmem:[%s57 + $0x580] sm:$0xff]
    %v6917 = vld [vmem:[%s57 + $0x588] sm:$0xff]
    %v6918 = vld [vmem:[%s57 + $0x590] sm:$0xff]
    %v6919 = vld [vmem:[%s57 + $0x598] sm:$0xff]
    %v6920 = vld [vmem:[%s57 + $0x5a0] sm:$0xff]
    %v6921 = vld [vmem:[%s57 + $0x5a8] sm:$0xff]
    %v6922 = vld [vmem:[%s57 + $0x5b0] sm:$0xff]
    %v6923 = vld [vmem:[%s57 + $0x5b8] sm:$0xff]
    %v6924 = vld [vmem:[%s57 + $0x5c0] sm:$0xff]
    %v6925 = vld [vmem:[%s57 + $0x5c8] sm:$0xff]
    %v6926 = vld [vmem:[%s57 + $0x5d0] sm:$0xff]
    %v6927 = vld [vmem:[%s57 + $0x5d8] sm:$0xff]
    %v6928 = vld [vmem:[%s57 + $0x5e0] sm:$0xff]
    %v6929 = vld [vmem:[%s57 + $0x5e8] sm:$0xff]
    %v6930 = vld [vmem:[%s57 + $0x5f0] sm:$0xff]
    %v6931 = vld [vmem:[%s57 + $0x5f8] sm:$0xff]
    %v6932 = vld [vmem:[%s57 + $0x600] sm:$0xff]
    %v6933 = vld [vmem:[%s57 + $0x608] sm:$0xff]
    %v6934 = vld [vmem:[%s57 + $0x610] sm:$0xff]
    %v6935 = vld [vmem:[%s57 + $0x618] sm:$0xff]
    %vm6936 = vcmask 261120
    %v6938 = vsel %vm6936, %v6739, 0
    %6940 = vmatprep.subr.mxu0 0.0
    %6941 = vmatpush1.msra.mxu0 %v6740
    %6942 = vmatprep.subr.mxu0 0.0
    %6943 = vmatpush1.msra.mxu0 %v6741
    %6944 = vmatprep.subr.mxu0 0.0
    %6945 = vmatpush1.msra.mxu0 %v6742
    %6946 = vmatprep.subr.mxu0 0.0
    %6947 = vmatpush1.msra.mxu0 %v6743
    %6948 = vmatprep.subr.mxu0 0.0
    %6949 = vmatpush1.msra.mxu0 %v6744
    %6950 = vmatprep.subr.mxu0 0.0
    %6951 = vmatpush1.msra.mxu0 %v6745
    %6952 = vmatprep.subr.mxu0 0.0
    %6953 = vmatpush1.msra.mxu0 %v6746
    %6954 = vmatprep.subr.mxu0 0.0
    %6955 = vmatpush1.msra.mxu0 %v6747
    %6956 = vmatprep.subr.mxu0 0.0
    %6957 = vmatpush1.msra.mxu0 %v6748
    %6958 = vmatprep.subr.mxu0 0.0
    %6959 = vmatpush1.msra.mxu0 %v6749
    %6960 = vmatprep.subr.mxu0 0.0
    %6961 = vmatpush1.msra.mxu0 %v6750
    %6962 = vmatprep.subr.mxu0 0.0
    %6963 = vmatpush1.msra.mxu0 %v6751
    %6964 = vmatprep.subr.mxu0 0.0
    %6965 = vmatpush1.msra.mxu0 %v6752
    %6966 = vmatprep.subr.mxu0 0.0
    %6967 = vmatpush1.msra.mxu0 %v6753
    %6968 = vmatprep.subr.mxu0 0.0
    %6969 = vmatpush1.msra.mxu0 %v6754
    %6970 = vmatprep.subr.mxu0 0.0
    %6971 = vmatpush1.msra.mxu0 %v6755
    %6972 = vmatprep.subr.mxu0 0.0
    %6973 = vmatpush1.msra.mxu0 %v6756
    %6974 = vmatprep.subr.mxu0 0.0
    %6975 = vmatpush1.msra.mxu0 %v6757
    %6976 = vmatprep.subr.mxu0 0.0
    %6977 = vmatpush1.msra.mxu0 %v6758
    %6978 = vmatprep.subr.mxu0 0.0
    %6979 = vmatpush1.msra.mxu0 %v6759
    %6980 = vmatprep.subr.mxu0 0.0
    %6981 = vmatpush1.msra.mxu0 %v6760
    %6982 = vmatprep.subr.mxu0 0.0
    %6983 = vmatpush1.msra.mxu0 %v6761
    %6984 = vmatprep.subr.mxu0 0.0
    %6985 = vmatpush1.msra.mxu0 %v6762
    %6986 = vmatprep.subr.mxu0 0.0
    %6987 = vmatpush1.msra.mxu0 %v6763
    %6988 = vmatprep.subr.mxu0 0.0
    %6989 = vmatpush1.msra.mxu0 %v6764
    %6990 = vmatprep.subr.mxu0 0.0
    %6991 = vmatpush1.msra.mxu0 %v6765
    %6992 = vmatprep.subr.mxu0 0.0
    %6993 = vmatpush1.msra.mxu0 %v6766
    %6994 = vmatprep.subr.mxu0 0.0
    %6995 = vmatpush1.msra.mxu0 %v6767
    %6996 = vmatprep.subr.mxu0 0.0
    %6997 = vmatpush1.msra.mxu0 %v6768
    %6998 = vmatprep.subr.mxu0 0.0
    %6999 = vmatpush1.msra.mxu0 %v6769
    %7000 = vmatprep.subr.mxu0 0.0
    %7001 = vmatpush1.msra.mxu0 %v6770
    %7002 = vmatprep.subr.mxu0 0.0
    %7003 = vmatpush1.msra.mxu0 %v6771
    %7004 = vmatprep.mubr.f32.mxu0 %v6661
    %7005 = vmatmul.mubr.f32.gmra.mrb[0].mxu0 %v6654
    %v7006 = vpop.f32.mrb[0].mxu0
    %v7007 = vadd.f32 0.0, %v7006
    %v7008 = vpop.f32.mrb[0].mxu0
    %7009 = vdwg.mxu0
    %7010 = vmatprep.subr.mxu0 0.0
    %7011 = vmatpush1.msra.mxu0 %v6772
    %7012 = vmatprep.subr.mxu0 0.0
    %7013 = vmatpush1.msra.mxu0 %v6773
    %7014 = vmatprep.subr.mxu0 0.0
    %7015 = vmatpush1.msra.mxu0 %v6774
    %7016 = vmatprep.subr.mxu0 0.0
    %7017 = vmatpush1.msra.mxu0 %v6775
    %7018 = vmatprep.subr.mxu0 0.0
    %7019 = vmatpush1.msra.mxu0 %v6776
    %7020 = vmatprep.subr.mxu0 0.0
    %7021 = vmatpush1.msra.mxu0 %v6777
    %7022 = vmatprep.subr.mxu0 0.0
    %7023 = vmatpush1.msra.mxu0 %v6778
    %7024 = vmatprep.subr.mxu0 0.0
    %7025 = vmatpush1.msra.mxu0 %v6779
    %7026 = vmatprep.subr.mxu0 0.0
    %7027 = vmatpush1.msra.mxu0 %v6780
    %7028 = vmatprep.subr.mxu0 0.0
    %7029 = vmatpush1.msra.mxu0 %v6781
    %7030 = vmatprep.subr.mxu0 0.0
    %7031 = vmatpush1.msra.mxu0 %v6782
    %7032 = vmatprep.subr.mxu0 0.0
    %7033 = vmatpush1.msra.mxu0 %v6783
    %7034 = vmatprep.subr.mxu0 0.0
    %7035 = vmatpush1.msra.mxu0 %v6784
    %7036 = vmatprep.subr.mxu0 0.0
    %7037 = vmatpush1.msra.mxu0 %v6785
    %7038 = vmatprep.subr.mxu0 0.0
    %7039 = vmatpush1.msra.mxu0 %v6786
    %7040 = vmatprep.subr.mxu0 0.0
    %7041 = vmatpush1.msra.mxu0 %v6787
    %7042 = vmatprep.subr.mxu0 0.0
    %7043 = vmatpush1.msra.mxu0 %v6788
    %7044 = vmatprep.subr.mxu0 0.0
    %7045 = vmatpush1.msra.mxu0 %v6789
    %7046 = vmatprep.subr.mxu0 0.0
    %7047 = vmatpush1.msra.mxu0 %v6790
    %7048 = vmatprep.subr.mxu0 0.0
    %7049 = vmatpush1.msra.mxu0 %v6791
    %7050 = vmatprep.subr.mxu0 0.0
    %7051 = vmatpush1.msra.mxu0 %v6792
    %7052 = vmatprep.subr.mxu0 0.0
    %7053 = vmatpush1.msra.mxu0 %v6793
    %7054 = vmatprep.subr.mxu0 0.0
    %7055 = vmatpush1.msra.mxu0 %v6794
    %7056 = vmatprep.subr.mxu0 0.0
    %7057 = vmatpush1.msra.mxu0 %v6795
    %7058 = vmatprep.subr.mxu0 0.0
    %7059 = vmatpush1.msra.mxu0 %v6796
    %7060 = vmatprep.subr.mxu0 0.0
    %7061 = vmatpush1.msra.mxu0 %v6797
    %7062 = vmatprep.subr.mxu0 0.0
    %7063 = vmatpush1.msra.mxu0 %v6798
    %7064 = vmatprep.subr.mxu0 0.0
    %7065 = vmatpush1.msra.mxu0 %v6799
    %7066 = vmatprep.subr.mxu0 0.0
    %7067 = vmatpush1.msra.mxu0 %v6800
    %7068 = vmatprep.subr.mxu0 0.0
    %7069 = vmatpush1.msra.mxu0 %v6801
    %7070 = vmatprep.subr.mxu0 0.0
    %7071 = vmatpush1.msra.mxu0 %v6802
    %7072 = vmatprep.subr.mxu0 0.0
    %7073 = vmatpush1.msra.mxu0 %v6803
    %7074 = vmatprep.mubr.f32.mxu0 %v6675
    %7075 = vmatmul.mubr.f32.gmra.mrb[0].mxu0 %v6668
    %v7076 = vpop.f32.mrb[0].mxu0
    %v7077 = vadd.f32 %v7007, %v7076
    %v7078 = vpop.f32.mrb[0].mxu0
    %7079 = vdwg.mxu0
    %7080 = vmatprep.subr.mxu0 0.0
    %7081 = vmatpush1.msra.mxu0 %v6804
    %7082 = vmatprep.subr.mxu0 0.0
    %7083 = vmatpush1.msra.mxu0 %v6805
    %7084 = vmatprep.subr.mxu0 0.0
    %7085 = vmatpush1.msra.mxu0 %v6806
    %7086 = vmatprep.subr.mxu0 0.0
    %7087 = vmatpush1.msra.mxu0 %v6807
    %7088 = vmatprep.subr.mxu0 0.0
    %7089 = vmatpush1.msra.mxu0 %v6808
    %7090 = vmatprep.subr.mxu0 0.0
    %7091 = vmatpush1.msra.mxu0 %v6809
    %7092 = vmatprep.subr.mxu0 0.0
    %7093 = vmatpush1.msra.mxu0 %v6810
    %7094 = vmatprep.subr.mxu0 0.0
    %7095 = vmatpush1.msra.mxu0 %v6811
    %7096 = vmatprep.subr.mxu0 0.0
    %7097 = vmatpush1.msra.mxu0 %v6812
    %7098 = vmatprep.subr.mxu0 0.0
    %7099 = vmatpush1.msra.mxu0 %v6813
    %7100 = vmatprep.subr.mxu0 0.0
    %7101 = vmatpush1.msra.mxu0 %v6814
    %7102 = vmatprep.subr.mxu0 0.0
    %7103 = vmatpush1.msra.mxu0 %v6815
    %7104 = vmatprep.subr.mxu0 0.0
    %7105 = vmatpush1.msra.mxu0 %v6816
    %7106 = vmatprep.subr.mxu0 0.0
    %7107 = vmatpush1.msra.mxu0 %v6817
    %7108 = vmatprep.subr.mxu0 0.0
    %7109 = vmatpush1.msra.mxu0 %v6818
    %7110 = vmatprep.subr.mxu0 0.0
    %7111 = vmatpush1.msra.mxu0 %v6819
    %7112 = vmatprep.subr.mxu0 0.0
    %7113 = vmatpush1.msra.mxu0 %v6820
    %7114 = vmatprep.subr.mxu0 0.0
    %7115 = vmatpush1.msra.mxu0 %v6821
    %7116 = vmatprep.subr.mxu0 0.0
    %7117 = vmatpush1.msra.mxu0 %v6822
    %7118 = vmatprep.subr.mxu0 0.0
    %7119 = vmatpush1.msra.mxu0 %v6823
    %7120 = vmatprep.subr.mxu0 0.0
    %7121 = vmatpush1.msra.mxu0 %v6824
    %7122 = vmatprep.subr.mxu0 0.0
    %7123 = vmatpush1.msra.mxu0 %v6825
    %7124 = vmatprep.subr.mxu0 0.0
    %7125 = vmatpush1.msra.mxu0 %v6826
    %7126 = vmatprep.subr.mxu0 0.0
    %7127 = vmatpush1.msra.mxu0 %v6827
    %7128 = vmatprep.subr.mxu0 0.0
    %7129 = vmatpush1.msra.mxu0 %v6828
    %7130 = vmatprep.subr.mxu0 0.0
    %7131 = vmatpush1.msra.mxu0 %v6829
    %7132 = vmatprep.subr.mxu0 0.0
    %7133 = vmatpush1.msra.mxu0 %v6830
    %7134 = vmatprep.subr.mxu0 0.0
    %7135 = vmatpush1.msra.mxu0 %v6831
    %7136 = vmatprep.subr.mxu0 0.0
    %7137 = vmatpush1.msra.mxu0 %v6832
    %7138 = vmatprep.subr.mxu0 0.0
    %7139 = vmatpush1.msra.mxu0 %v6833
    %7140 = vmatprep.subr.mxu0 0.0
    %7141 = vmatpush1.msra.mxu0 %v6834
    %7142 = vmatprep.subr.mxu0 0.0
    %7143 = vmatpush1.msra.mxu0 %v6835
    %7144 = vmatprep.mubr.f32.mxu0 %v6689
    %7145 = vmatmul.mubr.f32.gmra.mrb[0].mxu0 %v6682
    %v7146 = vpop.f32.mrb[0].mxu0
    %v7147 = vadd.f32 %v7077, %v7146
    %v7148 = vpop.f32.mrb[0].mxu0
    %7149 = vdwg.mxu0
    %7150 = vmatprep.subr.mxu0 0.0
    %7151 = vmatpush1.msra.mxu0 %v6836
    %7152 = vmatprep.subr.mxu0 0.0
    %7153 = vmatpush1.msra.mxu0 %v6837
    %7154 = vmatprep.subr.mxu0 0.0
    %7155 = vmatpush1.msra.mxu0 %v6838
    %7156 = vmatprep.subr.mxu0 0.0
    %7157 = vmatpush1.msra.mxu0 %v6839
    %7158 = vmatprep.subr.mxu0 0.0
    %7159 = vmatpush1.msra.mxu0 %v6840
    %7160 = vmatprep.subr.mxu0 0.0
    %7161 = vmatpush1.msra.mxu0 %v6841
    %7162 = vmatprep.subr.mxu0 0.0
    %7163 = vmatpush1.msra.mxu0 %v6842
    %7164 = vmatprep.subr.mxu0 0.0
    %7165 = vmatpush1.msra.mxu0 %v6843
    %7166 = vmatprep.subr.mxu0 0.0
    %7167 = vmatpush1.msra.mxu0 %v6844
    %7168 = vmatprep.subr.mxu0 0.0
    %7169 = vmatpush1.msra.mxu0 %v6845
    %7170 = vmatprep.subr.mxu0 0.0
    %7171 = vmatpush1.msra.mxu0 %v6846
    %7172 = vmatprep.subr.mxu0 0.0
    %7173 = vmatpush1.msra.mxu0 %v6847
    %7174 = vmatprep.subr.mxu0 0.0
    %7175 = vmatpush1.msra.mxu0 %v6848
    %7176 = vmatprep.subr.mxu0 0.0
    %7177 = vmatpush1.msra.mxu0 %v6849
    %7178 = vmatprep.subr.mxu0 0.0
    %7179 = vmatpush1.msra.mxu0 %v6850
    %7180 = vmatprep.subr.mxu0 0.0
    %7181 = vmatpush1.msra.mxu0 %v6851
    %7182 = vmatprep.subr.mxu0 0.0
    %7183 = vmatpush1.msra.mxu0 %v6852
    %7184 = vmatprep.subr.mxu0 0.0
    %7185 = vmatpush1.msra.mxu0 %v6853
    %7186 = vmatprep.subr.mxu0 0.0
    %7187 = vmatpush1.msra.mxu0 %v6854
    %7188 = vmatprep.subr.mxu0 0.0
    %7189 = vmatpush1.msra.mxu0 %v6855
    %7190 = vmatprep.subr.mxu0 0.0
    %7191 = vmatpush1.msra.mxu0 %v6856
    %7192 = vmatprep.subr.mxu0 0.0
    %7193 = vmatpush1.msra.mxu0 %v6857
    %7194 = vmatprep.subr.mxu0 0.0
    %7195 = vmatpush1.msra.mxu0 %v6858
    %7196 = vmatprep.subr.mxu0 0.0
    %7197 = vmatpush1.msra.mxu0 %v6859
    %7198 = vmatprep.subr.mxu0 0.0
    %7199 = vmatpush1.msra.mxu0 %v6860
    %7200 = vmatprep.subr.mxu0 0.0
    %7201 = vmatpush1.msra.mxu0 %v6861
    %7202 = vmatprep.subr.mxu0 0.0
    %7203 = vmatpush1.msra.mxu0 %v6862
    %7204 = vmatprep.subr.mxu0 0.0
    %7205 = vmatpush1.msra.mxu0 %v6863
    %7206 = vmatprep.subr.mxu0 0.0
    %7207 = vmatpush1.msra.mxu0 %v6864
    %7208 = vmatprep.subr.mxu0 0.0
    %7209 = vmatpush1.msra.mxu0 %v6865
    %7210 = vmatprep.subr.mxu0 0.0
    %7211 = vmatpush1.msra.mxu0 %v6866
    %7212 = vmatprep.subr.mxu0 0.0
    %7213 = vmatpush1.msra.mxu0 %v6867
    %7214 = vmatprep.mubr.f32.mxu0 %v6703
    %7215 = vmatmul.mubr.f32.gmra.mrb[0].mxu0 %v6696
    %v7216 = vpop.f32.mrb[0].mxu0
    %v7217 = vadd.f32 %v7147, %v7216
    %v7218 = vpop.f32.mrb[0].mxu0
    %7219 = vdwg.mxu0
    %7220 = vmatprep.subr.mxu0 0.0
    %7221 = vmatpush1.msra.mxu0 %v6868
    %7222 = vmatprep.subr.mxu0 0.0
    %7223 = vmatpush1.msra.mxu0 %v6869
    %7224 = vmatprep.subr.mxu0 0.0
    %7225 = vmatpush1.msra.mxu0 %v6870
    %7226 = vmatprep.subr.mxu0 0.0
    %7227 = vmatpush1.msra.mxu0 %v6871
    %7228 = vmatprep.subr.mxu0 0.0
    %7229 = vmatpush1.msra.mxu0 %v6872
    %7230 = vmatprep.subr.mxu0 0.0
    %7231 = vmatpush1.msra.mxu0 %v6873
    %7232 = vmatprep.subr.mxu0 0.0
    %7233 = vmatpush1.msra.mxu0 %v6874
    %7234 = vmatprep.subr.mxu0 0.0
    %7235 = vmatpush1.msra.mxu0 %v6875
    %7236 = vmatprep.subr.mxu0 0.0
    %7237 = vmatpush1.msra.mxu0 %v6876
    %7238 = vmatprep.subr.mxu0 0.0
    %7239 = vmatpush1.msra.mxu0 %v6877
    %7240 = vmatprep.subr.mxu0 0.0
    %7241 = vmatpush1.msra.mxu0 %v6878
    %7242 = vmatprep.subr.mxu0 0.0
    %7243 = vmatpush1.msra.mxu0 %v6879
    %7244 = vmatprep.subr.mxu0 0.0
    %7245 = vmatpush1.msra.mxu0 %v6880
    %7246 = vmatprep.subr.mxu0 0.0
    %7247 = vmatpush1.msra.mxu0 %v6881
    %7248 = vmatprep.subr.mxu0 0.0
    %7249 = vmatpush1.msra.mxu0 %v6882
    %7250 = vmatprep.subr.mxu0 0.0
    %7251 = vmatpush1.msra.mxu0 %v6883
    %7252 = vmatprep.subr.mxu0 0.0
    %7253 = vmatpush1.msra.mxu0 %v6884
    %7254 = vmatprep.subr.mxu0 0.0
    %7255 = vmatpush1.msra.mxu0 %v6885
    %7256 = vmatprep.subr.mxu0 0.0
    %7257 = vmatpush1.msra.mxu0 %v6886
    %7258 = vmatprep.subr.mxu0 0.0
    %7259 = vmatpush1.msra.mxu0 %v6887
    %7260 = vmatprep.subr.mxu0 0.0
    %7261 = vmatpush1.msra.mxu0 %v6888
    %7262 = vmatprep.subr.mxu0 0.0
    %7263 = vmatpush1.msra.mxu0 %v6889
    %7264 = vmatprep.subr.mxu0 0.0
    %7265 = vmatpush1.msra.mxu0 %v6890
    %7266 = vmatprep.subr.mxu0 0.0
    %7267 = vmatpush1.msra.mxu0 %v6891
    %7268 = vmatprep.subr.mxu0 0.0
    %7269 = vmatpush1.msra.mxu0 %v6892
    %7270 = vmatprep.subr.mxu0 0.0
    %7271 = vmatpush1.msra.mxu0 %v6893
    %7272 = vmatprep.subr.mxu0 0.0
    %7273 = vmatpush1.msra.mxu0 %v6894
    %7274 = vmatprep.subr.mxu0 0.0
    %7275 = vmatpush1.msra.mxu0 %v6895
    %7276 = vmatprep.subr.mxu0 0.0
    %7277 = vmatpush1.msra.mxu0 %v6896
    %7278 = vmatprep.subr.mxu0 0.0
    %7279 = vmatpush1.msra.mxu0 %v6897
    %7280 = vmatprep.subr.mxu0 0.0
    %7281 = vmatpush1.msra.mxu0 %v6898
    %7282 = vmatprep.subr.mxu0 0.0
    %7283 = vmatpush1.msra.mxu0 %v6899
    %7284 = vmatprep.mubr.f32.mxu0 %v6717
    %7285 = vmatmul.mubr.f32.gmra.mrb[0].mxu0 %v6710
    %v7286 = vpop.f32.mrb[0].mxu0
    %v7287 = vadd.f32 %v7217, %v7286
    %v7288 = vpop.f32.mrb[0].mxu0
    %7289 = vdwg.mxu0
    %7290 = vmatprep.subr.mxu0 0.0
    %7291 = vmatpush1.msra.mxu0 %v6900
    %7292 = vmatprep.subr.mxu0 0.0
    %7293 = vmatpush1.msra.mxu0 %v6901
    %7294 = vmatprep.subr.mxu0 0.0
    %7295 = vmatpush1.msra.mxu0 %v6902
    %7296 = vmatprep.subr.mxu0 0.0
    %7297 = vmatpush1.msra.mxu0 %v6903
    %7298 = vmatprep.subr.mxu0 0.0
    %7299 = vmatpush1.msra.mxu0 %v6904
    %7300 = vmatprep.subr.mxu0 0.0
    %7301 = vmatpush1.msra.mxu0 %v6905
    %7302 = vmatprep.subr.mxu0 0.0
    %7303 = vmatpush1.msra.mxu0 %v6906
    %7304 = vmatprep.subr.mxu0 0.0
    %7305 = vmatpush1.msra.mxu0 %v6907
    %7306 = vmatprep.subr.mxu0 0.0
    %7307 = vmatpush1.msra.mxu0 %v6908
    %7308 = vmatprep.subr.mxu0 0.0
    %7309 = vmatpush1.msra.mxu0 %v6909
    %7310 = vmatprep.subr.mxu0 0.0
    %7311 = vmatpush1.msra.mxu0 %v6910
    %7312 = vmatprep.subr.mxu0 0.0
    %7313 = vmatpush1.msra.mxu0 %v6911
    %7314 = vmatprep.subr.mxu0 0.0
    %7315 = vmatpush1.msra.mxu0 %v6912
    %7316 = vmatprep.subr.mxu0 0.0
    %7317 = vmatpush1.msra.mxu0 %v6913
    %7318 = vmatprep.subr.mxu0 0.0
    %7319 = vmatpush1.msra.mxu0 %v6914
    %7320 = vmatprep.subr.mxu0 0.0
    %7321 = vmatpush1.msra.mxu0 %v6915
    %7322 = vmatprep.subr.mxu0 0.0
    %7323 = vmatpush1.msra.mxu0 %v6916
    %7324 = vmatprep.subr.mxu0 0.0
    %7325 = vmatpush1.msra.mxu0 %v6917
    %7326 = vmatprep.subr.mxu0 0.0
    %7327 = vmatpush1.msra.mxu0 %v6918
    %7328 = vmatprep.subr.mxu0 0.0
    %7329 = vmatpush1.msra.mxu0 %v6919
    %7330 = vmatprep.subr.mxu0 0.0
    %7331 = vmatpush1.msra.mxu0 %v6920
    %7332 = vmatprep.subr.mxu0 0.0
    %7333 = vmatpush1.msra.mxu0 %v6921
    %7334 = vmatprep.subr.mxu0 0.0
    %7335 = vmatpush1.msra.mxu0 %v6922
    %7336 = vmatprep.subr.mxu0 0.0
    %7337 = vmatpush1.msra.mxu0 %v6923
    %7338 = vmatprep.subr.mxu0 0.0
    %7339 = vmatpush1.msra.mxu0 %v6924
    %7340 = vmatprep.subr.mxu0 0.0
    %7341 = vmatpush1.msra.mxu0 %v6925
    %7342 = vmatprep.subr.mxu0 0.0
    %7343 = vmatpush1.msra.mxu0 %v6926
    %7344 = vmatprep.subr.mxu0 0.0
    %7345 = vmatpush1.msra.mxu0 %v6927
    %7346 = vmatprep.subr.mxu0 0.0
    %7347 = vmatpush1.msra.mxu0 %v6928
    %7348 = vmatprep.subr.mxu0 0.0
    %7349 = vmatpush1.msra.mxu0 %v6929
    %7350 = vmatprep.subr.mxu0 0.0
    %7351 = vmatpush1.msra.mxu0 %v6930
    %7352 = vmatprep.subr.mxu0 0.0
    %7353 = vmatpush1.msra.mxu0 %v6931
    %7354 = vmatprep.mubr.f32.mxu0 %v6731
    %7355 = vmatmul.mubr.f32.gmra.mrb[0].mxu0 %v6724
    %v7356 = vpop.f32.mrb[0].mxu0
    %v7357 = vadd.f32 %v7287, %v7356
    %v7358 = vpop.f32.mrb[0].mxu0
    %7359 = vdwg.mxu0
    %7360 = vmatprep.subr.mxu0 0.0
    %7361 = vmatpush1.msra.mxu0 %v6932
    %7362 = vmatprep.subr.mxu0 0.0
    %7363 = vmatpush1.msra.mxu0 %v6933
    %7364 = vmatprep.subr.mxu0 0.0
    %7365 = vmatpush1.msra.mxu0 %v6934
    %7366 = vmatprep.subr.mxu0 0.0
    %7367 = vmatpush1.msra.mxu0 %v6935
    %7368 = vmatprep.subr.mxu0 0.0
    %7369 = vmatpush1.msra.mxu0 0.0
    %7370 = vmatprep.subr.mxu0 0.0
    %7371 = vmatpush1.msra.mxu0 0.0
    %7372 = vmatprep.subr.mxu0 0.0
    %7373 = vmatpush1.msra.mxu0 0.0
    %7374 = vmatprep.subr.mxu0 0.0
    %7375 = vmatpush1.msra.mxu0 0.0
    %7376 = vmatprep.subr.mxu0 0.0
    %7377 = vmatpush1.msra.mxu0 0.0
    %7378 = vmatprep.subr.mxu0 0.0
    %7379 = vmatpush1.msra.mxu0 0.0
    %7380 = vmatprep.subr.mxu0 0.0
    %7381 = vmatpush1.msra.mxu0 0.0
    %7382 = vmatprep.subr.mxu0 0.0
    %7383 = vmatpush1.msra.mxu0 0.0
    %7384 = vmatprep.subr.mxu0 0.0
    %7385 = vmatpush1.msra.mxu0 0.0
    %7386 = vmatprep.subr.mxu0 0.0
    %7387 = vmatpush1.msra.mxu0 0.0
    %7388 = vmatprep.subr.mxu0 0.0
    %7389 = vmatpush1.msra.mxu0 0.0
    %7390 = vmatprep.subr.mxu0 0.0
    %7391 = vmatpush1.msra.mxu0 0.0
    %7392 = vmatprep.subr.mxu0 0.0
    %7393 = vmatpush1.msra.mxu0 0.0
    %7394 = vmatprep.subr.mxu0 0.0
    %7395 = vmatpush1.msra.mxu0 0.0
    %7396 = vmatprep.subr.mxu0 0.0
    %7397 = vmatpush1.msra.mxu0 0.0
    %7398 = vmatprep.subr.mxu0 0.0
    %7399 = vmatpush1.msra.mxu0 0.0
    %7400 = vmatprep.subr.mxu0 0.0
    %7401 = vmatpush1.msra.mxu0 0.0
    %7402 = vmatprep.subr.mxu0 0.0
    %7403 = vmatpush1.msra.mxu0 0.0
    %7404 = vmatprep.subr.mxu0 0.0
    %7405 = vmatpush1.msra.mxu0 0.0
    %7406 = vmatprep.subr.mxu0 0.0
    %7407 = vmatpush1.msra.mxu0 0.0
    %7408 = vmatprep.subr.mxu0 0.0
    %7409 = vmatpush1.msra.mxu0 0.0
    %7410 = vmatprep.subr.mxu0 0.0
    %7411 = vmatpush1.msra.mxu0 0.0
    %7412 = vmatprep.subr.mxu0 0.0
    %7413 = vmatpush1.msra.mxu0 0.0
    %7414 = vmatprep.subr.mxu0 0.0
    %7415 = vmatpush1.msra.mxu0 0.0
    %7416 = vmatprep.subr.mxu0 0.0
    %7417 = vmatpush1.msra.mxu0 0.0
    %7418 = vmatprep.subr.mxu0 0.0
    %7419 = vmatpush1.msra.mxu0 0.0
    %7420 = vmatprep.subr.mxu0 0.0
    %7421 = vmatpush1.msra.mxu0 0.0
    %7422 = vmatprep.subr.mxu0 0.0
    %7423 = vmatpush1.msra.mxu0 0.0
    %7424 = vmatprep.mubr.f32.mxu0 0.0
    %7425 = vmatmul.mubr.f32.gmra.mrb[0].mxu0 %v6938
    %v7426 = vpop.f32.mrb[0].mxu0
    %v7427 = vadd.f32 %v7357, %v7426
    %v7428 = vpop.f32.mrb[0].mxu0
    %7429 = vdwg.mxu0
    %v7430 = vmul.f32 %v6635, %v6635
    %v7431 = vmul.f32 %v6636, %v6636
    %v7432 = vmul.f32 %v6637, %v6637
    %v7433 = vmul.f32 %v6638, %v6638
    %v7434 = vmul.f32 %v6639, %v6639
    %v7435 = vmul.f32 %v6640, %v6640
    %v7436 = vmul.f32 %v6641, %v6641
    %v7437 = vmul.f32 %v6642, %v6642
    %v7438 = vmul.f32 %v6643, %v6643
    %v7439 = vmul.f32 %v6644, %v6644
    %v7440 = vmul.f32 %v6645, %v6645
    %v7441 = vmul.f32 %v6646, %v6646
    %v7442 = vmul.f32 %v6647, %v6647
    %v7443 = vsel %vm1608, %v7430, 0.0
    %v7444 = vrot.slane %v7443, 4
    %v7445 = vadd.f32 %v7443, %v7444
    %v7446 = vrot.slane %v7445, 2
    %v7447 = vadd.f32 %v7445, %v7446
    %v7448 = vrot.slane %v7447, 1
    %v7449 = vadd.f32 %v7447, %v7448
    %v7450 = vsel %vm1608, %v7431, 0.0
    %v7451 = vrot.slane %v7450, 4
    %v7452 = vadd.f32 %v7450, %v7451
    %v7453 = vrot.slane %v7452, 2
    %v7454 = vadd.f32 %v7452, %v7453
    %v7455 = vrot.slane %v7454, 1
    %v7456 = vadd.f32 %v7454, %v7455
    %v7457 = vsel %vm1608, %v7432, 0.0
    %v7458 = vrot.slane %v7457, 4
    %v7459 = vadd.f32 %v7457, %v7458
    %v7460 = vrot.slane %v7459, 2
    %v7461 = vadd.f32 %v7459, %v7460
    %v7462 = vrot.slane %v7461, 1
    %v7463 = vadd.f32 %v7461, %v7462
    %v7464 = vsel %vm1608, %v7433, 0.0
    %v7465 = vrot.slane %v7464, 4
    %v7466 = vadd.f32 %v7464, %v7465
    %v7467 = vrot.slane %v7466, 2
    %v7468 = vadd.f32 %v7466, %v7467
    %v7469 = vrot.slane %v7468, 1
    %v7470 = vadd.f32 %v7468, %v7469
    %v7471 = vsel %vm1608, %v7434, 0.0
    %v7472 = vrot.slane %v7471, 4
    %v7473 = vadd.f32 %v7471, %v7472
    %v7474 = vrot.slane %v7473, 2
    %v7475 = vadd.f32 %v7473, %v7474
    %v7476 = vrot.slane %v7475, 1
    %v7477 = vadd.f32 %v7475, %v7476
    %v7478 = vsel %vm1608, %v7435, 0.0
    %v7479 = vrot.slane %v7478, 4
    %v7480 = vadd.f32 %v7478, %v7479
    %v7481 = vrot.slane %v7480, 2
    %v7482 = vadd.f32 %v7480, %v7481
    %v7483 = vrot.slane %v7482, 1
    %v7484 = vadd.f32 %v7482, %v7483
    %v7485 = vsel %vm1608, %v7436, 0.0
    %v7486 = vrot.slane %v7485, 4
    %v7487 = vadd.f32 %v7485, %v7486
    %v7488 = vrot.slane %v7487, 2
    %v7489 = vadd.f32 %v7487, %v7488
    %v7490 = vrot.slane %v7489, 1
    %v7491 = vadd.f32 %v7489, %v7490
    %v7492 = vsel %vm1608, %v7437, 0.0
    %v7493 = vrot.slane %v7492, 4
    %v7494 = vadd.f32 %v7492, %v7493
    %v7495 = vrot.slane %v7494, 2
    %v7496 = vadd.f32 %v7494, %v7495
    %v7497 = vrot.slane %v7496, 1
    %v7498 = vadd.f32 %v7496, %v7497
    %v7499 = vsel %vm1608, %v7438, 0.0
    %v7500 = vrot.slane %v7499, 4
    %v7501 = vadd.f32 %v7499, %v7500
    %v7502 = vrot.slane %v7501, 2
    %v7503 = vadd.f32 %v7501, %v7502
    %v7504 = vrot.slane %v7503, 1
    %v7505 = vadd.f32 %v7503, %v7504
    %v7506 = vsel %vm1608, %v7439, 0.0
    %v7507 = vrot.slane %v7506, 4
    %v7508 = vadd.f32 %v7506, %v7507
    %v7509 = vrot.slane %v7508, 2
    %v7510 = vadd.f32 %v7508, %v7509
    %v7511 = vrot.slane %v7510, 1
    %v7512 = vadd.f32 %v7510, %v7511
    %v7513 = vsel %vm1608, %v7440, 0.0
    %v7514 = vrot.slane %v7513, 4
    %v7515 = vadd.f32 %v7513, %v7514
    %v7516 = vrot.slane %v7515, 2
    %v7517 = vadd.f32 %v7515, %v7516
    %v7518 = vrot.slane %v7517, 1
    %v7519 = vadd.f32 %v7517, %v7518
    %v7520 = vsel %vm1608, %v7441, 0.0
    %v7521 = vrot.slane %v7520, 4
    %v7522 = vadd.f32 %v7520, %v7521
    %v7523 = vrot.slane %v7522, 2
    %v7524 = vadd.f32 %v7522, %v7523
    %v7525 = vrot.slane %v7524, 1
    %v7526 = vadd.f32 %v7524, %v7525
    %v7527 = vsel %vm6732, %v7442, 0.0
    %v7528 = vrot.slane %v7527, 4
    %v7529 = vadd.f32 %v7527, %v7528
    %v7530 = vrot.slane %v7529, 2
    %v7531 = vadd.f32 %v7529, %v7530
    %v7532 = vrot.slane %v7531, 1
    %v7533 = vadd.f32 %v7531, %v7532
    %v7535 = vsel %vm6936, %v7533, 0
    %7537 = vmatprep.subr.mxu0 0.0
    %7538 = vmatpush1.msra.mxu0 %v6740
    %7539 = vmatprep.subr.mxu0 0.0
    %7540 = vmatpush1.msra.mxu0 %v6741
    %7541 = vmatprep.subr.mxu0 0.0
    %7542 = vmatpush1.msra.mxu0 %v6742
    %7543 = vmatprep.subr.mxu0 0.0
    %7544 = vmatpush1.msra.mxu0 %v6743
    %7545 = vmatprep.subr.mxu0 0.0
    %7546 = vmatpush1.msra.mxu0 %v6744
    %7547 = vmatprep.subr.mxu0 0.0
    %7548 = vmatpush1.msra.mxu0 %v6745
    %7549 = vmatprep.subr.mxu0 0.0
    %7550 = vmatpush1.msra.mxu0 %v6746
    %7551 = vmatprep.subr.mxu0 0.0
    %7552 = vmatpush1.msra.mxu0 %v6747
    %7553 = vmatprep.subr.mxu0 0.0
    %7554 = vmatpush1.msra.mxu0 %v6748
    %7555 = vmatprep.subr.mxu0 0.0
    %7556 = vmatpush1.msra.mxu0 %v6749
    %7557 = vmatprep.subr.mxu0 0.0
    %7558 = vmatpush1.msra.mxu0 %v6750
    %7559 = vmatprep.subr.mxu0 0.0
    %7560 = vmatpush1.msra.mxu0 %v6751
    %7561 = vmatprep.subr.mxu0 0.0
    %7562 = vmatpush1.msra.mxu0 %v6752
    %7563 = vmatprep.subr.mxu0 0.0
    %7564 = vmatpush1.msra.mxu0 %v6753
    %7565 = vmatprep.subr.mxu0 0.0
    %7566 = vmatpush1.msra.mxu0 %v6754
    %7567 = vmatprep.subr.mxu0 0.0
    %7568 = vmatpush1.msra.mxu0 %v6755
    %7569 = vmatprep.subr.mxu0 0.0
    %7570 = vmatpush1.msra.mxu0 %v6756
    %7571 = vmatprep.subr.mxu0 0.0
    %7572 = vmatpush1.msra.mxu0 %v6757
    %7573 = vmatprep.subr.mxu0 0.0
    %7574 = vmatpush1.msra.mxu0 %v6758
    %7575 = vmatprep.subr.mxu0 0.0
    %7576 = vmatpush1.msra.mxu0 %v6759
    %7577 = vmatprep.subr.mxu0 0.0
    %7578 = vmatpush1.msra.mxu0 %v6760
    %7579 = vmatprep.subr.mxu0 0.0
    %7580 = vmatpush1.msra.mxu0 %v6761
    %7581 = vmatprep.subr.mxu0 0.0
    %7582 = vmatpush1.msra.mxu0 %v6762
    %7583 = vmatprep.subr.mxu0 0.0
    %7584 = vmatpush1.msra.mxu0 %v6763
    %7585 = vmatprep.subr.mxu0 0.0
    %7586 = vmatpush1.msra.mxu0 %v6764
    %7587 = vmatprep.subr.mxu0 0.0
    %7588 = vmatpush1.msra.mxu0 %v6765
    %7589 = vmatprep.subr.mxu0 0.0
    %7590 = vmatpush1.msra.mxu0 %v6766
    %7591 = vmatprep.subr.mxu0 0.0
    %7592 = vmatpush1.msra.mxu0 %v6767
    %7593 = vmatprep.subr.mxu0 0.0
    %7594 = vmatpush1.msra.mxu0 %v6768
    %7595 = vmatprep.subr.mxu0 0.0
    %7596 = vmatpush1.msra.mxu0 %v6769
    %7597 = vmatprep.subr.mxu0 0.0
    %7598 = vmatpush1.msra.mxu0 %v6770
    %7599 = vmatprep.subr.mxu0 0.0
    %7600 = vmatpush1.msra.mxu0 %v6771
    %7601 = vmatprep.mubr.f32.mxu0 %v7456
    %7602 = vmatmul.mubr.f32.gmra.mrb[0].mxu0 %v7449
    %v7603 = vpop.f32.mrb[0].mxu0
    %v7604 = vadd.f32 0.0, %v7603
    %v7605 = vpop.f32.mrb[0].mxu0
    %7606 = vdwg.mxu0
    %7607 = vmatprep.subr.mxu0 0.0
    %7608 = vmatpush1.msra.mxu0 %v6772
    %7609 = vmatprep.subr.mxu0 0.0
    %7610 = vmatpush1.msra.mxu0 %v6773
    %7611 = vmatprep.subr.mxu0 0.0
    %7612 = vmatpush1.msra.mxu0 %v6774
    %7613 = vmatprep.subr.mxu0 0.0
    %7614 = vmatpush1.msra.mxu0 %v6775
    %7615 = vmatprep.subr.mxu0 0.0
    %7616 = vmatpush1.msra.mxu0 %v6776
    %7617 = vmatprep.subr.mxu0 0.0
    %7618 = vmatpush1.msra.mxu0 %v6777
    %7619 = vmatprep.subr.mxu0 0.0
    %7620 = vmatpush1.msra.mxu0 %v6778
    %7621 = vmatprep.subr.mxu0 0.0
    %7622 = vmatpush1.msra.mxu0 %v6779
    %7623 = vmatprep.subr.mxu0 0.0
    %7624 = vmatpush1.msra.mxu0 %v6780
    %7625 = vmatprep.subr.mxu0 0.0
    %7626 = vmatpush1.msra.mxu0 %v6781
    %7627 = vmatprep.subr.mxu0 0.0
    %7628 = vmatpush1.msra.mxu0 %v6782
    %7629 = vmatprep.subr.mxu0 0.0
    %7630 = vmatpush1.msra.mxu0 %v6783
    %7631 = vmatprep.subr.mxu0 0.0
    %7632 = vmatpush1.msra.mxu0 %v6784
    %7633 = vmatprep.subr.mxu0 0.0
    %7634 = vmatpush1.msra.mxu0 %v6785
    %7635 = vmatprep.subr.mxu0 0.0
    %7636 = vmatpush1.msra.mxu0 %v6786
    %7637 = vmatprep.subr.mxu0 0.0
    %7638 = vmatpush1.msra.mxu0 %v6787
    %7639 = vmatprep.subr.mxu0 0.0
    %7640 = vmatpush1.msra.mxu0 %v6788
    %7641 = vmatprep.subr.mxu0 0.0
    %7642 = vmatpush1.msra.mxu0 %v6789
    %7643 = vmatprep.subr.mxu0 0.0
    %7644 = vmatpush1.msra.mxu0 %v6790
    %7645 = vmatprep.subr.mxu0 0.0
    %7646 = vmatpush1.msra.mxu0 %v6791
    %7647 = vmatprep.subr.mxu0 0.0
    %7648 = vmatpush1.msra.mxu0 %v6792
    %7649 = vmatprep.subr.mxu0 0.0
    %7650 = vmatpush1.msra.mxu0 %v6793
    %7651 = vmatprep.subr.mxu0 0.0
    %7652 = vmatpush1.msra.mxu0 %v6794
    %7653 = vmatprep.subr.mxu0 0.0
    %7654 = vmatpush1.msra.mxu0 %v6795
    %7655 = vmatprep.subr.mxu0 0.0
    %7656 = vmatpush1.msra.mxu0 %v6796
    %7657 = vmatprep.subr.mxu0 0.0
    %7658 = vmatpush1.msra.mxu0 %v6797
    %7659 = vmatprep.subr.mxu0 0.0
    %7660 = vmatpush1.msra.mxu0 %v6798
    %7661 = vmatprep.subr.mxu0 0.0
    %7662 = vmatpush1.msra.mxu0 %v6799
    %7663 = vmatprep.subr.mxu0 0.0
    %7664 = vmatpush1.msra.mxu0 %v6800
    %7665 = vmatprep.subr.mxu0 0.0
    %7666 = vmatpush1.msra.mxu0 %v6801
    %7667 = vmatprep.subr.mxu0 0.0
    %7668 = vmatpush1.msra.mxu0 %v6802
    %7669 = vmatprep.subr.mxu0 0.0
    %7670 = vmatpush1.msra.mxu0 %v6803
    %7671 = vmatprep.mubr.f32.mxu0 %v7470
    %7672 = vmatmul.mubr.f32.gmra.mrb[0].mxu0 %v7463
    %v7673 = vpop.f32.mrb[0].mxu0
    %v7674 = vadd.f32 %v7604, %v7673
    %v7675 = vpop.f32.mrb[0].mxu0
    %7676 = vdwg.mxu0
    %7677 = vmatprep.subr.mxu0 0.0
    %7678 = vmatpush1.msra.mxu0 %v6804
    %7679 = vmatprep.subr.mxu0 0.0
    %7680 = vmatpush1.msra.mxu0 %v6805
    %7681 = vmatprep.subr.mxu0 0.0
    %7682 = vmatpush1.msra.mxu0 %v6806
    %7683 = vmatprep.subr.mxu0 0.0
    %7684 = vmatpush1.msra.mxu0 %v6807
    %7685 = vmatprep.subr.mxu0 0.0
    %7686 = vmatpush1.msra.mxu0 %v6808
    %7687 = vmatprep.subr.mxu0 0.0
    %7688 = vmatpush1.msra.mxu0 %v6809
    %7689 = vmatprep.subr.mxu0 0.0
    %7690 = vmatpush1.msra.mxu0 %v6810
    %7691 = vmatprep.subr.mxu0 0.0
    %7692 = vmatpush1.msra.mxu0 %v6811
    %7693 = vmatprep.subr.mxu0 0.0
    %7694 = vmatpush1.msra.mxu0 %v6812
    %7695 = vmatprep.subr.mxu0 0.0
    %7696 = vmatpush1.msra.mxu0 %v6813
    %7697 = vmatprep.subr.mxu0 0.0
    %7698 = vmatpush1.msra.mxu0 %v6814
    %7699 = vmatprep.subr.mxu0 0.0
    %7700 = vmatpush1.msra.mxu0 %v6815
    %7701 = vmatprep.subr.mxu0 0.0
    %7702 = vmatpush1.msra.mxu0 %v6816
    %7703 = vmatprep.subr.mxu0 0.0
    %7704 = vmatpush1.msra.mxu0 %v6817
    %7705 = vmatprep.subr.mxu0 0.0
    %7706 = vmatpush1.msra.mxu0 %v6818
    %7707 = vmatprep.subr.mxu0 0.0
    %7708 = vmatpush1.msra.mxu0 %v6819
    %7709 = vmatprep.subr.mxu0 0.0
    %7710 = vmatpush1.msra.mxu0 %v6820
    %7711 = vmatprep.subr.mxu0 0.0
    %7712 = vmatpush1.msra.mxu0 %v6821
    %7713 = vmatprep.subr.mxu0 0.0
    %7714 = vmatpush1.msra.mxu0 %v6822
    %7715 = vmatprep.subr.mxu0 0.0
    %7716 = vmatpush1.msra.mxu0 %v6823
    %7717 = vmatprep.subr.mxu0 0.0
    %7718 = vmatpush1.msra.mxu0 %v6824
    %7719 = vmatprep.subr.mxu0 0.0
    %7720 = vmatpush1.msra.mxu0 %v6825
    %7721 = vmatprep.subr.mxu0 0.0
    %7722 = vmatpush1.msra.mxu0 %v6826
    %7723 = vmatprep.subr.mxu0 0.0
    %7724 = vmatpush1.msra.mxu0 %v6827
    %7725 = vmatprep.subr.mxu0 0.0
    %7726 = vmatpush1.msra.mxu0 %v6828
    %7727 = vmatprep.subr.mxu0 0.0
    %7728 = vmatpush1.msra.mxu0 %v6829
    %7729 = vmatprep.subr.mxu0 0.0
    %7730 = vmatpush1.msra.mxu0 %v6830
    %7731 = vmatprep.subr.mxu0 0.0
    %7732 = vmatpush1.msra.mxu0 %v6831
    %7733 = vmatprep.subr.mxu0 0.0
    %7734 = vmatpush1.msra.mxu0 %v6832
    %7735 = vmatprep.subr.mxu0 0.0
    %7736 = vmatpush1.msra.mxu0 %v6833
    %7737 = vmatprep.subr.mxu0 0.0
    %7738 = vmatpush1.msra.mxu0 %v6834
    %7739 = vmatprep.subr.mxu0 0.0
    %7740 = vmatpush1.msra.mxu0 %v6835
    %7741 = vmatprep.mubr.f32.mxu0 %v7484
    %7742 = vmatmul.mubr.f32.gmra.mrb[0].mxu0 %v7477
    %v7743 = vpop.f32.mrb[0].mxu0
    %v7744 = vadd.f32 %v7674, %v7743
    %v7745 = vpop.f32.mrb[0].mxu0
    %7746 = vdwg.mxu0
    %7747 = vmatprep.subr.mxu0 0.0
    %7748 = vmatpush1.msra.mxu0 %v6836
    %7749 = vmatprep.subr.mxu0 0.0
    %7750 = vmatpush1.msra.mxu0 %v6837
    %7751 = vmatprep.subr.mxu0 0.0
    %7752 = vmatpush1.msra.mxu0 %v6838
    %7753 = vmatprep.subr.mxu0 0.0
    %7754 = vmatpush1.msra.mxu0 %v6839
    %7755 = vmatprep.subr.mxu0 0.0
    %7756 = vmatpush1.msra.mxu0 %v6840
    %7757 = vmatprep.subr.mxu0 0.0
    %7758 = vmatpush1.msra.mxu0 %v6841
    %7759 = vmatprep.subr.mxu0 0.0
    %7760 = vmatpush1.msra.mxu0 %v6842
    %7761 = vmatprep.subr.mxu0 0.0
    %7762 = vmatpush1.msra.mxu0 %v6843
    %7763 = vmatprep.subr.mxu0 0.0
    %7764 = vmatpush1.msra.mxu0 %v6844
    %7765 = vmatprep.subr.mxu0 0.0
    %7766 = vmatpush1.msra.mxu0 %v6845
    %7767 = vmatprep.subr.mxu0 0.0
    %7768 = vmatpush1.msra.mxu0 %v6846
    %7769 = vmatprep.subr.mxu0 0.0
    %7770 = vmatpush1.msra.mxu0 %v6847
    %7771 = vmatprep.subr.mxu0 0.0
    %7772 = vmatpush1.msra.mxu0 %v6848
    %7773 = vmatprep.subr.mxu0 0.0
    %7774 = vmatpush1.msra.mxu0 %v6849
    %7775 = vmatprep.subr.mxu0 0.0
    %7776 = vmatpush1.msra.mxu0 %v6850
    %7777 = vmatprep.subr.mxu0 0.0
    %7778 = vmatpush1.msra.mxu0 %v6851
    %7779 = vmatprep.subr.mxu0 0.0
    %7780 = vmatpush1.msra.mxu0 %v6852
    %7781 = vmatprep.subr.mxu0 0.0
    %7782 = vmatpush1.msra.mxu0 %v6853
    %7783 = vmatprep.subr.mxu0 0.0
    %7784 = vmatpush1.msra.mxu0 %v6854
    %7785 = vmatprep.subr.mxu0 0.0
    %7786 = vmatpush1.msra.mxu0 %v6855
    %7787 = vmatprep.subr.mxu0 0.0
    %7788 = vmatpush1.msra.mxu0 %v6856
    %7789 = vmatprep.subr.mxu0 0.0
    %7790 = vmatpush1.msra.mxu0 %v6857
    %7791 = vmatprep.subr.mxu0 0.0
    %7792 = vmatpush1.msra.mxu0 %v6858
    %7793 = vmatprep.subr.mxu0 0.0
    %7794 = vmatpush1.msra.mxu0 %v6859
    %7795 = vmatprep.subr.mxu0 0.0
    %7796 = vmatpush1.msra.mxu0 %v6860
    %7797 = vmatprep.subr.mxu0 0.0
    %7798 = vmatpush1.msra.mxu0 %v6861
    %7799 = vmatprep.subr.mxu0 0.0
    %7800 = vmatpush1.msra.mxu0 %v6862
    %7801 = vmatprep.subr.mxu0 0.0
    %7802 = vmatpush1.msra.mxu0 %v6863
    %7803 = vmatprep.subr.mxu0 0.0
    %7804 = vmatpush1.msra.mxu0 %v6864
    %7805 = vmatprep.subr.mxu0 0.0
    %7806 = vmatpush1.msra.mxu0 %v6865
    %7807 = vmatprep.subr.mxu0 0.0
    %7808 = vmatpush1.msra.mxu0 %v6866
    %7809 = vmatprep.subr.mxu0 0.0
    %7810 = vmatpush1.msra.mxu0 %v6867
    %7811 = vmatprep.mubr.f32.mxu0 %v7498
    %7812 = vmatmul.mubr.f32.gmra.mrb[0].mxu0 %v7491
    %v7813 = vpop.f32.mrb[0].mxu0
    %v7814 = vadd.f32 %v7744, %v7813
    %v7815 = vpop.f32.mrb[0].mxu0
    %7816 = vdwg.mxu0
    %7817 = vmatprep.subr.mxu0 0.0
    %7818 = vmatpush1.msra.mxu0 %v6868
    %7819 = vmatprep.subr.mxu0 0.0
    %7820 = vmatpush1.msra.mxu0 %v6869
    %7821 = vmatprep.subr.mxu0 0.0
    %7822 = vmatpush1.msra.mxu0 %v6870
    %7823 = vmatprep.subr.mxu0 0.0
    %7824 = vmatpush1.msra.mxu0 %v6871
    %7825 = vmatprep.subr.mxu0 0.0
    %7826 = vmatpush1.msra.mxu0 %v6872
    %7827 = vmatprep.subr.mxu0 0.0
    %7828 = vmatpush1.msra.mxu0 %v6873
    %7829 = vmatprep.subr.mxu0 0.0
    %7830 = vmatpush1.msra.mxu0 %v6874
    %7831 = vmatprep.subr.mxu0 0.0
    %7832 = vmatpush1.msra.mxu0 %v6875
    %7833 = vmatprep.subr.mxu0 0.0
    %7834 = vmatpush1.msra.mxu0 %v6876
    %7835 = vmatprep.subr.mxu0 0.0
    %7836 = vmatpush1.msra.mxu0 %v6877
    %7837 = vmatprep.subr.mxu0 0.0
    %7838 = vmatpush1.msra.mxu0 %v6878
    %7839 = vmatprep.subr.mxu0 0.0
    %7840 = vmatpush1.msra.mxu0 %v6879
    %7841 = vmatprep.subr.mxu0 0.0
    %7842 = vmatpush1.msra.mxu0 %v6880
    %7843 = vmatprep.subr.mxu0 0.0
    %7844 = vmatpush1.msra.mxu0 %v6881
    %7845 = vmatprep.subr.mxu0 0.0
    %7846 = vmatpush1.msra.mxu0 %v6882
    %7847 = vmatprep.subr.mxu0 0.0
    %7848 = vmatpush1.msra.mxu0 %v6883
    %7849 = vmatprep.subr.mxu0 0.0
    %7850 = vmatpush1.msra.mxu0 %v6884
    %7851 = vmatprep.subr.mxu0 0.0
    %7852 = vmatpush1.msra.mxu0 %v6885
    %7853 = vmatprep.subr.mxu0 0.0
    %7854 = vmatpush1.msra.mxu0 %v6886
    %7855 = vmatprep.subr.mxu0 0.0
    %7856 = vmatpush1.msra.mxu0 %v6887
    %7857 = vmatprep.subr.mxu0 0.0
    %7858 = vmatpush1.msra.mxu0 %v6888
    %7859 = vmatprep.subr.mxu0 0.0
    %7860 = vmatpush1.msra.mxu0 %v6889
    %7861 = vmatprep.subr.mxu0 0.0
    %7862 = vmatpush1.msra.mxu0 %v6890
    %7863 = vmatprep.subr.mxu0 0.0
    %7864 = vmatpush1.msra.mxu0 %v6891
    %7865 = vmatprep.subr.mxu0 0.0
    %7866 = vmatpush1.msra.mxu0 %v6892
    %7867 = vmatprep.subr.mxu0 0.0
    %7868 = vmatpush1.msra.mxu0 %v6893
    %7869 = vmatprep.subr.mxu0 0.0
    %7870 = vmatpush1.msra.mxu0 %v6894
    %7871 = vmatprep.subr.mxu0 0.0
    %7872 = vmatpush1.msra.mxu0 %v6895
    %7873 = vmatprep.subr.mxu0 0.0
    %7874 = vmatpush1.msra.mxu0 %v6896
    %7875 = vmatprep.subr.mxu0 0.0
    %7876 = vmatpush1.msra.mxu0 %v6897
    %7877 = vmatprep.subr.mxu0 0.0
    %7878 = vmatpush1.msra.mxu0 %v6898
    %7879 = vmatprep.subr.mxu0 0.0
    %7880 = vmatpush1.msra.mxu0 %v6899
    %7881 = vmatprep.mubr.f32.mxu0 %v7512
    %7882 = vmatmul.mubr.f32.gmra.mrb[0].mxu0 %v7505
    %v7883 = vpop.f32.mrb[0].mxu0
    %v7884 = vadd.f32 %v7814, %v7883
    %v7885 = vpop.f32.mrb[0].mxu0
    %7886 = vdwg.mxu0
    %7887 = vmatprep.subr.mxu0 0.0
    %7888 = vmatpush1.msra.mxu0 %v6900
    %7889 = vmatprep.subr.mxu0 0.0
    %7890 = vmatpush1.msra.mxu0 %v6901
    %7891 = vmatprep.subr.mxu0 0.0
    %7892 = vmatpush1.msra.mxu0 %v6902
    %7893 = vmatprep.subr.mxu0 0.0
    %7894 = vmatpush1.msra.mxu0 %v6903
    %7895 = vmatprep.subr.mxu0 0.0
    %7896 = vmatpush1.msra.mxu0 %v6904
    %7897 = vmatprep.subr.mxu0 0.0
    %7898 = vmatpush1.msra.mxu0 %v6905
    %7899 = vmatprep.subr.mxu0 0.0
    %7900 = vmatpush1.msra.mxu0 %v6906
    %7901 = vmatprep.subr.mxu0 0.0
    %7902 = vmatpush1.msra.mxu0 %v6907
    %7903 = vmatprep.subr.mxu0 0.0
    %7904 = vmatpush1.msra.mxu0 %v6908
    %7905 = vmatprep.subr.mxu0 0.0
    %7906 = vmatpush1.msra.mxu0 %v6909
    %7907 = vmatprep.subr.mxu0 0.0
    %7908 = vmatpush1.msra.mxu0 %v6910
    %7909 = vmatprep.subr.mxu0 0.0
    %7910 = vmatpush1.msra.mxu0 %v6911
    %7911 = vmatprep.subr.mxu0 0.0
    %7912 = vmatpush1.msra.mxu0 %v6912
    %7913 = vmatprep.subr.mxu0 0.0
    %7914 = vmatpush1.msra.mxu0 %v6913
    %7915 = vmatprep.subr.mxu0 0.0
    %7916 = vmatpush1.msra.mxu0 %v6914
    %7917 = vmatprep.subr.mxu0 0.0
    %7918 = vmatpush1.msra.mxu0 %v6915
    %7919 = vmatprep.subr.mxu0 0.0
    %7920 = vmatpush1.msra.mxu0 %v6916
    %7921 = vmatprep.subr.mxu0 0.0
    %7922 = vmatpush1.msra.mxu0 %v6917
    %7923 = vmatprep.subr.mxu0 0.0
    %7924 = vmatpush1.msra.mxu0 %v6918
    %7925 = vmatprep.subr.mxu0 0.0
    %7926 = vmatpush1.msra.mxu0 %v6919
    %7927 = vmatprep.subr.mxu0 0.0
    %7928 = vmatpush1.msra.mxu0 %v6920
    %7929 = vmatprep.subr.mxu0 0.0
    %7930 = vmatpush1.msra.mxu0 %v6921
    %7931 = vmatprep.subr.mxu0 0.0
    %7932 = vmatpush1.msra.mxu0 %v6922
    %7933 = vmatprep.subr.mxu0 0.0
    %7934 = vmatpush1.msra.mxu0 %v6923
    %7935 = vmatprep.subr.mxu0 0.0
    %7936 = vmatpush1.msra.mxu0 %v6924
    %7937 = vmatprep.subr.mxu0 0.0
    %7938 = vmatpush1.msra.mxu0 %v6925
    %7939 = vmatprep.subr.mxu0 0.0
    %7940 = vmatpush1.msra.mxu0 %v6926
    %7941 = vmatprep.subr.mxu0 0.0
    %7942 = vmatpush1.msra.mxu0 %v6927
    %7943 = vmatprep.subr.mxu0 0.0
    %7944 = vmatpush1.msra.mxu0 %v6928
    %7945 = vmatprep.subr.mxu0 0.0
    %7946 = vmatpush1.msra.mxu0 %v6929
    %7947 = vmatprep.subr.mxu0 0.0
    %7948 = vmatpush1.msra.mxu0 %v6930
    %7949 = vmatprep.subr.mxu0 0.0
    %7950 = vmatpush1.msra.mxu0 %v6931
    %7951 = vmatprep.mubr.f32.mxu0 %v7526
    %7952 = vmatmul.mubr.f32.gmra.mrb[0].mxu0 %v7519
    %v7953 = vpop.f32.mrb[0].mxu0
    %v7954 = vadd.f32 %v7884, %v7953
    %v7955 = vpop.f32.mrb[0].mxu0
    %7956 = vdwg.mxu0
    %7957 = vmatprep.subr.mxu0 0.0
    %7958 = vmatpush1.msra.mxu0 %v6932
    %7959 = vmatprep.subr.mxu0 0.0
    %7960 = vmatpush1.msra.mxu0 %v6933
    %7961 = vmatprep.subr.mxu0 0.0
    %7962 = vmatpush1.msra.mxu0 %v6934
    %7963 = vmatprep.subr.mxu0 0.0
    %7964 = vmatpush1.msra.mxu0 %v6935
    %7965 = vmatprep.subr.mxu0 0.0
    %7966 = vmatpush1.msra.mxu0 0.0
    %7967 = vmatprep.subr.mxu0 0.0
    %7968 = vmatpush1.msra.mxu0 0.0
    %7969 = vmatprep.subr.mxu0 0.0
    %7970 = vmatpush1.msra.mxu0 0.0
    %7971 = vmatprep.subr.mxu0 0.0
    %7972 = vmatpush1.msra.mxu0 0.0
    %7973 = vmatprep.subr.mxu0 0.0
    %7974 = vmatpush1.msra.mxu0 0.0
    %7975 = vmatprep.subr.mxu0 0.0
    %7976 = vmatpush1.msra.mxu0 0.0
    %7977 = vmatprep.subr.mxu0 0.0
    %7978 = vmatpush1.msra.mxu0 0.0
    %7979 = vmatprep.subr.mxu0 0.0
    %7980 = vmatpush1.msra.mxu0 0.0
    %7981 = vmatprep.subr.mxu0 0.0
    %7982 = vmatpush1.msra.mxu0 0.0
    %7983 = vmatprep.subr.mxu0 0.0
    %7984 = vmatpush1.msra.mxu0 0.0
    %7985 = vmatprep.subr.mxu0 0.0
    %7986 = vmatpush1.msra.mxu0 0.0
    %7987 = vmatprep.subr.mxu0 0.0
    %7988 = vmatpush1.msra.mxu0 0.0
    %7989 = vmatprep.subr.mxu0 0.0
    %7990 = vmatpush1.msra.mxu0 0.0
    %7991 = vmatprep.subr.mxu0 0.0
    %7992 = vmatpush1.msra.mxu0 0.0
    %7993 = vmatprep.subr.mxu0 0.0
    %7994 = vmatpush1.msra.mxu0 0.0
    %7995 = vmatprep.subr.mxu0 0.0
    %7996 = vmatpush1.msra.mxu0 0.0
    %7997 = vmatprep.subr.mxu0 0.0
    %7998 = vmatpush1.msra.mxu0 0.0
    %7999 = vmatprep.subr.mxu0 0.0
    %8000 = vmatpush1.msra.mxu0 0.0
    %8001 = vmatprep.subr.mxu0 0.0
    %8002 = vmatpush1.msra.mxu0 0.0
    %8003 = vmatprep.subr.mxu0 0.0
    %8004 = vmatpush1.msra.mxu0 0.0
    %8005 = vmatprep.subr.mxu0 0.0
    %8006 = vmatpush1.msra.mxu0 0.0
    %8007 = vmatprep.subr.mxu0 0.0
    %8008 = vmatpush1.msra.mxu0 0.0
    %8009 = vmatprep.subr.mxu0 0.0
    %8010 = vmatpush1.msra.mxu0 0.0
    %8011 = vmatprep.subr.mxu0 0.0
    %8012 = vmatpush1.msra.mxu0 0.0
    %8013 = vmatprep.subr.mxu0 0.0
    %8014 = vmatpush1.msra.mxu0 0.0
    %8015 = vmatprep.subr.mxu0 0.0
    %8016 = vmatpush1.msra.mxu0 0.0
    %8017 = vmatprep.subr.mxu0 0.0
    %8018 = vmatpush1.msra.mxu0 0.0
    %8019 = vmatprep.subr.mxu0 0.0
    %8020 = vmatpush1.msra.mxu0 0.0
    %8021 = vmatprep.mubr.f32.mxu0 0.0
    %8022 = vmatmul.mubr.f32.gmra.mrb[0].mxu0 %v7535
    %v8023 = vpop.f32.mrb[0].mxu0
    %v8024 = vadd.f32 %v7954, %v8023
    %v8025 = vpop.f32.mrb[0].mxu0
    %8026 = vdwg.mxu0
    %v8027 = vmul.f32 %v7427, 0.0025510204
    %v8028 = vmul.f32 %v8024, 0.0025510204
    %v8029 = vmul.f32 %v8027, %v8027
    %v8030 = vsub.f32 %v8028, %v8029
    %v8031 = vmax.f32 %v8030, 0.0
    %v8032 = vadd.f32 %v8031, 1e-05
    %v8033 = vrsqrt.pop %v8032
    %v8034 = vld [vmem:[#allocation36] sm:$0x1]
    %v8035 = vmul.f32 %v8034, %v8033
    %v8036 = vld [vmem:[#allocation37] sm:$0x1]
    %v8037 = vmul.f32 %v8035, %v8027
    %v8038 = vsub.f32 %v8036, %v8037
    %v8039 = vld [vmem:[#allocation34] sm:$0xff]
    %v8040 = vld [vmem:[#allocation34 + $0x8] sm:$0xff]
    %v8041 = vld [vmem:[#allocation34 + $0x10] sm:$0xff]
    %v8042 = vld [vmem:[#allocation34 + $0x18] sm:$0xff]
    %v8043 = vld [vmem:[#allocation34 + $0x20] sm:$0xff]
    %v8044 = vld [vmem:[#allocation34 + $0x28] sm:$0xff]
    %v8045 = vld [vmem:[#allocation34 + $0x30] sm:$0xff]
    %v8046 = vld [vmem:[#allocation34 + $0x38] sm:$0xff]
    %v8047 = vld [vmem:[#allocation34 + $0x40] sm:$0xff]
    %v8048 = vld [vmem:[#allocation34 + $0x48] sm:$0xff]
    %v8049 = vld [vmem:[#allocation34 + $0x50] sm:$0xff]
    %v8050 = vld [vmem:[#allocation34 + $0x58] sm:$0xff]
    %v8051 = vld [vmem:[#allocation34 + $0x60] sm:$0xff]
    %v8053 = vsel %vm3053, %v8035, 0
    %8055 = vmatprep.subr.mxu0 %v8040
    %8056 = vmatpush1.msra.mxu0 %v8039
    %8057 = vmatprep.subr.mxu0 0.0
    %8058 = vmatpush1.msra.mxu0 0.0
    %8059 = vmatprep.subr.mxu0 0.0
    %8060 = vmatpush1.msra.mxu0 0.0
    %8061 = vmatprep.subr.mxu0 0.0
    %8062 = vmatpush1.msra.mxu0 0.0
    %8063 = vmatprep.subr.mxu0 0.0
    %8064 = vmatpush1.msra.mxu0 0.0
    %8065 = vmatprep.subr.mxu0 0.0
    %8066 = vmatpush1.msra.mxu0 0.0
    %8067 = vmatprep.subr.mxu0 0.0
    %8068 = vmatpush1.msra.mxu0 0.0
    %8069 = vmatprep.subr.mxu0 0.0
    %8070 = vmatpush1.msra.mxu0 0.0
    %8071 = vmatprep.subr.mxu0 0.0
    %8072 = vmatpush1.msra.mxu0 0.0
    %8073 = vmatprep.subr.mxu0 0.0
    %8074 = vmatpush1.msra.mxu0 0.0
    %8075 = vmatprep.subr.mxu0 0.0
    %8076 = vmatpush1.msra.mxu0 0.0
    %8077 = vmatprep.subr.mxu0 0.0
    %8078 = vmatpush1.msra.mxu0 0.0
    %8079 = vmatprep.subr.mxu0 0.0
    %8080 = vmatpush1.msra.mxu0 0.0
    %8081 = vmatprep.subr.mxu0 0.0
    %8082 = vmatpush1.msra.mxu0 0.0
    %8083 = vmatprep.subr.mxu0 0.0
    %8084 = vmatpush1.msra.mxu0 0.0
    %8085 = vmatprep.subr.mxu0 0.0
    %8086 = vmatpush1.msra.mxu0 0.0
    %8087 = vmatprep.subr.mxu0 0.0
    %8088 = vmatpush1.msra.mxu0 0.0
    %8089 = vmatprep.subr.mxu0 0.0
    %8090 = vmatpush1.msra.mxu0 0.0
    %8091 = vmatprep.subr.mxu0 0.0
    %8092 = vmatpush1.msra.mxu0 0.0
    %8093 = vmatprep.subr.mxu0 0.0
    %8094 = vmatpush1.msra.mxu0 0.0
    %8095 = vmatprep.subr.mxu0 0.0
    %8096 = vmatpush1.msra.mxu0 0.0
    %8097 = vmatprep.subr.mxu0 0.0
    %8098 = vmatpush1.msra.mxu0 0.0
    %8099 = vmatprep.subr.mxu0 0.0
    %8100 = vmatpush1.msra.mxu0 0.0
    %8101 = vmatprep.subr.mxu0 0.0
    %8102 = vmatpush1.msra.mxu0 0.0
    %8103 = vmatprep.subr.mxu0 0.0
    %8104 = vmatpush1.msra.mxu0 0.0
    %8105 = vmatprep.subr.mxu0 0.0
    %8106 = vmatpush1.msra.mxu0 0.0
    %8107 = vmatprep.subr.mxu0 0.0
    %8108 = vmatpush1.msra.mxu0 0.0
    %8109 = vmatprep.subr.mxu0 0.0
    %8110 = vmatpush1.msra.mxu0 0.0
    %8111 = vmatprep.subr.mxu0 0.0
    %8112 = vmatpush1.msra.mxu0 0.0
    %8113 = vmatprep.subr.mxu0 0.0
    %8114 = vmatpush1.msra.mxu0 0.0
    %8115 = vmatprep.subr.mxu0 0.0
    %8116 = vmatpush1.msra.mxu0 0.0
    %8117 = vmatprep.subr.mxu0 0.0
    %8118 = vmatpush1.msra.mxu0 0.0
    %8119 = vmatprep.mubr.f32.mxu0 0.0
    %8120 = vmatmul.mubr.f32.gmra.mrb[0].mxu0 %v8053
    %v8121 = vpop.f32.mrb[0].mxu0
    %v8122 = vadd.f32 0.0, %v8121
    %v8123 = vpop.f32.mrb[0].mxu0
    %v8124 = vadd.f32 0.0, %v8123
    %8125 = vdwg.mxu0
    %8126 = vmatprep.subr.mxu0 %v8042
    %8127 = vmatpush1.msra.mxu0 %v8041
    %8128 = vmatprep.subr.mxu0 0.0
    %8129 = vmatpush1.msra.mxu0 0.0
    %8130 = vmatprep.subr.mxu0 0.0
    %8131 = vmatpush1.msra.mxu0 0.0
    %8132 = vmatprep.subr.mxu0 0.0
    %8133 = vmatpush1.msra.mxu0 0.0
    %8134 = vmatprep.subr.mxu0 0.0
    %8135 = vmatpush1.msra.mxu0 0.0
    %8136 = vmatprep.subr.mxu0 0.0
    %8137 = vmatpush1.msra.mxu0 0.0
    %8138 = vmatprep.subr.mxu0 0.0
    %8139 = vmatpush1.msra.mxu0 0.0
    %8140 = vmatprep.subr.mxu0 0.0
    %8141 = vmatpush1.msra.mxu0 0.0
    %8142 = vmatprep.subr.mxu0 0.0
    %8143 = vmatpush1.msra.mxu0 0.0
    %8144 = vmatprep.subr.mxu0 0.0
    %8145 = vmatpush1.msra.mxu0 0.0
    %8146 = vmatprep.subr.mxu0 0.0
    %8147 = vmatpush1.msra.mxu0 0.0
    %8148 = vmatprep.subr.mxu0 0.0
    %8149 = vmatpush1.msra.mxu0 0.0
    %8150 = vmatprep.subr.mxu0 0.0
    %8151 = vmatpush1.msra.mxu0 0.0
    %8152 = vmatprep.subr.mxu0 0.0
    %8153 = vmatpush1.msra.mxu0 0.0
    %8154 = vmatprep.subr.mxu0 0.0
    %8155 = vmatpush1.msra.mxu0 0.0
    %8156 = vmatprep.subr.mxu0 0.0
    %8157 = vmatpush1.msra.mxu0 0.0
    %8158 = vmatprep.subr.mxu0 0.0
    %8159 = vmatpush1.msra.mxu0 0.0
    %8160 = vmatprep.subr.mxu0 0.0
    %8161 = vmatpush1.msra.mxu0 0.0
    %8162 = vmatprep.subr.mxu0 0.0
    %8163 = vmatpush1.msra.mxu0 0.0
    %8164 = vmatprep.subr.mxu0 0.0
    %8165 = vmatpush1.msra.mxu0 0.0
    %8166 = vmatprep.subr.mxu0 0.0
    %8167 = vmatpush1.msra.mxu0 0.0
    %8168 = vmatprep.subr.mxu0 0.0
    %8169 = vmatpush1.msra.mxu0 0.0
    %8170 = vmatprep.subr.mxu0 0.0
    %8171 = vmatpush1.msra.mxu0 0.0
    %8172 = vmatprep.subr.mxu0 0.0
    %8173 = vmatpush1.msra.mxu0 0.0
    %8174 = vmatprep.subr.mxu0 0.0
    %8175 = vmatpush1.msra.mxu0 0.0
    %8176 = vmatprep.subr.mxu0 0.0
    %8177 = vmatpush1.msra.mxu0 0.0
    %8178 = vmatprep.subr.mxu0 0.0
    %8179 = vmatpush1.msra.mxu0 0.0
    %8180 = vmatprep.subr.mxu0 0.0
    %8181 = vmatpush1.msra.mxu0 0.0
    %8182 = vmatprep.subr.mxu0 0.0
    %8183 = vmatpush1.msra.mxu0 0.0
    %8184 = vmatprep.subr.mxu0 0.0
    %8185 = vmatpush1.msra.mxu0 0.0
    %8186 = vmatprep.subr.mxu0 0.0
    %8187 = vmatpush1.msra.mxu0 0.0
    %8188 = vmatprep.subr.mxu0 0.0
    %8189 = vmatpush1.msra.mxu0 0.0
    %8190 = vmatprep.mubr.f32.mxu0 0.0
    %8191 = vmatmul.mubr.f32.gmra.mrb[0].mxu0 %v8053
    %v8192 = vpop.f32.mrb[0].mxu0
    %v8193 = vadd.f32 0.0, %v8192
    %v8194 = vpop.f32.mrb[0].mxu0
    %v8195 = vadd.f32 0.0, %v8194
    %8196 = vdwg.mxu0
    %8197 = vmatprep.subr.mxu0 %v8044
    %8198 = vmatpush1.msra.mxu0 %v8043
    %8199 = vmatprep.subr.mxu0 0.0
    %8200 = vmatpush1.msra.mxu0 0.0
    %8201 = vmatprep.subr.mxu0 0.0
    %8202 = vmatpush1.msra.mxu0 0.0
    %8203 = vmatprep.subr.mxu0 0.0
    %8204 = vmatpush1.msra.mxu0 0.0
    %8205 = vmatprep.subr.mxu0 0.0
    %8206 = vmatpush1.msra.mxu0 0.0
    %8207 = vmatprep.subr.mxu0 0.0
    %8208 = vmatpush1.msra.mxu0 0.0
    %8209 = vmatprep.subr.mxu0 0.0
    %8210 = vmatpush1.msra.mxu0 0.0
    %8211 = vmatprep.subr.mxu0 0.0
    %8212 = vmatpush1.msra.mxu0 0.0
    %8213 = vmatprep.subr.mxu0 0.0
    %8214 = vmatpush1.msra.mxu0 0.0
    %8215 = vmatprep.subr.mxu0 0.0
    %8216 = vmatpush1.msra.mxu0 0.0
    %8217 = vmatprep.subr.mxu0 0.0
    %8218 = vmatpush1.msra.mxu0 0.0
    %8219 = vmatprep.subr.mxu0 0.0
    %8220 = vmatpush1.msra.mxu0 0.0
    %8221 = vmatprep.subr.mxu0 0.0
    %8222 = vmatpush1.msra.mxu0 0.0
    %8223 = vmatprep.subr.mxu0 0.0
    %8224 = vmatpush1.msra.mxu0 0.0
    %8225 = vmatprep.subr.mxu0 0.0
    %8226 = vmatpush1.msra.mxu0 0.0
    %8227 = vmatprep.subr.mxu0 0.0
    %8228 = vmatpush1.msra.mxu0 0.0
    %8229 = vmatprep.subr.mxu0 0.0
    %8230 = vmatpush1.msra.mxu0 0.0
    %8231 = vmatprep.subr.mxu0 0.0
    %8232 = vmatpush1.msra.mxu0 0.0
    %8233 = vmatprep.subr.mxu0 0.0
    %8234 = vmatpush1.msra.mxu0 0.0
    %8235 = vmatprep.subr.mxu0 0.0
    %8236 = vmatpush1.msra.mxu0 0.0
    %8237 = vmatprep.subr.mxu0 0.0
    %8238 = vmatpush1.msra.mxu0 0.0
    %8239 = vmatprep.subr.mxu0 0.0
    %8240 = vmatpush1.msra.mxu0 0.0
    %8241 = vmatprep.subr.mxu0 0.0
    %8242 = vmatpush1.msra.mxu0 0.0
    %8243 = vmatprep.subr.mxu0 0.0
    %8244 = vmatpush1.msra.mxu0 0.0
    %8245 = vmatprep.subr.mxu0 0.0
    %8246 = vmatpush1.msra.mxu0 0.0
    %8247 = vmatprep.subr.mxu0 0.0
    %8248 = vmatpush1.msra.mxu0 0.0
    %8249 = vmatprep.subr.mxu0 0.0
    %8250 = vmatpush1.msra.mxu0 0.0
    %8251 = vmatprep.subr.mxu0 0.0
    %8252 = vmatpush1.msra.mxu0 0.0
    %8253 = vmatprep.subr.mxu0 0.0
    %8254 = vmatpush1.msra.mxu0 0.0
    %8255 = vmatprep.subr.mxu0 0.0
    %8256 = vmatpush1.msra.mxu0 0.0
    %8257 = vmatprep.subr.mxu0 0.0
    %8258 = vmatpush1.msra.mxu0 0.0
    %8259 = vmatprep.subr.mxu0 0.0
    %8260 = vmatpush1.msra.mxu0 0.0
    %8261 = vmatprep.mubr.f32.mxu0 0.0
    %8262 = vmatmul.mubr.f32.gmra.mrb[0].mxu0 %v8053
    %v8263 = vpop.f32.mrb[0].mxu0
    %v8264 = vadd.f32 0.0, %v8263
    %v8265 = vpop.f32.mrb[0].mxu0
    %v8266 = vadd.f32 0.0, %v8265
    %8267 = vdwg.mxu0
    %8268 = vmatprep.subr.mxu0 %v8046
    %8269 = vmatpush1.msra.mxu0 %v8045
    %8270 = vmatprep.subr.mxu0 0.0
    %8271 = vmatpush1.msra.mxu0 0.0
    %8272 = vmatprep.subr.mxu0 0.0
    %8273 = vmatpush1.msra.mxu0 0.0
    %8274 = vmatprep.subr.mxu0 0.0
    %8275 = vmatpush1.msra.mxu0 0.0
    %8276 = vmatprep.subr.mxu0 0.0
    %8277 = vmatpush1.msra.mxu0 0.0
    %8278 = vmatprep.subr.mxu0 0.0
    %8279 = vmatpush1.msra.mxu0 0.0
    %8280 = vmatprep.subr.mxu0 0.0
    %8281 = vmatpush1.msra.mxu0 0.0
    %8282 = vmatprep.subr.mxu0 0.0
    %8283 = vmatpush1.msra.mxu0 0.0
    %8284 = vmatprep.subr.mxu0 0.0
    %8285 = vmatpush1.msra.mxu0 0.0
    %8286 = vmatprep.subr.mxu0 0.0
    %8287 = vmatpush1.msra.mxu0 0.0
    %8288 = vmatprep.subr.mxu0 0.0
    %8289 = vmatpush1.msra.mxu0 0.0
    %8290 = vmatprep.subr.mxu0 0.0
    %8291 = vmatpush1.msra.mxu0 0.0
    %8292 = vmatprep.subr.mxu0 0.0
    %8293 = vmatpush1.msra.mxu0 0.0
    %8294 = vmatprep.subr.mxu0 0.0
    %8295 = vmatpush1.msra.mxu0 0.0
    %8296 = vmatprep.subr.mxu0 0.0
    %8297 = vmatpush1.msra.mxu0 0.0
    %8298 = vmatprep.subr.mxu0 0.0
    %8299 = vmatpush1.msra.mxu0 0.0
    %8300 = vmatprep.subr.mxu0 0.0
    %8301 = vmatpush1.msra.mxu0 0.0
    %8302 = vmatprep.subr.mxu0 0.0
    %8303 = vmatpush1.msra.mxu0 0.0
    %8304 = vmatprep.subr.mxu0 0.0
    %8305 = vmatpush1.msra.mxu0 0.0
    %8306 = vmatprep.subr.mxu0 0.0
    %8307 = vmatpush1.msra.mxu0 0.0
    %8308 = vmatprep.subr.mxu0 0.0
    %8309 = vmatpush1.msra.mxu0 0.0
    %8310 = vmatprep.subr.mxu0 0.0
    %8311 = vmatpush1.msra.mxu0 0.0
    %8312 = vmatprep.subr.mxu0 0.0
    %8313 = vmatpush1.msra.mxu0 0.0
    %8314 = vmatprep.subr.mxu0 0.0
    %8315 = vmatpush1.msra.mxu0 0.0
    %8316 = vmatprep.subr.mxu0 0.0
    %8317 = vmatpush1.msra.mxu0 0.0
    %8318 = vmatprep.subr.mxu0 0.0
    %8319 = vmatpush1.msra.mxu0 0.0
    %8320 = vmatprep.subr.mxu0 0.0
    %8321 = vmatpush1.msra.mxu0 0.0
    %8322 = vmatprep.subr.mxu0 0.0
    %8323 = vmatpush1.msra.mxu0 0.0
    %8324 = vmatprep.subr.mxu0 0.0
    %8325 = vmatpush1.msra.mxu0 0.0
    %8326 = vmatprep.subr.mxu0 0.0
    %8327 = vmatpush1.msra.mxu0 0.0
    %8328 = vmatprep.subr.mxu0 0.0
    %8329 = vmatpush1.msra.mxu0 0.0
    %8330 = vmatprep.subr.mxu0 0.0
    %8331 = vmatpush1.msra.mxu0 0.0
    %8332 = vmatprep.mubr.f32.mxu0 0.0
    %8333 = vmatmul.mubr.f32.gmra.mrb[0].mxu0 %v8053
    %v8334 = vpop.f32.mrb[0].mxu0
    %v8335 = vadd.f32 0.0, %v8334
    %v8336 = vpop.f32.mrb[0].mxu0
    %v8337 = vadd.f32 0.0, %v8336
    %8338 = vdwg.mxu0
    %8339 = vmatprep.subr.mxu0 %v8048
    %8340 = vmatpush1.msra.mxu0 %v8047
    %8341 = vmatprep.subr.mxu0 0.0
    %8342 = vmatpush1.msra.mxu0 0.0
    %8343 = vmatprep.subr.mxu0 0.0
    %8344 = vmatpush1.msra.mxu0 0.0
    %8345 = vmatprep.subr.mxu0 0.0
    %8346 = vmatpush1.msra.mxu0 0.0
    %8347 = vmatprep.subr.mxu0 0.0
    %8348 = vmatpush1.msra.mxu0 0.0
    %8349 = vmatprep.subr.mxu0 0.0
    %8350 = vmatpush1.msra.mxu0 0.0
    %8351 = vmatprep.subr.mxu0 0.0
    %8352 = vmatpush1.msra.mxu0 0.0
    %8353 = vmatprep.subr.mxu0 0.0
    %8354 = vmatpush1.msra.mxu0 0.0
    %8355 = vmatprep.subr.mxu0 0.0
    %8356 = vmatpush1.msra.mxu0 0.0
    %8357 = vmatprep.subr.mxu0 0.0
    %8358 = vmatpush1.msra.mxu0 0.0
    %8359 = vmatprep.subr.mxu0 0.0
    %8360 = vmatpush1.msra.mxu0 0.0
    %8361 = vmatprep.subr.mxu0 0.0
    %8362 = vmatpush1.msra.mxu0 0.0
    %8363 = vmatprep.subr.mxu0 0.0
    %8364 = vmatpush1.msra.mxu0 0.0
    %8365 = vmatprep.subr.mxu0 0.0
    %8366 = vmatpush1.msra.mxu0 0.0
    %8367 = vmatprep.subr.mxu0 0.0
    %8368 = vmatpush1.msra.mxu0 0.0
    %8369 = vmatprep.subr.mxu0 0.0
    %8370 = vmatpush1.msra.mxu0 0.0
    %8371 = vmatprep.subr.mxu0 0.0
    %8372 = vmatpush1.msra.mxu0 0.0
    %8373 = vmatprep.subr.mxu0 0.0
    %8374 = vmatpush1.msra.mxu0 0.0
    %8375 = vmatprep.subr.mxu0 0.0
    %8376 = vmatpush1.msra.mxu0 0.0
    %8377 = vmatprep.subr.mxu0 0.0
    %8378 = vmatpush1.msra.mxu0 0.0
    %8379 = vmatprep.subr.mxu0 0.0
    %8380 = vmatpush1.msra.mxu0 0.0
    %8381 = vmatprep.subr.mxu0 0.0
    %8382 = vmatpush1.msra.mxu0 0.0
    %8383 = vmatprep.subr.mxu0 0.0
    %8384 = vmatpush1.msra.mxu0 0.0
    %8385 = vmatprep.subr.mxu0 0.0
    %8386 = vmatpush1.msra.mxu0 0.0
    %8387 = vmatprep.subr.mxu0 0.0
    %8388 = vmatpush1.msra.mxu0 0.0
    %8389 = vmatprep.subr.mxu0 0.0
    %8390 = vmatpush1.msra.mxu0 0.0
    %8391 = vmatprep.subr.mxu0 0.0
    %8392 = vmatpush1.msra.mxu0 0.0
    %8393 = vmatprep.subr.mxu0 0.0
    %8394 = vmatpush1.msra.mxu0 0.0
    %8395 = vmatprep.subr.mxu0 0.0
    %8396 = vmatpush1.msra.mxu0 0.0
    %8397 = vmatprep.subr.mxu0 0.0
    %8398 = vmatpush1.msra.mxu0 0.0
    %8399 = vmatprep.subr.mxu0 0.0
    %8400 = vmatpush1.msra.mxu0 0.0
    %8401 = vmatprep.subr.mxu0 0.0
    %8402 = vmatpush1.msra.mxu0 0.0
    %8403 = vmatprep.mubr.f32.mxu0 0.0
    %8404 = vmatmul.mubr.f32.gmra.mrb[0].mxu0 %v8053
    %v8405 = vpop.f32.mrb[0].mxu0
    %v8406 = vadd.f32 0.0, %v8405
    %v8407 = vpop.f32.mrb[0].mxu0
    %v8408 = vadd.f32 0.0, %v8407
    %8409 = vdwg.mxu0
    %8410 = vmatprep.subr.mxu0 %v8050
    %8411 = vmatpush1.msra.mxu0 %v8049
    %8412 = vmatprep.subr.mxu0 0.0
    %8413 = vmatpush1.msra.mxu0 0.0
    %8414 = vmatprep.subr.mxu0 0.0
    %8415 = vmatpush1.msra.mxu0 0.0
    %8416 = vmatprep.subr.mxu0 0.0
    %8417 = vmatpush1.msra.mxu0 0.0
    %8418 = vmatprep.subr.mxu0 0.0
    %8419 = vmatpush1.msra.mxu0 0.0
    %8420 = vmatprep.subr.mxu0 0.0
    %8421 = vmatpush1.msra.mxu0 0.0
    %8422 = vmatprep.subr.mxu0 0.0
    %8423 = vmatpush1.msra.mxu0 0.0
    %8424 = vmatprep.subr.mxu0 0.0
    %8425 = vmatpush1.msra.mxu0 0.0
    %8426 = vmatprep.subr.mxu0 0.0
    %8427 = vmatpush1.msra.mxu0 0.0
    %8428 = vmatprep.subr.mxu0 0.0
    %8429 = vmatpush1.msra.mxu0 0.0
    %8430 = vmatprep.subr.mxu0 0.0
    %8431 = vmatpush1.msra.mxu0 0.0
    %8432 = vmatprep.subr.mxu0 0.0
    %8433 = vmatpush1.msra.mxu0 0.0
    %8434 = vmatprep.subr.mxu0 0.0
    %8435 = vmatpush1.msra.mxu0 0.0
    %8436 = vmatprep.subr.mxu0 0.0
    %8437 = vmatpush1.msra.mxu0 0.0
    %8438 = vmatprep.subr.mxu0 0.0
    %8439 = vmatpush1.msra.mxu0 0.0
    %8440 = vmatprep.subr.mxu0 0.0
    %8441 = vmatpush1.msra.mxu0 0.0
    %8442 = vmatprep.subr.mxu0 0.0
    %8443 = vmatpush1.msra.mxu0 0.0
    %8444 = vmatprep.subr.mxu0 0.0
    %8445 = vmatpush1.msra.mxu0 0.0
    %8446 = vmatprep.subr.mxu0 0.0
    %8447 = vmatpush1.msra.mxu0 0.0
    %8448 = vmatprep.subr.mxu0 0.0
    %8449 = vmatpush1.msra.mxu0 0.0
    %8450 = vmatprep.subr.mxu0 0.0
    %8451 = vmatpush1.msra.mxu0 0.0
    %8452 = vmatprep.subr.mxu0 0.0
    %8453 = vmatpush1.msra.mxu0 0.0
    %8454 = vmatprep.subr.mxu0 0.0
    %8455 = vmatpush1.msra.mxu0 0.0
    %8456 = vmatprep.subr.mxu0 0.0
    %8457 = vmatpush1.msra.mxu0 0.0
    %8458 = vmatprep.subr.mxu0 0.0
    %8459 = vmatpush1.msra.mxu0 0.0
    %8460 = vmatprep.subr.mxu0 0.0
    %8461 = vmatpush1.msra.mxu0 0.0
    %8462 = vmatprep.subr.mxu0 0.0
    %8463 = vmatpush1.msra.mxu0 0.0
    %8464 = vmatprep.subr.mxu0 0.0
    %8465 = vmatpush1.msra.mxu0 0.0
    %8466 = vmatprep.subr.mxu0 0.0
    %8467 = vmatpush1.msra.mxu0 0.0
    %8468 = vmatprep.subr.mxu0 0.0
    %8469 = vmatpush1.msra.mxu0 0.0
    %8470 = vmatprep.subr.mxu0 0.0
    %8471 = vmatpush1.msra.mxu0 0.0
    %8472 = vmatprep.subr.mxu0 0.0
    %8473 = vmatpush1.msra.mxu0 0.0
    %8474 = vmatprep.mubr.f32.mxu0 0.0
    %8475 = vmatmul.mubr.f32.gmra.mrb[0].mxu0 %v8053
    %v8476 = vpop.f32.mrb[0].mxu0
    %v8477 = vadd.f32 0.0, %v8476
    %v8478 = vpop.f32.mrb[0].mxu0
    %v8479 = vadd.f32 0.0, %v8478
    %8480 = vdwg.mxu0
    %8481 = vmatprep.subr.mxu0 0.0
    %8482 = vmatpush1.msra.mxu0 %v8051
    %8483 = vmatprep.subr.mxu0 0.0
    %8484 = vmatpush1.msra.mxu0 0.0
    %8485 = vmatprep.subr.mxu0 0.0
    %8486 = vmatpush1.msra.mxu0 0.0
    %8487 = vmatprep.subr.mxu0 0.0
    %8488 = vmatpush1.msra.mxu0 0.0
    %8489 = vmatprep.subr.mxu0 0.0
    %8490 = vmatpush1.msra.mxu0 0.0
    %8491 = vmatprep.subr.mxu0 0.0
    %8492 = vmatpush1.msra.mxu0 0.0
    %8493 = vmatprep.subr.mxu0 0.0
    %8494 = vmatpush1.msra.mxu0 0.0
    %8495 = vmatprep.subr.mxu0 0.0
    %8496 = vmatpush1.msra.mxu0 0.0
    %8497 = vmatprep.subr.mxu0 0.0
    %8498 = vmatpush1.msra.mxu0 0.0
    %8499 = vmatprep.subr.mxu0 0.0
    %8500 = vmatpush1.msra.mxu0 0.0
    %8501 = vmatprep.subr.mxu0 0.0
    %8502 = vmatpush1.msra.mxu0 0.0
    %8503 = vmatprep.subr.mxu0 0.0
    %8504 = vmatpush1.msra.mxu0 0.0
    %8505 = vmatprep.subr.mxu0 0.0
    %8506 = vmatpush1.msra.mxu0 0.0
    %8507 = vmatprep.subr.mxu0 0.0
    %8508 = vmatpush1.msra.mxu0 0.0
    %8509 = vmatprep.subr.mxu0 0.0
    %8510 = vmatpush1.msra.mxu0 0.0
    %8511 = vmatprep.subr.mxu0 0.0
    %8512 = vmatpush1.msra.mxu0 0.0
    %8513 = vmatprep.subr.mxu0 0.0
    %8514 = vmatpush1.msra.mxu0 0.0
    %8515 = vmatprep.subr.mxu0 0.0
    %8516 = vmatpush1.msra.mxu0 0.0
    %8517 = vmatprep.subr.mxu0 0.0
    %8518 = vmatpush1.msra.mxu0 0.0
    %8519 = vmatprep.subr.mxu0 0.0
    %8520 = vmatpush1.msra.mxu0 0.0
    %8521 = vmatprep.subr.mxu0 0.0
    %8522 = vmatpush1.msra.mxu0 0.0
    %8523 = vmatprep.subr.mxu0 0.0
    %8524 = vmatpush1.msra.mxu0 0.0
    %8525 = vmatprep.subr.mxu0 0.0
    %8526 = vmatpush1.msra.mxu0 0.0
    %8527 = vmatprep.subr.mxu0 0.0
    %8528 = vmatpush1.msra.mxu0 0.0
    %8529 = vmatprep.subr.mxu0 0.0
    %8530 = vmatpush1.msra.mxu0 0.0
    %8531 = vmatprep.subr.mxu0 0.0
    %8532 = vmatpush1.msra.mxu0 0.0
    %8533 = vmatprep.subr.mxu0 0.0
    %8534 = vmatpush1.msra.mxu0 0.0
    %8535 = vmatprep.subr.mxu0 0.0
    %8536 = vmatpush1.msra.mxu0 0.0
    %8537 = vmatprep.subr.mxu0 0.0
    %8538 = vmatpush1.msra.mxu0 0.0
    %8539 = vmatprep.subr.mxu0 0.0
    %8540 = vmatpush1.msra.mxu0 0.0
    %8541 = vmatprep.subr.mxu0 0.0
    %8542 = vmatpush1.msra.mxu0 0.0
    %8543 = vmatprep.subr.mxu0 0.0
    %8544 = vmatpush1.msra.mxu0 0.0
    %8545 = vmatprep.mubr.f32.mxu0 0.0
    %8546 = vmatmul.mubr.f32.gmra.mrb[0].mxu0 %v8053
    %v8547 = vpop.f32.mrb[0].mxu0
    %v8548 = vadd.f32 0.0, %v8547
    %v8549 = vpop.f32.mrb[0].mxu0
    %8550 = vdwg.mxu0
    %v8552 = vsel %vm3053, %v8038, 0
    %8554 = vmatprep.subr.mxu0 %v8040
    %8555 = vmatpush1.msra.mxu0 %v8039
    %8556 = vmatprep.subr.mxu0 0.0
    %8557 = vmatpush1.msra.mxu0 0.0
    %8558 = vmatprep.subr.mxu0 0.0
    %8559 = vmatpush1.msra.mxu0 0.0
    %8560 = vmatprep.subr.mxu0 0.0
    %8561 = vmatpush1.msra.mxu0 0.0
    %8562 = vmatprep.subr.mxu0 0.0
    %8563 = vmatpush1.msra.mxu0 0.0
    %8564 = vmatprep.subr.mxu0 0.0
    %8565 = vmatpush1.msra.mxu0 0.0
    %8566 = vmatprep.subr.mxu0 0.0
    %8567 = vmatpush1.msra.mxu0 0.0
    %8568 = vmatprep.subr.mxu0 0.0
    %8569 = vmatpush1.msra.mxu0 0.0
    %8570 = vmatprep.subr.mxu0 0.0
    %8571 = vmatpush1.msra.mxu0 0.0
    %8572 = vmatprep.subr.mxu0 0.0
    %8573 = vmatpush1.msra.mxu0 0.0
    %8574 = vmatprep.subr.mxu0 0.0
    %8575 = vmatpush1.msra.mxu0 0.0
    %8576 = vmatprep.subr.mxu0 0.0
    %8577 = vmatpush1.msra.mxu0 0.0
    %8578 = vmatprep.subr.mxu0 0.0
    %8579 = vmatpush1.msra.mxu0 0.0
    %8580 = vmatprep.subr.mxu0 0.0
    %8581 = vmatpush1.msra.mxu0 0.0
    %8582 = vmatprep.subr.mxu0 0.0
    %8583 = vmatpush1.msra.mxu0 0.0
    %8584 = vmatprep.subr.mxu0 0.0
    %8585 = vmatpush1.msra.mxu0 0.0
    %8586 = vmatprep.subr.mxu0 0.0
    %8587 = vmatpush1.msra.mxu0 0.0
    %8588 = vmatprep.subr.mxu0 0.0
    %8589 = vmatpush1.msra.mxu0 0.0
    %8590 = vmatprep.subr.mxu0 0.0
    %8591 = vmatpush1.msra.mxu0 0.0
    %8592 = vmatprep.subr.mxu0 0.0
    %8593 = vmatpush1.msra.mxu0 0.0
    %8594 = vmatprep.subr.mxu0 0.0
    %8595 = vmatpush1.msra.mxu0 0.0
    %8596 = vmatprep.subr.mxu0 0.0
    %8597 = vmatpush1.msra.mxu0 0.0
    %8598 = vmatprep.subr.mxu0 0.0
    %8599 = vmatpush1.msra.mxu0 0.0
    %8600 = vmatprep.subr.mxu0 0.0
    %8601 = vmatpush1.msra.mxu0 0.0
    %8602 = vmatprep.subr.mxu0 0.0
    %8603 = vmatpush1.msra.mxu0 0.0
    %8604 = vmatprep.subr.mxu0 0.0
    %8605 = vmatpush1.msra.mxu0 0.0
    %8606 = vmatprep.subr.mxu0 0.0
    %8607 = vmatpush1.msra.mxu0 0.0
    %8608 = vmatprep.subr.mxu0 0.0
    %8609 = vmatpush1.msra.mxu0 0.0
    %8610 = vmatprep.subr.mxu0 0.0
    %8611 = vmatpush1.msra.mxu0 0.0
    %8612 = vmatprep.subr.mxu0 0.0
    %8613 = vmatpush1.msra.mxu0 0.0
    %8614 = vmatprep.subr.mxu0 0.0
    %8615 = vmatpush1.msra.mxu0 0.0
    %8616 = vmatprep.subr.mxu0 0.0
    %8617 = vmatpush1.msra.mxu0 0.0
    %8618 = vmatprep.mubr.f32.mxu0 0.0
    %8619 = vmatmul.mubr.f32.gmra.mrb[0].mxu0 %v8552
    %v8620 = vpop.f32.mrb[0].mxu0
    %v8621 = vadd.f32 0.0, %v8620
    %v8622 = vpop.f32.mrb[0].mxu0
    %v8623 = vadd.f32 0.0, %v8622
    %8624 = vdwg.mxu0
    %8625 = vmatprep.subr.mxu0 %v8042
    %8626 = vmatpush1.msra.mxu0 %v8041
    %8627 = vmatprep.subr.mxu0 0.0
    %8628 = vmatpush1.msra.mxu0 0.0
    %8629 = vmatprep.subr.mxu0 0.0
    %8630 = vmatpush1.msra.mxu0 0.0
    %8631 = vmatprep.subr.mxu0 0.0
    %8632 = vmatpush1.msra.mxu0 0.0
    %8633 = vmatprep.subr.mxu0 0.0
    %8634 = vmatpush1.msra.mxu0 0.0
    %8635 = vmatprep.subr.mxu0 0.0
    %8636 = vmatpush1.msra.mxu0 0.0
    %8637 = vmatprep.subr.mxu0 0.0
    %8638 = vmatpush1.msra.mxu0 0.0
    %8639 = vmatprep.subr.mxu0 0.0
    %8640 = vmatpush1.msra.mxu0 0.0
    %8641 = vmatprep.subr.mxu0 0.0
    %8642 = vmatpush1.msra.mxu0 0.0
    %8643 = vmatprep.subr.mxu0 0.0
    %8644 = vmatpush1.msra.mxu0 0.0
    %8645 = vmatprep.subr.mxu0 0.0
    %8646 = vmatpush1.msra.mxu0 0.0
    %8647 = vmatprep.subr.mxu0 0.0
    %8648 = vmatpush1.msra.mxu0 0.0
    %8649 = vmatprep.subr.mxu0 0.0
    %8650 = vmatpush1.msra.mxu0 0.0
    %8651 = vmatprep.subr.mxu0 0.0
    %8652 = vmatpush1.msra.mxu0 0.0
    %8653 = vmatprep.subr.mxu0 0.0
    %8654 = vmatpush1.msra.mxu0 0.0
    %8655 = vmatprep.subr.mxu0 0.0
    %8656 = vmatpush1.msra.mxu0 0.0
    %8657 = vmatprep.subr.mxu0 0.0
    %8658 = vmatpush1.msra.mxu0 0.0
    %8659 = vmatprep.subr.mxu0 0.0
    %8660 = vmatpush1.msra.mxu0 0.0
    %8661 = vmatprep.subr.mxu0 0.0
    %8662 = vmatpush1.msra.mxu0 0.0
    %8663 = vmatprep.subr.mxu0 0.0
    %8664 = vmatpush1.msra.mxu0 0.0
    %8665 = vmatprep.subr.mxu0 0.0
    %8666 = vmatpush1.msra.mxu0 0.0
    %8667 = vmatprep.subr.mxu0 0.0
    %8668 = vmatpush1.msra.mxu0 0.0
    %8669 = vmatprep.subr.mxu0 0.0
    %8670 = vmatpush1.msra.mxu0 0.0
    %8671 = vmatprep.subr.mxu0 0.0
    %8672 = vmatpush1.msra.mxu0 0.0
    %8673 = vmatprep.subr.mxu0 0.0
    %8674 = vmatpush1.msra.mxu0 0.0
    %8675 = vmatprep.subr.mxu0 0.0
    %8676 = vmatpush1.msra.mxu0 0.0
    %8677 = vmatprep.subr.mxu0 0.0
    %8678 = vmatpush1.msra.mxu0 0.0
    %8679 = vmatprep.subr.mxu0 0.0
    %8680 = vmatpush1.msra.mxu0 0.0
    %8681 = vmatprep.subr.mxu0 0.0
    %8682 = vmatpush1.msra.mxu0 0.0
    %8683 = vmatprep.subr.mxu0 0.0
    %8684 = vmatpush1.msra.mxu0 0.0
    %8685 = vmatprep.subr.mxu0 0.0
    %8686 = vmatpush1.msra.mxu0 0.0
    %8687 = vmatprep.subr.mxu0 0.0
    %8688 = vmatpush1.msra.mxu0 0.0
    %8689 = vmatprep.mubr.f32.mxu0 0.0
    %8690 = vmatmul.mubr.f32.gmra.mrb[0].mxu0 %v8552
    %v8691 = vpop.f32.mrb[0].mxu0
    %v8692 = vadd.f32 0.0, %v8691
    %v8693 = vpop.f32.mrb[0].mxu0
    %v8694 = vadd.f32 0.0, %v8693
    %8695 = vdwg.mxu0
    %8696 = vmatprep.subr.mxu0 %v8044
    %8697 = vmatpush1.msra.mxu0 %v8043
    %8698 = vmatprep.subr.mxu0 0.0
    %8699 = vmatpush1.msra.mxu0 0.0
    %8700 = vmatprep.subr.mxu0 0.0
    %8701 = vmatpush1.msra.mxu0 0.0
    %8702 = vmatprep.subr.mxu0 0.0
    %8703 = vmatpush1.msra.mxu0 0.0
    %8704 = vmatprep.subr.mxu0 0.0
    %8705 = vmatpush1.msra.mxu0 0.0
    %8706 = vmatprep.subr.mxu0 0.0
    %8707 = vmatpush1.msra.mxu0 0.0
    %8708 = vmatprep.subr.mxu0 0.0
    %8709 = vmatpush1.msra.mxu0 0.0
    %8710 = vmatprep.subr.mxu0 0.0
    %8711 = vmatpush1.msra.mxu0 0.0
    %8712 = vmatprep.subr.mxu0 0.0
    %8713 = vmatpush1.msra.mxu0 0.0
    %8714 = vmatprep.subr.mxu0 0.0
    %8715 = vmatpush1.msra.mxu0 0.0
    %8716 = vmatprep.subr.mxu0 0.0
    %8717 = vmatpush1.msra.mxu0 0.0
    %8718 = vmatprep.subr.mxu0 0.0
    %8719 = vmatpush1.msra.mxu0 0.0
    %8720 = vmatprep.subr.mxu0 0.0
    %8721 = vmatpush1.msra.mxu0 0.0
    %8722 = vmatprep.subr.mxu0 0.0
    %8723 = vmatpush1.msra.mxu0 0.0
    %8724 = vmatprep.subr.mxu0 0.0
    %8725 = vmatpush1.msra.mxu0 0.0
    %8726 = vmatprep.subr.mxu0 0.0
    %8727 = vmatpush1.msra.mxu0 0.0
    %8728 = vmatprep.subr.mxu0 0.0
    %8729 = vmatpush1.msra.mxu0 0.0
    %8730 = vmatprep.subr.mxu0 0.0
    %8731 = vmatpush1.msra.mxu0 0.0
    %8732 = vmatprep.subr.mxu0 0.0
    %8733 = vmatpush1.msra.mxu0 0.0
    %8734 = vmatprep.subr.mxu0 0.0
    %8735 = vmatpush1.msra.mxu0 0.0
    %8736 = vmatprep.subr.mxu0 0.0
    %8737 = vmatpush1.msra.mxu0 0.0
    %8738 = vmatprep.subr.mxu0 0.0
    %8739 = vmatpush1.msra.mxu0 0.0
    %8740 = vmatprep.subr.mxu0 0.0
    %8741 = vmatpush1.msra.mxu0 0.0
    %8742 = vmatprep.subr.mxu0 0.0
    %8743 = vmatpush1.msra.mxu0 0.0
    %8744 = vmatprep.subr.mxu0 0.0
    %8745 = vmatpush1.msra.mxu0 0.0
    %8746 = vmatprep.subr.mxu0 0.0
    %8747 = vmatpush1.msra.mxu0 0.0
    %8748 = vmatprep.subr.mxu0 0.0
    %8749 = vmatpush1.msra.mxu0 0.0
    %8750 = vmatprep.subr.mxu0 0.0
    %8751 = vmatpush1.msra.mxu0 0.0
    %8752 = vmatprep.subr.mxu0 0.0
    %8753 = vmatpush1.msra.mxu0 0.0
    %8754 = vmatprep.subr.mxu0 0.0
    %8755 = vmatpush1.msra.mxu0 0.0
    %8756 = vmatprep.subr.mxu0 0.0
    %8757 = vmatpush1.msra.mxu0 0.0
    %8758 = vmatprep.subr.mxu0 0.0
    %8759 = vmatpush1.msra.mxu0 0.0
    %8760 = vmatprep.mubr.f32.mxu0 0.0
    %8761 = vmatmul.mubr.f32.gmra.mrb[0].mxu0 %v8552
    %v8762 = vpop.f32.mrb[0].mxu0
    %v8763 = vadd.f32 0.0, %v8762
    %v8764 = vpop.f32.mrb[0].mxu0
    %v8765 = vadd.f32 0.0, %v8764
    %8766 = vdwg.mxu0
    %8767 = vmatprep.subr.mxu0 %v8046
    %8768 = vmatpush1.msra.mxu0 %v8045
    %8769 = vmatprep.subr.mxu0 0.0
    %8770 = vmatpush1.msra.mxu0 0.0
    %8771 = vmatprep.subr.mxu0 0.0
    %8772 = vmatpush1.msra.mxu0 0.0
    %8773 = vmatprep.subr.mxu0 0.0
    %8774 = vmatpush1.msra.mxu0 0.0
    %8775 = vmatprep.subr.mxu0 0.0
    %8776 = vmatpush1.msra.mxu0 0.0
    %8777 = vmatprep.subr.mxu0 0.0
    %8778 = vmatpush1.msra.mxu0 0.0
    %8779 = vmatprep.subr.mxu0 0.0
    %8780 = vmatpush1.msra.mxu0 0.0
    %8781 = vmatprep.subr.mxu0 0.0
    %8782 = vmatpush1.msra.mxu0 0.0
    %8783 = vmatprep.subr.mxu0 0.0
    %8784 = vmatpush1.msra.mxu0 0.0
    %8785 = vmatprep.subr.mxu0 0.0
    %8786 = vmatpush1.msra.mxu0 0.0
    %8787 = vmatprep.subr.mxu0 0.0
    %8788 = vmatpush1.msra.mxu0 0.0
    %8789 = vmatprep.subr.mxu0 0.0
    %8790 = vmatpush1.msra.mxu0 0.0
    %8791 = vmatprep.subr.mxu0 0.0
    %8792 = vmatpush1.msra.mxu0 0.0
    %8793 = vmatprep.subr.mxu0 0.0
    %8794 = vmatpush1.msra.mxu0 0.0
    %8795 = vmatprep.subr.mxu0 0.0
    %8796 = vmatpush1.msra.mxu0 0.0
    %8797 = vmatprep.subr.mxu0 0.0
    %8798 = vmatpush1.msra.mxu0 0.0
    %8799 = vmatprep.subr.mxu0 0.0
    %8800 = vmatpush1.msra.mxu0 0.0
    %8801 = vmatprep.subr.mxu0 0.0
    %8802 = vmatpush1.msra.mxu0 0.0
    %8803 = vmatprep.subr.mxu0 0.0
    %8804 = vmatpush1.msra.mxu0 0.0
    %8805 = vmatprep.subr.mxu0 0.0
    %8806 = vmatpush1.msra.mxu0 0.0
    %8807 = vmatprep.subr.mxu0 0.0
    %8808 = vmatpush1.msra.mxu0 0.0
    %8809 = vmatprep.subr.mxu0 0.0
    %8810 = vmatpush1.msra.mxu0 0.0
    %8811 = vmatprep.subr.mxu0 0.0
    %8812 = vmatpush1.msra.mxu0 0.0
    %8813 = vmatprep.subr.mxu0 0.0
    %8814 = vmatpush1.msra.mxu0 0.0
    %8815 = vmatprep.subr.mxu0 0.0
    %8816 = vmatpush1.msra.mxu0 0.0
    %8817 = vmatprep.subr.mxu0 0.0
    %8818 = vmatpush1.msra.mxu0 0.0
    %8819 = vmatprep.subr.mxu0 0.0
    %8820 = vmatpush1.msra.mxu0 0.0
    %8821 = vmatprep.subr.mxu0 0.0
    %8822 = vmatpush1.msra.mxu0 0.0
    %8823 = vmatprep.subr.mxu0 0.0
    %8824 = vmatpush1.msra.mxu0 0.0
    %8825 = vmatprep.subr.mxu0 0.0
    %8826 = vmatpush1.msra.mxu0 0.0
    %8827 = vmatprep.subr.mxu0 0.0
    %8828 = vmatpush1.msra.mxu0 0.0
    %8829 = vmatprep.subr.mxu0 0.0
    %8830 = vmatpush1.msra.mxu0 0.0
    %8831 = vmatprep.mubr.f32.mxu0 0.0
    %8832 = vmatmul.mubr.f32.gmra.mrb[0].mxu0 %v8552
    %v8833 = vpop.f32.mrb[0].mxu0
    %v8834 = vadd.f32 0.0, %v8833
    %v8835 = vpop.f32.mrb[0].mxu0
    %v8836 = vadd.f32 0.0, %v8835
    %8837 = vdwg.mxu0
    %8838 = vmatprep.subr.mxu0 %v8048
    %8839 = vmatpush1.msra.mxu0 %v8047
    %8840 = vmatprep.subr.mxu0 0.0
    %8841 = vmatpush1.msra.mxu0 0.0
    %8842 = vmatprep.subr.mxu0 0.0
    %8843 = vmatpush1.msra.mxu0 0.0
    %8844 = vmatprep.subr.mxu0 0.0
    %8845 = vmatpush1.msra.mxu0 0.0
    %8846 = vmatprep.subr.mxu0 0.0
    %8847 = vmatpush1.msra.mxu0 0.0
    %8848 = vmatprep.subr.mxu0 0.0
    %8849 = vmatpush1.msra.mxu0 0.0
    %8850 = vmatprep.subr.mxu0 0.0
    %8851 = vmatpush1.msra.mxu0 0.0
    %8852 = vmatprep.subr.mxu0 0.0
    %8853 = vmatpush1.msra.mxu0 0.0
    %8854 = vmatprep.subr.mxu0 0.0
    %8855 = vmatpush1.msra.mxu0 0.0
    %8856 = vmatprep.subr.mxu0 0.0
    %8857 = vmatpush1.msra.mxu0 0.0
    %8858 = vmatprep.subr.mxu0 0.0
    %8859 = vmatpush1.msra.mxu0 0.0
    %8860 = vmatprep.subr.mxu0 0.0
    %8861 = vmatpush1.msra.mxu0 0.0
    %8862 = vmatprep.subr.mxu0 0.0
    %8863 = vmatpush1.msra.mxu0 0.0
    %8864 = vmatprep.subr.mxu0 0.0
    %8865 = vmatpush1.msra.mxu0 0.0
    %8866 = vmatprep.subr.mxu0 0.0
    %8867 = vmatpush1.msra.mxu0 0.0
    %8868 = vmatprep.subr.mxu0 0.0
    %8869 = vmatpush1.msra.mxu0 0.0
    %8870 = vmatprep.subr.mxu0 0.0
    %8871 = vmatpush1.msra.mxu0 0.0
    %8872 = vmatprep.subr.mxu0 0.0
    %8873 = vmatpush1.msra.mxu0 0.0
    %8874 = vmatprep.subr.mxu0 0.0
    %8875 = vmatpush1.msra.mxu0 0.0
    %8876 = vmatprep.subr.mxu0 0.0
    %8877 = vmatpush1.msra.mxu0 0.0
    %8878 = vmatprep.subr.mxu0 0.0
    %8879 = vmatpush1.msra.mxu0 0.0
    %8880 = vmatprep.subr.mxu0 0.0
    %8881 = vmatpush1.msra.mxu0 0.0
    %8882 = vmatprep.subr.mxu0 0.0
    %8883 = vmatpush1.msra.mxu0 0.0
    %8884 = vmatprep.subr.mxu0 0.0
    %8885 = vmatpush1.msra.mxu0 0.0
    %8886 = vmatprep.subr.mxu0 0.0
    %8887 = vmatpush1.msra.mxu0 0.0
    %8888 = vmatprep.subr.mxu0 0.0
    %8889 = vmatpush1.msra.mxu0 0.0
    %8890 = vmatprep.subr.mxu0 0.0
    %8891 = vmatpush1.msra.mxu0 0.0
    %8892 = vmatprep.subr.mxu0 0.0
    %8893 = vmatpush1.msra.mxu0 0.0
    %8894 = vmatprep.subr.mxu0 0.0
    %8895 = vmatpush1.msra.mxu0 0.0
    %8896 = vmatprep.subr.mxu0 0.0
    %8897 = vmatpush1.msra.mxu0 0.0
    %8898 = vmatprep.subr.mxu0 0.0
    %8899 = vmatpush1.msra.mxu0 0.0
    %8900 = vmatprep.subr.mxu0 0.0
    %8901 = vmatpush1.msra.mxu0 0.0
    %8902 = vmatprep.mubr.f32.mxu0 0.0
    %8903 = vmatmul.mubr.f32.gmra.mrb[0].mxu0 %v8552
    %v8904 = vpop.f32.mrb[0].mxu0
    %v8905 = vadd.f32 0.0, %v8904
    %v8906 = vpop.f32.mrb[0].mxu0
    %v8907 = vadd.f32 0.0, %v8906
    %8908 = vdwg.mxu0
    %8909 = vmatprep.subr.mxu0 %v8050
    %8910 = vmatpush1.msra.mxu0 %v8049
    %8911 = vmatprep.subr.mxu0 0.0
    %8912 = vmatpush1.msra.mxu0 0.0
    %8913 = vmatprep.subr.mxu0 0.0
    %8914 = vmatpush1.msra.mxu0 0.0
    %8915 = vmatprep.subr.mxu0 0.0
    %8916 = vmatpush1.msra.mxu0 0.0
    %8917 = vmatprep.subr.mxu0 0.0
    %8918 = vmatpush1.msra.mxu0 0.0
    %8919 = vmatprep.subr.mxu0 0.0
    %8920 = vmatpush1.msra.mxu0 0.0
    %8921 = vmatprep.subr.mxu0 0.0
    %8922 = vmatpush1.msra.mxu0 0.0
    %8923 = vmatprep.subr.mxu0 0.0
    %8924 = vmatpush1.msra.mxu0 0.0
    %8925 = vmatprep.subr.mxu0 0.0
    %8926 = vmatpush1.msra.mxu0 0.0
    %8927 = vmatprep.subr.mxu0 0.0
    %8928 = vmatpush1.msra.mxu0 0.0
    %8929 = vmatprep.subr.mxu0 0.0
    %8930 = vmatpush1.msra.mxu0 0.0
    %8931 = vmatprep.subr.mxu0 0.0
    %8932 = vmatpush1.msra.mxu0 0.0
    %8933 = vmatprep.subr.mxu0 0.0
    %8934 = vmatpush1.msra.mxu0 0.0
    %8935 = vmatprep.subr.mxu0 0.0
    %8936 = vmatpush1.msra.mxu0 0.0
    %8937 = vmatprep.subr.mxu0 0.0
    %8938 = vmatpush1.msra.mxu0 0.0
    %8939 = vmatprep.subr.mxu0 0.0
    %8940 = vmatpush1.msra.mxu0 0.0
    %8941 = vmatprep.subr.mxu0 0.0
    %8942 = vmatpush1.msra.mxu0 0.0
    %8943 = vmatprep.subr.mxu0 0.0
    %8944 = vmatpush1.msra.mxu0 0.0
    %8945 = vmatprep.subr.mxu0 0.0
    %8946 = vmatpush1.msra.mxu0 0.0
    %8947 = vmatprep.subr.mxu0 0.0
    %8948 = vmatpush1.msra.mxu0 0.0
    %8949 = vmatprep.subr.mxu0 0.0
    %8950 = vmatpush1.msra.mxu0 0.0
    %8951 = vmatprep.subr.mxu0 0.0
    %8952 = vmatpush1.msra.mxu0 0.0
    %8953 = vmatprep.subr.mxu0 0.0
    %8954 = vmatpush1.msra.mxu0 0.0
    %8955 = vmatprep.subr.mxu0 0.0
    %8956 = vmatpush1.msra.mxu0 0.0
    %8957 = vmatprep.subr.mxu0 0.0
    %8958 = vmatpush1.msra.mxu0 0.0
    %8959 = vmatprep.subr.mxu0 0.0
    %8960 = vmatpush1.msra.mxu0 0.0
    %8961 = vmatprep.subr.mxu0 0.0
    %8962 = vmatpush1.msra.mxu0 0.0
    %8963 = vmatprep.subr.mxu0 0.0
    %8964 = vmatpush1.msra.mxu0 0.0
    %8965 = vmatprep.subr.mxu0 0.0
    %8966 = vmatpush1.msra.mxu0 0.0
    %8967 = vmatprep.subr.mxu0 0.0
    %8968 = vmatpush1.msra.mxu0 0.0
    %8969 = vmatprep.subr.mxu0 0.0
    %8970 = vmatpush1.msra.mxu0 0.0
    %8971 = vmatprep.subr.mxu0 0.0
    %8972 = vmatpush1.msra.mxu0 0.0
    %8973 = vmatprep.mubr.f32.mxu0 0.0
    %8974 = vmatmul.mubr.f32.gmra.mrb[0].mxu0 %v8552
    %v8975 = vpop.f32.mrb[0].mxu0
    %v8976 = vadd.f32 0.0, %v8975
    %v8977 = vpop.f32.mrb[0].mxu0
    %v8978 = vadd.f32 0.0, %v8977
    %8979 = vdwg.mxu0
    %8980 = vmatprep.subr.mxu0 0.0
    %8981 = vmatpush1.msra.mxu0 %v8051
    %8982 = vmatprep.subr.mxu0 0.0
    %8983 = vmatpush1.msra.mxu0 0.0
    %8984 = vmatprep.subr.mxu0 0.0
    %8985 = vmatpush1.msra.mxu0 0.0
    %8986 = vmatprep.subr.mxu0 0.0
    %8987 = vmatpush1.msra.mxu0 0.0
    %8988 = vmatprep.subr.mxu0 0.0
    %8989 = vmatpush1.msra.mxu0 0.0
    %8990 = vmatprep.subr.mxu0 0.0
    %8991 = vmatpush1.msra.mxu0 0.0
    %8992 = vmatprep.subr.mxu0 0.0
    %8993 = vmatpush1.msra.mxu0 0.0
    %8994 = vmatprep.subr.mxu0 0.0
    %8995 = vmatpush1.msra.mxu0 0.0
    %8996 = vmatprep.subr.mxu0 0.0
    %8997 = vmatpush1.msra.mxu0 0.0
    %8998 = vmatprep.subr.mxu0 0.0
    %8999 = vmatpush1.msra.mxu0 0.0
    %9000 = vmatprep.subr.mxu0 0.0
    %9001 = vmatpush1.msra.mxu0 0.0
    %9002 = vmatprep.subr.mxu0 0.0
    %9003 = vmatpush1.msra.mxu0 0.0
    %9004 = vmatprep.subr.mxu0 0.0
    %9005 = vmatpush1.msra.mxu0 0.0
    %9006 = vmatprep.subr.mxu0 0.0
    %9007 = vmatpush1.msra.mxu0 0.0
    %9008 = vmatprep.subr.mxu0 0.0
    %9009 = vmatpush1.msra.mxu0 0.0
    %9010 = vmatprep.subr.mxu0 0.0
    %9011 = vmatpush1.msra.mxu0 0.0
    %9012 = vmatprep.subr.mxu0 0.0
    %9013 = vmatpush1.msra.mxu0 0.0
    %9014 = vmatprep.subr.mxu0 0.0
    %9015 = vmatpush1.msra.mxu0 0.0
    %9016 = vmatprep.subr.mxu0 0.0
    %9017 = vmatpush1.msra.mxu0 0.0
    %9018 = vmatprep.subr.mxu0 0.0
    %9019 = vmatpush1.msra.mxu0 0.0
    %9020 = vmatprep.subr.mxu0 0.0
    %9021 = vmatpush1.msra.mxu0 0.0
    %9022 = vmatprep.subr.mxu0 0.0
    %9023 = vmatpush1.msra.mxu0 0.0
    %9024 = vmatprep.subr.mxu0 0.0
    %9025 = vmatpush1.msra.mxu0 0.0
    %9026 = vmatprep.subr.mxu0 0.0
    %9027 = vmatpush1.msra.mxu0 0.0
    %9028 = vmatprep.subr.mxu0 0.0
    %9029 = vmatpush1.msra.mxu0 0.0
    %9030 = vmatprep.subr.mxu0 0.0
    %9031 = vmatpush1.msra.mxu0 0.0
    %9032 = vmatprep.subr.mxu0 0.0
    %9033 = vmatpush1.msra.mxu0 0.0
    %9034 = vmatprep.subr.mxu0 0.0
    %9035 = vmatpush1.msra.mxu0 0.0
    %9036 = vmatprep.subr.mxu0 0.0
    %9037 = vmatpush1.msra.mxu0 0.0
    %9038 = vmatprep.subr.mxu0 0.0
    %9039 = vmatpush1.msra.mxu0 0.0
    %9040 = vmatprep.subr.mxu0 0.0
    %9041 = vmatpush1.msra.mxu0 0.0
    %9042 = vmatprep.subr.mxu0 0.0
    %9043 = vmatpush1.msra.mxu0 0.0
    %9044 = vmatprep.mubr.f32.mxu0 0.0
    %9045 = vmatmul.mubr.f32.gmra.mrb[0].mxu0 %v8552
    %v9046 = vpop.f32.mrb[0].mxu0
    %v9047 = vadd.f32 0.0, %v9046
    %v9048 = vpop.f32.mrb[0].mxu0
    %9049 = vdwg.mxu0
    %v9050 = vlaneseq
    %v9051 = vshrl.u32 %v9050, 7
    %v9052 = vsub.s32 0, %v9051
    %v9053 = vrot.slane %v8122, %v9052
    %v9054 = vlaneseq
    %v9055 = vshrl.u32 %v9054, 7
    %v9056 = vsub.s32 0, %v9055
    %v9057 = vrot.slane %v8124, %v9056
    %v9058 = vlaneseq
    %v9059 = vshrl.u32 %v9058, 7
    %v9060 = vsub.s32 0, %v9059
    %v9061 = vrot.slane %v8193, %v9060
    %v9062 = vlaneseq
    %v9063 = vshrl.u32 %v9062, 7
    %v9064 = vsub.s32 0, %v9063
    %v9065 = vrot.slane %v8195, %v9064
    %v9066 = vlaneseq
    %v9067 = vshrl.u32 %v9066, 7
    %v9068 = vsub.s32 0, %v9067
    %v9069 = vrot.slane %v8264, %v9068
    %v9070 = vlaneseq
    %v9071 = vshrl.u32 %v9070, 7
    %v9072 = vsub.s32 0, %v9071
    %v9073 = vrot.slane %v8266, %v9072
    %v9074 = vlaneseq
    %v9075 = vshrl.u32 %v9074, 7
    %v9076 = vsub.s32 0, %v9075
    %v9077 = vrot.slane %v8335, %v9076
    %v9078 = vlaneseq
    %v9079 = vshrl.u32 %v9078, 7
    %v9080 = vsub.s32 0, %v9079
    %v9081 = vrot.slane %v8337, %v9080
    %v9082 = vlaneseq
    %v9083 = vshrl.u32 %v9082, 7
    %v9084 = vsub.s32 0, %v9083
    %v9085 = vrot.slane %v8406, %v9084
    %v9086 = vlaneseq
    %v9087 = vshrl.u32 %v9086, 7
    %v9088 = vsub.s32 0, %v9087
    %v9089 = vrot.slane %v8408, %v9088
    %v9090 = vlaneseq
    %v9091 = vshrl.u32 %v9090, 7
    %v9092 = vsub.s32 0, %v9091
    %v9093 = vrot.slane %v8477, %v9092
    %v9094 = vlaneseq
    %v9095 = vshrl.u32 %v9094, 7
    %v9096 = vsub.s32 0, %v9095
    %v9097 = vrot.slane %v8479, %v9096
    %v9098 = vlaneseq
    %v9099 = vshrl.u32 %v9098, 7
    %v9100 = vsub.s32 0, %v9099
    %v9101 = vrot.slane %v8548, %v9100
    %v9102 = vmul.f32 %v6635, %v9053
    %v9103 = vmul.f32 %v6636, %v9057
    %v9104 = vmul.f32 %v6637, %v9061
    %v9105 = vmul.f32 %v6638, %v9065
    %v9106 = vmul.f32 %v6639, %v9069
    %v9107 = vmul.f32 %v6640, %v9073
    %v9108 = vmul.f32 %v6641, %v9077
    %v9109 = vmul.f32 %v6642, %v9081
    %v9110 = vmul.f32 %v6643, %v9085
    %v9111 = vmul.f32 %v6644, %v9089
    %v9112 = vmul.f32 %v6645, %v9093
    %v9113 = vmul.f32 %v6646, %v9097
    %v9114 = vmul.f32 %v6647, %v9101
    %v9115 = vlaneseq
    %v9116 = vshrl.u32 %v9115, 7
    %v9117 = vsub.s32 0, %v9116
    %v9118 = vrot.slane %v8621, %v9117
    %v9119 = vlaneseq
    %v9120 = vshrl.u32 %v9119, 7
    %v9121 = vsub.s32 0, %v9120
    %v9122 = vrot.slane %v8623, %v9121
    %v9123 = vlaneseq
    %v9124 = vshrl.u32 %v9123, 7
    %v9125 = vsub.s32 0, %v9124
    %v9126 = vrot.slane %v8692, %v9125
    %v9127 = vlaneseq
    %v9128 = vshrl.u32 %v9127, 7
    %v9129 = vsub.s32 0, %v9128
    %v9130 = vrot.slane %v8694, %v9129
    %v9131 = vlaneseq
    %v9132 = vshrl.u32 %v9131, 7
    %v9133 = vsub.s32 0, %v9132
    %v9134 = vrot.slane %v8763, %v9133
    %v9135 = vlaneseq
    %v9136 = vshrl.u32 %v9135, 7
    %v9137 = vsub.s32 0, %v9136
    %v9138 = vrot.slane %v8765, %v9137
    %v9139 = vlaneseq
    %v9140 = vshrl.u32 %v9139, 7
    %v9141 = vsub.s32 0, %v9140
    %v9142 = vrot.slane %v8834, %v9141
    %v9143 = vlaneseq
    %v9144 = vshrl.u32 %v9143, 7
    %v9145 = vsub.s32 0, %v9144
    %v9146 = vrot.slane %v8836, %v9145
    %v9147 = vlaneseq
    %v9148 = vshrl.u32 %v9147, 7
    %v9149 = vsub.s32 0, %v9148
    %v9150 = vrot.slane %v8905, %v9149
    %v9151 = vlaneseq
    %v9152 = vshrl.u32 %v9151, 7
    %v9153 = vsub.s32 0, %v9152
    %v9154 = vrot.slane %v8907, %v9153
    %v9155 = vlaneseq
    %v9156 = vshrl.u32 %v9155, 7
    %v9157 = vsub.s32 0, %v9156
    %v9158 = vrot.slane %v8976, %v9157
    %v9159 = vlaneseq
    %v9160 = vshrl.u32 %v9159, 7
    %v9161 = vsub.s32 0, %v9160
    %v9162 = vrot.slane %v8978, %v9161
    %v9163 = vlaneseq
    %v9164 = vshrl.u32 %v9163, 7
    %v9165 = vsub.s32 0, %v9164
    %v9166 = vrot.slane %v9047, %v9165
    %v9167 = vadd.f32 %v9102, %v9118
    %v9168 = vadd.f32 %v9103, %v9122
    %v9169 = vadd.f32 %v9104, %v9126
    %v9170 = vadd.f32 %v9105, %v9130
    %v9171 = vadd.f32 %v9106, %v9134
    %v9172 = vadd.f32 %v9107, %v9138
    %v9173 = vadd.f32 %v9108, %v9142
    %v9174 = vadd.f32 %v9109, %v9146
    %v9175 = vadd.f32 %v9110, %v9150
    %v9176 = vadd.f32 %v9111, %v9154
    %v9177 = vadd.f32 %v9112, %v9158
    %v9178 = vadd.f32 %v9113, %v9162
    %v9179 = vadd.f32 %v9114, %v9166
    %v9180 = vld [vmem:[%s65] sm:$0xff]
    %v9181 = vld [vmem:[%s65 + $0x8] sm:$0xff]
    %v9182 = vld [vmem:[%s65 + $0x10] sm:$0xff]
    %v9183 = vld [vmem:[%s65 + $0x18] sm:$0xff]
    %v9184 = vld [vmem:[%s65 + $0x20] sm:$0xff]
    %v9185 = vld [vmem:[%s65 + $0x28] sm:$0xff]
    %v9186 = vld [vmem:[%s65 + $0x30] sm:$0xff]
    %v9187 = vld [vmem:[%s65 + $0x38] sm:$0xff]
    %v9188 = vld [vmem:[%s65 + $0x40] sm:$0xff]
    %v9189 = vld [vmem:[%s65 + $0x48] sm:$0xff]
    %v9190 = vld [vmem:[%s65 + $0x50] sm:$0xff]
    %v9191 = vld [vmem:[%s65 + $0x58] sm:$0xff]
    %v9192 = vld [vmem:[%s65 + $0x60] sm:$0xff]
    %v9193 = vld [vmem:[%s65 + $0x68] sm:$0xff]
    %v9194 = vld [vmem:[%s65 + $0x70] sm:$0xff]
    %v9195 = vld [vmem:[%s65 + $0x78] sm:$0xff]
    %v9196 = vld [vmem:[%s65 + $0x80] sm:$0xff]
    %v9197 = vld [vmem:[%s65 + $0x88] sm:$0xff]
    %v9198 = vld [vmem:[%s65 + $0x90] sm:$0xff]
    %v9199 = vld [vmem:[%s65 + $0x98] sm:$0xff]
    %v9200 = vld [vmem:[%s65 + $0xa0] sm:$0xff]
    %v9201 = vld [vmem:[%s65 + $0xa8] sm:$0xff]
    %v9202 = vld [vmem:[%s65 + $0xb0] sm:$0xff]
    %v9203 = vld [vmem:[%s65 + $0xb8] sm:$0xff]
    %v9204 = vld [vmem:[%s65 + $0xc0] sm:$0xff]
    %v9205 = vld [vmem:[%s65 + $0xc8] sm:$0xff]
    %v9206 = vld [vmem:[%s65 + $0xd0] sm:$0xff]
    %v9207 = vld [vmem:[%s65 + $0xd8] sm:$0xff]
    %v9208 = vld [vmem:[%s65 + $0xe0] sm:$0xff]
    %v9209 = vld [vmem:[%s65 + $0xe8] sm:$0xff]
    %v9210 = vld [vmem:[%s65 + $0xf0] sm:$0xff]
    %v9211 = vld [vmem:[%s65 + $0xf8] sm:$0xff]
    %v9212 = vld [vmem:[%s65 + $0x100] sm:$0xff]
    %v9213 = vld [vmem:[%s65 + $0x108] sm:$0xff]
    %v9214 = vld [vmem:[%s65 + $0x110] sm:$0xff]
    %v9215 = vld [vmem:[%s65 + $0x118] sm:$0xff]
    %v9216 = vld [vmem:[%s65 + $0x120] sm:$0xff]
    %v9217 = vld [vmem:[%s65 + $0x128] sm:$0xff]
    %v9218 = vld [vmem:[%s65 + $0x130] sm:$0xff]
    %v9219 = vld [vmem:[%s65 + $0x138] sm:$0xff]
    %v9220 = vld [vmem:[%s65 + $0x140] sm:$0xff]
    %v9221 = vld [vmem:[%s65 + $0x148] sm:$0xff]
    %v9222 = vld [vmem:[%s65 + $0x150] sm:$0xff]
    %v9223 = vld [vmem:[%s65 + $0x158] sm:$0xff]
    %v9224 = vld [vmem:[%s65 + $0x160] sm:$0xff]
    %v9225 = vld [vmem:[%s65 + $0x168] sm:$0xff]
    %v9226 = vld [vmem:[%s65 + $0x170] sm:$0xff]
    %v9227 = vld [vmem:[%s65 + $0x178] sm:$0xff]
    %v9228 = vld [vmem:[%s65 + $0x180] sm:$0xff]
    %v9229 = vld [vmem:[%s65 + $0x188] sm:$0xff]
    %v9230 = vld [vmem:[%s65 + $0x190] sm:$0xff]
    %v9231 = vld [vmem:[%s65 + $0x198] sm:$0xff]
    %v9232 = vld [vmem:[%s65 + $0x1a0] sm:$0xff]
    %v9233 = vld [vmem:[%s65 + $0x1a8] sm:$0xff]
    %v9234 = vld [vmem:[%s65 + $0x1b0] sm:$0xff]
    %v9235 = vld [vmem:[%s65 + $0x1b8] sm:$0xff]
    %v9236 = vld [vmem:[%s65 + $0x1c0] sm:$0xff]
    %v9237 = vld [vmem:[%s65 + $0x1c8] sm:$0xff]
    %v9238 = vld [vmem:[%s65 + $0x1d0] sm:$0xff]
    %v9239 = vld [vmem:[%s65 + $0x1d8] sm:$0xff]
    %v9240 = vld [vmem:[%s65 + $0x1e0] sm:$0xff]
    %v9241 = vld [vmem:[%s65 + $0x1e8] sm:$0xff]
    %v9242 = vld [vmem:[%s65 + $0x1f0] sm:$0xff]
    %v9243 = vld [vmem:[%s65 + $0x1f8] sm:$0xff]
    %v9244 = vld [vmem:[%s65 + $0x200] sm:$0xff]
    %v9245 = vld [vmem:[%s65 + $0x208] sm:$0xff]
    %v9246 = vld [vmem:[%s65 + $0x210] sm:$0xff]
    %v9247 = vld [vmem:[%s65 + $0x218] sm:$0xff]
    %v9248 = vld [vmem:[%s65 + $0x220] sm:$0xff]
    %v9249 = vld [vmem:[%s65 + $0x228] sm:$0xff]
    %v9250 = vld [vmem:[%s65 + $0x230] sm:$0xff]
    %v9251 = vld [vmem:[%s65 + $0x238] sm:$0xff]
    %v9252 = vld [vmem:[%s65 + $0x240] sm:$0xff]
    %v9253 = vld [vmem:[%s65 + $0x248] sm:$0xff]
    %v9254 = vld [vmem:[%s65 + $0x250] sm:$0xff]
    %v9255 = vld [vmem:[%s65 + $0x258] sm:$0xff]
    %v9256 = vld [vmem:[%s65 + $0x260] sm:$0xff]
    %v9257 = vld [vmem:[%s65 + $0x268] sm:$0xff]
    %v9258 = vld [vmem:[%s65 + $0x270] sm:$0xff]
    %v9259 = vld [vmem:[%s65 + $0x278] sm:$0xff]
    %v9260 = vld [vmem:[%s65 + $0x280] sm:$0xff]
    %v9261 = vld [vmem:[%s65 + $0x288] sm:$0xff]
    %v9262 = vld [vmem:[%s65 + $0x290] sm:$0xff]
    %v9263 = vld [vmem:[%s65 + $0x298] sm:$0xff]
    %v9264 = vld [vmem:[%s65 + $0x2a0] sm:$0xff]
    %v9265 = vld [vmem:[%s65 + $0x2a8] sm:$0xff]
    %v9266 = vld [vmem:[%s65 + $0x2b0] sm:$0xff]
    %v9267 = vld [vmem:[%s65 + $0x2b8] sm:$0xff]
    %v9268 = vld [vmem:[%s65 + $0x2c0] sm:$0xff]
    %v9269 = vld [vmem:[%s65 + $0x2c8] sm:$0xff]
    %v9270 = vld [vmem:[%s65 + $0x2d0] sm:$0xff]
    %v9271 = vld [vmem:[%s65 + $0x2d8] sm:$0xff]
    %v9272 = vld [vmem:[%s65 + $0x2e0] sm:$0xff]
    %v9273 = vld [vmem:[%s65 + $0x2e8] sm:$0xff]
    %v9274 = vld [vmem:[%s65 + $0x2f0] sm:$0xff]
    %v9275 = vld [vmem:[%s65 + $0x2f8] sm:$0xff]
    %v9276 = vld [vmem:[%s65 + $0x300] sm:$0xff]
    %v9277 = vld [vmem:[%s65 + $0x308] sm:$0xff]
    %v9278 = vld [vmem:[%s65 + $0x310] sm:$0xff]
    %v9279 = vld [vmem:[%s65 + $0x318] sm:$0xff]
    %v9280 = vld [vmem:[%s65 + $0x320] sm:$0xff]
    %v9281 = vld [vmem:[%s65 + $0x328] sm:$0xff]
    %v9282 = vld [vmem:[%s65 + $0x330] sm:$0xff]
    %v9283 = vld [vmem:[%s65 + $0x338] sm:$0xff]
    %v9284 = vld [vmem:[%s65 + $0x340] sm:$0xff]
    %v9285 = vld [vmem:[%s65 + $0x348] sm:$0xff]
    %v9286 = vld [vmem:[%s65 + $0x350] sm:$0xff]
    %v9287 = vld [vmem:[%s65 + $0x358] sm:$0xff]
    %v9288 = vld [vmem:[%s65 + $0x360] sm:$0xff]
    %v9289 = vld [vmem:[%s65 + $0x368] sm:$0xff]
    %v9290 = vld [vmem:[%s65 + $0x370] sm:$0xff]
    %v9291 = vld [vmem:[%s65 + $0x378] sm:$0xff]
    %v9292 = vld [vmem:[%s65 + $0x380] sm:$0xff]
    %v9293 = vld [vmem:[%s65 + $0x388] sm:$0xff]
    %v9294 = vld [vmem:[%s65 + $0x390] sm:$0xff]
    %v9295 = vld [vmem:[%s65 + $0x398] sm:$0xff]
    %v9296 = vld [vmem:[%s65 + $0x3a0] sm:$0xff]
    %v9297 = vld [vmem:[%s65 + $0x3a8] sm:$0xff]
    %v9298 = vld [vmem:[%s65 + $0x3b0] sm:$0xff]
    %v9299 = vld [vmem:[%s65 + $0x3b8] sm:$0xff]
    %v9300 = vld [vmem:[%s65 + $0x3c0] sm:$0xff]
    %v9301 = vld [vmem:[%s65 + $0x3c8] sm:$0xff]
    %v9302 = vld [vmem:[%s65 + $0x3d0] sm:$0xff]
    %v9303 = vld [vmem:[%s65 + $0x3d8] sm:$0xff]
    %v9304 = vld [vmem:[%s65 + $0x3e0] sm:$0xff]
    %v9305 = vld [vmem:[%s65 + $0x3e8] sm:$0xff]
    %v9306 = vld [vmem:[%s65 + $0x3f0] sm:$0xff]
    %v9307 = vld [vmem:[%s65 + $0x3f8] sm:$0xff]
    %v9308 = vld [vmem:[%s65 + $0x400] sm:$0xff]
    %v9309 = vld [vmem:[%s65 + $0x408] sm:$0xff]
    %v9310 = vld [vmem:[%s65 + $0x410] sm:$0xff]
    %v9311 = vld [vmem:[%s65 + $0x418] sm:$0xff]
    %v9312 = vld [vmem:[%s65 + $0x420] sm:$0xff]
    %v9313 = vld [vmem:[%s65 + $0x428] sm:$0xff]
    %v9314 = vld [vmem:[%s65 + $0x430] sm:$0xff]
    %v9315 = vld [vmem:[%s65 + $0x438] sm:$0xff]
    %v9316 = vld [vmem:[%s65 + $0x440] sm:$0xff]
    %v9317 = vld [vmem:[%s65 + $0x448] sm:$0xff]
    %v9318 = vld [vmem:[%s65 + $0x450] sm:$0xff]
    %v9319 = vld [vmem:[%s65 + $0x458] sm:$0xff]
    %v9320 = vld [vmem:[%s65 + $0x460] sm:$0xff]
    %v9321 = vld [vmem:[%s65 + $0x468] sm:$0xff]
    %v9322 = vld [vmem:[%s65 + $0x470] sm:$0xff]
    %v9323 = vld [vmem:[%s65 + $0x478] sm:$0xff]
    %v9324 = vld [vmem:[%s65 + $0x480] sm:$0xff]
    %v9325 = vld [vmem:[%s65 + $0x488] sm:$0xff]
    %v9326 = vld [vmem:[%s65 + $0x490] sm:$0xff]
    %v9327 = vld [vmem:[%s65 + $0x498] sm:$0xff]
    %v9328 = vld [vmem:[%s65 + $0x4a0] sm:$0xff]
    %v9329 = vld [vmem:[%s65 + $0x4a8] sm:$0xff]
    %v9330 = vld [vmem:[%s65 + $0x4b0] sm:$0xff]
    %v9331 = vld [vmem:[%s65 + $0x4b8] sm:$0xff]
    %v9332 = vld [vmem:[%s65 + $0x4c0] sm:$0xff]
    %v9333 = vld [vmem:[%s65 + $0x4c8] sm:$0xff]
    %v9334 = vld [vmem:[%s65 + $0x4d0] sm:$0xff]
    %v9335 = vld [vmem:[%s65 + $0x4d8] sm:$0xff]
    %v9336 = vld [vmem:[%s65 + $0x4e0] sm:$0xff]
    %v9337 = vld [vmem:[%s65 + $0x4e8] sm:$0xff]
    %v9338 = vld [vmem:[%s65 + $0x4f0] sm:$0xff]
    %v9339 = vld [vmem:[%s65 + $0x4f8] sm:$0xff]
    %v9340 = vld [vmem:[%s65 + $0x500] sm:$0xff]
    %v9341 = vld [vmem:[%s65 + $0x508] sm:$0xff]
    %v9342 = vld [vmem:[%s65 + $0x510] sm:$0xff]
    %v9343 = vld [vmem:[%s65 + $0x518] sm:$0xff]
    %v9344 = vld [vmem:[%s65 + $0x520] sm:$0xff]
    %v9345 = vld [vmem:[%s65 + $0x528] sm:$0xff]
    %v9346 = vld [vmem:[%s65 + $0x530] sm:$0xff]
    %v9347 = vld [vmem:[%s65 + $0x538] sm:$0xff]
    %v9348 = vld [vmem:[%s65 + $0x540] sm:$0xff]
    %v9349 = vld [vmem:[%s65 + $0x548] sm:$0xff]
    %v9350 = vld [vmem:[%s65 + $0x550] sm:$0xff]
    %v9351 = vld [vmem:[%s65 + $0x558] sm:$0xff]
    %v9352 = vld [vmem:[%s65 + $0x560] sm:$0xff]
    %v9353 = vld [vmem:[%s65 + $0x568] sm:$0xff]
    %v9354 = vld [vmem:[%s65 + $0x570] sm:$0xff]
    %v9355 = vld [vmem:[%s65 + $0x578] sm:$0xff]
    %v9356 = vld [vmem:[%s65 + $0x580] sm:$0xff]
    %v9357 = vld [vmem:[%s65 + $0x588] sm:$0xff]
    %v9358 = vld [vmem:[%s65 + $0x590] sm:$0xff]
    %v9359 = vld [vmem:[%s65 + $0x598] sm:$0xff]
    %v9360 = vld [vmem:[%s65 + $0x5a0] sm:$0xff]
    %v9361 = vld [vmem:[%s65 + $0x5a8] sm:$0xff]
    %v9362 = vld [vmem:[%s65 + $0x5b0] sm:$0xff]
    %v9363 = vld [vmem:[%s65 + $0x5b8] sm:$0xff]
    %v9364 = vld [vmem:[%s65 + $0x5c0] sm:$0xff]
    %v9365 = vld [vmem:[%s65 + $0x5c8] sm:$0xff]
    %v9366 = vld [vmem:[%s65 + $0x5d0] sm:$0xff]
    %v9367 = vld [vmem:[%s65 + $0x5d8] sm:$0xff]
    %v9368 = vld [vmem:[%s65 + $0x5e0] sm:$0xff]
    %v9369 = vld [vmem:[%s65 + $0x5e8] sm:$0xff]
    %v9370 = vld [vmem:[%s65 + $0x5f0] sm:$0xff]
    %v9371 = vld [vmem:[%s65 + $0x5f8] sm:$0xff]
    %v9372 = vld [vmem:[%s65 + $0x600] sm:$0xff]
    %v9373 = vld [vmem:[%s65 + $0x608] sm:$0xff]
    %v9374 = vld [vmem:[%s65 + $0x610] sm:$0xff]
    %v9375 = vld [vmem:[%s65 + $0x618] sm:$0xff]
    %v9376 = vld [vmem:[%s65 + $0x620] sm:$0xff]
    %v9377 = vld [vmem:[%s65 + $0x628] sm:$0xff]
    %v9378 = vld [vmem:[%s65 + $0x630] sm:$0xff]
    %v9379 = vld [vmem:[%s65 + $0x638] sm:$0xff]
    %v9380 = vld [vmem:[%s65 + $0x640] sm:$0xff]
    %v9381 = vld [vmem:[%s65 + $0x648] sm:$0xff]
    %v9382 = vld [vmem:[%s65 + $0x650] sm:$0xff]
    %v9383 = vld [vmem:[%s65 + $0x658] sm:$0xff]
    %v9384 = vld [vmem:[%s65 + $0x660] sm:$0xff]
    %v9385 = vld [vmem:[%s65 + $0x668] sm:$0xff]
    %v9386 = vld [vmem:[%s65 + $0x670] sm:$0xff]
    %v9387 = vld [vmem:[%s65 + $0x678] sm:$0xff]
    %v9388 = vld [vmem:[%s65 + $0x680] sm:$0xff]
    %v9389 = vld [vmem:[%s65 + $0x688] sm:$0xff]
    %v9390 = vld [vmem:[%s65 + $0x690] sm:$0xff]
    %v9391 = vld [vmem:[%s65 + $0x698] sm:$0xff]
    %v9392 = vld [vmem:[%s65 + $0x6a0] sm:$0xff]
    %v9393 = vld [vmem:[%s65 + $0x6a8] sm:$0xff]
    %v9394 = vld [vmem:[%s65 + $0x6b0] sm:$0xff]
    %v9395 = vld [vmem:[%s65 + $0x6b8] sm:$0xff]
    %v9396 = vld [vmem:[%s65 + $0x6c0] sm:$0xff]
    %v9397 = vld [vmem:[%s65 + $0x6c8] sm:$0xff]
    %v9398 = vld [vmem:[%s65 + $0x6d0] sm:$0xff]
    %v9399 = vld [vmem:[%s65 + $0x6d8] sm:$0xff]
    %v9400 = vld [vmem:[%s65 + $0x6e0] sm:$0xff]
    %v9401 = vld [vmem:[%s65 + $0x6e8] sm:$0xff]
    %v9402 = vld [vmem:[%s65 + $0x6f0] sm:$0xff]
    %v9403 = vld [vmem:[%s65 + $0x6f8] sm:$0xff]
    %v9404 = vld [vmem:[%s65 + $0x700] sm:$0xff]
    %v9405 = vld [vmem:[%s65 + $0x708] sm:$0xff]
    %v9406 = vld [vmem:[%s65 + $0x710] sm:$0xff]
    %v9407 = vld [vmem:[%s65 + $0x718] sm:$0xff]
    %v9408 = vld [vmem:[%s65 + $0x720] sm:$0xff]
    %v9409 = vld [vmem:[%s65 + $0x728] sm:$0xff]
    %v9410 = vld [vmem:[%s65 + $0x730] sm:$0xff]
    %v9411 = vld [vmem:[%s65 + $0x738] sm:$0xff]
    %v9412 = vld [vmem:[%s65 + $0x740] sm:$0xff]
    %v9413 = vld [vmem:[%s65 + $0x748] sm:$0xff]
    %v9414 = vld [vmem:[%s65 + $0x750] sm:$0xff]
    %v9415 = vld [vmem:[%s65 + $0x758] sm:$0xff]
    %v9416 = vld [vmem:[%s65 + $0x760] sm:$0xff]
    %v9417 = vld [vmem:[%s65 + $0x768] sm:$0xff]
    %v9418 = vld [vmem:[%s65 + $0x770] sm:$0xff]
    %v9419 = vld [vmem:[%s65 + $0x778] sm:$0xff]
    %v9420 = vld [vmem:[%s65 + $0x780] sm:$0xff]
    %v9421 = vld [vmem:[%s65 + $0x788] sm:$0xff]
    %v9422 = vld [vmem:[%s65 + $0x790] sm:$0xff]
    %v9423 = vld [vmem:[%s65 + $0x798] sm:$0xff]
    %v9424 = vld [vmem:[%s65 + $0x7a0] sm:$0xff]
    %v9425 = vld [vmem:[%s65 + $0x7a8] sm:$0xff]
    %v9426 = vld [vmem:[%s65 + $0x7b0] sm:$0xff]
    %v9427 = vld [vmem:[%s65 + $0x7b8] sm:$0xff]
    %v9428 = vld [vmem:[%s65 + $0x7c0] sm:$0xff]
    %v9429 = vld [vmem:[%s65 + $0x7c8] sm:$0xff]
    %v9430 = vld [vmem:[%s65 + $0x7d0] sm:$0xff]
    %v9431 = vld [vmem:[%s65 + $0x7d8] sm:$0xff]
    %v9432 = vld [vmem:[%s65 + $0x7e0] sm:$0xff]
    %v9433 = vld [vmem:[%s65 + $0x7e8] sm:$0xff]
    %v9434 = vld [vmem:[%s65 + $0x7f0] sm:$0xff]
    %v9435 = vld [vmem:[%s65 + $0x7f8] sm:$0xff]
    %v9436 = vld [vmem:[%s65 + $0x800] sm:$0xff]
    %v9437 = vld [vmem:[%s65 + $0x808] sm:$0xff]
    %v9438 = vld [vmem:[%s65 + $0x810] sm:$0xff]
    %v9439 = vld [vmem:[%s65 + $0x818] sm:$0xff]
    %v9440 = vld [vmem:[%s65 + $0x820] sm:$0xff]
    %v9441 = vld [vmem:[%s65 + $0x828] sm:$0xff]
    %v9442 = vld [vmem:[%s65 + $0x830] sm:$0xff]
    %v9443 = vld [vmem:[%s65 + $0x838] sm:$0xff]
    %v9444 = vld [vmem:[%s65 + $0x840] sm:$0xff]
    %v9445 = vld [vmem:[%s65 + $0x848] sm:$0xff]
    %v9446 = vld [vmem:[%s65 + $0x850] sm:$0xff]
    %v9447 = vld [vmem:[%s65 + $0x858] sm:$0xff]
    %v9448 = vld [vmem:[%s65 + $0x860] sm:$0xff]
    %v9449 = vld [vmem:[%s65 + $0x868] sm:$0xff]
    %v9450 = vld [vmem:[%s65 + $0x870] sm:$0xff]
    %v9451 = vld [vmem:[%s65 + $0x878] sm:$0xff]
    %v9452 = vld [vmem:[%s65 + $0x880] sm:$0xff]
    %v9453 = vld [vmem:[%s65 + $0x888] sm:$0xff]
    %v9454 = vld [vmem:[%s65 + $0x890] sm:$0xff]
    %v9455 = vld [vmem:[%s65 + $0x898] sm:$0xff]
    %v9456 = vld [vmem:[%s65 + $0x8a0] sm:$0xff]
    %v9457 = vld [vmem:[%s65 + $0x8a8] sm:$0xff]
    %v9458 = vld [vmem:[%s65 + $0x8b0] sm:$0xff]
    %v9459 = vld [vmem:[%s65 + $0x8b8] sm:$0xff]
    %v9460 = vld [vmem:[%s65 + $0x8c0] sm:$0xff]
    %v9461 = vld [vmem:[%s65 + $0x8c8] sm:$0xff]
    %v9462 = vld [vmem:[%s65 + $0x8d0] sm:$0xff]
    %v9463 = vld [vmem:[%s65 + $0x8d8] sm:$0xff]
    %v9464 = vld [vmem:[%s65 + $0x8e0] sm:$0xff]
    %v9465 = vld [vmem:[%s65 + $0x8e8] sm:$0xff]
    %v9466 = vld [vmem:[%s65 + $0x8f0] sm:$0xff]
    %v9467 = vld [vmem:[%s65 + $0x8f8] sm:$0xff]
    %v9468 = vld [vmem:[%s65 + $0x900] sm:$0xff]
    %v9469 = vld [vmem:[%s65 + $0x908] sm:$0xff]
    %v9470 = vld [vmem:[%s65 + $0x910] sm:$0xff]
    %v9471 = vld [vmem:[%s65 + $0x918] sm:$0xff]
    %v9472 = vld [vmem:[%s65 + $0x920] sm:$0xff]
    %v9473 = vld [vmem:[%s65 + $0x928] sm:$0xff]
    %v9474 = vld [vmem:[%s65 + $0x930] sm:$0xff]
    %v9475 = vld [vmem:[%s65 + $0x938] sm:$0xff]
    %v9476 = vld [vmem:[%s65 + $0x940] sm:$0xff]
    %v9477 = vld [vmem:[%s65 + $0x948] sm:$0xff]
    %v9478 = vld [vmem:[%s65 + $0x950] sm:$0xff]
    %v9479 = vld [vmem:[%s65 + $0x958] sm:$0xff]
    %v9480 = vld [vmem:[%s65 + $0x960] sm:$0xff]
    %v9481 = vld [vmem:[%s65 + $0x968] sm:$0xff]
    %v9482 = vld [vmem:[%s65 + $0x970] sm:$0xff]
    %v9483 = vld [vmem:[%s65 + $0x978] sm:$0xff]
    %v9484 = vld [vmem:[%s65 + $0x980] sm:$0xff]
    %v9485 = vld [vmem:[%s65 + $0x988] sm:$0xff]
    %v9486 = vld [vmem:[%s65 + $0x990] sm:$0xff]
    %v9487 = vld [vmem:[%s65 + $0x998] sm:$0xff]
    %v9488 = vld [vmem:[%s65 + $0x9a0] sm:$0xff]
    %v9489 = vld [vmem:[%s65 + $0x9a8] sm:$0xff]
    %v9490 = vld [vmem:[%s65 + $0x9b0] sm:$0xff]
    %v9491 = vld [vmem:[%s65 + $0x9b8] sm:$0xff]
    %v9492 = vld [vmem:[%s65 + $0x9c0] sm:$0xff]
    %v9493 = vld [vmem:[%s65 + $0x9c8] sm:$0xff]
    %v9494 = vld [vmem:[%s65 + $0x9d0] sm:$0xff]
    %v9495 = vld [vmem:[%s65 + $0x9d8] sm:$0xff]
    %v9496 = vld [vmem:[%s65 + $0x9e0] sm:$0xff]
    %v9497 = vld [vmem:[%s65 + $0x9e8] sm:$0xff]
    %v9498 = vld [vmem:[%s65 + $0x9f0] sm:$0xff]
    %v9499 = vld [vmem:[%s65 + $0x9f8] sm:$0xff]
    %v9500 = vld [vmem:[%s65 + $0xa00] sm:$0xff]
    %v9501 = vld [vmem:[%s65 + $0xa08] sm:$0xff]
    %v9502 = vld [vmem:[%s65 + $0xa10] sm:$0xff]
    %v9503 = vld [vmem:[%s65 + $0xa18] sm:$0xff]
    %v9504 = vld [vmem:[%s65 + $0xa20] sm:$0xff]
    %v9505 = vld [vmem:[%s65 + $0xa28] sm:$0xff]
    %v9506 = vld [vmem:[%s65 + $0xa30] sm:$0xff]
    %v9507 = vld [vmem:[%s65 + $0xa38] sm:$0xff]
    %v9508 = vld [vmem:[%s65 + $0xa40] sm:$0xff]
    %v9509 = vld [vmem:[%s65 + $0xa48] sm:$0xff]
    %v9510 = vld [vmem:[%s65 + $0xa50] sm:$0xff]
    %v9511 = vld [vmem:[%s65 + $0xa58] sm:$0xff]
    %v9512 = vld [vmem:[%s65 + $0xa60] sm:$0xff]
    %v9513 = vld [vmem:[%s65 + $0xa68] sm:$0xff]
    %v9514 = vld [vmem:[%s65 + $0xa70] sm:$0xff]
    %v9515 = vld [vmem:[%s65 + $0xa78] sm:$0xff]
    %v9516 = vld [vmem:[%s65 + $0xa80] sm:$0xff]
    %v9517 = vld [vmem:[%s65 + $0xa88] sm:$0xff]
    %v9518 = vld [vmem:[%s65 + $0xa90] sm:$0xff]
    %v9519 = vld [vmem:[%s65 + $0xa98] sm:$0xff]
    %v9520 = vld [vmem:[%s65 + $0xaa0] sm:$0xff]
    %v9521 = vld [vmem:[%s65 + $0xaa8] sm:$0xff]
    %v9522 = vld [vmem:[%s65 + $0xab0] sm:$0xff]
    %v9523 = vld [vmem:[%s65 + $0xab8] sm:$0xff]
    %v9524 = vld [vmem:[%s65 + $0xac0] sm:$0xff]
    %v9525 = vld [vmem:[%s65 + $0xac8] sm:$0xff]
    %v9526 = vld [vmem:[%s65 + $0xad0] sm:$0xff]
    %v9527 = vld [vmem:[%s65 + $0xad8] sm:$0xff]
    %v9528 = vld [vmem:[%s65 + $0xae0] sm:$0xff]
    %v9529 = vld [vmem:[%s65 + $0xae8] sm:$0xff]
    %v9530 = vld [vmem:[%s65 + $0xaf0] sm:$0xff]
    %v9531 = vld [vmem:[%s65 + $0xaf8] sm:$0xff]
    %v9532 = vld [vmem:[%s65 + $0xb00] sm:$0xff]
    %v9533 = vld [vmem:[%s65 + $0xb08] sm:$0xff]
    %v9534 = vld [vmem:[%s65 + $0xb10] sm:$0xff]
    %v9535 = vld [vmem:[%s65 + $0xb18] sm:$0xff]
    %v9536 = vld [vmem:[%s65 + $0xb20] sm:$0xff]
    %v9537 = vld [vmem:[%s65 + $0xb28] sm:$0xff]
    %v9538 = vld [vmem:[%s65 + $0xb30] sm:$0xff]
    %v9539 = vld [vmem:[%s65 + $0xb38] sm:$0xff]
    %v9540 = vld [vmem:[%s65 + $0xb40] sm:$0xff]
    %v9541 = vld [vmem:[%s65 + $0xb48] sm:$0xff]
    %v9542 = vld [vmem:[%s65 + $0xb50] sm:$0xff]
    %v9543 = vld [vmem:[%s65 + $0xb58] sm:$0xff]
    %v9544 = vld [vmem:[%s65 + $0xb60] sm:$0xff]
    %v9545 = vld [vmem:[%s65 + $0xb68] sm:$0xff]
    %v9546 = vld [vmem:[%s65 + $0xb70] sm:$0xff]
    %v9547 = vld [vmem:[%s65 + $0xb78] sm:$0xff]
    %v9548 = vld [vmem:[%s65 + $0xb80] sm:$0xff]
    %v9549 = vld [vmem:[%s65 + $0xb88] sm:$0xff]
    %v9550 = vld [vmem:[%s65 + $0xb90] sm:$0xff]
    %v9551 = vld [vmem:[%s65 + $0xb98] sm:$0xff]
    %v9552 = vld [vmem:[%s65 + $0xba0] sm:$0xff]
    %v9553 = vld [vmem:[%s65 + $0xba8] sm:$0xff]
    %v9554 = vld [vmem:[%s65 + $0xbb0] sm:$0xff]
    %v9555 = vld [vmem:[%s65 + $0xbb8] sm:$0xff]
    %v9556 = vld [vmem:[%s65 + $0xbc0] sm:$0xff]
    %v9557 = vld [vmem:[%s65 + $0xbc8] sm:$0xff]
    %v9558 = vld [vmem:[%s65 + $0xbd0] sm:$0xff]
    %v9559 = vld [vmem:[%s65 + $0xbd8] sm:$0xff]
    %v9560 = vld [vmem:[%s65 + $0xbe0] sm:$0xff]
    %v9561 = vld [vmem:[%s65 + $0xbe8] sm:$0xff]
    %v9562 = vld [vmem:[%s65 + $0xbf0] sm:$0xff]
    %v9563 = vld [vmem:[%s65 + $0xbf8] sm:$0xff]
    %v9564 = vld [vmem:[%s65 + $0xc00] sm:$0xff]
    %v9565 = vld [vmem:[%s65 + $0xc08] sm:$0xff]
    %v9566 = vld [vmem:[%s65 + $0xc10] sm:$0xff]
    %v9567 = vld [vmem:[%s65 + $0xc18] sm:$0xff]
    %v9568 = vld [vmem:[%s65 + $0xc20] sm:$0xff]
    %v9569 = vld [vmem:[%s65 + $0xc28] sm:$0xff]
    %v9570 = vld [vmem:[%s65 + $0xc30] sm:$0xff]
    %v9571 = vld [vmem:[%s65 + $0xc38] sm:$0xff]
    %v9572 = vld [vmem:[#allocation39] sm:$0x3]
    %v9574 = vlaneseq
    %v9575 = vshrl.u32 %v9574, 7
    %v9576 = vsub.s32 0, %v9575
    %v9577 = vrot.slane %v9572, %v9576
    %v9578 = vlaneseq
    %v9579 = vshrl.u32 %v9578, 7
    %v9580 = vsub.s32 1, %v9579
    %v9581 = vrot.slane %v9572, %v9580
    %v9585 = vsel %vm6936, %v9179, 0
    %9587 = vmatprep.subr.mxu0 %v9181
    %9588 = vmatpush1.msra.mxu0 %v9180
    %9589 = vmatprep.subr.mxu0 %v9183
    %9590 = vmatpush1.msra.mxu0 %v9182
    %9591 = vmatprep.subr.mxu0 %v9185
    %9592 = vmatpush1.msra.mxu0 %v9184
    %9593 = vmatprep.subr.mxu0 %v9187
    %9594 = vmatpush1.msra.mxu0 %v9186
    %9595 = vmatprep.subr.mxu0 %v9189
    %9596 = vmatpush1.msra.mxu0 %v9188
    %9597 = vmatprep.subr.mxu0 %v9191
    %9598 = vmatpush1.msra.mxu0 %v9190
    %9599 = vmatprep.subr.mxu0 %v9193
    %9600 = vmatpush1.msra.mxu0 %v9192
    %9601 = vmatprep.subr.mxu0 %v9195
    %9602 = vmatpush1.msra.mxu0 %v9194
    %9603 = vmatprep.subr.mxu0 %v9197
    %9604 = vmatpush1.msra.mxu0 %v9196
    %9605 = vmatprep.subr.mxu0 %v9199
    %9606 = vmatpush1.msra.mxu0 %v9198
    %9607 = vmatprep.subr.mxu0 %v9201
    %9608 = vmatpush1.msra.mxu0 %v9200
    %9609 = vmatprep.subr.mxu0 %v9203
    %9610 = vmatpush1.msra.mxu0 %v9202
    %9611 = vmatprep.subr.mxu0 %v9205
    %9612 = vmatpush1.msra.mxu0 %v9204
    %9613 = vmatprep.subr.mxu0 %v9207
    %9614 = vmatpush1.msra.mxu0 %v9206
    %9615 = vmatprep.subr.mxu0 %v9209
    %9616 = vmatpush1.msra.mxu0 %v9208
    %9617 = vmatprep.subr.mxu0 %v9211
    %9618 = vmatpush1.msra.mxu0 %v9210
    %9619 = vmatprep.subr.mxu0 %v9213
    %9620 = vmatpush1.msra.mxu0 %v9212
    %9621 = vmatprep.subr.mxu0 %v9215
    %9622 = vmatpush1.msra.mxu0 %v9214
    %9623 = vmatprep.subr.mxu0 %v9217
    %9624 = vmatpush1.msra.mxu0 %v9216
    %9625 = vmatprep.subr.mxu0 %v9219
    %9626 = vmatpush1.msra.mxu0 %v9218
    %9627 = vmatprep.subr.mxu0 %v9221
    %9628 = vmatpush1.msra.mxu0 %v9220
    %9629 = vmatprep.subr.mxu0 %v9223
    %9630 = vmatpush1.msra.mxu0 %v9222
    %9631 = vmatprep.subr.mxu0 %v9225
    %9632 = vmatpush1.msra.mxu0 %v9224
    %9633 = vmatprep.subr.mxu0 %v9227
    %9634 = vmatpush1.msra.mxu0 %v9226
    %9635 = vmatprep.subr.mxu0 %v9229
    %9636 = vmatpush1.msra.mxu0 %v9228
    %9637 = vmatprep.subr.mxu0 %v9231
    %9638 = vmatpush1.msra.mxu0 %v9230
    %9639 = vmatprep.subr.mxu0 %v9233
    %9640 = vmatpush1.msra.mxu0 %v9232
    %9641 = vmatprep.subr.mxu0 %v9235
    %9642 = vmatpush1.msra.mxu0 %v9234
    %9643 = vmatprep.subr.mxu0 %v9237
    %9644 = vmatpush1.msra.mxu0 %v9236
    %9645 = vmatprep.subr.mxu0 %v9239
    %9646 = vmatpush1.msra.mxu0 %v9238
    %9647 = vmatprep.subr.mxu0 %v9241
    %9648 = vmatpush1.msra.mxu0 %v9240
    %9649 = vmatprep.subr.mxu0 %v9243
    %9650 = vmatpush1.msra.mxu0 %v9242
    %9651 = vmatprep.mubr.f32.mxu0 %v9168
    %9652 = vmatmul.mubr.f32.gmra.mrb[0].mxu0 %v9167
    %v9653 = vpop.f32.mrb[0].mxu0
    %v9654 = vadd.f32 %v9577, %v9653
    %v9655 = vpop.f32.mrb[0].mxu0
    %v9656 = vadd.f32 %v9581, %v9655
    %9657 = vdwg.mxu0
    %9658 = vmatprep.subr.mxu0 %v9245
    %9659 = vmatpush1.msra.mxu0 %v9244
    %9660 = vmatprep.subr.mxu0 %v9247
    %9661 = vmatpush1.msra.mxu0 %v9246
    %9662 = vmatprep.subr.mxu0 %v9249
    %9663 = vmatpush1.msra.mxu0 %v9248
    %9664 = vmatprep.subr.mxu0 %v9251
    %9665 = vmatpush1.msra.mxu0 %v9250
    %9666 = vmatprep.subr.mxu0 %v9253
    %9667 = vmatpush1.msra.mxu0 %v9252
    %9668 = vmatprep.subr.mxu0 %v9255
    %9669 = vmatpush1.msra.mxu0 %v9254
    %9670 = vmatprep.subr.mxu0 %v9257
    %9671 = vmatpush1.msra.mxu0 %v9256
    %9672 = vmatprep.subr.mxu0 %v9259
    %9673 = vmatpush1.msra.mxu0 %v9258
    %9674 = vmatprep.subr.mxu0 %v9261
    %9675 = vmatpush1.msra.mxu0 %v9260
    %9676 = vmatprep.subr.mxu0 %v9263
    %9677 = vmatpush1.msra.mxu0 %v9262
    %9678 = vmatprep.subr.mxu0 %v9265
    %9679 = vmatpush1.msra.mxu0 %v9264
    %9680 = vmatprep.subr.mxu0 %v9267
    %9681 = vmatpush1.msra.mxu0 %v9266
    %9682 = vmatprep.subr.mxu0 %v9269
    %9683 = vmatpush1.msra.mxu0 %v9268
    %9684 = vmatprep.subr.mxu0 %v9271
    %9685 = vmatpush1.msra.mxu0 %v9270
    %9686 = vmatprep.subr.mxu0 %v9273
    %9687 = vmatpush1.msra.mxu0 %v9272
    %9688 = vmatprep.subr.mxu0 %v9275
    %9689 = vmatpush1.msra.mxu0 %v9274
    %9690 = vmatprep.subr.mxu0 %v9277
    %9691 = vmatpush1.msra.mxu0 %v9276
    %9692 = vmatprep.subr.mxu0 %v9279
    %9693 = vmatpush1.msra.mxu0 %v9278
    %9694 = vmatprep.subr.mxu0 %v9281
    %9695 = vmatpush1.msra.mxu0 %v9280
    %9696 = vmatprep.subr.mxu0 %v9283
    %9697 = vmatpush1.msra.mxu0 %v9282
    %9698 = vmatprep.subr.mxu0 %v9285
    %9699 = vmatpush1.msra.mxu0 %v9284
    %9700 = vmatprep.subr.mxu0 %v9287
    %9701 = vmatpush1.msra.mxu0 %v9286
    %9702 = vmatprep.subr.mxu0 %v9289
    %9703 = vmatpush1.msra.mxu0 %v9288
    %9704 = vmatprep.subr.mxu0 %v9291
    %9705 = vmatpush1.msra.mxu0 %v9290
    %9706 = vmatprep.subr.mxu0 %v9293
    %9707 = vmatpush1.msra.mxu0 %v9292
    %9708 = vmatprep.subr.mxu0 %v9295
    %9709 = vmatpush1.msra.mxu0 %v9294
    %9710 = vmatprep.subr.mxu0 %v9297
    %9711 = vmatpush1.msra.mxu0 %v9296
    %9712 = vmatprep.subr.mxu0 %v9299
    %9713 = vmatpush1.msra.mxu0 %v9298
    %9714 = vmatprep.subr.mxu0 %v9301
    %9715 = vmatpush1.msra.mxu0 %v9300
    %9716 = vmatprep.subr.mxu0 %v9303
    %9717 = vmatpush1.msra.mxu0 %v9302
    %9718 = vmatprep.subr.mxu0 %v9305
    %9719 = vmatpush1.msra.mxu0 %v9304
    %9720 = vmatprep.subr.mxu0 %v9307
    %9721 = vmatpush1.msra.mxu0 %v9306
    %9722 = vmatprep.mubr.f32.mxu0 %v9170
    %9723 = vmatmul.mubr.f32.gmra.mrb[0].mxu0 %v9169
    %v9724 = vpop.f32.mrb[0].mxu0
    %v9725 = vadd.f32 %v9654, %v9724
    %v9726 = vpop.f32.mrb[0].mxu0
    %v9727 = vadd.f32 %v9656, %v9726
    %9728 = vdwg.mxu0
    %9729 = vmatprep.subr.mxu0 %v9309
    %9730 = vmatpush1.msra.mxu0 %v9308
    %9731 = vmatprep.subr.mxu0 %v9311
    %9732 = vmatpush1.msra.mxu0 %v9310
    %9733 = vmatprep.subr.mxu0 %v9313
    %9734 = vmatpush1.msra.mxu0 %v9312
    %9735 = vmatprep.subr.mxu0 %v9315
    %9736 = vmatpush1.msra.mxu0 %v9314
    %9737 = vmatprep.subr.mxu0 %v9317
    %9738 = vmatpush1.msra.mxu0 %v9316
    %9739 = vmatprep.subr.mxu0 %v9319
    %9740 = vmatpush1.msra.mxu0 %v9318
    %9741 = vmatprep.subr.mxu0 %v9321
    %9742 = vmatpush1.msra.mxu0 %v9320
    %9743 = vmatprep.subr.mxu0 %v9323
    %9744 = vmatpush1.msra.mxu0 %v9322
    %9745 = vmatprep.subr.mxu0 %v9325
    %9746 = vmatpush1.msra.mxu0 %v9324
    %9747 = vmatprep.subr.mxu0 %v9327
    %9748 = vmatpush1.msra.mxu0 %v9326
    %9749 = vmatprep.subr.mxu0 %v9329
    %9750 = vmatpush1.msra.mxu0 %v9328
    %9751 = vmatprep.subr.mxu0 %v9331
    %9752 = vmatpush1.msra.mxu0 %v9330
    %9753 = vmatprep.subr.mxu0 %v9333
    %9754 = vmatpush1.msra.mxu0 %v9332
    %9755 = vmatprep.subr.mxu0 %v9335
    %9756 = vmatpush1.msra.mxu0 %v9334
    %9757 = vmatprep.subr.mxu0 %v9337
    %9758 = vmatpush1.msra.mxu0 %v9336
    %9759 = vmatprep.subr.mxu0 %v9339
    %9760 = vmatpush1.msra.mxu0 %v9338
    %9761 = vmatprep.subr.mxu0 %v9341
    %9762 = vmatpush1.msra.mxu0 %v9340
    %9763 = vmatprep.subr.mxu0 %v9343
    %9764 = vmatpush1.msra.mxu0 %v9342
    %9765 = vmatprep.subr.mxu0 %v9345
    %9766 = vmatpush1.msra.mxu0 %v9344
    %9767 = vmatprep.subr.mxu0 %v9347
    %9768 = vmatpush1.msra.mxu0 %v9346
    %9769 = vmatprep.subr.mxu0 %v9349
    %9770 = vmatpush1.msra.mxu0 %v9348
    %9771 = vmatprep.subr.mxu0 %v9351
    %9772 = vmatpush1.msra.mxu0 %v9350
    %9773 = vmatprep.subr.mxu0 %v9353
    %9774 = vmatpush1.msra.mxu0 %v9352
    %9775 = vmatprep.subr.mxu0 %v9355
    %9776 = vmatpush1.msra.mxu0 %v9354
    %9777 = vmatprep.subr.mxu0 %v9357
    %9778 = vmatpush1.msra.mxu0 %v9356
    %9779 = vmatprep.subr.mxu0 %v9359
    %9780 = vmatpush1.msra.mxu0 %v9358
    %9781 = vmatprep.subr.mxu0 %v9361
    %9782 = vmatpush1.msra.mxu0 %v9360
    %9783 = vmatprep.subr.mxu0 %v9363
    %9784 = vmatpush1.msra.mxu0 %v9362
    %9785 = vmatprep.subr.mxu0 %v9365
    %9786 = vmatpush1.msra.mxu0 %v9364
    %9787 = vmatprep.subr.mxu0 %v9367
    %9788 = vmatpush1.msra.mxu0 %v9366
    %9789 = vmatprep.subr.mxu0 %v9369
    %9790 = vmatpush1.msra.mxu0 %v9368
    %9791 = vmatprep.subr.mxu0 %v9371
    %9792 = vmatpush1.msra.mxu0 %v9370
    %9793 = vmatprep.mubr.f32.mxu0 %v9172
    %9794 = vmatmul.mubr.f32.gmra.mrb[0].mxu0 %v9171
    %v9795 = vpop.f32.mrb[0].mxu0
    %v9796 = vadd.f32 %v9725, %v9795
    %v9797 = vpop.f32.mrb[0].mxu0
    %v9798 = vadd.f32 %v9727, %v9797
    %9799 = vdwg.mxu0
    %9800 = vmatprep.subr.mxu0 %v9373
    %9801 = vmatpush1.msra.mxu0 %v9372
    %9802 = vmatprep.subr.mxu0 %v9375
    %9803 = vmatpush1.msra.mxu0 %v9374
    %9804 = vmatprep.subr.mxu0 %v9377
    %9805 = vmatpush1.msra.mxu0 %v9376
    %9806 = vmatprep.subr.mxu0 %v9379
    %9807 = vmatpush1.msra.mxu0 %v9378
    %9808 = vmatprep.subr.mxu0 %v9381
    %9809 = vmatpush1.msra.mxu0 %v9380
    %9810 = vmatprep.subr.mxu0 %v9383
    %9811 = vmatpush1.msra.mxu0 %v9382
    %9812 = vmatprep.subr.mxu0 %v9385
    %9813 = vmatpush1.msra.mxu0 %v9384
    %9814 = vmatprep.subr.mxu0 %v9387
    %9815 = vmatpush1.msra.mxu0 %v9386
    %9816 = vmatprep.subr.mxu0 %v9389
    %9817 = vmatpush1.msra.mxu0 %v9388
    %9818 = vmatprep.subr.mxu0 %v9391
    %9819 = vmatpush1.msra.mxu0 %v9390
    %9820 = vmatprep.subr.mxu0 %v9393
    %9821 = vmatpush1.msra.mxu0 %v9392
    %9822 = vmatprep.subr.mxu0 %v9395
    %9823 = vmatpush1.msra.mxu0 %v9394
    %9824 = vmatprep.subr.mxu0 %v9397
    %9825 = vmatpush1.msra.mxu0 %v9396
    %9826 = vmatprep.subr.mxu0 %v9399
    %9827 = vmatpush1.msra.mxu0 %v9398
    %9828 = vmatprep.subr.mxu0 %v9401
    %9829 = vmatpush1.msra.mxu0 %v9400
    %9830 = vmatprep.subr.mxu0 %v9403
    %9831 = vmatpush1.msra.mxu0 %v9402
    %9832 = vmatprep.subr.mxu0 %v9405
    %9833 = vmatpush1.msra.mxu0 %v9404
    %9834 = vmatprep.subr.mxu0 %v9407
    %9835 = vmatpush1.msra.mxu0 %v9406
    %9836 = vmatprep.subr.mxu0 %v9409
    %9837 = vmatpush1.msra.mxu0 %v9408
    %9838 = vmatprep.subr.mxu0 %v9411
    %9839 = vmatpush1.msra.mxu0 %v9410
    %9840 = vmatprep.subr.mxu0 %v9413
    %9841 = vmatpush1.msra.mxu0 %v9412
    %9842 = vmatprep.subr.mxu0 %v9415
    %9843 = vmatpush1.msra.mxu0 %v9414
    %9844 = vmatprep.subr.mxu0 %v9417
    %9845 = vmatpush1.msra.mxu0 %v9416
    %9846 = vmatprep.subr.mxu0 %v9419
    %9847 = vmatpush1.msra.mxu0 %v9418
    %9848 = vmatprep.subr.mxu0 %v9421
    %9849 = vmatpush1.msra.mxu0 %v9420
    %9850 = vmatprep.subr.mxu0 %v9423
    %9851 = vmatpush1.msra.mxu0 %v9422
    %9852 = vmatprep.subr.mxu0 %v9425
    %9853 = vmatpush1.msra.mxu0 %v9424
    %9854 = vmatprep.subr.mxu0 %v9427
    %9855 = vmatpush1.msra.mxu0 %v9426
    %9856 = vmatprep.subr.mxu0 %v9429
    %9857 = vmatpush1.msra.mxu0 %v9428
    %9858 = vmatprep.subr.mxu0 %v9431
    %9859 = vmatpush1.msra.mxu0 %v9430
    %9860 = vmatprep.subr.mxu0 %v9433
    %9861 = vmatpush1.msra.mxu0 %v9432
    %9862 = vmatprep.subr.mxu0 %v9435
    %9863 = vmatpush1.msra.mxu0 %v9434
    %9864 = vmatprep.mubr.f32.mxu0 %v9174
    %9865 = vmatmul.mubr.f32.gmra.mrb[0].mxu0 %v9173
    %v9866 = vpop.f32.mrb[0].mxu0
    %v9867 = vadd.f32 %v9796, %v9866
    %v9868 = vpop.f32.mrb[0].mxu0
    %v9869 = vadd.f32 %v9798, %v9868
    %9870 = vdwg.mxu0
    %9871 = vmatprep.subr.mxu0 %v9437
    %9872 = vmatpush1.msra.mxu0 %v9436
    %9873 = vmatprep.subr.mxu0 %v9439
    %9874 = vmatpush1.msra.mxu0 %v9438
    %9875 = vmatprep.subr.mxu0 %v9441
    %9876 = vmatpush1.msra.mxu0 %v9440
    %9877 = vmatprep.subr.mxu0 %v9443
    %9878 = vmatpush1.msra.mxu0 %v9442
    %9879 = vmatprep.subr.mxu0 %v9445
    %9880 = vmatpush1.msra.mxu0 %v9444
    %9881 = vmatprep.subr.mxu0 %v9447
    %9882 = vmatpush1.msra.mxu0 %v9446
    %9883 = vmatprep.subr.mxu0 %v9449
    %9884 = vmatpush1.msra.mxu0 %v9448
    %9885 = vmatprep.subr.mxu0 %v9451
    %9886 = vmatpush1.msra.mxu0 %v9450
    %9887 = vmatprep.subr.mxu0 %v9453
    %9888 = vmatpush1.msra.mxu0 %v9452
    %9889 = vmatprep.subr.mxu0 %v9455
    %9890 = vmatpush1.msra.mxu0 %v9454
    %9891 = vmatprep.subr.mxu0 %v9457
    %9892 = vmatpush1.msra.mxu0 %v9456
    %9893 = vmatprep.subr.mxu0 %v9459
    %9894 = vmatpush1.msra.mxu0 %v9458
    %9895 = vmatprep.subr.mxu0 %v9461
    %9896 = vmatpush1.msra.mxu0 %v9460
    %9897 = vmatprep.subr.mxu0 %v9463
    %9898 = vmatpush1.msra.mxu0 %v9462
    %9899 = vmatprep.subr.mxu0 %v9465
    %9900 = vmatpush1.msra.mxu0 %v9464
    %9901 = vmatprep.subr.mxu0 %v9467
    %9902 = vmatpush1.msra.mxu0 %v9466
    %9903 = vmatprep.subr.mxu0 %v9469
    %9904 = vmatpush1.msra.mxu0 %v9468
    %9905 = vmatprep.subr.mxu0 %v9471
    %9906 = vmatpush1.msra.mxu0 %v9470
    %9907 = vmatprep.subr.mxu0 %v9473
    %9908 = vmatpush1.msra.mxu0 %v9472
    %9909 = vmatprep.subr.mxu0 %v9475
    %9910 = vmatpush1.msra.mxu0 %v9474
    %9911 = vmatprep.subr.mxu0 %v9477
    %9912 = vmatpush1.msra.mxu0 %v9476
    %9913 = vmatprep.subr.mxu0 %v9479
    %9914 = vmatpush1.msra.mxu0 %v9478
    %9915 = vmatprep.subr.mxu0 %v9481
    %9916 = vmatpush1.msra.mxu0 %v9480
    %9917 = vmatprep.subr.mxu0 %v9483
    %9918 = vmatpush1.msra.mxu0 %v9482
    %9919 = vmatprep.subr.mxu0 %v9485
    %9920 = vmatpush1.msra.mxu0 %v9484
    %9921 = vmatprep.subr.mxu0 %v9487
    %9922 = vmatpush1.msra.mxu0 %v9486
    %9923 = vmatprep.subr.mxu0 %v9489
    %9924 = vmatpush1.msra.mxu0 %v9488
    %9925 = vmatprep.subr.mxu0 %v9491
    %9926 = vmatpush1.msra.mxu0 %v9490
    %9927 = vmatprep.subr.mxu0 %v9493
    %9928 = vmatpush1.msra.mxu0 %v9492
    %9929 = vmatprep.subr.mxu0 %v9495
    %9930 = vmatpush1.msra.mxu0 %v9494
    %9931 = vmatprep.subr.mxu0 %v9497
    %9932 = vmatpush1.msra.mxu0 %v9496
    %9933 = vmatprep.subr.mxu0 %v9499
    %9934 = vmatpush1.msra.mxu0 %v9498
    %9935 = vmatprep.mubr.f32.mxu0 %v9176
    %9936 = vmatmul.mubr.f32.gmra.mrb[0].mxu0 %v9175
    %v9937 = vpop.f32.mrb[0].mxu0
    %v9938 = vadd.f32 %v9867, %v9937
    %v9939 = vpop.f32.mrb[0].mxu0
    %v9940 = vadd.f32 %v9869, %v9939
    %9941 = vdwg.mxu0
    %9942 = vmatprep.subr.mxu0 %v9501
    %9943 = vmatpush1.msra.mxu0 %v9500
    %9944 = vmatprep.subr.mxu0 %v9503
    %9945 = vmatpush1.msra.mxu0 %v9502
    %9946 = vmatprep.subr.mxu0 %v9505
    %9947 = vmatpush1.msra.mxu0 %v9504
    %9948 = vmatprep.subr.mxu0 %v9507
    %9949 = vmatpush1.msra.mxu0 %v9506
    %9950 = vmatprep.subr.mxu0 %v9509
    %9951 = vmatpush1.msra.mxu0 %v9508
    %9952 = vmatprep.subr.mxu0 %v9511
    %9953 = vmatpush1.msra.mxu0 %v9510
    %9954 = vmatprep.subr.mxu0 %v9513
    %9955 = vmatpush1.msra.mxu0 %v9512
    %9956 = vmatprep.subr.mxu0 %v9515
    %9957 = vmatpush1.msra.mxu0 %v9514
    %9958 = vmatprep.subr.mxu0 %v9517
    %9959 = vmatpush1.msra.mxu0 %v9516
    %9960 = vmatprep.subr.mxu0 %v9519
    %9961 = vmatpush1.msra.mxu0 %v9518
    %9962 = vmatprep.subr.mxu0 %v9521
    %9963 = vmatpush1.msra.mxu0 %v9520
    %9964 = vmatprep.subr.mxu0 %v9523
    %9965 = vmatpush1.msra.mxu0 %v9522
    %9966 = vmatprep.subr.mxu0 %v9525
    %9967 = vmatpush1.msra.mxu0 %v9524
    %9968 = vmatprep.subr.mxu0 %v9527
    %9969 = vmatpush1.msra.mxu0 %v9526
    %9970 = vmatprep.subr.mxu0 %v9529
    %9971 = vmatpush1.msra.mxu0 %v9528
    %9972 = vmatprep.subr.mxu0 %v9531
    %9973 = vmatpush1.msra.mxu0 %v9530
    %9974 = vmatprep.subr.mxu0 %v9533
    %9975 = vmatpush1.msra.mxu0 %v9532
    %9976 = vmatprep.subr.mxu0 %v9535
    %9977 = vmatpush1.msra.mxu0 %v9534
    %9978 = vmatprep.subr.mxu0 %v9537
    %9979 = vmatpush1.msra.mxu0 %v9536
    %9980 = vmatprep.subr.mxu0 %v9539
    %9981 = vmatpush1.msra.mxu0 %v9538
    %9982 = vmatprep.subr.mxu0 %v9541
    %9983 = vmatpush1.msra.mxu0 %v9540
    %9984 = vmatprep.subr.mxu0 %v9543
    %9985 = vmatpush1.msra.mxu0 %v9542
    %9986 = vmatprep.subr.mxu0 %v9545
    %9987 = vmatpush1.msra.mxu0 %v9544
    %9988 = vmatprep.subr.mxu0 %v9547
    %9989 = vmatpush1.msra.mxu0 %v9546
    %9990 = vmatprep.subr.mxu0 %v9549
    %9991 = vmatpush1.msra.mxu0 %v9548
    %9992 = vmatprep.subr.mxu0 %v9551
    %9993 = vmatpush1.msra.mxu0 %v9550
    %9994 = vmatprep.subr.mxu0 %v9553
    %9995 = vmatpush1.msra.mxu0 %v9552
    %9996 = vmatprep.subr.mxu0 %v9555
    %9997 = vmatpush1.msra.mxu0 %v9554
    %9998 = vmatprep.subr.mxu0 %v9557
    %9999 = vmatpush1.msra.mxu0 %v9556
    %10000 = vmatprep.subr.mxu0 %v9559
    %10001 = vmatpush1.msra.mxu0 %v9558
    %10002 = vmatprep.subr.mxu0 %v9561
    %10003 = vmatpush1.msra.mxu0 %v9560
    %10004 = vmatprep.subr.mxu0 %v9563
    %10005 = vmatpush1.msra.mxu0 %v9562
    %10006 = vmatprep.mubr.f32.mxu0 %v9178
    %10007 = vmatmul.mubr.f32.gmra.mrb[0].mxu0 %v9177
    %v10008 = vpop.f32.mrb[0].mxu0
    %v10009 = vadd.f32 %v9938, %v10008
    %v10010 = vpop.f32.mrb[0].mxu0
    %v10011 = vadd.f32 %v9940, %v10010
    %10012 = vdwg.mxu0
    %10013 = vmatprep.subr.mxu0 %v9565
    %10014 = vmatpush1.msra.mxu0 %v9564
    %10015 = vmatprep.subr.mxu0 %v9567
    %10016 = vmatpush1.msra.mxu0 %v9566
    %10017 = vmatprep.subr.mxu0 %v9569
    %10018 = vmatpush1.msra.mxu0 %v9568
    %10019 = vmatprep.subr.mxu0 %v9571
    %10020 = vmatpush1.msra.mxu0 %v9570
    %10021 = vmatprep.subr.mxu0 0.0
    %10022 = vmatpush1.msra.mxu0 0.0
    %10023 = vmatprep.subr.mxu0 0.0
    %10024 = vmatpush1.msra.mxu0 0.0
    %10025 = vmatprep.subr.mxu0 0.0
    %10026 = vmatpush1.msra.mxu0 0.0
    %10027 = vmatprep.subr.mxu0 0.0
    %10028 = vmatpush1.msra.mxu0 0.0
    %10029 = vmatprep.subr.mxu0 0.0
    %10030 = vmatpush1.msra.mxu0 0.0
    %10031 = vmatprep.subr.mxu0 0.0
    %10032 = vmatpush1.msra.mxu0 0.0
    %10033 = vmatprep.subr.mxu0 0.0
    %10034 = vmatpush1.msra.mxu0 0.0
    %10035 = vmatprep.subr.mxu0 0.0
    %10036 = vmatpush1.msra.mxu0 0.0
    %10037 = vmatprep.subr.mxu0 0.0
    %10038 = vmatpush1.msra.mxu0 0.0
    %10039 = vmatprep.subr.mxu0 0.0
    %10040 = vmatpush1.msra.mxu0 0.0
    %10041 = vmatprep.subr.mxu0 0.0
    %10042 = vmatpush1.msra.mxu0 0.0
    %10043 = vmatprep.subr.mxu0 0.0
    %10044 = vmatpush1.msra.mxu0 0.0
    %10045 = vmatprep.subr.mxu0 0.0
    %10046 = vmatpush1.msra.mxu0 0.0
    %10047 = vmatprep.subr.mxu0 0.0
    %10048 = vmatpush1.msra.mxu0 0.0
    %10049 = vmatprep.subr.mxu0 0.0
    %10050 = vmatpush1.msra.mxu0 0.0
    %10051 = vmatprep.subr.mxu0 0.0
    %10052 = vmatpush1.msra.mxu0 0.0
    %10053 = vmatprep.subr.mxu0 0.0
    %10054 = vmatpush1.msra.mxu0 0.0
    %10055 = vmatprep.subr.mxu0 0.0
    %10056 = vmatpush1.msra.mxu0 0.0
    %10057 = vmatprep.subr.mxu0 0.0
    %10058 = vmatpush1.msra.mxu0 0.0
    %10059 = vmatprep.subr.mxu0 0.0
    %10060 = vmatpush1.msra.mxu0 0.0
    %10061 = vmatprep.subr.mxu0 0.0
    %10062 = vmatpush1.msra.mxu0 0.0
    %10063 = vmatprep.subr.mxu0 0.0
    %10064 = vmatpush1.msra.mxu0 0.0
    %10065 = vmatprep.subr.mxu0 0.0
    %10066 = vmatpush1.msra.mxu0 0.0
    %10067 = vmatprep.subr.mxu0 0.0
    %10068 = vmatpush1.msra.mxu0 0.0
    %10069 = vmatprep.subr.mxu0 0.0
    %10070 = vmatpush1.msra.mxu0 0.0
    %10071 = vmatprep.subr.mxu0 0.0
    %10072 = vmatpush1.msra.mxu0 0.0
    %10073 = vmatprep.subr.mxu0 0.0
    %10074 = vmatpush1.msra.mxu0 0.0
    %10075 = vmatprep.subr.mxu0 0.0
    %10076 = vmatpush1.msra.mxu0 0.0
    %10077 = vmatprep.mubr.f32.mxu0 0.0
    %10078 = vmatmul.mubr.f32.gmra.mrb[0].mxu0 %v9585
    %v10079 = vpop.f32.mrb[0].mxu0
    %v10080 = vadd.f32 %v10009, %v10079
    %v10081 = vpop.f32.mrb[0].mxu0
    %v10082 = vadd.f32 %v10011, %v10081
    %10083 = vdwg.mxu0
    %v10086 = vcombine.low %v10080, %v10082
    %v10088 = vunpack.c.l.s4 1983009808
    %v10089 = vunpack.c.0.s8 %v10088
    %v10090 = vlaneseq
    %v10091 = vshrl.u32 %v10090, 7
    %v10092 = vsub.s32 %v10089, %v10091
    %v10093 = vrot.slane %v10086, %v10092
    %10095 = vst [vmem:[%s69] sm:$0xf] %v10093
    // Predicated region
    $region238: #{elev_map_enc_dec.1} parent=1 // pred_check
      _
    $region239: #{elev_map_enc_dec.1} parent=1 // pred_check_branch
      %10097 = sbr.rel (0) target = $region241
    $region240: #{elev_map_enc_dec.1} parent=1 // pred_region
      _
    $region241: #{elev_map_enc_dec.1} parent=1 // pred_fallthru
      _
    // Predicated region
    $region242: #{elev_map_enc_dec.1} parent=1 // pred_check
      _
    $region243: #{elev_map_enc_dec.1} parent=1 // pred_check_branch
      %10099 = sbr.rel (0) target = $region245
    $region244: #{elev_map_enc_dec.1} parent=1 // pred_region
      _
    $region245: #{elev_map_enc_dec.1} parent=1 // pred_fallthru
      _
    %10100 = vsyncpa [#allocation3], 1
    %10101 = vsyncpa [#allocation5], 1
    %10102 = vsyncpa [#allocation8], 1
    %10103 = vsyncpa [#allocation11], 1
    %10104 = vsyncpa [#allocation14], 1
    %10105 = vsyncpa [#allocation17], 1
    %10106 = vsyncpa [#allocation20], 1
    %10107 = vsyncpa [#allocation23], 1
    %10108 = vsyncpa [#allocation26], 1
    %10109 = vsyncpa [#allocation29], 1
    %10110 = vsyncpa [#allocation32], 1
    %10111 = vsyncpa [#allocation35], 1
    %10112 = vsyncpa [#allocation38], 1

</llo_original>
